<compile_context>
chip_gen: v6e
topology: v6e:2x2x1
jax: 0.10.0
libtpu: 0.0.40
codegen_flags: <defaults>
</compile_context>

<pallas_src>
import functools

import jax
import jax.numpy as jnp
from jax.experimental import pallas as pl
from jax.experimental.pallas import tpu as pltpu


# ------------------- fused im2col-GEMM + epilogue kernel -------------------

def _make_conv_gemm_kernel(mode):
    """mode: 'bn_relu' (bias + BatchNorm batch-stats + ReLU) or 'sigmoid'."""

    def kernel(a_ref, b_ref, bias_ref, gamma_ref, beta_ref, o_ref, acc_ref):
        k = pl.program_id(0)

        @pl.when(k == 0)
        def _():
            acc_ref[...] = jnp.zeros_like(acc_ref)

        acc_ref[...] += jnp.dot(a_ref[...], b_ref[...],
                                preferred_element_type=jnp.float32)

        @pl.when(k == pl.num_programs(0) - 1)
        def _():
            y = acc_ref[...] + bias_ref[...]                    # (M, Cout) f32
            if mode == "bn_relu":
                # BatchNorm3d training-mode stats: per-channel (lane) mean and
                # biased variance over the M = N*D*H*W rows, in one pass.
                m = y.shape[0]
                mean = jnp.sum(y, axis=0, keepdims=True) * (1.0 / m)
                mean_sq = jnp.sum(y * y, axis=0, keepdims=True) * (1.0 / m)
                var = jnp.maximum(mean_sq - mean * mean, 0.0)
                y = (y - mean) * jax.lax.rsqrt(var + 1e-5)
                y = y * gamma_ref[...] + beta_ref[...]
                y = jnp.maximum(y, 0.0)
            else:  # 'sigmoid' -- numerically stable, exact division
                t = jnp.exp(-jnp.abs(y))
                y = jnp.where(y >= 0.0, 1.0 / (1.0 + t), t / (1.0 + t))
            o_ref[...] = y.astype(o_ref.dtype)

    return kernel


def conv_gemm_fused(a, b, bias, gamma, beta, *, mode, out_dtype):
    """a: (M, K) bf16 patches, b: (K, Cout) bf16, bias/gamma/beta: (1, Cout) f32."""
    M, K = a.shape
    _, N = b.shape
    # Tile only the reduction axis; M/N stay resident so the BN epilogue sees
    # full batch statistics.
    tk = 512 if (K > 512 and K % 512 == 0) else K
    nk = K // tk
    return pl.pallas_call(
        _make_conv_gemm_kernel(mode),
        out_shape=jax.ShapeDtypeStruct((M, N), out_dtype),
        grid=(nk,),
        in_specs=[
            pl.BlockSpec((M, tk), lambda k: (0, k)),
            pl.BlockSpec((tk, N), lambda k: (k, 0)),
            pl.BlockSpec((1, N), lambda k: (0, 0)),
            pl.BlockSpec((1, N), lambda k: (0, 0)),
            pl.BlockSpec((1, N), lambda k: (0, 0)),
        ],
        out_specs=pl.BlockSpec((M, N), lambda k: (0, 0)),
        scratch_shapes=[pltpu.VMEM((M, N), jnp.float32)],
        compiler_params=pltpu.CompilerParams(
            dimension_semantics=("arbitrary",)),
    )(a, b, bias, gamma, beta)


# ------------------- fused fc1 + fc2 + reparametrize kernel -------------------

def _fc_reparam_kernel(x_ref, w1_ref, b1_ref, w2_ref, b2_ref, eps_ref,
                       mu_ref, ls_ref, z_ref):
    x = x_ref[...]
    mu = jnp.dot(x, w1_ref[...], preferred_element_type=jnp.float32) + b1_ref[...]
    ls = jnp.dot(x, w2_ref[...], preferred_element_type=jnp.float32) + b2_ref[...]
    z = eps_ref[...] * jnp.exp(0.5 * ls) + mu
    mu_ref[...] = mu
    ls_ref[...] = ls
    z_ref[...] = z.astype(z_ref.dtype)


def fc_reparametrize(flat, w1, b1, w2, b2, eps):
    nb, kdim = flat.shape
    lat = w1.shape[1]

    def full(r, c):
        return pl.BlockSpec((r, c), lambda i: (0, 0))

    return pl.pallas_call(
        _fc_reparam_kernel,
        out_shape=(jax.ShapeDtypeStruct((nb, lat), jnp.float32),
                   jax.ShapeDtypeStruct((nb, lat), jnp.float32),
                   jax.ShapeDtypeStruct((nb, lat), jnp.bfloat16)),
        grid=(1,),
        in_specs=[full(nb, kdim), full(kdim, lat), full(1, lat),
                  full(kdim, lat), full(1, lat), full(nb, lat)],
        out_specs=(full(nb, lat), full(nb, lat), full(nb, lat)),
    )(flat, w1, b1, w2, b2, eps)


# ------------------- im2col glue (channels-last activations) -------------------

def _extract_patches(x_ndhwc, k, stride, pad):
    """Single-gather im2col. Returns A: (N*od*oh*ow, k^3*Cin) and output dims."""
    n, d, h, w, c = x_ndhwc.shape
    xp = jnp.pad(x_ndhwc, ((0, 0), (pad, pad), (pad, pad), (pad, pad), (0, 0)))
    dp, hp, wp = d + 2 * pad, h + 2 * pad, w + 2 * pad
    od = (dp - k) // stride + 1
    oh = (hp - k) // stride + 1
    ow = (wp - k) // stride + 1
    d_idx = (jnp.arange(od) * stride)[:, None] + jnp.arange(k)[None, :]   # (od, k)
    h_idx = (jnp.arange(oh) * stride)[:, None] + jnp.arange(k)[None, :]
    w_idx = (jnp.arange(ow) * stride)[:, None] + jnp.arange(k)[None, :]
    di = d_idx[:, None, None, :, None, None]
    hi = h_idx[None, :, None, None, :, None]
    wi = w_idx[None, None, :, None, None, :]
    patches = xp[:, di, hi, wi, :]             # (N, od, oh, ow, k, k, k, Cin)
    a = patches.reshape(n * od * oh * ow, k * k * k * c)
    return a, (n, od, oh, ow)


def _dilate(x_ndhwc, s):
    if s == 1:
        return x_ndhwc
    n, d, h, w, c = x_ndhwc.shape
    out = jnp.zeros((n, (d - 1) * s + 1, (h - 1) * s + 1, (w - 1) * s + 1, c),
                    x_ndhwc.dtype)
    return out.at[:, ::s, ::s, ::s, :].set(x_ndhwc)


def conv3d_block(x_ndhwc, w, b, gamma, beta, stride, pad, *, mode, out_dtype):
    """Conv3d (PyTorch weight layout (Cout,Cin,kd,kh,kw)) + fused epilogue."""
    cout, cin, k = w.shape[0], w.shape[1], w.shape[2]
    a, (n, od, oh, ow) = _extract_patches(x_ndhwc, k, stride, pad)
    # B columns match A's (kd, kh, kw, Cin) column ordering.
    bmat = jnp.transpose(w, (2, 3, 4, 1, 0)).reshape(k * k * k * cin, cout)
    out = conv_gemm_fused(a.astype(jnp.bfloat16), bmat.astype(jnp.bfloat16),
                          b.reshape(1, cout), gamma.reshape(1, cout),
                          beta.reshape(1, cout), mode=mode, out_dtype=out_dtype)
    return out.reshape(n, od, oh, ow, cout)


def conv_transpose3d_block(x_ndhwc, w, b, gamma, beta, stride, pad, *,
                           mode, out_dtype):
    """ConvTranspose3d (PyTorch weight layout (Cin,Cout,kd,kh,kw)) + fused epilogue.

    Implemented as zero-insert dilation + stride-1 conv so the GEMM output rows
    are exactly the final spatial positions and BN/sigmoid fuse into the epilogue.
    # TODO(synk): a sub-pixel (8-phase) decomposition would avoid the stride-2
    # zero-insert FLOP blow-up, but breaks single-kernel BN fusion; at these
    # sizes the fused epilogue (1 pallas_call / layer) wins.
    """
    cin, cout, k = w.shape[0], w.shape[1], w.shape[2]
    xd = _dilate(x_ndhwc, stride)
    a, (n, od, oh, ow) = _extract_patches(xd, k, 1, k - 1 - pad)
    bmat = jnp.transpose(jnp.flip(w, (2, 3, 4)),
                         (2, 3, 4, 0, 1)).reshape(k * k * k * cin, cout)
    out = conv_gemm_fused(a.astype(jnp.bfloat16), bmat.astype(jnp.bfloat16),
                          b.reshape(1, cout), gamma.reshape(1, cout),
                          beta.reshape(1, cout), mode=mode, out_dtype=out_dtype)
    return out.reshape(n, od, oh, ow, cout)


# ------------------------------- VAE module -------------------------------

LATENT = 16
CHANNEL_SIZES = [8, 16, 100]
KERNEL_SIZES = [4, 4, 4]
STRIDE_SIZES = [2, 2, 2]
PADDING_SIZES = [1, 1, 1]


def init_params(key):
    params = {"enc": [], "dec": []}
    ks = jax.random.split(key, 32)
    ki = 0

    def nxt():
        nonlocal ki
        k = ks[ki]
        ki += 1
        return k

    # Encoder conv blocks (Conv3d + BN + ReLU)
    in_c = 1
    for idx, out_c in enumerate(CHANNEL_SIZES):
        k = KERNEL_SIZES[idx]
        params["enc"].append({
            "w": 0.05 * jax.random.normal(nxt(), (out_c, in_c, k, k, k), jnp.float32),
            "b": 0.05 * jax.random.normal(nxt(), (out_c,), jnp.float32),
            "gamma": jnp.ones((out_c,), jnp.float32),
            "beta": jnp.zeros((out_c,), jnp.float32),
            "stride": STRIDE_SIZES[idx],
            "pad": PADDING_SIZES[idx],
        })
        in_c = out_c

    # fc1 / fc2 : Linear(100, latent)
    params["fc1_w"] = 0.05 * jax.random.normal(nxt(), (LATENT, 100), jnp.float32)
    params["fc1_b"] = 0.05 * jax.random.normal(nxt(), (LATENT,), jnp.float32)
    params["fc2_w"] = 0.05 * jax.random.normal(nxt(), (LATENT, 100), jnp.float32)
    params["fc2_b"] = 0.05 * jax.random.normal(nxt(), (LATENT,), jnp.float32)

    # Decoder: channel_sizes[:-1] reversed + [1]; kernel order unchanged (as in VAE.__init__)
    dec_channels = CHANNEL_SIZES[:-1][::-1] + [1]
    dec_strides = STRIDE_SIZES[::-1]
    dec_pads = PADDING_SIZES[::-1]
    in_c = LATENT
    for idx, out_c in enumerate(dec_channels):
        k = KERNEL_SIZES[idx]
        params["dec"].append({
            "w": 0.05 * jax.random.normal(nxt(), (in_c, out_c, k, k, k), jnp.float32),
            "b": 0.05 * jax.random.normal(nxt(), (out_c,), jnp.float32),
            # gamma/beta are placeholders for the final (sigmoid) layer; the
            # sigmoid epilogue never reads them.
            "gamma": jnp.ones((out_c,), jnp.float32),
            "beta": jnp.zeros((out_c,), jnp.float32),
            "stride": dec_strides[idx],
            "pad": dec_pads[idx],
            "last": out_c == 1,
        })
        in_c = out_c
    return params


def vae_forward(params, x, eps):
    # NCDHW -> channels-last once; bf16 MXU operands (epilogue math stays f32).
    h = jnp.transpose(x, (0, 2, 3, 4, 1)).astype(jnp.bfloat16)

    # Encoder: each layer = one fused Pallas kernel (GEMM + bias + BN + ReLU).
    for layer in params["enc"]:
        h = conv3d_block(h, layer["w"], layer["b"], layer["gamma"], layer["beta"],
                         layer["stride"], layer["pad"],
                         mode="bn_relu", out_dtype=jnp.bfloat16)

    n = h.shape[0]
    flat = h.reshape(n, -1)                                    # (N, 100)
    mu, log_sigma, z = fc_reparametrize(
        flat,
        params["fc1_w"].T.astype(jnp.bfloat16), params["fc1_b"].reshape(1, -1),
        params["fc2_w"].T.astype(jnp.bfloat16), params["fc2_b"].reshape(1, -1),
        eps)

    # Decoder (training=True path uses z).
    h = z.reshape(n, 1, 1, 1, LATENT)
    for layer in params["dec"]:
        if layer["last"]:
            mode, odt = "sigmoid", jnp.float32
        else:
            mode, odt = "bn_relu", jnp.bfloat16
        h = conv_transpose3d_block(h, layer["w"], layer["b"], layer["gamma"],
                                   layer["beta"], layer["stride"], layer["pad"],
                                   mode=mode, out_dtype=odt)

    x_tilda = jnp.transpose(h, (0, 4, 1, 2, 3))                # back to NCDHW
    return mu, log_sigma, x_tilda


if __name__ == "__main__":
    key = jax.random.PRNGKey(0)
    pkey, xkey, ekey = jax.random.split(key, 3)
    params = init_params(pkey)

    # Input volume: (N=2, C=1, D=8, H=8, W=8) so the flattened encoder feature
    # size is exactly 100 (matches nn.Linear(100, latent)).
    x = jax.random.normal(xkey, (2, 1, 8, 8, 8), jnp.float32)
    eps = jax.random.normal(ekey, (2, LATENT), jnp.float32)    # N(0,1) reparam noise

    fwd = jax.jit(functools.partial(vae_forward, params))
    mu, log_sigma, x_tilda = fwd(x, eps)
    jax.block_until_ready((mu, log_sigma, x_tilda))

    assert mu.shape == (2, LATENT) and mu.dtype == jnp.float32
    assert log_sigma.shape == (2, LATENT)
    assert x_tilda.shape == (2, 1, 8, 8, 8)
    assert bool(jnp.all(jnp.isfinite(x_tilda)))
    assert bool(jnp.all((x_tilda >= 0.0) & (x_tilda <= 1.0)))
    print("KERNEL_OK")
</pallas_src>

<mosaic_0001>
module attributes {stable_mosaic.version = 11 : i64} {
  func.func @kernel(%arg0: i32, %arg1: memref<128x64xbf16, #tpu.memory_space<vmem>>, %arg2: memref<64x8xbf16, #tpu.memory_space<vmem>>, %arg3: memref<1x8xf32, #tpu.memory_space<vmem>>, %arg4: memref<1x8xf32, #tpu.memory_space<vmem>>, %arg5: memref<1x8xf32, #tpu.memory_space<vmem>>, %arg6: memref<128x8xbf16, #tpu.memory_space<vmem>>, %arg7: memref<128x8xf32, #tpu.memory_space<vmem>>) attributes {dimension_semantics = [#tpu.dimension_semantics<arbitrary>], iteration_bounds = array<i64: 1>, scalar_prefetch = 0 : i64, scratch_operands = 1 : i64, tpu.core_type = #tpu.core_type<tc>, window_params = [{transform_indices = @transform_0, window_bounds = array<i64: 128, 64>}, {transform_indices = @transform_1, window_bounds = array<i64: 64, 8>}, {pipeline_mode = #tpu.pipeline_mode<synchronous>, transform_indices = @transform_2, window_bounds = array<i64: 1, 8>}, {pipeline_mode = #tpu.pipeline_mode<synchronous>, transform_indices = @transform_3, window_bounds = array<i64: 1, 8>}, {pipeline_mode = #tpu.pipeline_mode<synchronous>, transform_indices = @transform_4, window_bounds = array<i64: 1, 8>}, {pipeline_mode = #tpu.pipeline_mode<synchronous>, transform_indices = @transform_5, window_bounds = array<i64: 128, 8>}]} {
    %c0_i32 = arith.constant 0 : i32
    %0 = arith.cmpi eq, %arg0, %c0_i32 : i32
    %1 = arith.extui %0 : i1 to i32
    %c0_i32_0 = arith.constant 0 : i32
    %2 = arith.cmpi ne, %1, %c0_i32_0 : i32
    scf.if %2 {
      %cst_10 = arith.constant 0.000000e+00 : f32
      %12 = vector.broadcast %cst_10 : f32 to vector<128x8xf32>
      %c0_11 = arith.constant 0 : index
      %c0_12 = arith.constant 0 : index
      %13 = vector.load %arg7[%c0_11, %c0_12] : memref<128x8xf32, #tpu.memory_space<vmem>>, vector<128x8xf32>
      tpu.vector_store %arg7[%c0_11, %c0_12], %12 {strides = array<i32>} : memref<128x8xf32, #tpu.memory_space<vmem>>, vector<128x8xf32>,
    } else {
    }
    %c0 = arith.constant 0 : index
    %c0_1 = arith.constant 0 : index
    %3 = vector.load %arg7[%c0, %c0_1] : memref<128x8xf32, #tpu.memory_space<vmem>>, vector<128x8xf32>
    %c0_2 = arith.constant 0 : index
    %c0_3 = arith.constant 0 : index
    %4 = vector.load %arg1[%c0_2, %c0_3] : memref<128x64xbf16, #tpu.memory_space<vmem>>, vector<128x64xbf16>
    %c0_4 = arith.constant 0 : index
    %c0_5 = arith.constant 0 : index
    %5 = vector.load %arg2[%c0_4, %c0_5] : memref<64x8xbf16, #tpu.memory_space<vmem>>, vector<64x8xbf16>
    %cst = arith.constant dense<0.000000e+00> : vector<128x8xf32>
    %6 = tpu.matmul %4, %5, %cst {dimension_numbers = #tpu.dot_dimension_numbers<[1], [0], [0], [1], [0, 0, 1, 1], [], []>} : vector<128x64xbf16>, vector<64x8xbf16>, vector<128x8xf32> -> vector<128x8xf32>
    %7 = arith.addf %3, %6 : vector<128x8xf32>
    %c0_6 = arith.constant 0 : index
    %c0_7 = arith.constant 0 : index
    %8 = vector.load %arg7[%c0_6, %c0_7] : memref<128x8xf32, #tpu.memory_space<vmem>>, vector<128x8xf32>
    tpu.vector_store %arg7[%c0_6, %c0_7], %7 {strides = array<i32>} : memref<128x8xf32, #tpu.memory_space<vmem>>, vector<128x8xf32>,
    %c0_i32_8 = arith.constant 0 : i32
    %9 = arith.cmpi eq, %arg0, %c0_i32_8 : i32
    %10 = arith.extui %9 : i1 to i32
    %c0_i32_9 = arith.constant 0 : i32
    %11 = arith.cmpi ne, %10, %c0_i32_9 : i32
    scf.if %11 {
      %c0_10 = arith.constant 0 : index
      %c0_11 = arith.constant 0 : index
      %12 = vector.load %arg7[%c0_10, %c0_11] : memref<128x8xf32, #tpu.memory_space<vmem>>, vector<128x8xf32>
      %c0_12 = arith.constant 0 : index
      %c0_13 = arith.constant 0 : index
      %13 = vector.load %arg3[%c0_12, %c0_13] : memref<1x8xf32, #tpu.memory_space<vmem>>, vector<1x8xf32>
      %14 = vector.broadcast %13 : vector<1x8xf32> to vector<128x8xf32>
      %15 = arith.addf %12, %14 : vector<128x8xf32>
      %cst_14 = arith.constant dense<0.000000e+00> : vector<8xf32>
      %16 = vector.multi_reduction <add>, %15, %cst_14 [0] : vector<128x8xf32> to vector<8xf32>
      %17 = vector.shape_cast %16 : vector<8xf32> to vector<1x8xf32>
      %cst_15 = arith.constant 7.812500e-03 : f32
      %18 = vector.broadcast %cst_15 : f32 to vector<1x8xf32>
      %19 = arith.mulf %17, %18 : vector<1x8xf32>
      %20 = arith.mulf %15, %15 : vector<128x8xf32>
      %cst_16 = arith.constant dense<0.000000e+00> : vector<8xf32>
      %21 = vector.multi_reduction <add>, %20, %cst_16 [0] : vector<128x8xf32> to vector<8xf32>
      %22 = vector.shape_cast %21 : vector<8xf32> to vector<1x8xf32>
      %cst_17 = arith.constant 7.812500e-03 : f32
      %23 = vector.broadcast %cst_17 : f32 to vector<1x8xf32>
      %24 = arith.mulf %22, %23 : vector<1x8xf32>
      %25 = arith.mulf %19, %19 : vector<1x8xf32>
      %26 = arith.subf %24, %25 : vector<1x8xf32>
      %cst_18 = arith.constant 0.000000e+00 : f32
      %27 = vector.broadcast %cst_18 : f32 to vector<1x8xf32>
      %28 = arith.maximumf %26, %27 : vector<1x8xf32>
      %29 = vector.broadcast %19 : vector<1x8xf32> to vector<128x8xf32>
      %30 = arith.subf %15, %29 : vector<128x8xf32>
      %cst_19 = arith.constant 9.99999974E-6 : f32
      %31 = vector.broadcast %cst_19 : f32 to vector<1x8xf32>
      %32 = arith.addf %28, %31 : vector<1x8xf32>
      %33 = math.rsqrt %32 : vector<1x8xf32>
      %34 = vector.broadcast %33 : vector<1x8xf32> to vector<128x8xf32>
      %35 = arith.mulf %30, %34 : vector<128x8xf32>
      %c0_20 = arith.constant 0 : index
      %c0_21 = arith.constant 0 : index
      %36 = vector.load %arg4[%c0_20, %c0_21] : memref<1x8xf32, #tpu.memory_space<vmem>>, vector<1x8xf32>
      %37 = vector.broadcast %36 : vector<1x8xf32> to vector<128x8xf32>
      %38 = arith.mulf %35, %37 : vector<128x8xf32>
      %c0_22 = arith.constant 0 : index
      %c0_23 = arith.constant 0 : index
      %39 = vector.load %arg5[%c0_22, %c0_23] : memref<1x8xf32, #tpu.memory_space<vmem>>, vector<1x8xf32>
      %40 = vector.broadcast %39 : vector<1x8xf32> to vector<128x8xf32>
      %41 = arith.addf %38, %40 : vector<128x8xf32>
      %cst_24 = arith.constant 0.000000e+00 : f32
      %42 = vector.broadcast %cst_24 : f32 to vector<128x8xf32>
      %43 = arith.maximumf %41, %42 : vector<128x8xf32>
      %44 = arith.truncf %43 : vector<128x8xf32> to vector<128x8xbf16>
      %c0_25 = arith.constant 0 : index
      %c0_26 = arith.constant 0 : index
      %45 = vector.load %arg6[%c0_25, %c0_26] : memref<128x8xbf16, #tpu.memory_space<vmem>>, vector<128x8xbf16>
      tpu.vector_store %arg6[%c0_25, %c0_26], %44 {strides = array<i32>} : memref<128x8xbf16, #tpu.memory_space<vmem>>, vector<128x8xbf16>,
    } else {
    }
    return
  }
  func.func @transform_0(%arg0: i32) -> (i32, i32) {
    %c0_i32 = arith.constant 0 : i32
    %c0_i32_0 = arith.constant 0 : i32
    return %c0_i32, %arg0 : i32, i32
  }
  func.func @transform_1(%arg0: i32) -> (i32, i32) {
    %c0_i32 = arith.constant 0 : i32
    %c0_i32_0 = arith.constant 0 : i32
    return %arg0, %c0_i32 : i32, i32
  }
  func.func @transform_2(%arg0: i32) -> (i32, i32) {
    %c0_i32 = arith.constant 0 : i32
    %c0_i32_0 = arith.constant 0 : i32
    %c0_i32_1 = arith.constant 0 : i32
    return %c0_i32, %c0_i32_0 : i32, i32
  }
  func.func @transform_3(%arg0: i32) -> (i32, i32) {
    %c0_i32 = arith.constant 0 : i32
    %c0_i32_0 = arith.constant 0 : i32
    %c0_i32_1 = arith.constant 0 : i32
    return %c0_i32, %c0_i32_0 : i32, i32
  }
  func.func @transform_4(%arg0: i32) -> (i32, i32) {
    %c0_i32 = arith.constant 0 : i32
    %c0_i32_0 = arith.constant 0 : i32
    %c0_i32_1 = arith.constant 0 : i32
    return %c0_i32, %c0_i32_0 : i32, i32
  }
  func.func @transform_5(%arg0: i32) -> (i32, i32) {
    %c0_i32 = arith.constant 0 : i32
    %c0_i32_0 = arith.constant 0 : i32
    %c0_i32_1 = arith.constant 0 : i32
    return %c0_i32, %c0_i32_0 : i32, i32
  }
}

module attributes {stable_mosaic.version = 11 : i64} {
  func.func @kernel(%arg0: i32, %arg1: memref<16x512xbf16, #tpu.memory_space<vmem>>, %arg2: memref<512x16xbf16, #tpu.memory_space<vmem>>, %arg3: memref<1x16xf32, #tpu.memory_space<vmem>>, %arg4: memref<1x16xf32, #tpu.memory_space<vmem>>, %arg5: memref<1x16xf32, #tpu.memory_space<vmem>>, %arg6: memref<16x16xbf16, #tpu.memory_space<vmem>>, %arg7: memref<16x16xf32, #tpu.memory_space<vmem>>) attributes {dimension_semantics = [#tpu.dimension_semantics<arbitrary>], iteration_bounds = array<i64: 1>, scalar_prefetch = 0 : i64, scratch_operands = 1 : i64, tpu.core_type = #tpu.core_type<tc>, window_params = [{transform_indices = @transform_0, window_bounds = array<i64: 16, 512>}, {transform_indices = @transform_1, window_bounds = array<i64: 512, 16>}, {pipeline_mode = #tpu.pipeline_mode<synchronous>, transform_indices = @transform_2, window_bounds = array<i64: 1, 16>}, {pipeline_mode = #tpu.pipeline_mode<synchronous>, transform_indices = @transform_3, window_bounds = array<i64: 1, 16>}, {pipeline_mode = #tpu.pipeline_mode<synchronous>, transform_indices = @transform_4, window_bounds = array<i64: 1, 16>}, {pipeline_mode = #tpu.pipeline_mode<synchronous>, transform_indices = @transform_5, window_bounds = array<i64: 16, 16>}]} {
    %c0_i32 = arith.constant 0 : i32
    %0 = arith.cmpi eq, %arg0, %c0_i32 : i32
    %1 = arith.extui %0 : i1 to i32
    %c0_i32_0 = arith.constant 0 : i32
    %2 = arith.cmpi ne, %1, %c0_i32_0 : i32
    scf.if %2 {
      %cst_10 = arith.constant 0.000000e+00 : f32
      %12 = vector.broadcast %cst_10 : f32 to vector<16x16xf32>
      %c0_11 = arith.constant 0 : index
      %c0_12 = arith.constant 0 : index
      %13 = vector.load %arg7[%c0_11, %c0_12] : memref<16x16xf32, #tpu.memory_space<vmem>>, vector<16x16xf32>
      tpu.vector_store %arg7[%c0_11, %c0_12], %12 {strides = array<i32>} : memref<16x16xf32, #tpu.memory_space<vmem>>, vector<16x16xf32>,
    } else {
    }
    %c0 = arith.constant 0 : index
    %c0_1 = arith.constant 0 : index
    %3 = vector.load %arg7[%c0, %c0_1] : memref<16x16xf32, #tpu.memory_space<vmem>>, vector<16x16xf32>
    %c0_2 = arith.constant 0 : index
    %c0_3 = arith.constant 0 : index
    %4 = vector.load %arg1[%c0_2, %c0_3] : memref<16x512xbf16, #tpu.memory_space<vmem>>, vector<16x512xbf16>
    %c0_4 = arith.constant 0 : index
    %c0_5 = arith.constant 0 : index
    %5 = vector.load %arg2[%c0_4, %c0_5] : memref<512x16xbf16, #tpu.memory_space<vmem>>, vector<512x16xbf16>
    %cst = arith.constant dense<0.000000e+00> : vector<16x16xf32>
    %6 = tpu.matmul %4, %5, %cst {dimension_numbers = #tpu.dot_dimension_numbers<[1], [0], [0], [1], [0, 0, 1, 1], [], []>} : vector<16x512xbf16>, vector<512x16xbf16>, vector<16x16xf32> -> vector<16x16xf32>
    %7 = arith.addf %3, %6 : vector<16x16xf32>
    %c0_6 = arith.constant 0 : index
    %c0_7 = arith.constant 0 : index
    %8 = vector.load %arg7[%c0_6, %c0_7] : memref<16x16xf32, #tpu.memory_space<vmem>>, vector<16x16xf32>
    tpu.vector_store %arg7[%c0_6, %c0_7], %7 {strides = array<i32>} : memref<16x16xf32, #tpu.memory_space<vmem>>, vector<16x16xf32>,
    %c0_i32_8 = arith.constant 0 : i32
    %9 = arith.cmpi eq, %arg0, %c0_i32_8 : i32
    %10 = arith.extui %9 : i1 to i32
    %c0_i32_9 = arith.constant 0 : i32
    %11 = arith.cmpi ne, %10, %c0_i32_9 : i32
    scf.if %11 {
      %c0_10 = arith.constant 0 : index
      %c0_11 = arith.constant 0 : index
      %12 = vector.load %arg7[%c0_10, %c0_11] : memref<16x16xf32, #tpu.memory_space<vmem>>, vector<16x16xf32>
      %c0_12 = arith.constant 0 : index
      %c0_13 = arith.constant 0 : index
      %13 = vector.load %arg3[%c0_12, %c0_13] : memref<1x16xf32, #tpu.memory_space<vmem>>, vector<1x16xf32>
      %14 = vector.broadcast %13 : vector<1x16xf32> to vector<16x16xf32>
      %15 = arith.addf %12, %14 : vector<16x16xf32>
      %cst_14 = arith.constant dense<0.000000e+00> : vector<16xf32>
      %16 = vector.multi_reduction <add>, %15, %cst_14 [0] : vector<16x16xf32> to vector<16xf32>
      %17 = vector.shape_cast %16 : vector<16xf32> to vector<1x16xf32>
      %cst_15 = arith.constant 6.250000e-02 : f32
      %18 = vector.broadcast %cst_15 : f32 to vector<1x16xf32>
      %19 = arith.mulf %17, %18 : vector<1x16xf32>
      %20 = arith.mulf %15, %15 : vector<16x16xf32>
      %cst_16 = arith.constant dense<0.000000e+00> : vector<16xf32>
      %21 = vector.multi_reduction <add>, %20, %cst_16 [0] : vector<16x16xf32> to vector<16xf32>
      %22 = vector.shape_cast %21 : vector<16xf32> to vector<1x16xf32>
      %cst_17 = arith.constant 6.250000e-02 : f32
      %23 = vector.broadcast %cst_17 : f32 to vector<1x16xf32>
      %24 = arith.mulf %22, %23 : vector<1x16xf32>
      %25 = arith.mulf %19, %19 : vector<1x16xf32>
      %26 = arith.subf %24, %25 : vector<1x16xf32>
      %cst_18 = arith.constant 0.000000e+00 : f32
      %27 = vector.broadcast %cst_18 : f32 to vector<1x16xf32>
      %28 = arith.maximumf %26, %27 : vector<1x16xf32>
      %29 = vector.broadcast %19 : vector<1x16xf32> to vector<16x16xf32>
      %30 = arith.subf %15, %29 : vector<16x16xf32>
      %cst_19 = arith.constant 9.99999974E-6 : f32
      %31 = vector.broadcast %cst_19 : f32 to vector<1x16xf32>
      %32 = arith.addf %28, %31 : vector<1x16xf32>
      %33 = math.rsqrt %32 : vector<1x16xf32>
      %34 = vector.broadcast %33 : vector<1x16xf32> to vector<16x16xf32>
      %35 = arith.mulf %30, %34 : vector<16x16xf32>
      %c0_20 = arith.constant 0 : index
      %c0_21 = arith.constant 0 : index
      %36 = vector.load %arg4[%c0_20, %c0_21] : memref<1x16xf32, #tpu.memory_space<vmem>>, vector<1x16xf32>
      %37 = vector.broadcast %36 : vector<1x16xf32> to vector<16x16xf32>
      %38 = arith.mulf %35, %37 : vector<16x16xf32>
      %c0_22 = arith.constant 0 : index
      %c0_23 = arith.constant 0 : index
      %39 = vector.load %arg5[%c0_22, %c0_23] : memref<1x16xf32, #tpu.memory_space<vmem>>, vector<1x16xf32>
      %40 = vector.broadcast %39 : vector<1x16xf32> to vector<16x16xf32>
      %41 = arith.addf %38, %40 : vector<16x16xf32>
      %cst_24 = arith.constant 0.000000e+00 : f32
      %42 = vector.broadcast %cst_24 : f32 to vector<16x16xf32>
      %43 = arith.maximumf %41, %42 : vector<16x16xf32>
      %44 = arith.truncf %43 : vector<16x16xf32> to vector<16x16xbf16>
      %c0_25 = arith.constant 0 : index
      %c0_26 = arith.constant 0 : index
      %45 = vector.load %arg6[%c0_25, %c0_26] : memref<16x16xbf16, #tpu.memory_space<vmem>>, vector<16x16xbf16>
      tpu.vector_store %arg6[%c0_25, %c0_26], %44 {strides = array<i32>} : memref<16x16xbf16, #tpu.memory_space<vmem>>, vector<16x16xbf16>,
    } else {
    }
    return
  }
  func.func @transform_0(%arg0: i32) -> (i32, i32) {
    %c0_i32 = arith.constant 0 : i32
    %c0_i32_0 = arith.constant 0 : i32
    return %c0_i32, %arg0 : i32, i32
  }
  func.func @transform_1(%arg0: i32) -> (i32, i32) {
    %c0_i32 = arith.constant 0 : i32
    %c0_i32_0 = arith.constant 0 : i32
    return %arg0, %c0_i32 : i32, i32
  }
  func.func @transform_2(%arg0: i32) -> (i32, i32) {
    %c0_i32 = arith.constant 0 : i32
    %c0_i32_0 = arith.constant 0 : i32
    %c0_i32_1 = arith.constant 0 : i32
    return %c0_i32, %c0_i32_0 : i32, i32
  }
  func.func @transform_3(%arg0: i32) -> (i32, i32) {
    %c0_i32 = arith.constant 0 : i32
    %c0_i32_0 = arith.constant 0 : i32
    %c0_i32_1 = arith.constant 0 : i32
    return %c0_i32, %c0_i32_0 : i32, i32
  }
  func.func @transform_4(%arg0: i32) -> (i32, i32) {
    %c0_i32 = arith.constant 0 : i32
    %c0_i32_0 = arith.constant 0 : i32
    %c0_i32_1 = arith.constant 0 : i32
    return %c0_i32, %c0_i32_0 : i32, i32
  }
  func.func @transform_5(%arg0: i32) -> (i32, i32) {
    %c0_i32 = arith.constant 0 : i32
    %c0_i32_0 = arith.constant 0 : i32
    %c0_i32_1 = arith.constant 0 : i32
    return %c0_i32, %c0_i32_0 : i32, i32
  }
}

module attributes {stable_mosaic.version = 11 : i64} {
  func.func @kernel(%arg0: i32, %arg1: memref<2x512xbf16, #tpu.memory_space<vmem>>, %arg2: memref<512x100xbf16, #tpu.memory_space<vmem>>, %arg3: memref<1x100xf32, #tpu.memory_space<vmem>>, %arg4: memref<1x100xf32, #tpu.memory_space<vmem>>, %arg5: memref<1x100xf32, #tpu.memory_space<vmem>>, %arg6: memref<2x100xbf16, #tpu.memory_space<vmem>>, %arg7: memref<2x100xf32, #tpu.memory_space<vmem>>) attributes {dimension_semantics = [#tpu.dimension_semantics<arbitrary>], iteration_bounds = array<i64: 2>, scalar_prefetch = 0 : i64, scratch_operands = 1 : i64, tpu.core_type = #tpu.core_type<tc>, window_params = [{transform_indices = @transform_0, window_bounds = array<i64: 2, 512>}, {transform_indices = @transform_1, window_bounds = array<i64: 512, 100>}, {pipeline_mode = #tpu.pipeline_mode<synchronous>, transform_indices = @transform_2, window_bounds = array<i64: 1, 100>}, {pipeline_mode = #tpu.pipeline_mode<synchronous>, transform_indices = @transform_3, window_bounds = array<i64: 1, 100>}, {pipeline_mode = #tpu.pipeline_mode<synchronous>, transform_indices = @transform_4, window_bounds = array<i64: 1, 100>}, {pipeline_mode = #tpu.pipeline_mode<synchronous>, transform_indices = @transform_5, window_bounds = array<i64: 2, 100>}]} {
    %c0_i32 = arith.constant 0 : i32
    %0 = arith.cmpi eq, %arg0, %c0_i32 : i32
    %1 = arith.extui %0 : i1 to i32
    %c0_i32_0 = arith.constant 0 : i32
    %2 = arith.cmpi ne, %1, %c0_i32_0 : i32
    scf.if %2 {
      %cst_9 = arith.constant 0.000000e+00 : f32
      %12 = vector.broadcast %cst_9 : f32 to vector<2x100xf32>
      %c0_10 = arith.constant 0 : index
      %c0_11 = arith.constant 0 : index
      %13 = vector.load %arg7[%c0_10, %c0_11] : memref<2x100xf32, #tpu.memory_space<vmem>>, vector<2x100xf32>
      tpu.vector_store %arg7[%c0_10, %c0_11], %12 {strides = array<i32>} : memref<2x100xf32, #tpu.memory_space<vmem>>, vector<2x100xf32>,
    } else {
    }
    %c0 = arith.constant 0 : index
    %c0_1 = arith.constant 0 : index
    %3 = vector.load %arg7[%c0, %c0_1] : memref<2x100xf32, #tpu.memory_space<vmem>>, vector<2x100xf32>
    %c0_2 = arith.constant 0 : index
    %c0_3 = arith.constant 0 : index
    %4 = vector.load %arg1[%c0_2, %c0_3] : memref<2x512xbf16, #tpu.memory_space<vmem>>, vector<2x512xbf16>
    %c0_4 = arith.constant 0 : index
    %c0_5 = arith.constant 0 : index
    %5 = vector.load %arg2[%c0_4, %c0_5] : memref<512x100xbf16, #tpu.memory_space<vmem>>, vector<512x100xbf16>
    %cst = arith.constant dense<0.000000e+00> : vector<2x100xf32>
    %6 = tpu.matmul %4, %5, %cst {dimension_numbers = #tpu.dot_dimension_numbers<[1], [0], [0], [1], [0, 0, 1, 1], [], []>} : vector<2x512xbf16>, vector<512x100xbf16>, vector<2x100xf32> -> vector<2x100xf32>
    %7 = arith.addf %3, %6 : vector<2x100xf32>
    %c0_6 = arith.constant 0 : index
    %c0_7 = arith.constant 0 : index
    %8 = vector.load %arg7[%c0_6, %c0_7] : memref<2x100xf32, #tpu.memory_space<vmem>>, vector<2x100xf32>
    tpu.vector_store %arg7[%c0_6, %c0_7], %7 {strides = array<i32>} : memref<2x100xf32, #tpu.memory_space<vmem>>, vector<2x100xf32>,
    %c1_i32 = arith.constant 1 : i32
    %9 = arith.cmpi eq, %arg0, %c1_i32 : i32
    %10 = arith.extui %9 : i1 to i32
    %c0_i32_8 = arith.constant 0 : i32
    %11 = arith.cmpi ne, %10, %c0_i32_8 : i32
    scf.if %11 {
      %c0_9 = arith.constant 0 : index
      %c0_10 = arith.constant 0 : index
      %12 = vector.load %arg7[%c0_9, %c0_10] : memref<2x100xf32, #tpu.memory_space<vmem>>, vector<2x100xf32>
      %c0_11 = arith.constant 0 : index
      %c0_12 = arith.constant 0 : index
      %13 = vector.load %arg3[%c0_11, %c0_12] : memref<1x100xf32, #tpu.memory_space<vmem>>, vector<1x100xf32>
      %14 = vector.broadcast %13 : vector<1x100xf32> to vector<2x100xf32>
      %15 = arith.addf %12, %14 : vector<2x100xf32>
      %cst_13 = arith.constant dense<0.000000e+00> : vector<100xf32>
      %16 = vector.multi_reduction <add>, %15, %cst_13 [0] : vector<2x100xf32> to vector<100xf32>
      %17 = vector.shape_cast %16 : vector<100xf32> to vector<1x100xf32>
      %cst_14 = arith.constant 5.000000e-01 : f32
      %18 = vector.broadcast %cst_14 : f32 to vector<1x100xf32>
      %19 = arith.mulf %17, %18 : vector<1x100xf32>
      %20 = arith.mulf %15, %15 : vector<2x100xf32>
      %cst_15 = arith.constant dense<0.000000e+00> : vector<100xf32>
      %21 = vector.multi_reduction <add>, %20, %cst_15 [0] : vector<2x100xf32> to vector<100xf32>
      %22 = vector.shape_cast %21 : vector<100xf32> to vector<1x100xf32>
      %cst_16 = arith.constant 5.000000e-01 : f32
      %23 = vector.broadcast %cst_16 : f32 to vector<1x100xf32>
      %24 = arith.mulf %22, %23 : vector<1x100xf32>
      %25 = arith.mulf %19, %19 : vector<1x100xf32>
      %26 = arith.subf %24, %25 : vector<1x100xf32>
      %cst_17 = arith.constant 0.000000e+00 : f32
      %27 = vector.broadcast %cst_17 : f32 to vector<1x100xf32>
      %28 = arith.maximumf %26, %27 : vector<1x100xf32>
      %29 = vector.broadcast %19 : vector<1x100xf32> to vector<2x100xf32>
      %30 = arith.subf %15, %29 : vector<2x100xf32>
      %cst_18 = arith.constant 9.99999974E-6 : f32
      %31 = vector.broadcast %cst_18 : f32 to vector<1x100xf32>
      %32 = arith.addf %28, %31 : vector<1x100xf32>
      %33 = math.rsqrt %32 : vector<1x100xf32>
      %34 = vector.broadcast %33 : vector<1x100xf32> to vector<2x100xf32>
      %35 = arith.mulf %30, %34 : vector<2x100xf32>
      %c0_19 = arith.constant 0 : index
      %c0_20 = arith.constant 0 : index
      %36 = vector.load %arg4[%c0_19, %c0_20] : memref<1x100xf32, #tpu.memory_space<vmem>>, vector<1x100xf32>
      %37 = vector.broadcast %36 : vector<1x100xf32> to vector<2x100xf32>
      %38 = arith.mulf %35, %37 : vector<2x100xf32>
      %c0_21 = arith.constant 0 : index
      %c0_22 = arith.constant 0 : index
      %39 = vector.load %arg5[%c0_21, %c0_22] : memref<1x100xf32, #tpu.memory_space<vmem>>, vector<1x100xf32>
      %40 = vector.broadcast %39 : vector<1x100xf32> to vector<2x100xf32>
      %41 = arith.addf %38, %40 : vector<2x100xf32>
      %cst_23 = arith.constant 0.000000e+00 : f32
      %42 = vector.broadcast %cst_23 : f32 to vector<2x100xf32>
      %43 = arith.maximumf %41, %42 : vector<2x100xf32>
      %44 = arith.truncf %43 : vector<2x100xf32> to vector<2x100xbf16>
      %c0_24 = arith.constant 0 : index
      %c0_25 = arith.constant 0 : index
      %45 = vector.load %arg6[%c0_24, %c0_25] : memref<2x100xbf16, #tpu.memory_space<vmem>>, vector<2x100xbf16>
      tpu.vector_store %arg6[%c0_24, %c0_25], %44 {strides = array<i32>} : memref<2x100xbf16, #tpu.memory_space<vmem>>, vector<2x100xbf16>,
    } else {
    }
    return
  }
  func.func @transform_0(%arg0: i32) -> (i32, i32) {
    %c0_i32 = arith.constant 0 : i32
    %c0_i32_0 = arith.constant 0 : i32
    return %c0_i32, %arg0 : i32, i32
  }
  func.func @transform_1(%arg0: i32) -> (i32, i32) {
    %c0_i32 = arith.constant 0 : i32
    %c0_i32_0 = arith.constant 0 : i32
    return %arg0, %c0_i32 : i32, i32
  }
  func.func @transform_2(%arg0: i32) -> (i32, i32) {
    %c0_i32 = arith.constant 0 : i32
    %c0_i32_0 = arith.constant 0 : i32
    %c0_i32_1 = arith.constant 0 : i32
    return %c0_i32, %c0_i32_0 : i32, i32
  }
  func.func @transform_3(%arg0: i32) -> (i32, i32) {
    %c0_i32 = arith.constant 0 : i32
    %c0_i32_0 = arith.constant 0 : i32
    %c0_i32_1 = arith.constant 0 : i32
    return %c0_i32, %c0_i32_0 : i32, i32
  }
  func.func @transform_4(%arg0: i32) -> (i32, i32) {
    %c0_i32 = arith.constant 0 : i32
    %c0_i32_0 = arith.constant 0 : i32
    %c0_i32_1 = arith.constant 0 : i32
    return %c0_i32, %c0_i32_0 : i32, i32
  }
  func.func @transform_5(%arg0: i32) -> (i32, i32) {
    %c0_i32 = arith.constant 0 : i32
    %c0_i32_0 = arith.constant 0 : i32
    %c0_i32_1 = arith.constant 0 : i32
    return %c0_i32, %c0_i32_0 : i32, i32
  }
}

module attributes {stable_mosaic.version = 11 : i64} {
  func.func @_fc_reparam_kernel(%arg0: i32, %arg1: memref<2x100xbf16, #tpu.memory_space<vmem>>, %arg2: memref<100x16xbf16, #tpu.memory_space<vmem>>, %arg3: memref<1x16xf32, #tpu.memory_space<vmem>>, %arg4: memref<100x16xbf16, #tpu.memory_space<vmem>>, %arg5: memref<1x16xf32, #tpu.memory_space<vmem>>, %arg6: memref<2x16xf32, #tpu.memory_space<vmem>>, %arg7: memref<2x16xf32, #tpu.memory_space<vmem>>, %arg8: memref<2x16xf32, #tpu.memory_space<vmem>>, %arg9: memref<2x16xbf16, #tpu.memory_space<vmem>>) attributes {dimension_semantics = [#tpu.dimension_semantics<arbitrary>], iteration_bounds = array<i64: 1>, scalar_prefetch = 0 : i64, scratch_operands = 0 : i64, tpu.core_type = #tpu.core_type<tc>, window_params = [{pipeline_mode = #tpu.pipeline_mode<synchronous>, transform_indices = @transform_0, window_bounds = array<i64: 2, 100>}, {pipeline_mode = #tpu.pipeline_mode<synchronous>, transform_indices = @transform_1, window_bounds = array<i64: 100, 16>}, {pipeline_mode = #tpu.pipeline_mode<synchronous>, transform_indices = @transform_2, window_bounds = array<i64: 1, 16>}, {pipeline_mode = #tpu.pipeline_mode<synchronous>, transform_indices = @transform_3, window_bounds = array<i64: 100, 16>}, {pipeline_mode = #tpu.pipeline_mode<synchronous>, transform_indices = @transform_4, window_bounds = array<i64: 1, 16>}, {pipeline_mode = #tpu.pipeline_mode<synchronous>, transform_indices = @transform_5, window_bounds = array<i64: 2, 16>}, {pipeline_mode = #tpu.pipeline_mode<synchronous>, transform_indices = @transform_6, window_bounds = array<i64: 2, 16>}, {pipeline_mode = #tpu.pipeline_mode<synchronous>, transform_indices = @transform_7, window_bounds = array<i64: 2, 16>}, {pipeline_mode = #tpu.pipeline_mode<synchronous>, transform_indices = @transform_8, window_bounds = array<i64: 2, 16>}]} {
    %c0 = arith.constant 0 : index
    %c0_0 = arith.constant 0 : index
    %0 = vector.load %arg1[%c0, %c0_0] : memref<2x100xbf16, #tpu.memory_space<vmem>>, vector<2x100xbf16>
    %c0_1 = arith.constant 0 : index
    %c0_2 = arith.constant 0 : index
    %1 = vector.load %arg2[%c0_1, %c0_2] : memref<100x16xbf16, #tpu.memory_space<vmem>>, vector<100x16xbf16>
    %cst = arith.constant dense<0.000000e+00> : vector<2x16xf32>
    %2 = tpu.matmul %0, %1, %cst {dimension_numbers = #tpu.dot_dimension_numbers<[1], [0], [0], [1], [0, 0, 1, 1], [], []>} : vector<2x100xbf16>, vector<100x16xbf16>, vector<2x16xf32> -> vector<2x16xf32>
    %c0_3 = arith.constant 0 : index
    %c0_4 = arith.constant 0 : index
    %3 = vector.load %arg3[%c0_3, %c0_4] : memref<1x16xf32, #tpu.memory_space<vmem>>, vector<1x16xf32>
    %4 = vector.broadcast %3 : vector<1x16xf32> to vector<2x16xf32>
    %5 = arith.addf %2, %4 : vector<2x16xf32>
    %c0_5 = arith.constant 0 : index
    %c0_6 = arith.constant 0 : index
    %6 = vector.load %arg4[%c0_5, %c0_6] : memref<100x16xbf16, #tpu.memory_space<vmem>>, vector<100x16xbf16>
    %cst_7 = arith.constant dense<0.000000e+00> : vector<2x16xf32>
    %7 = tpu.matmul %0, %6, %cst_7 {dimension_numbers = #tpu.dot_dimension_numbers<[1], [0], [0], [1], [0, 0, 1, 1], [], []>} : vector<2x100xbf16>, vector<100x16xbf16>, vector<2x16xf32> -> vector<2x16xf32>
    %c0_8 = arith.constant 0 : index
    %c0_9 = arith.constant 0 : index
    %8 = vector.load %arg5[%c0_8, %c0_9] : memref<1x16xf32, #tpu.memory_space<vmem>>, vector<1x16xf32>
    %9 = vector.broadcast %8 : vector<1x16xf32> to vector<2x16xf32>
    %10 = arith.addf %7, %9 : vector<2x16xf32>
    %c0_10 = arith.constant 0 : index
    %c0_11 = arith.constant 0 : index
    %11 = vector.load %arg6[%c0_10, %c0_11] : memref<2x16xf32, #tpu.memory_space<vmem>>, vector<2x16xf32>
    %cst_12 = arith.constant 5.000000e-01 : f32
    %12 = vector.broadcast %cst_12 : f32 to vector<2x16xf32>
    %13 = arith.mulf %12, %10 : vector<2x16xf32>
    %14 = math.exp %13 : vector<2x16xf32>
    %15 = arith.mulf %11, %14 : vector<2x16xf32>
    %16 = arith.addf %15, %5 : vector<2x16xf32>
    %c0_13 = arith.constant 0 : index
    %c0_14 = arith.constant 0 : index
    %17 = vector.load %arg7[%c0_13, %c0_14] : memref<2x16xf32, #tpu.memory_space<vmem>>, vector<2x16xf32>
    tpu.vector_store %arg7[%c0_13, %c0_14], %5 {strides = array<i32>} : memref<2x16xf32, #tpu.memory_space<vmem>>, vector<2x16xf32>,
    %c0_15 = arith.constant 0 : index
    %c0_16 = arith.constant 0 : index
    %18 = vector.load %arg8[%c0_15, %c0_16] : memref<2x16xf32, #tpu.memory_space<vmem>>, vector<2x16xf32>
    tpu.vector_store %arg8[%c0_15, %c0_16], %10 {strides = array<i32>} : memref<2x16xf32, #tpu.memory_space<vmem>>, vector<2x16xf32>,
    %19 = arith.truncf %16 : vector<2x16xf32> to vector<2x16xbf16>
    %c0_17 = arith.constant 0 : index
    %c0_18 = arith.constant 0 : index
    %20 = vector.load %arg9[%c0_17, %c0_18] : memref<2x16xbf16, #tpu.memory_space<vmem>>, vector<2x16xbf16>
    tpu.vector_store %arg9[%c0_17, %c0_18], %19 {strides = array<i32>} : memref<2x16xbf16, #tpu.memory_space<vmem>>, vector<2x16xbf16>,
    return
  }
  func.func @transform_0(%arg0: i32) -> (i32, i32) {
    %c0_i32 = arith.constant 0 : i32
    %c0_i32_0 = arith.constant 0 : i32
    %c0_i32_1 = arith.constant 0 : i32
    return %c0_i32, %c0_i32_0 : i32, i32
  }
  func.func @transform_1(%arg0: i32) -> (i32, i32) {
    %c0_i32 = arith.constant 0 : i32
    %c0_i32_0 = arith.constant 0 : i32
    %c0_i32_1 = arith.constant 0 : i32
    return %c0_i32, %c0_i32_0 : i32, i32
  }
  func.func @transform_2(%arg0: i32) -> (i32, i32) {
    %c0_i32 = arith.constant 0 : i32
    %c0_i32_0 = arith.constant 0 : i32
    %c0_i32_1 = arith.constant 0 : i32
    return %c0_i32, %c0_i32_0 : i32, i32
  }
  func.func @transform_3(%arg0: i32) -> (i32, i32) {
    %c0_i32 = arith.constant 0 : i32
    %c0_i32_0 = arith.constant 0 : i32
    %c0_i32_1 = arith.constant 0 : i32
    return %c0_i32, %c0_i32_0 : i32, i32
  }
  func.func @transform_4(%arg0: i32) -> (i32, i32) {
    %c0_i32 = arith.constant 0 : i32
    %c0_i32_0 = arith.constant 0 : i32
    %c0_i32_1 = arith.constant 0 : i32
    return %c0_i32, %c0_i32_0 : i32, i32
  }
  func.func @transform_5(%arg0: i32) -> (i32, i32) {
    %c0_i32 = arith.constant 0 : i32
    %c0_i32_0 = arith.constant 0 : i32
    %c0_i32_1 = arith.constant 0 : i32
    return %c0_i32, %c0_i32_0 : i32, i32
  }
  func.func @transform_6(%arg0: i32) -> (i32, i32) {
    %c0_i32 = arith.constant 0 : i32
    %c0_i32_0 = arith.constant 0 : i32
    %c0_i32_1 = arith.constant 0 : i32
    return %c0_i32, %c0_i32_0 : i32, i32
  }
  func.func @transform_7(%arg0: i32) -> (i32, i32) {
    %c0_i32 = arith.constant 0 : i32
    %c0_i32_0 = arith.constant 0 : i32
    %c0_i32_1 = arith.constant 0 : i32
    return %c0_i32, %c0_i32_0 : i32, i32
  }
  func.func @transform_8(%arg0: i32) -> (i32, i32) {
    %c0_i32 = arith.constant 0 : i32
    %c0_i32_0 = arith.constant 0 : i32
    %c0_i32_1 = arith.constant 0 : i32
    return %c0_i32, %c0_i32_0 : i32, i32
  }
}

module attributes {stable_mosaic.version = 11 : i64} {
  func.func @kernel(%arg0: i32, %arg1: memref<16x512xbf16, #tpu.memory_space<vmem>>, %arg2: memref<512x16xbf16, #tpu.memory_space<vmem>>, %arg3: memref<1x16xf32, #tpu.memory_space<vmem>>, %arg4: memref<1x16xf32, #tpu.memory_space<vmem>>, %arg5: memref<1x16xf32, #tpu.memory_space<vmem>>, %arg6: memref<16x16xbf16, #tpu.memory_space<vmem>>, %arg7: memref<16x16xf32, #tpu.memory_space<vmem>>) attributes {dimension_semantics = [#tpu.dimension_semantics<arbitrary>], iteration_bounds = array<i64: 2>, scalar_prefetch = 0 : i64, scratch_operands = 1 : i64, tpu.core_type = #tpu.core_type<tc>, window_params = [{transform_indices = @transform_0, window_bounds = array<i64: 16, 512>}, {transform_indices = @transform_1, window_bounds = array<i64: 512, 16>}, {pipeline_mode = #tpu.pipeline_mode<synchronous>, transform_indices = @transform_2, window_bounds = array<i64: 1, 16>}, {pipeline_mode = #tpu.pipeline_mode<synchronous>, transform_indices = @transform_3, window_bounds = array<i64: 1, 16>}, {pipeline_mode = #tpu.pipeline_mode<synchronous>, transform_indices = @transform_4, window_bounds = array<i64: 1, 16>}, {pipeline_mode = #tpu.pipeline_mode<synchronous>, transform_indices = @transform_5, window_bounds = array<i64: 16, 16>}]} {
    %c0_i32 = arith.constant 0 : i32
    %0 = arith.cmpi eq, %arg0, %c0_i32 : i32
    %1 = arith.extui %0 : i1 to i32
    %c0_i32_0 = arith.constant 0 : i32
    %2 = arith.cmpi ne, %1, %c0_i32_0 : i32
    scf.if %2 {
      %cst_9 = arith.constant 0.000000e+00 : f32
      %12 = vector.broadcast %cst_9 : f32 to vector<16x16xf32>
      %c0_10 = arith.constant 0 : index
      %c0_11 = arith.constant 0 : index
      %13 = vector.load %arg7[%c0_10, %c0_11] : memref<16x16xf32, #tpu.memory_space<vmem>>, vector<16x16xf32>
      tpu.vector_store %arg7[%c0_10, %c0_11], %12 {strides = array<i32>} : memref<16x16xf32, #tpu.memory_space<vmem>>, vector<16x16xf32>,
    } else {
    }
    %c0 = arith.constant 0 : index
    %c0_1 = arith.constant 0 : index
    %3 = vector.load %arg7[%c0, %c0_1] : memref<16x16xf32, #tpu.memory_space<vmem>>, vector<16x16xf32>
    %c0_2 = arith.constant 0 : index
    %c0_3 = arith.constant 0 : index
    %4 = vector.load %arg1[%c0_2, %c0_3] : memref<16x512xbf16, #tpu.memory_space<vmem>>, vector<16x512xbf16>
    %c0_4 = arith.constant 0 : index
    %c0_5 = arith.constant 0 : index
    %5 = vector.load %arg2[%c0_4, %c0_5] : memref<512x16xbf16, #tpu.memory_space<vmem>>, vector<512x16xbf16>
    %cst = arith.constant dense<0.000000e+00> : vector<16x16xf32>
    %6 = tpu.matmul %4, %5, %cst {dimension_numbers = #tpu.dot_dimension_numbers<[1], [0], [0], [1], [0, 0, 1, 1], [], []>} : vector<16x512xbf16>, vector<512x16xbf16>, vector<16x16xf32> -> vector<16x16xf32>
    %7 = arith.addf %3, %6 : vector<16x16xf32>
    %c0_6 = arith.constant 0 : index
    %c0_7 = arith.constant 0 : index
    %8 = vector.load %arg7[%c0_6, %c0_7] : memref<16x16xf32, #tpu.memory_space<vmem>>, vector<16x16xf32>
    tpu.vector_store %arg7[%c0_6, %c0_7], %7 {strides = array<i32>} : memref<16x16xf32, #tpu.memory_space<vmem>>, vector<16x16xf32>,
    %c1_i32 = arith.constant 1 : i32
    %9 = arith.cmpi eq, %arg0, %c1_i32 : i32
    %10 = arith.extui %9 : i1 to i32
    %c0_i32_8 = arith.constant 0 : i32
    %11 = arith.cmpi ne, %10, %c0_i32_8 : i32
    scf.if %11 {
      %c0_9 = arith.constant 0 : index
      %c0_10 = arith.constant 0 : index
      %12 = vector.load %arg7[%c0_9, %c0_10] : memref<16x16xf32, #tpu.memory_space<vmem>>, vector<16x16xf32>
      %c0_11 = arith.constant 0 : index
      %c0_12 = arith.constant 0 : index
      %13 = vector.load %arg3[%c0_11, %c0_12] : memref<1x16xf32, #tpu.memory_space<vmem>>, vector<1x16xf32>
      %14 = vector.broadcast %13 : vector<1x16xf32> to vector<16x16xf32>
      %15 = arith.addf %12, %14 : vector<16x16xf32>
      %cst_13 = arith.constant dense<0.000000e+00> : vector<16xf32>
      %16 = vector.multi_reduction <add>, %15, %cst_13 [0] : vector<16x16xf32> to vector<16xf32>
      %17 = vector.shape_cast %16 : vector<16xf32> to vector<1x16xf32>
      %cst_14 = arith.constant 6.250000e-02 : f32
      %18 = vector.broadcast %cst_14 : f32 to vector<1x16xf32>
      %19 = arith.mulf %17, %18 : vector<1x16xf32>
      %20 = arith.mulf %15, %15 : vector<16x16xf32>
      %cst_15 = arith.constant dense<0.000000e+00> : vector<16xf32>
      %21 = vector.multi_reduction <add>, %20, %cst_15 [0] : vector<16x16xf32> to vector<16xf32>
      %22 = vector.shape_cast %21 : vector<16xf32> to vector<1x16xf32>
      %cst_16 = arith.constant 6.250000e-02 : f32
      %23 = vector.broadcast %cst_16 : f32 to vector<1x16xf32>
      %24 = arith.mulf %22, %23 : vector<1x16xf32>
      %25 = arith.mulf %19, %19 : vector<1x16xf32>
      %26 = arith.subf %24, %25 : vector<1x16xf32>
      %cst_17 = arith.constant 0.000000e+00 : f32
      %27 = vector.broadcast %cst_17 : f32 to vector<1x16xf32>
      %28 = arith.maximumf %26, %27 : vector<1x16xf32>
      %29 = vector.broadcast %19 : vector<1x16xf32> to vector<16x16xf32>
      %30 = arith.subf %15, %29 : vector<16x16xf32>
      %cst_18 = arith.constant 9.99999974E-6 : f32
      %31 = vector.broadcast %cst_18 : f32 to vector<1x16xf32>
      %32 = arith.addf %28, %31 : vector<1x16xf32>
      %33 = math.rsqrt %32 : vector<1x16xf32>
      %34 = vector.broadcast %33 : vector<1x16xf32> to vector<16x16xf32>
      %35 = arith.mulf %30, %34 : vector<16x16xf32>
      %c0_19 = arith.constant 0 : index
      %c0_20 = arith.constant 0 : index
      %36 = vector.load %arg4[%c0_19, %c0_20] : memref<1x16xf32, #tpu.memory_space<vmem>>, vector<1x16xf32>
      %37 = vector.broadcast %36 : vector<1x16xf32> to vector<16x16xf32>
      %38 = arith.mulf %35, %37 : vector<16x16xf32>
      %c0_21 = arith.constant 0 : index
      %c0_22 = arith.constant 0 : index
      %39 = vector.load %arg5[%c0_21, %c0_22] : memref<1x16xf32, #tpu.memory_space<vmem>>, vector<1x16xf32>
      %40 = vector.broadcast %39 : vector<1x16xf32> to vector<16x16xf32>
      %41 = arith.addf %38, %40 : vector<16x16xf32>
      %cst_23 = arith.constant 0.000000e+00 : f32
      %42 = vector.broadcast %cst_23 : f32 to vector<16x16xf32>
      %43 = arith.maximumf %41, %42 : vector<16x16xf32>
      %44 = arith.truncf %43 : vector<16x16xf32> to vector<16x16xbf16>
      %c0_24 = arith.constant 0 : index
      %c0_25 = arith.constant 0 : index
      %45 = vector.load %arg6[%c0_24, %c0_25] : memref<16x16xbf16, #tpu.memory_space<vmem>>, vector<16x16xbf16>
      tpu.vector_store %arg6[%c0_24, %c0_25], %44 {strides = array<i32>} : memref<16x16xbf16, #tpu.memory_space<vmem>>, vector<16x16xbf16>,
    } else {
    }
    return
  }
  func.func @transform_0(%arg0: i32) -> (i32, i32) {
    %c0_i32 = arith.constant 0 : i32
    %c0_i32_0 = arith.constant 0 : i32
    return %c0_i32, %arg0 : i32, i32
  }
  func.func @transform_1(%arg0: i32) -> (i32, i32) {
    %c0_i32 = arith.constant 0 : i32
    %c0_i32_0 = arith.constant 0 : i32
    return %arg0, %c0_i32 : i32, i32
  }
  func.func @transform_2(%arg0: i32) -> (i32, i32) {
    %c0_i32 = arith.constant 0 : i32
    %c0_i32_0 = arith.constant 0 : i32
    %c0_i32_1 = arith.constant 0 : i32
    return %c0_i32, %c0_i32_0 : i32, i32
  }
  func.func @transform_3(%arg0: i32) -> (i32, i32) {
    %c0_i32 = arith.constant 0 : i32
    %c0_i32_0 = arith.constant 0 : i32
    %c0_i32_1 = arith.constant 0 : i32
    return %c0_i32, %c0_i32_0 : i32, i32
  }
  func.func @transform_4(%arg0: i32) -> (i32, i32) {
    %c0_i32 = arith.constant 0 : i32
    %c0_i32_0 = arith.constant 0 : i32
    %c0_i32_1 = arith.constant 0 : i32
    return %c0_i32, %c0_i32_0 : i32, i32
  }
  func.func @transform_5(%arg0: i32) -> (i32, i32) {
    %c0_i32 = arith.constant 0 : i32
    %c0_i32_0 = arith.constant 0 : i32
    %c0_i32_1 = arith.constant 0 : i32
    return %c0_i32, %c0_i32_0 : i32, i32
  }
}

module attributes {stable_mosaic.version = 11 : i64} {
  func.func @kernel(%arg0: i32, %arg1: memref<128x512xbf16, #tpu.memory_space<vmem>>, %arg2: memref<512x8xbf16, #tpu.memory_space<vmem>>, %arg3: memref<1x8xf32, #tpu.memory_space<vmem>>, %arg4: memref<1x8xf32, #tpu.memory_space<vmem>>, %arg5: memref<1x8xf32, #tpu.memory_space<vmem>>, %arg6: memref<128x8xbf16, #tpu.memory_space<vmem>>, %arg7: memref<128x8xf32, #tpu.memory_space<vmem>>) attributes {dimension_semantics = [#tpu.dimension_semantics<arbitrary>], iteration_bounds = array<i64: 2>, scalar_prefetch = 0 : i64, scratch_operands = 1 : i64, tpu.core_type = #tpu.core_type<tc>, window_params = [{transform_indices = @transform_0, window_bounds = array<i64: 128, 512>}, {transform_indices = @transform_1, window_bounds = array<i64: 512, 8>}, {pipeline_mode = #tpu.pipeline_mode<synchronous>, transform_indices = @transform_2, window_bounds = array<i64: 1, 8>}, {pipeline_mode = #tpu.pipeline_mode<synchronous>, transform_indices = @transform_3, window_bounds = array<i64: 1, 8>}, {pipeline_mode = #tpu.pipeline_mode<synchronous>, transform_indices = @transform_4, window_bounds = array<i64: 1, 8>}, {pipeline_mode = #tpu.pipeline_mode<synchronous>, transform_indices = @transform_5, window_bounds = array<i64: 128, 8>}]} {
    %c0_i32 = arith.constant 0 : i32
    %0 = arith.cmpi eq, %arg0, %c0_i32 : i32
    %1 = arith.extui %0 : i1 to i32
    %c0_i32_0 = arith.constant 0 : i32
    %2 = arith.cmpi ne, %1, %c0_i32_0 : i32
    scf.if %2 {
      %cst_9 = arith.constant 0.000000e+00 : f32
      %12 = vector.broadcast %cst_9 : f32 to vector<128x8xf32>
      %c0_10 = arith.constant 0 : index
      %c0_11 = arith.constant 0 : index
      %13 = vector.load %arg7[%c0_10, %c0_11] : memref<128x8xf32, #tpu.memory_space<vmem>>, vector<128x8xf32>
      tpu.vector_store %arg7[%c0_10, %c0_11], %12 {strides = array<i32>} : memref<128x8xf32, #tpu.memory_space<vmem>>, vector<128x8xf32>,
    } else {
    }
    %c0 = arith.constant 0 : index
    %c0_1 = arith.constant 0 : index
    %3 = vector.load %arg7[%c0, %c0_1] : memref<128x8xf32, #tpu.memory_space<vmem>>, vector<128x8xf32>
    %c0_2 = arith.constant 0 : index
    %c0_3 = arith.constant 0 : index
    %4 = vector.load %arg1[%c0_2, %c0_3] : memref<128x512xbf16, #tpu.memory_space<vmem>>, vector<128x512xbf16>
    %c0_4 = arith.constant 0 : index
    %c0_5 = arith.constant 0 : index
    %5 = vector.load %arg2[%c0_4, %c0_5] : memref<512x8xbf16, #tpu.memory_space<vmem>>, vector<512x8xbf16>
    %cst = arith.constant dense<0.000000e+00> : vector<128x8xf32>
    %6 = tpu.matmul %4, %5, %cst {dimension_numbers = #tpu.dot_dimension_numbers<[1], [0], [0], [1], [0, 0, 1, 1], [], []>} : vector<128x512xbf16>, vector<512x8xbf16>, vector<128x8xf32> -> vector<128x8xf32>
    %7 = arith.addf %3, %6 : vector<128x8xf32>
    %c0_6 = arith.constant 0 : index
    %c0_7 = arith.constant 0 : index
    %8 = vector.load %arg7[%c0_6, %c0_7] : memref<128x8xf32, #tpu.memory_space<vmem>>, vector<128x8xf32>
    tpu.vector_store %arg7[%c0_6, %c0_7], %7 {strides = array<i32>} : memref<128x8xf32, #tpu.memory_space<vmem>>, vector<128x8xf32>,
    %c1_i32 = arith.constant 1 : i32
    %9 = arith.cmpi eq, %arg0, %c1_i32 : i32
    %10 = arith.extui %9 : i1 to i32
    %c0_i32_8 = arith.constant 0 : i32
    %11 = arith.cmpi ne, %10, %c0_i32_8 : i32
    scf.if %11 {
      %c0_9 = arith.constant 0 : index
      %c0_10 = arith.constant 0 : index
      %12 = vector.load %arg7[%c0_9, %c0_10] : memref<128x8xf32, #tpu.memory_space<vmem>>, vector<128x8xf32>
      %c0_11 = arith.constant 0 : index
      %c0_12 = arith.constant 0 : index
      %13 = vector.load %arg3[%c0_11, %c0_12] : memref<1x8xf32, #tpu.memory_space<vmem>>, vector<1x8xf32>
      %14 = vector.broadcast %13 : vector<1x8xf32> to vector<128x8xf32>
      %15 = arith.addf %12, %14 : vector<128x8xf32>
      %cst_13 = arith.constant dense<0.000000e+00> : vector<8xf32>
      %16 = vector.multi_reduction <add>, %15, %cst_13 [0] : vector<128x8xf32> to vector<8xf32>
      %17 = vector.shape_cast %16 : vector<8xf32> to vector<1x8xf32>
      %cst_14 = arith.constant 7.812500e-03 : f32
      %18 = vector.broadcast %cst_14 : f32 to vector<1x8xf32>
      %19 = arith.mulf %17, %18 : vector<1x8xf32>
      %20 = arith.mulf %15, %15 : vector<128x8xf32>
      %cst_15 = arith.constant dense<0.000000e+00> : vector<8xf32>
      %21 = vector.multi_reduction <add>, %20, %cst_15 [0] : vector<128x8xf32> to vector<8xf32>
      %22 = vector.shape_cast %21 : vector<8xf32> to vector<1x8xf32>
      %cst_16 = arith.constant 7.812500e-03 : f32
      %23 = vector.broadcast %cst_16 : f32 to vector<1x8xf32>
      %24 = arith.mulf %22, %23 : vector<1x8xf32>
      %25 = arith.mulf %19, %19 : vector<1x8xf32>
      %26 = arith.subf %24, %25 : vector<1x8xf32>
      %cst_17 = arith.constant 0.000000e+00 : f32
      %27 = vector.broadcast %cst_17 : f32 to vector<1x8xf32>
      %28 = arith.maximumf %26, %27 : vector<1x8xf32>
      %29 = vector.broadcast %19 : vector<1x8xf32> to vector<128x8xf32>
      %30 = arith.subf %15, %29 : vector<128x8xf32>
      %cst_18 = arith.constant 9.99999974E-6 : f32
      %31 = vector.broadcast %cst_18 : f32 to vector<1x8xf32>
      %32 = arith.addf %28, %31 : vector<1x8xf32>
      %33 = math.rsqrt %32 : vector<1x8xf32>
      %34 = vector.broadcast %33 : vector<1x8xf32> to vector<128x8xf32>
      %35 = arith.mulf %30, %34 : vector<128x8xf32>
      %c0_19 = arith.constant 0 : index
      %c0_20 = arith.constant 0 : index
      %36 = vector.load %arg4[%c0_19, %c0_20] : memref<1x8xf32, #tpu.memory_space<vmem>>, vector<1x8xf32>
      %37 = vector.broadcast %36 : vector<1x8xf32> to vector<128x8xf32>
      %38 = arith.mulf %35, %37 : vector<128x8xf32>
      %c0_21 = arith.constant 0 : index
      %c0_22 = arith.constant 0 : index
      %39 = vector.load %arg5[%c0_21, %c0_22] : memref<1x8xf32, #tpu.memory_space<vmem>>, vector<1x8xf32>
      %40 = vector.broadcast %39 : vector<1x8xf32> to vector<128x8xf32>
      %41 = arith.addf %38, %40 : vector<128x8xf32>
      %cst_23 = arith.constant 0.000000e+00 : f32
      %42 = vector.broadcast %cst_23 : f32 to vector<128x8xf32>
      %43 = arith.maximumf %41, %42 : vector<128x8xf32>
      %44 = arith.truncf %43 : vector<128x8xf32> to vector<128x8xbf16>
      %c0_24 = arith.constant 0 : index
      %c0_25 = arith.constant 0 : index
      %45 = vector.load %arg6[%c0_24, %c0_25] : memref<128x8xbf16, #tpu.memory_space<vmem>>, vector<128x8xbf16>
      tpu.vector_store %arg6[%c0_24, %c0_25], %44 {strides = array<i32>} : memref<128x8xbf16, #tpu.memory_space<vmem>>, vector<128x8xbf16>,
    } else {
    }
    return
  }
  func.func @transform_0(%arg0: i32) -> (i32, i32) {
    %c0_i32 = arith.constant 0 : i32
    %c0_i32_0 = arith.constant 0 : i32
    return %c0_i32, %arg0 : i32, i32
  }
  func.func @transform_1(%arg0: i32) -> (i32, i32) {
    %c0_i32 = arith.constant 0 : i32
    %c0_i32_0 = arith.constant 0 : i32
    return %arg0, %c0_i32 : i32, i32
  }
  func.func @transform_2(%arg0: i32) -> (i32, i32) {
    %c0_i32 = arith.constant 0 : i32
    %c0_i32_0 = arith.constant 0 : i32
    %c0_i32_1 = arith.constant 0 : i32
    return %c0_i32, %c0_i32_0 : i32, i32
  }
  func.func @transform_3(%arg0: i32) -> (i32, i32) {
    %c0_i32 = arith.constant 0 : i32
    %c0_i32_0 = arith.constant 0 : i32
    %c0_i32_1 = arith.constant 0 : i32
    return %c0_i32, %c0_i32_0 : i32, i32
  }
  func.func @transform_4(%arg0: i32) -> (i32, i32) {
    %c0_i32 = arith.constant 0 : i32
    %c0_i32_0 = arith.constant 0 : i32
    %c0_i32_1 = arith.constant 0 : i32
    return %c0_i32, %c0_i32_0 : i32, i32
  }
  func.func @transform_5(%arg0: i32) -> (i32, i32) {
    %c0_i32 = arith.constant 0 : i32
    %c0_i32_0 = arith.constant 0 : i32
    %c0_i32_1 = arith.constant 0 : i32
    return %c0_i32, %c0_i32_0 : i32, i32
  }
}

module attributes {stable_mosaic.version = 11 : i64} {
  func.func @kernel(%arg0: i32, %arg1: memref<1024x512xbf16, #tpu.memory_space<vmem>>, %arg2: memref<512x1xbf16, #tpu.memory_space<vmem>>, %arg3: memref<1x1xf32, #tpu.memory_space<vmem>>, %arg4: memref<1x1xf32, #tpu.memory_space<vmem>>, %arg5: memref<1x1xf32, #tpu.memory_space<vmem>>, %arg6: memref<1024x1xf32, #tpu.memory_space<vmem>>, %arg7: memref<1024x1xf32, #tpu.memory_space<vmem>>) attributes {dimension_semantics = [#tpu.dimension_semantics<arbitrary>], iteration_bounds = array<i64: 1>, scalar_prefetch = 0 : i64, scratch_operands = 1 : i64, tpu.core_type = #tpu.core_type<tc>, window_params = [{transform_indices = @transform_0, window_bounds = array<i64: 1024, 512>}, {transform_indices = @transform_1, window_bounds = array<i64: 512, 1>}, {pipeline_mode = #tpu.pipeline_mode<synchronous>, transform_indices = @transform_2, window_bounds = array<i64: 1, 1>}, {pipeline_mode = #tpu.pipeline_mode<synchronous>, transform_indices = @transform_3, window_bounds = array<i64: 1, 1>}, {pipeline_mode = #tpu.pipeline_mode<synchronous>, transform_indices = @transform_4, window_bounds = array<i64: 1, 1>}, {pipeline_mode = #tpu.pipeline_mode<synchronous>, transform_indices = @transform_5, window_bounds = array<i64: 1024, 1>}]} {
    %c0_i32 = arith.constant 0 : i32
    %0 = arith.cmpi eq, %arg0, %c0_i32 : i32
    %1 = arith.extui %0 : i1 to i32
    %c0_i32_0 = arith.constant 0 : i32
    %2 = arith.cmpi ne, %1, %c0_i32_0 : i32
    scf.if %2 {
      %cst_10 = arith.constant 0.000000e+00 : f32
      %12 = vector.broadcast %cst_10 : f32 to vector<1024x1xf32>
      %c0_11 = arith.constant 0 : index
      %c0_12 = arith.constant 0 : index
      %13 = vector.load %arg7[%c0_11, %c0_12] : memref<1024x1xf32, #tpu.memory_space<vmem>>, vector<1024x1xf32>
      tpu.vector_store %arg7[%c0_11, %c0_12], %12 {strides = array<i32>} : memref<1024x1xf32, #tpu.memory_space<vmem>>, vector<1024x1xf32>,
    } else {
    }
    %c0 = arith.constant 0 : index
    %c0_1 = arith.constant 0 : index
    %3 = vector.load %arg7[%c0, %c0_1] : memref<1024x1xf32, #tpu.memory_space<vmem>>, vector<1024x1xf32>
    %c0_2 = arith.constant 0 : index
    %c0_3 = arith.constant 0 : index
    %4 = vector.load %arg1[%c0_2, %c0_3] : memref<1024x512xbf16, #tpu.memory_space<vmem>>, vector<1024x512xbf16>
    %c0_4 = arith.constant 0 : index
    %c0_5 = arith.constant 0 : index
    %5 = vector.load %arg2[%c0_4, %c0_5] : memref<512x1xbf16, #tpu.memory_space<vmem>>, vector<512x1xbf16>
    %cst = arith.constant dense<0.000000e+00> : vector<1024x1xf32>
    %6 = tpu.matmul %4, %5, %cst {dimension_numbers = #tpu.dot_dimension_numbers<[1], [0], [0], [1], [0, 0, 1, 1], [], []>} : vector<1024x512xbf16>, vector<512x1xbf16>, vector<1024x1xf32> -> vector<1024x1xf32>
    %7 = arith.addf %3, %6 : vector<1024x1xf32>
    %c0_6 = arith.constant 0 : index
    %c0_7 = arith.constant 0 : index
    %8 = vector.load %arg7[%c0_6, %c0_7] : memref<1024x1xf32, #tpu.memory_space<vmem>>, vector<1024x1xf32>
    tpu.vector_store %arg7[%c0_6, %c0_7], %7 {strides = array<i32>} : memref<1024x1xf32, #tpu.memory_space<vmem>>, vector<1024x1xf32>,
    %c0_i32_8 = arith.constant 0 : i32
    %9 = arith.cmpi eq, %arg0, %c0_i32_8 : i32
    %10 = arith.extui %9 : i1 to i32
    %c0_i32_9 = arith.constant 0 : i32
    %11 = arith.cmpi ne, %10, %c0_i32_9 : i32
    scf.if %11 {
      %c0_10 = arith.constant 0 : index
      %c0_11 = arith.constant 0 : index
      %12 = vector.load %arg7[%c0_10, %c0_11] : memref<1024x1xf32, #tpu.memory_space<vmem>>, vector<1024x1xf32>
      %c0_12 = arith.constant 0 : index
      %c0_13 = arith.constant 0 : index
      %13 = vector.load %arg3[%c0_12, %c0_13] : memref<1x1xf32, #tpu.memory_space<vmem>>, vector<1x1xf32>
      %14 = vector.broadcast %13 : vector<1x1xf32> to vector<1024x1xf32>
      %15 = arith.addf %12, %14 : vector<1024x1xf32>
      %16 = math.absf %15 : vector<1024x1xf32>
      %cst_14 = arith.constant 0.000000e+00 : f32
      %17 = vector.broadcast %cst_14 : f32 to vector<1024x1xf32>
      %18 = arith.subf %17, %16 : vector<1024x1xf32>
      %19 = math.exp %18 : vector<1024x1xf32>
      %cst_15 = arith.constant 0.000000e+00 : f32
      %20 = vector.broadcast %cst_15 : f32 to vector<1024x1xf32>
      %21 = arith.cmpf oge, %15, %20 : vector<1024x1xf32>
      %cst_16 = arith.constant 1.000000e+00 : f32
      %22 = vector.broadcast %cst_16 : f32 to vector<1024x1xf32>
      %23 = arith.addf %22, %19 : vector<1024x1xf32>
      %cst_17 = arith.constant 1.000000e+00 : f32
      %24 = vector.broadcast %cst_17 : f32 to vector<1024x1xf32>
      %25 = arith.divf %24, %23 : vector<1024x1xf32>
      %cst_18 = arith.constant 1.000000e+00 : f32
      %26 = vector.broadcast %cst_18 : f32 to vector<1024x1xf32>
      %27 = arith.addf %26, %19 : vector<1024x1xf32>
      %28 = arith.divf %19, %27 : vector<1024x1xf32>
      %29 = arith.select %21, %25, %28 : vector<1024x1xi1>, vector<1024x1xf32>
      %c0_19 = arith.constant 0 : index
      %c0_20 = arith.constant 0 : index
      %30 = vector.load %arg6[%c0_19, %c0_20] : memref<1024x1xf32, #tpu.memory_space<vmem>>, vector<1024x1xf32>
      tpu.vector_store %arg6[%c0_19, %c0_20], %29 {strides = array<i32>} : memref<1024x1xf32, #tpu.memory_space<vmem>>, vector<1024x1xf32>,
    } else {
    }
    return
  }
  func.func @transform_0(%arg0: i32) -> (i32, i32) {
    %c0_i32 = arith.constant 0 : i32
    %c0_i32_0 = arith.constant 0 : i32
    return %c0_i32, %arg0 : i32, i32
  }
  func.func @transform_1(%arg0: i32) -> (i32, i32) {
    %c0_i32 = arith.constant 0 : i32
    %c0_i32_0 = arith.constant 0 : i32
    return %arg0, %c0_i32 : i32, i32
  }
  func.func @transform_2(%arg0: i32) -> (i32, i32) {
    %c0_i32 = arith.constant 0 : i32
    %c0_i32_0 = arith.constant 0 : i32
    %c0_i32_1 = arith.constant 0 : i32
    return %c0_i32, %c0_i32_0 : i32, i32
  }
  func.func @transform_3(%arg0: i32) -> (i32, i32) {
    %c0_i32 = arith.constant 0 : i32
    %c0_i32_0 = arith.constant 0 : i32
    %c0_i32_1 = arith.constant 0 : i32
    return %c0_i32, %c0_i32_0 : i32, i32
  }
  func.func @transform_4(%arg0: i32) -> (i32, i32) {
    %c0_i32 = arith.constant 0 : i32
    %c0_i32_0 = arith.constant 0 : i32
    %c0_i32_1 = arith.constant 0 : i32
    return %c0_i32, %c0_i32_0 : i32, i32
  }
  func.func @transform_5(%arg0: i32) -> (i32, i32) {
    %c0_i32 = arith.constant 0 : i32
    %c0_i32_0 = arith.constant 0 : i32
    %c0_i32_1 = arith.constant 0 : i32
    return %c0_i32, %c0_i32_0 : i32, i32
  }
}

</mosaic_0001>

<llo_original>
// kernel: vae_forward.7
$region0: #{vae_forward.7}
  #allocation0 [shape = 'u32[]', space=smem, size = 0x4, offset = 0x4, fixed_abs, tag = 'smem constant byte address 0x4 - core index']
  #allocation1 [shape = 'u32[144,128]{1,0:T(1,128)}', space=vmem, size = 0x12000, scoped, tag = 'internal scratch']
  #allocation2 [shape = 'f32[128,8]{1,0:T(8,128)}', space=vmem, size = 0x10000, scoped, tag = 'scratch operand']
  %s0 = inlined_call_operand.vmem [shape: bf16[128,64], index: 0, kind: input, shape index: {}]
  %s1 = inlined_call_operand.vmem [shape: bf16[64,8], index: 1, kind: input, shape index: {}]
  %s2 = inlined_call_operand.vmem [shape: f32[1,8], index: 2, kind: input, shape index: {}]
  %s3 = inlined_call_operand.vmem [shape: f32[1,8], index: 3, kind: input, shape index: {}]
  %s4 = inlined_call_operand.vmem [shape: f32[1,8], index: 4, kind: input, shape index: {}]
  %s5 = inlined_call_operand.vmem [shape: bf16[128,8], index: 5, kind: output, shape index: {}]
  %s6 = sld [smem:[#allocation0]]
  $region38: #{vae_forward.7} parent=0
    _
  %s8 = ssub.s32 1, %s6
  %s9 = scalar_select 0, %s8, %s6
  // Predicated region
  $region2: #{vae_forward.7} parent=0 // pred_check
    _
  $region3: #{vae_forward.7} parent=0 // pred_check_branch
    %11 = sbr.rel (0) target = $region5
  $region4: #{vae_forward.7} parent=0 // pred_region
    _
  $region5: #{vae_forward.7} parent=0 // pred_fallthru
    _
  // Predicated region
  $region6: #{vae_forward.7} parent=0 // pred_check
    _
  $region7: #{vae_forward.7} parent=0 // pred_check_branch
    %13 = sbr.rel (0) target = $region9
  $region8: #{vae_forward.7} parent=0 // pred_region
    _
  $region9: #{vae_forward.7} parent=0 // pred_fallthru
    _
  // Predicated region
  $region10: #{vae_forward.7} parent=0 // pred_check
    _
  $region11: #{vae_forward.7} parent=0 // pred_check_branch
    %15 = sbr.rel (0) target = $region13
  $region12: #{vae_forward.7} parent=0 // pred_region
    _
  $region13: #{vae_forward.7} parent=0 // pred_fallthru
    _
  // Predicated region
  $region14: #{vae_forward.7} parent=0 // pred_check
    _
  $region15: #{vae_forward.7} parent=0 // pred_check_branch
    %17 = sbr.rel (0) target = $region17
  $region16: #{vae_forward.7} parent=0 // pred_region
    _
  $region17: #{vae_forward.7} parent=0 // pred_fallthru
    _
  // Predicated region
  $region18: #{vae_forward.7} parent=0 // pred_check
    _
  $region19: #{vae_forward.7} parent=0 // pred_check_branch
    %19 = sbr.rel (0) target = $region21
  $region20: #{vae_forward.7} parent=0 // pred_region
    _
  $region21: #{vae_forward.7} parent=0 // pred_fallthru
    _
  %p21 = scmp.eq.s32.totalorder 0, 0
  // Predicated region
  $region22: #{vae_forward.7} parent=0 // pred_check
    %p22 = pneg %p21
  $region23: #{vae_forward.7} parent=0 // pred_check_branch
    %24 = sbr.rel (%p22) target = $region25
  $region24: #{vae_forward.7} parent=0 // pred_region
    %vm25 = vcmask 64512
    %26 = vst.msk [vmem:[#allocation2] sm:$0xff] %vm25, 0.0
    %27 = vst.msk [vmem:[#allocation2 + $0x8] sm:$0xff] %vm25, 0.0
    %28 = vst.msk [vmem:[#allocation2 + $0x10] sm:$0xff] %vm25, 0.0
    %29 = vst.msk [vmem:[#allocation2 + $0x18] sm:$0xff] %vm25, 0.0
    %30 = vst.msk [vmem:[#allocation2 + $0x20] sm:$0xff] %vm25, 0.0
    %31 = vst.msk [vmem:[#allocation2 + $0x28] sm:$0xff] %vm25, 0.0
    %32 = vst.msk [vmem:[#allocation2 + $0x30] sm:$0xff] %vm25, 0.0
    %33 = vst.msk [vmem:[#allocation2 + $0x38] sm:$0xff] %vm25, 0.0
    %34 = vst.msk [vmem:[#allocation2 + $0x40] sm:$0xff] %vm25, 0.0
    %35 = vst.msk [vmem:[#allocation2 + $0x48] sm:$0xff] %vm25, 0.0
    %36 = vst.msk [vmem:[#allocation2 + $0x50] sm:$0xff] %vm25, 0.0
    %37 = vst.msk [vmem:[#allocation2 + $0x58] sm:$0xff] %vm25, 0.0
    %38 = vst.msk [vmem:[#allocation2 + $0x60] sm:$0xff] %vm25, 0.0
    %39 = vst.msk [vmem:[#allocation2 + $0x68] sm:$0xff] %vm25, 0.0
    %40 = vst.msk [vmem:[#allocation2 + $0x70] sm:$0xff] %vm25, 0.0
    %41 = vst.msk [vmem:[#allocation2 + $0x78] sm:$0xff] %vm25, 0.0
  $region25: #{vae_forward.7} parent=0 // pred_fallthru
    _
  %v42 = vld [vmem:[#allocation2] sm:$0xff]
  %v43 = vld [vmem:[#allocation2 + $0x8] sm:$0xff]
  %v44 = vld [vmem:[#allocation2 + $0x10] sm:$0xff]
  %v45 = vld [vmem:[#allocation2 + $0x18] sm:$0xff]
  %v46 = vld [vmem:[#allocation2 + $0x20] sm:$0xff]
  %v47 = vld [vmem:[#allocation2 + $0x28] sm:$0xff]
  %v48 = vld [vmem:[#allocation2 + $0x30] sm:$0xff]
  %v49 = vld [vmem:[#allocation2 + $0x38] sm:$0xff]
  %v50 = vld [vmem:[#allocation2 + $0x40] sm:$0xff]
  %v51 = vld [vmem:[#allocation2 + $0x48] sm:$0xff]
  %v52 = vld [vmem:[#allocation2 + $0x50] sm:$0xff]
  %v53 = vld [vmem:[#allocation2 + $0x58] sm:$0xff]
  %v54 = vld [vmem:[#allocation2 + $0x60] sm:$0xff]
  %v55 = vld [vmem:[#allocation2 + $0x68] sm:$0xff]
  %v56 = vld [vmem:[#allocation2 + $0x70] sm:$0xff]
  %v57 = vld [vmem:[#allocation2 + $0x78] sm:$0xff]
  %v58 = vld [vmem:[%s0] sm:$0xf]
  %v59 = vld [vmem:[%s0 + $0x4] sm:$0xf]
  %v60 = vld [vmem:[%s0 + $0x8] sm:$0xf]
  %v61 = vld [vmem:[%s0 + $0xc] sm:$0xf]
  %v62 = vld [vmem:[%s0 + $0x10] sm:$0xf]
  %v63 = vld [vmem:[%s0 + $0x14] sm:$0xf]
  %v64 = vld [vmem:[%s0 + $0x18] sm:$0xf]
  %v65 = vld [vmem:[%s0 + $0x1c] sm:$0xf]
  %v66 = vld [vmem:[%s0 + $0x20] sm:$0xf]
  %v67 = vld [vmem:[%s0 + $0x24] sm:$0xf]
  %v68 = vld [vmem:[%s0 + $0x28] sm:$0xf]
  %v69 = vld [vmem:[%s0 + $0x2c] sm:$0xf]
  %v70 = vld [vmem:[%s0 + $0x30] sm:$0xf]
  %v71 = vld [vmem:[%s0 + $0x34] sm:$0xf]
  %v72 = vld [vmem:[%s0 + $0x38] sm:$0xf]
  %v73 = vld [vmem:[%s0 + $0x3c] sm:$0xf]
  %v74 = vld [vmem:[%s1] sm:$0xf]
  %v75 = vld [vmem:[%s1 + $0x4] sm:$0xf]
  %v76 = vld [vmem:[%s1 + $0x8] sm:$0xf]
  %v77 = vld [vmem:[%s1 + $0xc] sm:$0xf]
  %v78 = vld [vmem:[%s1 + $0x10] sm:$0xf]
  %v79 = vld [vmem:[%s1 + $0x14] sm:$0xf]
  %v80 = vld [vmem:[%s1 + $0x18] sm:$0xf]
  %v81 = vld [vmem:[%s1 + $0x1c] sm:$0xf]
  %v98 = vunpack.c.l.b16 %v58
  %v99 = vunpack.c.l.b16 %v59
  %v100 = vunpack.c.l.b16 %v60
  %v101 = vunpack.c.l.b16 %v61
  %v102 = vunpack.c.l.b16 %v62
  %v103 = vunpack.c.l.b16 %v63
  %v104 = vunpack.c.l.b16 %v64
  %v105 = vunpack.c.l.b16 %v65
  %v106 = vunpack.c.l.b16 %v66
  %v107 = vunpack.c.l.b16 %v67
  %v108 = vunpack.c.l.b16 %v68
  %v109 = vunpack.c.l.b16 %v69
  %v110 = vunpack.c.l.b16 %v70
  %v111 = vunpack.c.l.b16 %v71
  %v112 = vunpack.c.l.b16 %v72
  %v113 = vunpack.c.l.b16 %v73
  %v114 = vpack.c.b16 %v99, %v98
  %v115 = vpack.c.b16 %v101, %v100
  %v116 = vpack.c.b16 %v103, %v102
  %v117 = vpack.c.b16 %v105, %v104
  %v118 = vpack.c.b16 %v107, %v106
  %v119 = vpack.c.b16 %v109, %v108
  %v120 = vpack.c.b16 %v111, %v110
  %v121 = vpack.c.b16 %v113, %v112
  %v130 = vunpack.c.l.b16 %v74
  %v131 = vunpack.c.l.b16 %v75
  %v132 = vunpack.c.l.b16 %v76
  %v133 = vunpack.c.l.b16 %v77
  %v134 = vunpack.c.l.b16 %v78
  %v135 = vunpack.c.l.b16 %v79
  %v136 = vunpack.c.l.b16 %v80
  %v137 = vunpack.c.l.b16 %v81
  %v138 = vpack.c.b16 %v131, %v130
  %v139 = vpack.c.b16 %v133, %v132
  %v140 = vpack.c.b16 %v135, %v134
  %v141 = vpack.c.b16 %v137, %v136
  %vm146 = vcmask 523264
  %v148 = vsel %vm146, %v114, 0
  %v151 = vsel %vm146, %v115, 0
  %v154 = vsel %vm146, %v116, 0
  %v157 = vsel %vm146, %v117, 0
  %v160 = vsel %vm146, %v118, 0
  %v163 = vsel %vm146, %v119, 0
  %v166 = vsel %vm146, %v120, 0
  %v169 = vsel %vm146, %v121, 0
  %171 = vmatprep.subr.bf16.mxu0 0
  %172 = vmatpush1.bf16.msra.mxu0 0
  %173 = vmatprep.subr.bf16.mxu0 0
  %174 = vmatpush1.bf16.msra.mxu0 0
  %175 = vmatprep.subr.bf16.mxu0 0
  %176 = vmatpush1.bf16.msra.mxu0 0
  %177 = vmatprep.subr.bf16.mxu0 0
  %178 = vmatpush1.bf16.msra.mxu0 0
  %179 = vmatprep.subr.bf16.mxu0 0
  %180 = vmatpush1.bf16.msra.mxu0 %v141
  %181 = vmatprep.subr.bf16.mxu0 0
  %182 = vmatpush1.bf16.msra.mxu0 %v140
  %183 = vmatprep.subr.bf16.mxu0 0
  %184 = vmatpush1.bf16.msra.mxu0 %v139
  %185 = vmatprep.subr.bf16.mxu0 0
  %186 = vmatpush1.bf16.msra.mxu0 %v138
  %187 = vmatprep.subr.bf16.mxu0 0
  %188 = vmatpush2.bf16.msra.mxu0 0
  %189 = vmatprep.subr.bf16.mxu0 0
  %190 = vmatpush2.bf16.msra.mxu0 0
  %191 = vmatprep.subr.bf16.mxu0 0
  %192 = vmatpush2.bf16.msra.mxu0 0
  %193 = vmatprep.subr.bf16.mxu0 0
  %194 = vmatpush2.bf16.msra.mxu0 0
  %195 = vmatprep.subr.bf16.mxu0 0
  %196 = vmatpush2.bf16.msra.mxu0 0
  %197 = vmatprep.subr.bf16.mxu0 0
  %198 = vmatpush2.bf16.msra.mxu0 0
  %199 = vmatprep.subr.bf16.mxu0 0
  %200 = vmatpush2.bf16.msra.mxu0 0
  %201 = vmatprep.subr.bf16.mxu0 0
  %202 = vmatpush2.bf16.msra.mxu0 0
  %203 = vmatprep.mubr.bf16.mxu0 0
  %204 = vmatmul.mubr.bf16.gmra.mxu0 %v148
  %v205 = vpop.f32.mrf.mxu0
  %v206 = vadd.f32 0.0, %v205
  %v207 = vpop.f32.mrf.mxu0
  %v208 = vpop.f32.mrf.mxu0
  %v209 = vadd.f32 0.0, %v208
  %v210 = vpop.f32.mrf.mxu0
  %211 = vmatprep.mubr.bf16.mxu0 0
  %212 = vmatmul.mubr.bf16.gmra.mxu0 %v151
  %v213 = vpop.f32.mrf.mxu0
  %v214 = vadd.f32 0.0, %v213
  %v215 = vpop.f32.mrf.mxu0
  %v216 = vpop.f32.mrf.mxu0
  %v217 = vadd.f32 0.0, %v216
  %v218 = vpop.f32.mrf.mxu0
  %219 = vmatprep.mubr.bf16.mxu0 0
  %220 = vmatmul.mubr.bf16.gmra.mxu0 %v154
  %v221 = vpop.f32.mrf.mxu0
  %v222 = vadd.f32 0.0, %v221
  %v223 = vpop.f32.mrf.mxu0
  %v224 = vpop.f32.mrf.mxu0
  %v225 = vadd.f32 0.0, %v224
  %v226 = vpop.f32.mrf.mxu0
  %227 = vmatprep.mubr.bf16.mxu0 0
  %228 = vmatmul.mubr.bf16.gmra.mxu0 %v157
  %v229 = vpop.f32.mrf.mxu0
  %v230 = vadd.f32 0.0, %v229
  %v231 = vpop.f32.mrf.mxu0
  %v232 = vpop.f32.mrf.mxu0
  %v233 = vadd.f32 0.0, %v232
  %v234 = vpop.f32.mrf.mxu0
  %235 = vmatprep.mubr.bf16.mxu0 0
  %236 = vmatmul.mubr.bf16.gmra.mxu0 %v160
  %v237 = vpop.f32.mrf.mxu0
  %v238 = vadd.f32 0.0, %v237
  %v239 = vpop.f32.mrf.mxu0
  %v240 = vpop.f32.mrf.mxu0
  %v241 = vadd.f32 0.0, %v240
  %v242 = vpop.f32.mrf.mxu0
  %243 = vmatprep.mubr.bf16.mxu0 0
  %244 = vmatmul.mubr.bf16.gmra.mxu0 %v163
  %v245 = vpop.f32.mrf.mxu0
  %v246 = vadd.f32 0.0, %v245
  %v247 = vpop.f32.mrf.mxu0
  %v248 = vpop.f32.mrf.mxu0
  %v249 = vadd.f32 0.0, %v248
  %v250 = vpop.f32.mrf.mxu0
  %251 = vmatprep.mubr.bf16.mxu0 0
  %252 = vmatmul.mubr.bf16.gmra.mxu0 %v166
  %v253 = vpop.f32.mrf.mxu0
  %v254 = vadd.f32 0.0, %v253
  %v255 = vpop.f32.mrf.mxu0
  %v256 = vpop.f32.mrf.mxu0
  %v257 = vadd.f32 0.0, %v256
  %v258 = vpop.f32.mrf.mxu0
  %259 = vmatprep.mubr.bf16.mxu0 0
  %260 = vmatmul.mubr.bf16.gmra.mxu0 %v169
  %v261 = vpop.f32.mrf.mxu0
  %v262 = vadd.f32 0.0, %v261
  %v263 = vpop.f32.mrf.mxu0
  %v264 = vpop.f32.mrf.mxu0
  %v265 = vadd.f32 0.0, %v264
  %v266 = vpop.f32.mrf.mxu0
  %267 = vdwg.mxu0
  %v268 = vadd.f32 %v42, %v206
  %v269 = vadd.f32 %v43, %v209
  %v270 = vadd.f32 %v44, %v214
  %v271 = vadd.f32 %v45, %v217
  %v272 = vadd.f32 %v46, %v222
  %v273 = vadd.f32 %v47, %v225
  %v274 = vadd.f32 %v48, %v230
  %v275 = vadd.f32 %v49, %v233
  %v276 = vadd.f32 %v50, %v238
  %v277 = vadd.f32 %v51, %v241
  %v278 = vadd.f32 %v52, %v246
  %v279 = vadd.f32 %v53, %v249
  %v280 = vadd.f32 %v54, %v254
  %v281 = vadd.f32 %v55, %v257
  %v282 = vadd.f32 %v56, %v262
  %v283 = vadd.f32 %v57, %v265
  %vm284 = vcmask 64512
  %285 = vst.msk [vmem:[#allocation2] sm:$0xff] %vm284, %v268
  %286 = vst.msk [vmem:[#allocation2 + $0x8] sm:$0xff] %vm284, %v269
  %287 = vst.msk [vmem:[#allocation2 + $0x10] sm:$0xff] %vm284, %v270
  %288 = vst.msk [vmem:[#allocation2 + $0x18] sm:$0xff] %vm284, %v271
  %289 = vst.msk [vmem:[#allocation2 + $0x20] sm:$0xff] %vm284, %v272
  %290 = vst.msk [vmem:[#allocation2 + $0x28] sm:$0xff] %vm284, %v273
  %291 = vst.msk [vmem:[#allocation2 + $0x30] sm:$0xff] %vm284, %v274
  %292 = vst.msk [vmem:[#allocation2 + $0x38] sm:$0xff] %vm284, %v275
  %293 = vst.msk [vmem:[#allocation2 + $0x40] sm:$0xff] %vm284, %v276
  %294 = vst.msk [vmem:[#allocation2 + $0x48] sm:$0xff] %vm284, %v277
  %295 = vst.msk [vmem:[#allocation2 + $0x50] sm:$0xff] %vm284, %v278
  %296 = vst.msk [vmem:[#allocation2 + $0x58] sm:$0xff] %vm284, %v279
  %297 = vst.msk [vmem:[#allocation2 + $0x60] sm:$0xff] %vm284, %v280
  %298 = vst.msk [vmem:[#allocation2 + $0x68] sm:$0xff] %vm284, %v281
  %299 = vst.msk [vmem:[#allocation2 + $0x70] sm:$0xff] %vm284, %v282
  %300 = vst.msk [vmem:[#allocation2 + $0x78] sm:$0xff] %vm284, %v283
  // Predicated region
  $region26: #{vae_forward.7} parent=0 // pred_check
    %p301 = pneg %p21
  $region27: #{vae_forward.7} parent=0 // pred_check_branch
    %303 = sbr.rel (%p301) target = $region29
  $region28: #{vae_forward.7} parent=0 // pred_region
    %v304 = vld [vmem:[#allocation2] sm:$0xff]
    %v305 = vld [vmem:[#allocation2 + $0x8] sm:$0xff]
    %v306 = vld [vmem:[#allocation2 + $0x10] sm:$0xff]
    %v307 = vld [vmem:[#allocation2 + $0x18] sm:$0xff]
    %v308 = vld [vmem:[#allocation2 + $0x20] sm:$0xff]
    %v309 = vld [vmem:[#allocation2 + $0x28] sm:$0xff]
    %v310 = vld [vmem:[#allocation2 + $0x30] sm:$0xff]
    %v311 = vld [vmem:[#allocation2 + $0x38] sm:$0xff]
    %v312 = vld [vmem:[#allocation2 + $0x40] sm:$0xff]
    %v313 = vld [vmem:[#allocation2 + $0x48] sm:$0xff]
    %v314 = vld [vmem:[#allocation2 + $0x50] sm:$0xff]
    %v315 = vld [vmem:[#allocation2 + $0x58] sm:$0xff]
    %v316 = vld [vmem:[#allocation2 + $0x60] sm:$0xff]
    %v317 = vld [vmem:[#allocation2 + $0x68] sm:$0xff]
    %v318 = vld [vmem:[#allocation2 + $0x70] sm:$0xff]
    %v319 = vld [vmem:[#allocation2 + $0x78] sm:$0xff]
    %v320 = vld [vmem:[%s2] sm:$0x1]
    %v322 = vlaneseq
    %v323 = vshrl.u32 %v322, 7
    %v324 = vsub.s32 0, %v323
    %v325 = vrot.slane %v320, %v324
    %v327 = vadd.f32 %v304, %v325
    %v328 = vadd.f32 %v305, %v325
    %v329 = vadd.f32 %v306, %v325
    %v330 = vadd.f32 %v307, %v325
    %v331 = vadd.f32 %v308, %v325
    %v332 = vadd.f32 %v309, %v325
    %v333 = vadd.f32 %v310, %v325
    %v334 = vadd.f32 %v311, %v325
    %v335 = vadd.f32 %v312, %v325
    %v336 = vadd.f32 %v313, %v325
    %v337 = vadd.f32 %v314, %v325
    %v338 = vadd.f32 %v315, %v325
    %v339 = vadd.f32 %v316, %v325
    %v340 = vadd.f32 %v317, %v325
    %v341 = vadd.f32 %v318, %v325
    %v342 = vadd.f32 %v319, %v325
    %v343 = vsel %vm284, %v327, 0.0
    %v344 = vsel %vm284, %v328, 0.0
    %v345 = vadd.f32 %v343, %v344
    %v346 = vsel %vm284, %v329, 0.0
    %v347 = vadd.f32 %v345, %v346
    %v348 = vsel %vm284, %v330, 0.0
    %v349 = vadd.f32 %v347, %v348
    %v350 = vsel %vm284, %v331, 0.0
    %v351 = vadd.f32 %v349, %v350
    %v352 = vsel %vm284, %v332, 0.0
    %v353 = vadd.f32 %v351, %v352
    %v354 = vsel %vm284, %v333, 0.0
    %v355 = vadd.f32 %v353, %v354
    %v356 = vsel %vm284, %v334, 0.0
    %v357 = vadd.f32 %v355, %v356
    %v358 = vsel %vm284, %v335, 0.0
    %v359 = vadd.f32 %v357, %v358
    %v360 = vsel %vm284, %v336, 0.0
    %v361 = vadd.f32 %v359, %v360
    %v362 = vsel %vm284, %v337, 0.0
    %v363 = vadd.f32 %v361, %v362
    %v364 = vsel %vm284, %v338, 0.0
    %v365 = vadd.f32 %v363, %v364
    %v366 = vsel %vm284, %v339, 0.0
    %v367 = vadd.f32 %v365, %v366
    %v368 = vsel %vm284, %v340, 0.0
    %v369 = vadd.f32 %v367, %v368
    %v370 = vsel %vm284, %v341, 0.0
    %v371 = vadd.f32 %v369, %v370
    %v372 = vsel %vm284, %v342, 0.0
    %v373 = vadd.f32 %v371, %v372
    %v374 = vrot.slane %v373, 4
    %v375 = vadd.f32 %v373, %v374
    %v376 = vrot.slane %v375, 2
    %v377 = vadd.f32 %v375, %v376
    %v378 = vrot.slane %v377, 1
    %v379 = vadd.f32 %v377, %v378
    %v380 = vmul.f32 %v379, 0.0078125
    %v381 = vmul.f32 %v327, %v327
    %v382 = vmul.f32 %v328, %v328
    %v383 = vmul.f32 %v329, %v329
    %v384 = vmul.f32 %v330, %v330
    %v385 = vmul.f32 %v331, %v331
    %v386 = vmul.f32 %v332, %v332
    %v387 = vmul.f32 %v333, %v333
    %v388 = vmul.f32 %v334, %v334
    %v389 = vmul.f32 %v335, %v335
    %v390 = vmul.f32 %v336, %v336
    %v391 = vmul.f32 %v337, %v337
    %v392 = vmul.f32 %v338, %v338
    %v393 = vmul.f32 %v339, %v339
    %v394 = vmul.f32 %v340, %v340
    %v395 = vmul.f32 %v341, %v341
    %v396 = vmul.f32 %v342, %v342
    %v397 = vsel %vm284, %v381, 0.0
    %v398 = vsel %vm284, %v382, 0.0
    %v399 = vadd.f32 %v397, %v398
    %v400 = vsel %vm284, %v383, 0.0
    %v401 = vadd.f32 %v399, %v400
    %v402 = vsel %vm284, %v384, 0.0
    %v403 = vadd.f32 %v401, %v402
    %v404 = vsel %vm284, %v385, 0.0
    %v405 = vadd.f32 %v403, %v404
    %v406 = vsel %vm284, %v386, 0.0
    %v407 = vadd.f32 %v405, %v406
    %v408 = vsel %vm284, %v387, 0.0
    %v409 = vadd.f32 %v407, %v408
    %v410 = vsel %vm284, %v388, 0.0
    %v411 = vadd.f32 %v409, %v410
    %v412 = vsel %vm284, %v389, 0.0
    %v413 = vadd.f32 %v411, %v412
    %v414 = vsel %vm284, %v390, 0.0
    %v415 = vadd.f32 %v413, %v414
    %v416 = vsel %vm284, %v391, 0.0
    %v417 = vadd.f32 %v415, %v416
    %v418 = vsel %vm284, %v392, 0.0
    %v419 = vadd.f32 %v417, %v418
    %v420 = vsel %vm284, %v393, 0.0
    %v421 = vadd.f32 %v419, %v420
    %v422 = vsel %vm284, %v394, 0.0
    %v423 = vadd.f32 %v421, %v422
    %v424 = vsel %vm284, %v395, 0.0
    %v425 = vadd.f32 %v423, %v424
    %v426 = vsel %vm284, %v396, 0.0
    %v427 = vadd.f32 %v425, %v426
    %v428 = vrot.slane %v427, 4
    %v429 = vadd.f32 %v427, %v428
    %v430 = vrot.slane %v429, 2
    %v431 = vadd.f32 %v429, %v430
    %v432 = vrot.slane %v431, 1
    %v433 = vadd.f32 %v431, %v432
    %v434 = vmul.f32 %v433, 0.0078125
    %v435 = vmul.f32 %v380, %v380
    %v436 = vsub.f32 %v434, %v435
    %v437 = vmax.f32 %v436, 0.0
    %v438 = vsub.f32 %v327, %v380
    %v439 = vsub.f32 %v328, %v380
    %v440 = vsub.f32 %v329, %v380
    %v441 = vsub.f32 %v330, %v380
    %v442 = vsub.f32 %v331, %v380
    %v443 = vsub.f32 %v332, %v380
    %v444 = vsub.f32 %v333, %v380
    %v445 = vsub.f32 %v334, %v380
    %v446 = vsub.f32 %v335, %v380
    %v447 = vsub.f32 %v336, %v380
    %v448 = vsub.f32 %v337, %v380
    %v449 = vsub.f32 %v338, %v380
    %v450 = vsub.f32 %v339, %v380
    %v451 = vsub.f32 %v340, %v380
    %v452 = vsub.f32 %v341, %v380
    %v453 = vsub.f32 %v342, %v380
    %v454 = vadd.f32 %v437, 1e-05
    %v455 = vrsqrt.pop %v454
    %v456 = vmul.f32 %v438, %v455
    %v457 = vmul.f32 %v439, %v455
    %v458 = vmul.f32 %v440, %v455
    %v459 = vmul.f32 %v441, %v455
    %v460 = vmul.f32 %v442, %v455
    %v461 = vmul.f32 %v443, %v455
    %v462 = vmul.f32 %v444, %v455
    %v463 = vmul.f32 %v445, %v455
    %v464 = vmul.f32 %v446, %v455
    %v465 = vmul.f32 %v447, %v455
    %v466 = vmul.f32 %v448, %v455
    %v467 = vmul.f32 %v449, %v455
    %v468 = vmul.f32 %v450, %v455
    %v469 = vmul.f32 %v451, %v455
    %v470 = vmul.f32 %v452, %v455
    %v471 = vmul.f32 %v453, %v455
    %v472 = vld [vmem:[%s3] sm:$0x1]
    %v474 = vlaneseq
    %v475 = vshrl.u32 %v474, 7
    %v476 = vsub.s32 0, %v475
    %v477 = vrot.slane %v472, %v476
    %v479 = vmul.f32 %v456, %v477
    %v480 = vmul.f32 %v457, %v477
    %v481 = vmul.f32 %v458, %v477
    %v482 = vmul.f32 %v459, %v477
    %v483 = vmul.f32 %v460, %v477
    %v484 = vmul.f32 %v461, %v477
    %v485 = vmul.f32 %v462, %v477
    %v486 = vmul.f32 %v463, %v477
    %v487 = vmul.f32 %v464, %v477
    %v488 = vmul.f32 %v465, %v477
    %v489 = vmul.f32 %v466, %v477
    %v490 = vmul.f32 %v467, %v477
    %v491 = vmul.f32 %v468, %v477
    %v492 = vmul.f32 %v469, %v477
    %v493 = vmul.f32 %v470, %v477
    %v494 = vmul.f32 %v471, %v477
    %v495 = vld [vmem:[%s4] sm:$0x1]
    %v497 = vlaneseq
    %v498 = vshrl.u32 %v497, 7
    %v499 = vsub.s32 0, %v498
    %v500 = vrot.slane %v495, %v499
    %v502 = vadd.f32 %v479, %v500
    %v503 = vadd.f32 %v480, %v500
    %v504 = vadd.f32 %v481, %v500
    %v505 = vadd.f32 %v482, %v500
    %v506 = vadd.f32 %v483, %v500
    %v507 = vadd.f32 %v484, %v500
    %v508 = vadd.f32 %v485, %v500
    %v509 = vadd.f32 %v486, %v500
    %v510 = vadd.f32 %v487, %v500
    %v511 = vadd.f32 %v488, %v500
    %v512 = vadd.f32 %v489, %v500
    %v513 = vadd.f32 %v490, %v500
    %v514 = vadd.f32 %v491, %v500
    %v515 = vadd.f32 %v492, %v500
    %v516 = vadd.f32 %v493, %v500
    %v517 = vadd.f32 %v494, %v500
    %v518 = vmax.f32 %v502, 0.0
    %v519 = vmax.f32 %v503, 0.0
    %v520 = vmax.f32 %v504, 0.0
    %v521 = vmax.f32 %v505, 0.0
    %v522 = vmax.f32 %v506, 0.0
    %v523 = vmax.f32 %v507, 0.0
    %v524 = vmax.f32 %v508, 0.0
    %v525 = vmax.f32 %v509, 0.0
    %v526 = vmax.f32 %v510, 0.0
    %v527 = vmax.f32 %v511, 0.0
    %v528 = vmax.f32 %v512, 0.0
    %v529 = vmax.f32 %v513, 0.0
    %v530 = vmax.f32 %v514, 0.0
    %v531 = vmax.f32 %v515, 0.0
    %v532 = vmax.f32 %v516, 0.0
    %v533 = vmax.f32 %v517, 0.0
    %v534 = vpack.c.bf16 %v519, %v518
    %v535 = vpack.c.bf16 %v521, %v520
    %v536 = vpack.c.bf16 %v523, %v522
    %v537 = vpack.c.bf16 %v525, %v524
    %v538 = vpack.c.bf16 %v527, %v526
    %v539 = vpack.c.bf16 %v529, %v528
    %v540 = vpack.c.bf16 %v531, %v530
    %v541 = vpack.c.bf16 %v533, %v532
    %v550 = vunpack.c.l.b16 %v534
    %v551 = vunpack.c.h.b16 %v534
    %v552 = vunpack.c.l.b16 %v535
    %v553 = vunpack.c.h.b16 %v535
    %v554 = vunpack.c.l.b16 %v536
    %v555 = vunpack.c.h.b16 %v536
    %v556 = vunpack.c.l.b16 %v537
    %v557 = vunpack.c.h.b16 %v537
    %v558 = vunpack.c.l.b16 %v538
    %v559 = vunpack.c.h.b16 %v538
    %v560 = vunpack.c.l.b16 %v539
    %v561 = vunpack.c.h.b16 %v539
    %v562 = vunpack.c.l.b16 %v540
    %v563 = vunpack.c.h.b16 %v540
    %v564 = vunpack.c.l.b16 %v541
    %v565 = vunpack.c.h.b16 %v541
    %v566 = vpack.c.b16 %v550, %v550
    %v567 = vpack.c.b16 %v551, %v551
    %v568 = vpack.c.b16 %v552, %v552
    %v569 = vpack.c.b16 %v553, %v553
    %v570 = vpack.c.b16 %v554, %v554
    %v571 = vpack.c.b16 %v555, %v555
    %v572 = vpack.c.b16 %v556, %v556
    %v573 = vpack.c.b16 %v557, %v557
    %v574 = vpack.c.b16 %v558, %v558
    %v575 = vpack.c.b16 %v559, %v559
    %v576 = vpack.c.b16 %v560, %v560
    %v577 = vpack.c.b16 %v561, %v561
    %v578 = vpack.c.b16 %v562, %v562
    %v579 = vpack.c.b16 %v563, %v563
    %v580 = vpack.c.b16 %v564, %v564
    %v581 = vpack.c.b16 %v565, %v565
    %vm598 = vcmask 60416
    %599 = vst.msk [vmem:[%s5] sm:$0xf] %vm598, %v566
    %600 = vst.msk [vmem:[%s5 + $0x4] sm:$0xf] %vm598, %v567
    %601 = vst.msk [vmem:[%s5 + $0x8] sm:$0xf] %vm598, %v568
    %602 = vst.msk [vmem:[%s5 + $0xc] sm:$0xf] %vm598, %v569
    %603 = vst.msk [vmem:[%s5 + $0x10] sm:$0xf] %vm598, %v570
    %604 = vst.msk [vmem:[%s5 + $0x14] sm:$0xf] %vm598, %v571
    %605 = vst.msk [vmem:[%s5 + $0x18] sm:$0xf] %vm598, %v572
    %606 = vst.msk [vmem:[%s5 + $0x1c] sm:$0xf] %vm598, %v573
    %607 = vst.msk [vmem:[%s5 + $0x20] sm:$0xf] %vm598, %v574
    %608 = vst.msk [vmem:[%s5 + $0x24] sm:$0xf] %vm598, %v575
    %609 = vst.msk [vmem:[%s5 + $0x28] sm:$0xf] %vm598, %v576
    %610 = vst.msk [vmem:[%s5 + $0x2c] sm:$0xf] %vm598, %v577
    %611 = vst.msk [vmem:[%s5 + $0x30] sm:$0xf] %vm598, %v578
    %612 = vst.msk [vmem:[%s5 + $0x34] sm:$0xf] %vm598, %v579
    %613 = vst.msk [vmem:[%s5 + $0x38] sm:$0xf] %vm598, %v580
    %614 = vst.msk [vmem:[%s5 + $0x3c] sm:$0xf] %vm598, %v581
  $region29: #{vae_forward.7} parent=0 // pred_fallthru
    _
  // Predicated region
  $region30: #{vae_forward.7} parent=0 // pred_check
    _
  $region31: #{vae_forward.7} parent=0 // pred_check_branch
    %616 = sbr.rel (0) target = $region33
  $region32: #{vae_forward.7} parent=0 // pred_region
    _
  $region33: #{vae_forward.7} parent=0 // pred_fallthru
    _
  // Predicated region
  $region34: #{vae_forward.7} parent=0 // pred_check
    _
  $region35: #{vae_forward.7} parent=0 // pred_check_branch
    %618 = sbr.rel (0) target = $region37
  $region36: #{vae_forward.7} parent=0 // pred_region
    _
  $region37: #{vae_forward.7} parent=0 // pred_fallthru
    _

// kernel: vae_forward.8
$region0: #{vae_forward.8}
  #allocation0 [shape = 'u32[]', space=smem, size = 0x4, offset = 0x4, fixed_abs, tag = 'smem constant byte address 0x4 - core index']
  #allocation1 [shape = 'u32[144,128]{1,0:T(1,128)}', space=vmem, size = 0x12000, scoped, tag = 'internal scratch']
  #allocation2 [shape = 'f32[16,16]{1,0:T(8,128)}', space=vmem, size = 0x2000, scoped, tag = 'scratch operand']
  %s0 = inlined_call_operand.vmem [shape: bf16[16,512], index: 0, kind: input, shape index: {}]
  %s1 = inlined_call_operand.vmem [shape: bf16[512,16], index: 1, kind: input, shape index: {}]
  %s2 = inlined_call_operand.vmem [shape: f32[1,16], index: 2, kind: input, shape index: {}]
  %s3 = inlined_call_operand.vmem [shape: f32[1,16], index: 3, kind: input, shape index: {}]
  %s4 = inlined_call_operand.vmem [shape: f32[1,16], index: 4, kind: input, shape index: {}]
  %s5 = inlined_call_operand.vmem [shape: bf16[16,16], index: 5, kind: output, shape index: {}]
  %s6 = sld [smem:[#allocation0]]
  $region38: #{vae_forward.8} parent=0
    _
  %s8 = ssub.s32 1, %s6
  %s9 = scalar_select 0, %s8, %s6
  // Predicated region
  $region2: #{vae_forward.8} parent=0 // pred_check
    _
  $region3: #{vae_forward.8} parent=0 // pred_check_branch
    %11 = sbr.rel (0) target = $region5
  $region4: #{vae_forward.8} parent=0 // pred_region
    _
  $region5: #{vae_forward.8} parent=0 // pred_fallthru
    _
  // Predicated region
  $region6: #{vae_forward.8} parent=0 // pred_check
    _
  $region7: #{vae_forward.8} parent=0 // pred_check_branch
    %13 = sbr.rel (0) target = $region9
  $region8: #{vae_forward.8} parent=0 // pred_region
    _
  $region9: #{vae_forward.8} parent=0 // pred_fallthru
    _
  // Predicated region
  $region10: #{vae_forward.8} parent=0 // pred_check
    _
  $region11: #{vae_forward.8} parent=0 // pred_check_branch
    %15 = sbr.rel (0) target = $region13
  $region12: #{vae_forward.8} parent=0 // pred_region
    _
  $region13: #{vae_forward.8} parent=0 // pred_fallthru
    _
  // Predicated region
  $region14: #{vae_forward.8} parent=0 // pred_check
    _
  $region15: #{vae_forward.8} parent=0 // pred_check_branch
    %17 = sbr.rel (0) target = $region17
  $region16: #{vae_forward.8} parent=0 // pred_region
    _
  $region17: #{vae_forward.8} parent=0 // pred_fallthru
    _
  // Predicated region
  $region18: #{vae_forward.8} parent=0 // pred_check
    _
  $region19: #{vae_forward.8} parent=0 // pred_check_branch
    %19 = sbr.rel (0) target = $region21
  $region20: #{vae_forward.8} parent=0 // pred_region
    _
  $region21: #{vae_forward.8} parent=0 // pred_fallthru
    _
  %p21 = scmp.eq.s32.totalorder 0, 0
  // Predicated region
  $region22: #{vae_forward.8} parent=0 // pred_check
    %p22 = pneg %p21
  $region23: #{vae_forward.8} parent=0 // pred_check_branch
    %24 = sbr.rel (%p22) target = $region25
  $region24: #{vae_forward.8} parent=0 // pred_region
    %vm25 = vcmask 130048
    %26 = vst.msk [vmem:[#allocation2] sm:$0xff] %vm25, 0.0
    %27 = vst.msk [vmem:[#allocation2 + $0x8] sm:$0xff] %vm25, 0.0
  $region25: #{vae_forward.8} parent=0 // pred_fallthru
    _
  %v28 = vld [vmem:[#allocation2] sm:$0xff]
  %v29 = vld [vmem:[#allocation2 + $0x8] sm:$0xff]
  %v30 = vld [vmem:[%s0] sm:$0xff]
  %v31 = vld [vmem:[%s0 + $0x8] sm:$0xff]
  %v32 = vld [vmem:[%s0 + $0x10] sm:$0xff]
  %v33 = vld [vmem:[%s0 + $0x18] sm:$0xff]
  %v34 = vld [vmem:[%s1] sm:$0xf]
  %v35 = vld [vmem:[%s1 + $0x4] sm:$0xf]
  %v36 = vld [vmem:[%s1 + $0x8] sm:$0xf]
  %v37 = vld [vmem:[%s1 + $0xc] sm:$0xf]
  %v38 = vld [vmem:[%s1 + $0x10] sm:$0xf]
  %v39 = vld [vmem:[%s1 + $0x14] sm:$0xf]
  %v40 = vld [vmem:[%s1 + $0x18] sm:$0xf]
  %v41 = vld [vmem:[%s1 + $0x1c] sm:$0xf]
  %v42 = vld [vmem:[%s1 + $0x20] sm:$0xf]
  %v43 = vld [vmem:[%s1 + $0x24] sm:$0xf]
  %v44 = vld [vmem:[%s1 + $0x28] sm:$0xf]
  %v45 = vld [vmem:[%s1 + $0x2c] sm:$0xf]
  %v46 = vld [vmem:[%s1 + $0x30] sm:$0xf]
  %v47 = vld [vmem:[%s1 + $0x34] sm:$0xf]
  %v48 = vld [vmem:[%s1 + $0x38] sm:$0xf]
  %v49 = vld [vmem:[%s1 + $0x3c] sm:$0xf]
  %v50 = vld [vmem:[%s1 + $0x40] sm:$0xf]
  %v51 = vld [vmem:[%s1 + $0x44] sm:$0xf]
  %v52 = vld [vmem:[%s1 + $0x48] sm:$0xf]
  %v53 = vld [vmem:[%s1 + $0x4c] sm:$0xf]
  %v54 = vld [vmem:[%s1 + $0x50] sm:$0xf]
  %v55 = vld [vmem:[%s1 + $0x54] sm:$0xf]
  %v56 = vld [vmem:[%s1 + $0x58] sm:$0xf]
  %v57 = vld [vmem:[%s1 + $0x5c] sm:$0xf]
  %v58 = vld [vmem:[%s1 + $0x60] sm:$0xf]
  %v59 = vld [vmem:[%s1 + $0x64] sm:$0xf]
  %v60 = vld [vmem:[%s1 + $0x68] sm:$0xf]
  %v61 = vld [vmem:[%s1 + $0x6c] sm:$0xf]
  %v62 = vld [vmem:[%s1 + $0x70] sm:$0xf]
  %v63 = vld [vmem:[%s1 + $0x74] sm:$0xf]
  %v64 = vld [vmem:[%s1 + $0x78] sm:$0xf]
  %v65 = vld [vmem:[%s1 + $0x7c] sm:$0xf]
  %v66 = vld [vmem:[%s1 + $0x80] sm:$0xf]
  %v67 = vld [vmem:[%s1 + $0x84] sm:$0xf]
  %v68 = vld [vmem:[%s1 + $0x88] sm:$0xf]
  %v69 = vld [vmem:[%s1 + $0x8c] sm:$0xf]
  %v70 = vld [vmem:[%s1 + $0x90] sm:$0xf]
  %v71 = vld [vmem:[%s1 + $0x94] sm:$0xf]
  %v72 = vld [vmem:[%s1 + $0x98] sm:$0xf]
  %v73 = vld [vmem:[%s1 + $0x9c] sm:$0xf]
  %v74 = vld [vmem:[%s1 + $0xa0] sm:$0xf]
  %v75 = vld [vmem:[%s1 + $0xa4] sm:$0xf]
  %v76 = vld [vmem:[%s1 + $0xa8] sm:$0xf]
  %v77 = vld [vmem:[%s1 + $0xac] sm:$0xf]
  %v78 = vld [vmem:[%s1 + $0xb0] sm:$0xf]
  %v79 = vld [vmem:[%s1 + $0xb4] sm:$0xf]
  %v80 = vld [vmem:[%s1 + $0xb8] sm:$0xf]
  %v81 = vld [vmem:[%s1 + $0xbc] sm:$0xf]
  %v82 = vld [vmem:[%s1 + $0xc0] sm:$0xf]
  %v83 = vld [vmem:[%s1 + $0xc4] sm:$0xf]
  %v84 = vld [vmem:[%s1 + $0xc8] sm:$0xf]
  %v85 = vld [vmem:[%s1 + $0xcc] sm:$0xf]
  %v86 = vld [vmem:[%s1 + $0xd0] sm:$0xf]
  %v87 = vld [vmem:[%s1 + $0xd4] sm:$0xf]
  %v88 = vld [vmem:[%s1 + $0xd8] sm:$0xf]
  %v89 = vld [vmem:[%s1 + $0xdc] sm:$0xf]
  %v90 = vld [vmem:[%s1 + $0xe0] sm:$0xf]
  %v91 = vld [vmem:[%s1 + $0xe4] sm:$0xf]
  %v92 = vld [vmem:[%s1 + $0xe8] sm:$0xf]
  %v93 = vld [vmem:[%s1 + $0xec] sm:$0xf]
  %v94 = vld [vmem:[%s1 + $0xf0] sm:$0xf]
  %v95 = vld [vmem:[%s1 + $0xf4] sm:$0xf]
  %v96 = vld [vmem:[%s1 + $0xf8] sm:$0xf]
  %v97 = vld [vmem:[%s1 + $0xfc] sm:$0xf]
  %v102 = vunpack.c.l.b16 %v30
  %v103 = vunpack.c.h.b16 %v30
  %v104 = vunpack.c.l.b16 %v31
  %v105 = vunpack.c.h.b16 %v31
  %v106 = vunpack.c.l.b16 %v32
  %v107 = vunpack.c.h.b16 %v32
  %v108 = vunpack.c.l.b16 %v33
  %v109 = vunpack.c.h.b16 %v33
  %v110 = vpack.c.b16 %v106, %v102
  %v111 = vpack.c.b16 %v107, %v103
  %v112 = vpack.c.b16 %v108, %v104
  %v113 = vpack.c.b16 %v109, %v105
  %v182 = vunpack.c.l.b16 %v34
  %v183 = vunpack.c.l.b16 %v35
  %v184 = vunpack.c.l.b16 %v36
  %v185 = vunpack.c.l.b16 %v37
  %v186 = vunpack.c.l.b16 %v38
  %v187 = vunpack.c.l.b16 %v39
  %v188 = vunpack.c.l.b16 %v40
  %v189 = vunpack.c.l.b16 %v41
  %v190 = vunpack.c.l.b16 %v42
  %v191 = vunpack.c.l.b16 %v43
  %v192 = vunpack.c.l.b16 %v44
  %v193 = vunpack.c.l.b16 %v45
  %v194 = vunpack.c.l.b16 %v46
  %v195 = vunpack.c.l.b16 %v47
  %v196 = vunpack.c.l.b16 %v48
  %v197 = vunpack.c.l.b16 %v49
  %v198 = vunpack.c.l.b16 %v50
  %v199 = vunpack.c.l.b16 %v51
  %v200 = vunpack.c.l.b16 %v52
  %v201 = vunpack.c.l.b16 %v53
  %v202 = vunpack.c.l.b16 %v54
  %v203 = vunpack.c.l.b16 %v55
  %v204 = vunpack.c.l.b16 %v56
  %v205 = vunpack.c.l.b16 %v57
  %v206 = vunpack.c.l.b16 %v58
  %v207 = vunpack.c.l.b16 %v59
  %v208 = vunpack.c.l.b16 %v60
  %v209 = vunpack.c.l.b16 %v61
  %v210 = vunpack.c.l.b16 %v62
  %v211 = vunpack.c.l.b16 %v63
  %v212 = vunpack.c.l.b16 %v64
  %v213 = vunpack.c.l.b16 %v65
  %v214 = vunpack.c.l.b16 %v66
  %v215 = vunpack.c.l.b16 %v67
  %v216 = vunpack.c.l.b16 %v68
  %v217 = vunpack.c.l.b16 %v69
  %v218 = vunpack.c.l.b16 %v70
  %v219 = vunpack.c.l.b16 %v71
  %v220 = vunpack.c.l.b16 %v72
  %v221 = vunpack.c.l.b16 %v73
  %v222 = vunpack.c.l.b16 %v74
  %v223 = vunpack.c.l.b16 %v75
  %v224 = vunpack.c.l.b16 %v76
  %v225 = vunpack.c.l.b16 %v77
  %v226 = vunpack.c.l.b16 %v78
  %v227 = vunpack.c.l.b16 %v79
  %v228 = vunpack.c.l.b16 %v80
  %v229 = vunpack.c.l.b16 %v81
  %v230 = vunpack.c.l.b16 %v82
  %v231 = vunpack.c.l.b16 %v83
  %v232 = vunpack.c.l.b16 %v84
  %v233 = vunpack.c.l.b16 %v85
  %v234 = vunpack.c.l.b16 %v86
  %v235 = vunpack.c.l.b16 %v87
  %v236 = vunpack.c.l.b16 %v88
  %v237 = vunpack.c.l.b16 %v89
  %v238 = vunpack.c.l.b16 %v90
  %v239 = vunpack.c.l.b16 %v91
  %v240 = vunpack.c.l.b16 %v92
  %v241 = vunpack.c.l.b16 %v93
  %v242 = vunpack.c.l.b16 %v94
  %v243 = vunpack.c.l.b16 %v95
  %v244 = vunpack.c.l.b16 %v96
  %v245 = vunpack.c.l.b16 %v97
  %v246 = vpack.c.b16 %v183, %v182
  %v247 = vpack.c.b16 %v185, %v184
  %v248 = vpack.c.b16 %v187, %v186
  %v249 = vpack.c.b16 %v189, %v188
  %v250 = vpack.c.b16 %v191, %v190
  %v251 = vpack.c.b16 %v193, %v192
  %v252 = vpack.c.b16 %v195, %v194
  %v253 = vpack.c.b16 %v197, %v196
  %v254 = vpack.c.b16 %v199, %v198
  %v255 = vpack.c.b16 %v201, %v200
  %v256 = vpack.c.b16 %v203, %v202
  %v257 = vpack.c.b16 %v205, %v204
  %v258 = vpack.c.b16 %v207, %v206
  %v259 = vpack.c.b16 %v209, %v208
  %v260 = vpack.c.b16 %v211, %v210
  %v261 = vpack.c.b16 %v213, %v212
  %v262 = vpack.c.b16 %v215, %v214
  %v263 = vpack.c.b16 %v217, %v216
  %v264 = vpack.c.b16 %v219, %v218
  %v265 = vpack.c.b16 %v221, %v220
  %v266 = vpack.c.b16 %v223, %v222
  %v267 = vpack.c.b16 %v225, %v224
  %v268 = vpack.c.b16 %v227, %v226
  %v269 = vpack.c.b16 %v229, %v228
  %v270 = vpack.c.b16 %v231, %v230
  %v271 = vpack.c.b16 %v233, %v232
  %v272 = vpack.c.b16 %v235, %v234
  %v273 = vpack.c.b16 %v237, %v236
  %v274 = vpack.c.b16 %v239, %v238
  %v275 = vpack.c.b16 %v241, %v240
  %v276 = vpack.c.b16 %v243, %v242
  %v277 = vpack.c.b16 %v245, %v244
  %310 = vmatprep.subr.bf16.mxu0 0
  %311 = vmatpush1.bf16.msra.mxu0 %v253
  %312 = vmatprep.subr.bf16.mxu0 0
  %313 = vmatpush1.bf16.msra.mxu0 %v252
  %314 = vmatprep.subr.bf16.mxu0 0
  %315 = vmatpush1.bf16.msra.mxu0 %v251
  %316 = vmatprep.subr.bf16.mxu0 0
  %317 = vmatpush1.bf16.msra.mxu0 %v250
  %318 = vmatprep.subr.bf16.mxu0 0
  %319 = vmatpush1.bf16.msra.mxu0 %v249
  %320 = vmatprep.subr.bf16.mxu0 0
  %321 = vmatpush1.bf16.msra.mxu0 %v248
  %322 = vmatprep.subr.bf16.mxu0 0
  %323 = vmatpush1.bf16.msra.mxu0 %v247
  %324 = vmatprep.subr.bf16.mxu0 0
  %325 = vmatpush1.bf16.msra.mxu0 %v246
  %326 = vmatprep.subr.bf16.mxu0 0
  %327 = vmatpush2.bf16.msra.mxu0 %v261
  %328 = vmatprep.subr.bf16.mxu0 0
  %329 = vmatpush2.bf16.msra.mxu0 %v260
  %330 = vmatprep.subr.bf16.mxu0 0
  %331 = vmatpush2.bf16.msra.mxu0 %v259
  %332 = vmatprep.subr.bf16.mxu0 0
  %333 = vmatpush2.bf16.msra.mxu0 %v258
  %334 = vmatprep.subr.bf16.mxu0 0
  %335 = vmatpush2.bf16.msra.mxu0 %v257
  %336 = vmatprep.subr.bf16.mxu0 0
  %337 = vmatpush2.bf16.msra.mxu0 %v256
  %338 = vmatprep.subr.bf16.mxu0 0
  %339 = vmatpush2.bf16.msra.mxu0 %v255
  %340 = vmatprep.subr.bf16.mxu0 0
  %341 = vmatpush2.bf16.msra.mxu0 %v254
  %342 = vmatprep.mubr.bf16.mxu0 %v111
  %343 = vmatmul.mubr.bf16.gmra.mxu0 %v110
  %v344 = vpop.f32.mrf.mxu0
  %v345 = vadd.f32 0.0, %v344
  %v346 = vpop.f32.mrf.mxu0
  %v347 = vpop.f32.mrf.mxu0
  %v348 = vadd.f32 0.0, %v347
  %v349 = vpop.f32.mrf.mxu0
  %350 = vdwg.mxu0
  %351 = vmatprep.subr.bf16.mxu0 0
  %352 = vmatpush1.bf16.msra.mxu0 %v269
  %353 = vmatprep.subr.bf16.mxu0 0
  %354 = vmatpush1.bf16.msra.mxu0 %v268
  %355 = vmatprep.subr.bf16.mxu0 0
  %356 = vmatpush1.bf16.msra.mxu0 %v267
  %357 = vmatprep.subr.bf16.mxu0 0
  %358 = vmatpush1.bf16.msra.mxu0 %v266
  %359 = vmatprep.subr.bf16.mxu0 0
  %360 = vmatpush1.bf16.msra.mxu0 %v265
  %361 = vmatprep.subr.bf16.mxu0 0
  %362 = vmatpush1.bf16.msra.mxu0 %v264
  %363 = vmatprep.subr.bf16.mxu0 0
  %364 = vmatpush1.bf16.msra.mxu0 %v263
  %365 = vmatprep.subr.bf16.mxu0 0
  %366 = vmatpush1.bf16.msra.mxu0 %v262
  %367 = vmatprep.subr.bf16.mxu0 0
  %368 = vmatpush2.bf16.msra.mxu0 %v277
  %369 = vmatprep.subr.bf16.mxu0 0
  %370 = vmatpush2.bf16.msra.mxu0 %v276
  %371 = vmatprep.subr.bf16.mxu0 0
  %372 = vmatpush2.bf16.msra.mxu0 %v275
  %373 = vmatprep.subr.bf16.mxu0 0
  %374 = vmatpush2.bf16.msra.mxu0 %v274
  %375 = vmatprep.subr.bf16.mxu0 0
  %376 = vmatpush2.bf16.msra.mxu0 %v273
  %377 = vmatprep.subr.bf16.mxu0 0
  %378 = vmatpush2.bf16.msra.mxu0 %v272
  %379 = vmatprep.subr.bf16.mxu0 0
  %380 = vmatpush2.bf16.msra.mxu0 %v271
  %381 = vmatprep.subr.bf16.mxu0 0
  %382 = vmatpush2.bf16.msra.mxu0 %v270
  %383 = vmatprep.mubr.bf16.mxu0 %v113
  %384 = vmatmul.mubr.bf16.gmra.mxu0 %v112
  %v385 = vpop.f32.mrf.mxu0
  %v386 = vadd.f32 %v345, %v385
  %v387 = vpop.f32.mrf.mxu0
  %v388 = vpop.f32.mrf.mxu0
  %v389 = vadd.f32 %v348, %v388
  %v390 = vpop.f32.mrf.mxu0
  %391 = vdwg.mxu0
  %v392 = vadd.f32 %v28, %v386
  %v393 = vadd.f32 %v29, %v389
  %vm394 = vcmask 130048
  %395 = vst.msk [vmem:[#allocation2] sm:$0xff] %vm394, %v392
  %396 = vst.msk [vmem:[#allocation2 + $0x8] sm:$0xff] %vm394, %v393
  // Predicated region
  $region26: #{vae_forward.8} parent=0 // pred_check
    %p397 = pneg %p21
  $region27: #{vae_forward.8} parent=0 // pred_check_branch
    %399 = sbr.rel (%p397) target = $region29
  $region28: #{vae_forward.8} parent=0 // pred_region
    %v400 = vld [vmem:[#allocation2] sm:$0xff]
    %v401 = vld [vmem:[#allocation2 + $0x8] sm:$0xff]
    %v402 = vld [vmem:[%s2] sm:$0x1]
    %v404 = vlaneseq
    %v405 = vshrl.u32 %v404, 7
    %v406 = vsub.s32 0, %v405
    %v407 = vrot.slane %v402, %v406
    %v409 = vadd.f32 %v400, %v407
    %v410 = vadd.f32 %v401, %v407
    %v411 = vsel %vm394, %v409, 0.0
    %v412 = vsel %vm394, %v410, 0.0
    %v413 = vadd.f32 %v411, %v412
    %v414 = vrot.slane %v413, 4
    %v415 = vadd.f32 %v413, %v414
    %v416 = vrot.slane %v415, 2
    %v417 = vadd.f32 %v415, %v416
    %v418 = vrot.slane %v417, 1
    %v419 = vadd.f32 %v417, %v418
    %v420 = vmul.f32 %v419, 0.0625
    %v421 = vmul.f32 %v409, %v409
    %v422 = vmul.f32 %v410, %v410
    %v423 = vsel %vm394, %v421, 0.0
    %v424 = vsel %vm394, %v422, 0.0
    %v425 = vadd.f32 %v423, %v424
    %v426 = vrot.slane %v425, 4
    %v427 = vadd.f32 %v425, %v426
    %v428 = vrot.slane %v427, 2
    %v429 = vadd.f32 %v427, %v428
    %v430 = vrot.slane %v429, 1
    %v431 = vadd.f32 %v429, %v430
    %v432 = vmul.f32 %v431, 0.0625
    %v433 = vmul.f32 %v420, %v420
    %v434 = vsub.f32 %v432, %v433
    %v435 = vmax.f32 %v434, 0.0
    %v436 = vsub.f32 %v409, %v420
    %v437 = vsub.f32 %v410, %v420
    %v438 = vadd.f32 %v435, 1e-05
    %v439 = vrsqrt.pop %v438
    %v440 = vmul.f32 %v436, %v439
    %v441 = vmul.f32 %v437, %v439
    %v442 = vld [vmem:[%s3] sm:$0x1]
    %v444 = vlaneseq
    %v445 = vshrl.u32 %v444, 7
    %v446 = vsub.s32 0, %v445
    %v447 = vrot.slane %v442, %v446
    %v449 = vmul.f32 %v440, %v447
    %v450 = vmul.f32 %v441, %v447
    %v451 = vld [vmem:[%s4] sm:$0x1]
    %v453 = vlaneseq
    %v454 = vshrl.u32 %v453, 7
    %v455 = vsub.s32 0, %v454
    %v456 = vrot.slane %v451, %v455
    %v458 = vadd.f32 %v449, %v456
    %v459 = vadd.f32 %v450, %v456
    %v460 = vmax.f32 %v458, 0.0
    %v461 = vmax.f32 %v459, 0.0
    %v462 = vpack.c.bf16 %v461, %v460
    %v464 = vunpack.c.l.b16 %v462
    %v465 = vunpack.c.h.b16 %v462
    %v466 = vpack.c.b16 %v464, %v464
    %v467 = vpack.c.b16 %v465, %v465
    %vm470 = vcmask 125952
    %471 = vst.msk [vmem:[%s5] sm:$0xf] %vm470, %v466
    %472 = vst.msk [vmem:[%s5 + $0x4] sm:$0xf] %vm470, %v467
  $region29: #{vae_forward.8} parent=0 // pred_fallthru
    _
  // Predicated region
  $region30: #{vae_forward.8} parent=0 // pred_check
    _
  $region31: #{vae_forward.8} parent=0 // pred_check_branch
    %474 = sbr.rel (0) target = $region33
  $region32: #{vae_forward.8} parent=0 // pred_region
    _
  $region33: #{vae_forward.8} parent=0 // pred_fallthru
    _
  // Predicated region
  $region34: #{vae_forward.8} parent=0 // pred_check
    _
  $region35: #{vae_forward.8} parent=0 // pred_check_branch
    %476 = sbr.rel (0) target = $region37
  $region36: #{vae_forward.8} parent=0 // pred_region
    _
  $region37: #{vae_forward.8} parent=0 // pred_fallthru
    _

// kernel: vae_forward.9
$region0: #{vae_forward.9}
  #allocation0 [shape = 'u32[]', space=smem, size = 0x4, offset = 0x4, fixed_abs, tag = 'smem constant byte address 0x4 - core index']
  #allocation1 [shape = 'u32[144,128]{1,0:T(1,128)}', space=vmem, size = 0x12000, scoped, tag = 'internal scratch']
  #allocation2 [shape = 'f32[2,100]{1,0:T(2,128)}', space=vmem, size = 0x400, scoped, tag = 'scratch operand']
  %s0 = inlined_call_operand.vmem [shape: bf16[2,1024], index: 0, kind: input, shape index: {}]
  %s1 = inlined_call_operand.vmem [shape: bf16[1024,100], index: 1, kind: input, shape index: {}]
  %s2 = inlined_call_operand.vmem [shape: f32[1,100], index: 2, kind: input, shape index: {}]
  %s3 = inlined_call_operand.vmem [shape: f32[1,100], index: 3, kind: input, shape index: {}]
  %s4 = inlined_call_operand.vmem [shape: f32[1,100], index: 4, kind: input, shape index: {}]
  %s5 = inlined_call_operand.vmem [shape: bf16[2,100], index: 5, kind: output, shape index: {}]
  %s6 = sld [smem:[#allocation0]]
  $region61: #{vae_forward.9} parent=0
    _
  %s8 = ssub.s32 1, %s6
  %s9 = scalar_select 0, %s8, %s6
  loop: start=0, step=1, limit=4
  $region2: #{vae_forward.9} parent=0 // loop_pre_header
    _
  $region3: #{vae_forward.9} parent=0 // loop_header
    %s11 = sphi 0, %s15
    %p12 = scmp.ge.s32.totalorder %s11, 4
    %s21 = sphi 0, %s23
    %s24 = sphi 0, %s21
    %s25 = sphi 0, %s24
    %s41 = sphi 0, %s25
    %s47 = sphi 0, %s49
    %s50 = sphi 0, %s47
    %s51 = sphi 0, %s50
    %s67 = sphi 0, %s51
    %s71 = sphi 0, %s71
    %s73 = sphi 0, %s71
    %s74 = sphi 0, %s73
    %s88 = sphi 0, %s74
    %s92 = sphi 0, %s92
    %s94 = sphi 0, %s92
    %s95 = sphi 0, %s94
    %s109 = sphi 0, %s95
    %s113 = sphi 0, %s113
    %s115 = sphi 0, %s113
    %s116 = sphi 0, %s115
    %s130 = sphi 0, %s116
    %s134 = sphi 0, %s134
    %s136 = sphi 0, %s134
    %s137 = sphi 0, %s136
    %s151 = sphi 0, %s137
  $region4: #{vae_forward.9} parent=0 // loop_header_branch
    %14 = sbr.rel (%p12) target = $region8
  $region5: #{vae_forward.9} parent=0 // loop_body
    %s16 = ssub.s32 %s11, 1
    %s17 = ssub.s32 %s11, 2
    %s18 = sadd.s32 %s11, 1
    %s19 = ssub.s32 %s11, %s18
    %p20 = scmp.eq.s32.totalorder %s19, 0
    %s22 = sadd.s32 %s21, 1
    %s23 = scalar_select %p20, %s21, %s22
    %p26 = pneg %p20
    %p27 = scmp.eq.s32.totalorder %s11, 1
    %p28 = por %p26, %p27
    %p29 = scmp.ne.s32.totalorder %s21, %s24
    %p30 = scmp.eq.s32.totalorder %s11, 0
    %p31 = por %p29, %p30
    %p32 = scmp.ne.s32.totalorder %s21, %s24
    %p33 = scmp.eq.s32.totalorder %s16, 1
    %p34 = por %p32, %p33
    %p35 = scmp.ne.s32.totalorder %s24, %s25
    %p36 = scmp.eq.s32.totalorder %s16, 0
    %p37 = por %p35, %p36
    %p38 = scmp.ne.s32.totalorder %s24, %s25
    %p39 = scmp.eq.s32.totalorder %s17, 1
    %p40 = por %p38, %p39
    %p42 = scmp.ne.s32.totalorder %s25, %s41
    %p43 = scmp.eq.s32.totalorder %s17, 0
    %p44 = por %p42, %p43
    %s45 = ssub.s32 %s11, %s18
    %p46 = scmp.eq.s32.totalorder %s45, 0
    %s48 = sadd.s32 %s47, 1
    %s49 = scalar_select %p46, %s47, %s48
    %p52 = pneg %p46
    %p53 = scmp.eq.s32.totalorder %s11, 1
    %p54 = por %p52, %p53
    %p55 = scmp.ne.s32.totalorder %s47, %s50
    %p56 = scmp.eq.s32.totalorder %s11, 0
    %p57 = por %p55, %p56
    %p58 = scmp.ne.s32.totalorder %s47, %s50
    %p59 = scmp.eq.s32.totalorder %s16, 1
    %p60 = por %p58, %p59
    %p61 = scmp.ne.s32.totalorder %s50, %s51
    %p62 = scmp.eq.s32.totalorder %s16, 0
    %p63 = por %p61, %p62
    %p64 = scmp.ne.s32.totalorder %s50, %s51
    %p65 = scmp.eq.s32.totalorder %s17, 1
    %p66 = por %p64, %p65
    %p68 = scmp.ne.s32.totalorder %s51, %s67
    %p69 = scmp.eq.s32.totalorder %s17, 0
    %p70 = por %p68, %p69
    %s72 = sadd.s32 %s71, 1
    %p75 = scmp.eq.s32.totalorder %s11, 1
    %p76 = scmp.ne.s32.totalorder %s71, %s73
    %p77 = scmp.eq.s32.totalorder %s11, 0
    %p78 = por %p76, %p77
    %p79 = scmp.ne.s32.totalorder %s71, %s73
    %p80 = scmp.eq.s32.totalorder %s16, 1
    %p81 = por %p79, %p80
    %p82 = scmp.ne.s32.totalorder %s73, %s74
    %p83 = scmp.eq.s32.totalorder %s16, 0
    %p84 = por %p82, %p83
    %p85 = scmp.ne.s32.totalorder %s73, %s74
    %p86 = scmp.eq.s32.totalorder %s17, 1
    %p87 = por %p85, %p86
    %p89 = scmp.ne.s32.totalorder %s74, %s88
    %p90 = scmp.eq.s32.totalorder %s17, 0
    %p91 = por %p89, %p90
    %s93 = sadd.s32 %s92, 1
    %p96 = scmp.eq.s32.totalorder %s11, 1
    %p97 = scmp.ne.s32.totalorder %s92, %s94
    %p98 = scmp.eq.s32.totalorder %s11, 0
    %p99 = por %p97, %p98
    %p100 = scmp.ne.s32.totalorder %s92, %s94
    %p101 = scmp.eq.s32.totalorder %s16, 1
    %p102 = por %p100, %p101
    %p103 = scmp.ne.s32.totalorder %s94, %s95
    %p104 = scmp.eq.s32.totalorder %s16, 0
    %p105 = por %p103, %p104
    %p106 = scmp.ne.s32.totalorder %s94, %s95
    %p107 = scmp.eq.s32.totalorder %s17, 1
    %p108 = por %p106, %p107
    %p110 = scmp.ne.s32.totalorder %s95, %s109
    %p111 = scmp.eq.s32.totalorder %s17, 0
    %p112 = por %p110, %p111
    %s114 = sadd.s32 %s113, 1
    %p117 = scmp.eq.s32.totalorder %s11, 1
    %p118 = scmp.ne.s32.totalorder %s113, %s115
    %p119 = scmp.eq.s32.totalorder %s11, 0
    %p120 = por %p118, %p119
    %p121 = scmp.ne.s32.totalorder %s113, %s115
    %p122 = scmp.eq.s32.totalorder %s16, 1
    %p123 = por %p121, %p122
    %p124 = scmp.ne.s32.totalorder %s115, %s116
    %p125 = scmp.eq.s32.totalorder %s16, 0
    %p126 = por %p124, %p125
    %p127 = scmp.ne.s32.totalorder %s115, %s116
    %p128 = scmp.eq.s32.totalorder %s17, 1
    %p129 = por %p127, %p128
    %p131 = scmp.ne.s32.totalorder %s116, %s130
    %p132 = scmp.eq.s32.totalorder %s17, 0
    %p133 = por %p131, %p132
    %s135 = sadd.s32 %s134, 1
    %p138 = scmp.eq.s32.totalorder %s11, 1
    %p139 = scmp.ne.s32.totalorder %s134, %s136
    %p140 = scmp.eq.s32.totalorder %s11, 0
    %p141 = por %p139, %p140
    %p142 = scmp.ne.s32.totalorder %s134, %s136
    %p143 = scmp.eq.s32.totalorder %s16, 1
    %p144 = por %p142, %p143
    %p145 = scmp.ne.s32.totalorder %s136, %s137
    %p146 = scmp.eq.s32.totalorder %s16, 0
    %p147 = por %p145, %p146
    %p148 = scmp.ne.s32.totalorder %s136, %s137
    %p149 = scmp.eq.s32.totalorder %s17, 1
    %p150 = por %p148, %p149
    %p152 = scmp.ne.s32.totalorder %s137, %s151
    %p153 = scmp.eq.s32.totalorder %s17, 0
    %p154 = por %p152, %p153
    %p155 = scmp.le.s32.totalorder 1, %s11
    %p156 = scmp.lt.s32.totalorder %s11, 3
    %p157 = pnand %p155, %p156
    %p158 = pneg %p157
    // Predicated region
    $region9: #{vae_forward.9} parent=5 // pred_check
      _
    $region10: #{vae_forward.9} parent=5 // pred_check_branch
      %160 = sbr.rel (%p157) target = $region12
    $region11: #{vae_forward.9} parent=5 // pred_region
      %s161 = ssub.s32 %s11, 1
      // Predicated region
      $region13: #{vae_forward.9} parent=11 // pred_check
        %p162 = pneg %p84
      $region14: #{vae_forward.9} parent=11 // pred_check_branch
        %164 = sbr.rel (%p162) target = $region16
      $region15: #{vae_forward.9} parent=11 // pred_region
        _
      $region16: #{vae_forward.9} parent=11 // pred_fallthru
        _
      // Predicated region
      $region17: #{vae_forward.9} parent=11 // pred_check
        %p165 = pneg %p105
      $region18: #{vae_forward.9} parent=11 // pred_check_branch
        %167 = sbr.rel (%p165) target = $region20
      $region19: #{vae_forward.9} parent=11 // pred_region
        _
      $region20: #{vae_forward.9} parent=11 // pred_fallthru
        _
      // Predicated region
      $region21: #{vae_forward.9} parent=11 // pred_check
        %p168 = pneg %p126
      $region22: #{vae_forward.9} parent=11 // pred_check_branch
        %170 = sbr.rel (%p168) target = $region24
      $region23: #{vae_forward.9} parent=11 // pred_region
        _
      $region24: #{vae_forward.9} parent=11 // pred_fallthru
        _
    $region12: #{vae_forward.9} parent=5 // pred_fallthru
      _
    %p171 = scmp.lt.s32.totalorder %s11, 2
    // Predicated region
    $region25: #{vae_forward.9} parent=5 // pred_check
      %p172 = pneg %p171
    $region26: #{vae_forward.9} parent=5 // pred_check_branch
      %174 = sbr.rel (%p172) target = $region28
    $region27: #{vae_forward.9} parent=5 // pred_region
      // Predicated region
      $region29: #{vae_forward.9} parent=27 // pred_check
        %p175 = pneg %p31
      $region30: #{vae_forward.9} parent=27 // pred_check_branch
        %177 = sbr.rel (%p175) target = $region32
      $region31: #{vae_forward.9} parent=27 // pred_region
        %s178 = smul.u32 4, %s11
        %p179 = scmp.lt.s32.totalorder %s178, 7
        %s180 = scalar_select %p179, %s178, 7
        %s181 = scalar_lea.vmem %s0, %s180
        %s182 = smul.u32 4, %s11
      $region32: #{vae_forward.9} parent=27 // pred_fallthru
        _
      // Predicated region
      $region33: #{vae_forward.9} parent=27 // pred_check
        %p183 = pneg %p57
      $region34: #{vae_forward.9} parent=27 // pred_check_branch
        %185 = sbr.rel (%p183) target = $region36
      $region35: #{vae_forward.9} parent=27 // pred_region
        %s186 = smul.u32 64, %s11
        %p187 = scmp.lt.s32.totalorder %s186, 127
        %s188 = scalar_select %p187, %s186, 127
        %s189 = smul.addr %s188, 4
        %s190 = scalar_lea.vmem %s1, %s189
        %s191 = smul.u32 64, %s11
      $region36: #{vae_forward.9} parent=27 // pred_fallthru
        _
    $region28: #{vae_forward.9} parent=5 // pred_fallthru
      _
    %p192 = scmp.le.s32.totalorder 1, %s11
    %p193 = scmp.lt.s32.totalorder %s11, 3
    %p194 = pnand %p192, %p193
    %p195 = pneg %p194
    // Predicated region
    $region37: #{vae_forward.9} parent=5 // pred_check
      _
    $region38: #{vae_forward.9} parent=5 // pred_check_branch
      %197 = sbr.rel (%p194) target = $region40
    $region39: #{vae_forward.9} parent=5 // pred_region
      %s198 = ssub.s32 %s11, 1
      %s199 = smul.u32 4, %s16
      %p200 = scmp.lt.s32.totalorder %s199, 7
      %s201 = scalar_select %p200, %s199, 7
      %s202 = scalar_lea.vmem %s0, %s201
      %p203 = pneg %p37
      %p204 = pneg %p34
      %s205 = smul.u32 64, %s16
      %p206 = scmp.lt.s32.totalorder %s205, 127
      %s207 = scalar_select %p206, %s205, 127
      %s208 = smul.addr %s207, 4
      %s209 = scalar_lea.vmem %s1, %s208
      %p210 = pneg %p63
      %p211 = pneg %p60
      %p212 = pneg %p84
      %p213 = pneg %p81
      %p214 = pneg %p105
      %p215 = pneg %p102
      %p216 = pneg %p126
      %p217 = pneg %p123
      %p218 = pneg %p147
      %p219 = pneg %p144
      %s220 = smul.u32 4, %s16
      %p221 = scmp.lt.s32.totalorder %s220, 7
      %s222 = scalar_select %p221, %s220, 7
      %s223 = scalar_lea.vmem %s0, %s222
      %s224 = smul.u32 4, %s16
      %s225 = smul.u32 64, %s16
      %p226 = scmp.lt.s32.totalorder %s225, 127
      %s227 = scalar_select %p226, %s225, 127
      %s228 = smul.addr %s227, 4
      %s229 = scalar_lea.vmem %s1, %s228
      %s230 = smul.u32 64, %s16
      %p232 = scmp.eq.s32.totalorder %s16, 0
      // Predicated region
      $region41: #{vae_forward.9} parent=39 // pred_check
        %p233 = pneg %p232
      $region42: #{vae_forward.9} parent=39 // pred_check_branch
        %235 = sbr.rel (%p233) target = $region44
      $region43: #{vae_forward.9} parent=39 // pred_region
        %vm236 = vcmask 812032
        %237 = vst.msk [vmem:[#allocation2] sm:$0x3] %vm236, 0.0
      $region44: #{vae_forward.9} parent=39 // pred_fallthru
        _
      %v238 = vld [vmem:[#allocation2] sm:$0x3]
      %v239 = vld [vmem:[%s223] sm:$0xf]
      %v240 = vld [vmem:[%s229] sm:$0xf]
      %v241 = vld [vmem:[%s229 + $0x4] sm:$0xf]
      %v242 = vld [vmem:[%s229 + $0x8] sm:$0xf]
      %v243 = vld [vmem:[%s229 + $0xc] sm:$0xf]
      %v244 = vld [vmem:[%s229 + $0x10] sm:$0xf]
      %v245 = vld [vmem:[%s229 + $0x14] sm:$0xf]
      %v246 = vld [vmem:[%s229 + $0x18] sm:$0xf]
      %v247 = vld [vmem:[%s229 + $0x1c] sm:$0xf]
      %v248 = vld [vmem:[%s229 + $0x20] sm:$0xf]
      %v249 = vld [vmem:[%s229 + $0x24] sm:$0xf]
      %v250 = vld [vmem:[%s229 + $0x28] sm:$0xf]
      %v251 = vld [vmem:[%s229 + $0x2c] sm:$0xf]
      %v252 = vld [vmem:[%s229 + $0x30] sm:$0xf]
      %v253 = vld [vmem:[%s229 + $0x34] sm:$0xf]
      %v254 = vld [vmem:[%s229 + $0x38] sm:$0xf]
      %v255 = vld [vmem:[%s229 + $0x3c] sm:$0xf]
      %v256 = vld [vmem:[%s229 + $0x40] sm:$0xf]
      %v257 = vld [vmem:[%s229 + $0x44] sm:$0xf]
      %v258 = vld [vmem:[%s229 + $0x48] sm:$0xf]
      %v259 = vld [vmem:[%s229 + $0x4c] sm:$0xf]
      %v260 = vld [vmem:[%s229 + $0x50] sm:$0xf]
      %v261 = vld [vmem:[%s229 + $0x54] sm:$0xf]
      %v262 = vld [vmem:[%s229 + $0x58] sm:$0xf]
      %v263 = vld [vmem:[%s229 + $0x5c] sm:$0xf]
      %v264 = vld [vmem:[%s229 + $0x60] sm:$0xf]
      %v265 = vld [vmem:[%s229 + $0x64] sm:$0xf]
      %v266 = vld [vmem:[%s229 + $0x68] sm:$0xf]
      %v267 = vld [vmem:[%s229 + $0x6c] sm:$0xf]
      %v268 = vld [vmem:[%s229 + $0x70] sm:$0xf]
      %v269 = vld [vmem:[%s229 + $0x74] sm:$0xf]
      %v270 = vld [vmem:[%s229 + $0x78] sm:$0xf]
      %v271 = vld [vmem:[%s229 + $0x7c] sm:$0xf]
      %v272 = vld [vmem:[%s229 + $0x80] sm:$0xf]
      %v273 = vld [vmem:[%s229 + $0x84] sm:$0xf]
      %v274 = vld [vmem:[%s229 + $0x88] sm:$0xf]
      %v275 = vld [vmem:[%s229 + $0x8c] sm:$0xf]
      %v276 = vld [vmem:[%s229 + $0x90] sm:$0xf]
      %v277 = vld [vmem:[%s229 + $0x94] sm:$0xf]
      %v278 = vld [vmem:[%s229 + $0x98] sm:$0xf]
      %v279 = vld [vmem:[%s229 + $0x9c] sm:$0xf]
      %v280 = vld [vmem:[%s229 + $0xa0] sm:$0xf]
      %v281 = vld [vmem:[%s229 + $0xa4] sm:$0xf]
      %v282 = vld [vmem:[%s229 + $0xa8] sm:$0xf]
      %v283 = vld [vmem:[%s229 + $0xac] sm:$0xf]
      %v284 = vld [vmem:[%s229 + $0xb0] sm:$0xf]
      %v285 = vld [vmem:[%s229 + $0xb4] sm:$0xf]
      %v286 = vld [vmem:[%s229 + $0xb8] sm:$0xf]
      %v287 = vld [vmem:[%s229 + $0xbc] sm:$0xf]
      %v288 = vld [vmem:[%s229 + $0xc0] sm:$0xf]
      %v289 = vld [vmem:[%s229 + $0xc4] sm:$0xf]
      %v290 = vld [vmem:[%s229 + $0xc8] sm:$0xf]
      %v291 = vld [vmem:[%s229 + $0xcc] sm:$0xf]
      %v292 = vld [vmem:[%s229 + $0xd0] sm:$0xf]
      %v293 = vld [vmem:[%s229 + $0xd4] sm:$0xf]
      %v294 = vld [vmem:[%s229 + $0xd8] sm:$0xf]
      %v295 = vld [vmem:[%s229 + $0xdc] sm:$0xf]
      %v296 = vld [vmem:[%s229 + $0xe0] sm:$0xf]
      %v297 = vld [vmem:[%s229 + $0xe4] sm:$0xf]
      %v298 = vld [vmem:[%s229 + $0xe8] sm:$0xf]
      %v299 = vld [vmem:[%s229 + $0xec] sm:$0xf]
      %v300 = vld [vmem:[%s229 + $0xf0] sm:$0xf]
      %v301 = vld [vmem:[%s229 + $0xf4] sm:$0xf]
      %v302 = vld [vmem:[%s229 + $0xf8] sm:$0xf]
      %v303 = vld [vmem:[%s229 + $0xfc] sm:$0xf]
      %v306 = vunpack.c.l.s4 1966171168
      %v307 = vunpack.c.0.s8 %v306
      %v308 = vlaneseq
      %v309 = vshrl.u32 %v308, 7
      %v310 = vsub.s32 %v307, %v309
      %v311 = vrot.slane %v239, %v310
      %v312 = vcombine.high %v311, %v311
      %v314 = vunpack.c.l.s4 1966171168
      %v315 = vunpack.c.0.s8 %v314
      %v316 = vlaneseq
      %v317 = vshrl.u32 %v316, 7
      %v318 = vsub.s32 %v315, %v317
      %v319 = vrot.slane %v311, %v318
      %v321 = vunpack.c.l.s4 1966171168
      %v322 = vunpack.c.0.s8 %v321
      %v323 = vlaneseq
      %v324 = vshrl.u32 %v323, 7
      %v325 = vsub.s32 %v322, %v324
      %v326 = vrot.slane %v312, %v325
      %v327 = vcombine.high %v319, %v319
      %v328 = vcombine.high %v326, %v326
      %v397 = vunpack.c.l.b16 %v240
      %v398 = vunpack.c.l.b16 %v241
      %v399 = vunpack.c.l.b16 %v242
      %v400 = vunpack.c.l.b16 %v243
      %v401 = vunpack.c.l.b16 %v244
      %v402 = vunpack.c.l.b16 %v245
      %v403 = vunpack.c.l.b16 %v246
      %v404 = vunpack.c.l.b16 %v247
      %v405 = vunpack.c.l.b16 %v248
      %v406 = vunpack.c.l.b16 %v249
      %v407 = vunpack.c.l.b16 %v250
      %v408 = vunpack.c.l.b16 %v251
      %v409 = vunpack.c.l.b16 %v252
      %v410 = vunpack.c.l.b16 %v253
      %v411 = vunpack.c.l.b16 %v254
      %v412 = vunpack.c.l.b16 %v255
      %v413 = vunpack.c.l.b16 %v256
      %v414 = vunpack.c.l.b16 %v257
      %v415 = vunpack.c.l.b16 %v258
      %v416 = vunpack.c.l.b16 %v259
      %v417 = vunpack.c.l.b16 %v260
      %v418 = vunpack.c.l.b16 %v261
      %v419 = vunpack.c.l.b16 %v262
      %v420 = vunpack.c.l.b16 %v263
      %v421 = vunpack.c.l.b16 %v264
      %v422 = vunpack.c.l.b16 %v265
      %v423 = vunpack.c.l.b16 %v266
      %v424 = vunpack.c.l.b16 %v267
      %v425 = vunpack.c.l.b16 %v268
      %v426 = vunpack.c.l.b16 %v269
      %v427 = vunpack.c.l.b16 %v270
      %v428 = vunpack.c.l.b16 %v271
      %v429 = vunpack.c.l.b16 %v272
      %v430 = vunpack.c.l.b16 %v273
      %v431 = vunpack.c.l.b16 %v274
      %v432 = vunpack.c.l.b16 %v275
      %v433 = vunpack.c.l.b16 %v276
      %v434 = vunpack.c.l.b16 %v277
      %v435 = vunpack.c.l.b16 %v278
      %v436 = vunpack.c.l.b16 %v279
      %v437 = vunpack.c.l.b16 %v280
      %v438 = vunpack.c.l.b16 %v281
      %v439 = vunpack.c.l.b16 %v282
      %v440 = vunpack.c.l.b16 %v283
      %v441 = vunpack.c.l.b16 %v284
      %v442 = vunpack.c.l.b16 %v285
      %v443 = vunpack.c.l.b16 %v286
      %v444 = vunpack.c.l.b16 %v287
      %v445 = vunpack.c.l.b16 %v288
      %v446 = vunpack.c.l.b16 %v289
      %v447 = vunpack.c.l.b16 %v290
      %v448 = vunpack.c.l.b16 %v291
      %v449 = vunpack.c.l.b16 %v292
      %v450 = vunpack.c.l.b16 %v293
      %v451 = vunpack.c.l.b16 %v294
      %v452 = vunpack.c.l.b16 %v295
      %v453 = vunpack.c.l.b16 %v296
      %v454 = vunpack.c.l.b16 %v297
      %v455 = vunpack.c.l.b16 %v298
      %v456 = vunpack.c.l.b16 %v299
      %v457 = vunpack.c.l.b16 %v300
      %v458 = vunpack.c.l.b16 %v301
      %v459 = vunpack.c.l.b16 %v302
      %v460 = vunpack.c.l.b16 %v303
      %v461 = vpack.c.b16 %v398, %v397
      %v462 = vpack.c.b16 %v400, %v399
      %v463 = vpack.c.b16 %v402, %v401
      %v464 = vpack.c.b16 %v404, %v403
      %v465 = vpack.c.b16 %v406, %v405
      %v466 = vpack.c.b16 %v408, %v407
      %v467 = vpack.c.b16 %v410, %v409
      %v468 = vpack.c.b16 %v412, %v411
      %v469 = vpack.c.b16 %v414, %v413
      %v470 = vpack.c.b16 %v416, %v415
      %v471 = vpack.c.b16 %v418, %v417
      %v472 = vpack.c.b16 %v420, %v419
      %v473 = vpack.c.b16 %v422, %v421
      %v474 = vpack.c.b16 %v424, %v423
      %v475 = vpack.c.b16 %v426, %v425
      %v476 = vpack.c.b16 %v428, %v427
      %v477 = vpack.c.b16 %v430, %v429
      %v478 = vpack.c.b16 %v432, %v431
      %v479 = vpack.c.b16 %v434, %v433
      %v480 = vpack.c.b16 %v436, %v435
      %v481 = vpack.c.b16 %v438, %v437
      %v482 = vpack.c.b16 %v440, %v439
      %v483 = vpack.c.b16 %v442, %v441
      %v484 = vpack.c.b16 %v444, %v443
      %v485 = vpack.c.b16 %v446, %v445
      %v486 = vpack.c.b16 %v448, %v447
      %v487 = vpack.c.b16 %v450, %v449
      %v488 = vpack.c.b16 %v452, %v451
      %v489 = vpack.c.b16 %v454, %v453
      %v490 = vpack.c.b16 %v456, %v455
      %v491 = vpack.c.b16 %v458, %v457
      %v492 = vpack.c.b16 %v460, %v459
      %525 = vmatprep.subr.bf16.mxu0 0
      %526 = vmatpush1.bf16.msra.mxu0 %v468
      %527 = vmatprep.subr.bf16.mxu0 0
      %528 = vmatpush1.bf16.msra.mxu0 %v467
      %529 = vmatprep.subr.bf16.mxu0 0
      %530 = vmatpush1.bf16.msra.mxu0 %v466
      %531 = vmatprep.subr.bf16.mxu0 0
      %532 = vmatpush1.bf16.msra.mxu0 %v465
      %533 = vmatprep.subr.bf16.mxu0 0
      %534 = vmatpush1.bf16.msra.mxu0 %v464
      %535 = vmatprep.subr.bf16.mxu0 0
      %536 = vmatpush1.bf16.msra.mxu0 %v463
      %537 = vmatprep.subr.bf16.mxu0 0
      %538 = vmatpush1.bf16.msra.mxu0 %v462
      %539 = vmatprep.subr.bf16.mxu0 0
      %540 = vmatpush1.bf16.msra.mxu0 %v461
      %541 = vmatprep.subr.bf16.mxu0 0
      %542 = vmatpush2.bf16.msra.mxu0 %v476
      %543 = vmatprep.subr.bf16.mxu0 0
      %544 = vmatpush2.bf16.msra.mxu0 %v475
      %545 = vmatprep.subr.bf16.mxu0 0
      %546 = vmatpush2.bf16.msra.mxu0 %v474
      %547 = vmatprep.subr.bf16.mxu0 0
      %548 = vmatpush2.bf16.msra.mxu0 %v473
      %549 = vmatprep.subr.bf16.mxu0 0
      %550 = vmatpush2.bf16.msra.mxu0 %v472
      %551 = vmatprep.subr.bf16.mxu0 0
      %552 = vmatpush2.bf16.msra.mxu0 %v471
      %553 = vmatprep.subr.bf16.mxu0 0
      %554 = vmatpush2.bf16.msra.mxu0 %v470
      %555 = vmatprep.subr.bf16.mxu0 0
      %556 = vmatpush2.bf16.msra.mxu0 %v469
      %557 = vmatprep.mubr.bf16.mxu0 %v326
      %558 = vmatmul.mubr.bf16.gmra.mxu0 %v319
      %v559 = vpop.f32.mrf.mxu0
      %v560 = vadd.f32 0.0, %v559
      %v561 = vpop.f32.mrf.mxu0
      %v562 = vpop.f32.mrf.mxu0
      %v563 = vpop.f32.mrf.mxu0
      %564 = vdwg.mxu0
      %565 = vmatprep.subr.bf16.mxu0 0
      %566 = vmatpush1.bf16.msra.mxu0 %v484
      %567 = vmatprep.subr.bf16.mxu0 0
      %568 = vmatpush1.bf16.msra.mxu0 %v483
      %569 = vmatprep.subr.bf16.mxu0 0
      %570 = vmatpush1.bf16.msra.mxu0 %v482
      %571 = vmatprep.subr.bf16.mxu0 0
      %572 = vmatpush1.bf16.msra.mxu0 %v481
      %573 = vmatprep.subr.bf16.mxu0 0
      %574 = vmatpush1.bf16.msra.mxu0 %v480
      %575 = vmatprep.subr.bf16.mxu0 0
      %576 = vmatpush1.bf16.msra.mxu0 %v479
      %577 = vmatprep.subr.bf16.mxu0 0
      %578 = vmatpush1.bf16.msra.mxu0 %v478
      %579 = vmatprep.subr.bf16.mxu0 0
      %580 = vmatpush1.bf16.msra.mxu0 %v477
      %581 = vmatprep.subr.bf16.mxu0 0
      %582 = vmatpush2.bf16.msra.mxu0 %v492
      %583 = vmatprep.subr.bf16.mxu0 0
      %584 = vmatpush2.bf16.msra.mxu0 %v491
      %585 = vmatprep.subr.bf16.mxu0 0
      %586 = vmatpush2.bf16.msra.mxu0 %v490
      %587 = vmatprep.subr.bf16.mxu0 0
      %588 = vmatpush2.bf16.msra.mxu0 %v489
      %589 = vmatprep.subr.bf16.mxu0 0
      %590 = vmatpush2.bf16.msra.mxu0 %v488
      %591 = vmatprep.subr.bf16.mxu0 0
      %592 = vmatpush2.bf16.msra.mxu0 %v487
      %593 = vmatprep.subr.bf16.mxu0 0
      %594 = vmatpush2.bf16.msra.mxu0 %v486
      %595 = vmatprep.subr.bf16.mxu0 0
      %596 = vmatpush2.bf16.msra.mxu0 %v485
      %597 = vmatprep.mubr.bf16.mxu0 %v328
      %598 = vmatmul.mubr.bf16.gmra.mxu0 %v327
      %v599 = vpop.f32.mrf.mxu0
      %v600 = vadd.f32 %v560, %v599
      %v601 = vpop.f32.mrf.mxu0
      %v602 = vpop.f32.mrf.mxu0
      %v603 = vpop.f32.mrf.mxu0
      %604 = vdwg.mxu0
      %v605 = vadd.f32 %v238, %v600
      %vm606 = vcmask 812032
      %607 = vst.msk [vmem:[#allocation2] sm:$0x3] %vm606, %v605
      %p608 = scmp.eq.s32.totalorder %s16, 1
      // Predicated region
      $region45: #{vae_forward.9} parent=39 // pred_check
        %p609 = pneg %p608
      $region46: #{vae_forward.9} parent=39 // pred_check_branch
        %611 = sbr.rel (%p609) target = $region48
      $region47: #{vae_forward.9} parent=39 // pred_region
        %v612 = vld [vmem:[#allocation2] sm:$0x3]
        %v613 = vld [vmem:[%s2] sm:$0x1]
        %v615 = vlaneseq
        %v616 = vshrl.u32 %v615, 7
        %v617 = vsub.s32 0, %v616
        %v618 = vrot.slane %v613, %v617
        %v620 = vadd.f32 %v612, %v618
        %v621 = vsel %vm606, %v620, 0.0
        %v622 = vrot.slane %v621, 4
        %v623 = vadd.f32 %v621, %v622
        %v624 = vrot.slane %v623, 2
        %v625 = vadd.f32 %v623, %v624
        %v626 = vrot.slane %v625, 1
        %v627 = vadd.f32 %v625, %v626
        %v628 = vmul.f32 %v627, 0.5
        %v629 = vmul.f32 %v620, %v620
        %v630 = vsel %vm606, %v629, 0.0
        %v631 = vrot.slane %v630, 4
        %v632 = vadd.f32 %v630, %v631
        %v633 = vrot.slane %v632, 2
        %v634 = vadd.f32 %v632, %v633
        %v635 = vrot.slane %v634, 1
        %v636 = vadd.f32 %v634, %v635
        %v637 = vmul.f32 %v636, 0.5
        %v638 = vmul.f32 %v628, %v628
        %v639 = vsub.f32 %v637, %v638
        %v640 = vmax.f32 %v639, 0.0
        %v641 = vsub.f32 %v620, %v628
        %v642 = vadd.f32 %v640, 1e-05
        %v643 = vrsqrt.pop %v642
        %v644 = vmul.f32 %v641, %v643
        %v645 = vld [vmem:[%s3] sm:$0x1]
        %v647 = vlaneseq
        %v648 = vshrl.u32 %v647, 7
        %v649 = vsub.s32 0, %v648
        %v650 = vrot.slane %v645, %v649
        %v652 = vmul.f32 %v644, %v650
        %v653 = vld [vmem:[%s4] sm:$0x1]
        %v655 = vlaneseq
        %v656 = vshrl.u32 %v655, 7
        %v657 = vsub.s32 0, %v656
        %v658 = vrot.slane %v653, %v657
        %v660 = vadd.f32 %v652, %v658
        %v661 = vmax.f32 %v660, 0.0
        %v662 = vpack.c.bf16 %v661, %v661
        %vm663 = vcmask 811008
        %664 = vst.msk [vmem:[%s5] sm:$0x1] %vm663, %v662
      $region48: #{vae_forward.9} parent=39 // pred_fallthru
        _
      // Predicated region
      $region49: #{vae_forward.9} parent=39 // pred_check
        %p665 = pneg %p144
      $region50: #{vae_forward.9} parent=39 // pred_check_branch
        %667 = sbr.rel (%p665) target = $region52
      $region51: #{vae_forward.9} parent=39 // pred_region
        _
      $region52: #{vae_forward.9} parent=39 // pred_fallthru
        _
      // Predicated region
      $region53: #{vae_forward.9} parent=39 // pred_check
        %p668 = pneg %p144
      $region54: #{vae_forward.9} parent=39 // pred_check_branch
        %670 = sbr.rel (%p668) target = $region56
      $region55: #{vae_forward.9} parent=39 // pred_region
        _
      $region56: #{vae_forward.9} parent=39 // pred_fallthru
        _
    $region40: #{vae_forward.9} parent=5 // pred_fallthru
      _
    %p671 = scmp.le.s32.totalorder 2, %s11
    // Predicated region
    $region57: #{vae_forward.9} parent=5 // pred_check
      %p672 = pneg %p671
    $region58: #{vae_forward.9} parent=5 // pred_check_branch
      %674 = sbr.rel (%p672) target = $region60
    $region59: #{vae_forward.9} parent=5 // pred_region
      %s675 = ssub.s32 %s11, 2
    $region60: #{vae_forward.9} parent=5 // pred_fallthru
      _
  $region6: #{vae_forward.9} parent=0 // loop_footer
    %s15 = sadd.s32 1, %s11
  $region7: #{vae_forward.9} parent=0 // loop_footer_branch
    %10 = sbr.rel target = $region3
  $region8: #{vae_forward.9} parent=0 // loop_exit
    _

// kernel: vae_forward.10
$region0: #{vae_forward.10}
  #allocation0 [shape = 'u32[]', space=smem, size = 0x4, offset = 0x4, fixed_abs, tag = 'smem constant byte address 0x4 - core index']
  #allocation1 [shape = 'u32[144,128]{1,0:T(1,128)}', space=vmem, size = 0x12000, scoped, tag = 'internal scratch']
  %s0 = inlined_call_operand.vmem [shape: bf16[2,100], index: 0, kind: input, shape index: {}]
  %s1 = inlined_call_operand.vmem [shape: bf16[100,16], index: 1, kind: input, shape index: {}]
  %s2 = inlined_call_operand.vmem [shape: f32[1,16], index: 2, kind: input, shape index: {}]
  %s3 = inlined_call_operand.vmem [shape: bf16[100,16], index: 3, kind: input, shape index: {}]
  %s4 = inlined_call_operand.vmem [shape: f32[1,16], index: 4, kind: input, shape index: {}]
  %s5 = inlined_call_operand.vmem [shape: f32[2,16], index: 5, kind: input, shape index: {}]
  %s6 = inlined_call_operand.hbm [shape: f32[2,16], index: 6, kind: output, shape index: {0}]
  %s7 = inlined_call_operand.hbm [shape: f32[2,16], index: 7, kind: output, shape index: {1}]
  %s8 = inlined_call_operand.vmem [shape: bf16[2,16], index: 8, kind: output, shape index: {2}]
  %9 = xla_tuple %s6, %s7, %s8
  %s10 = sld [smem:[#allocation0]]
  $region50: #{vae_forward.10} parent=0
    _
  %s12 = ssub.s32 1, %s10
  %s13 = scalar_select 0, %s12, %s10
  $region1: #{vae_forward.10} parent=0
    #allocation2 [shape = 'u8[1024]{0}', space=vmem, size = 0x400, scoped, tag = 'output window, operand 0, single buffered']
    #allocation3 [shape = 's32[1]{0}', space=sflag, size = 0x4, scoped, tag = 'scoped memory for vae_forward.10']
    #allocation4 [shape = 'u8[1024]{0}', space=vmem, size = 0x400, scoped, tag = 'output window, operand 1, single buffered']
    #allocation5 [shape = 's32[1]{0}', space=sflag, size = 0x4, scoped, tag = 'scoped memory for vae_forward.10']
    %14 = vsyncpa [#allocation3], 0
    %15 = vsyncpa [#allocation5], 0
    // Predicated region
    $region2: #{vae_forward.10} parent=1 // pred_check
      _
    $region3: #{vae_forward.10} parent=1 // pred_check_branch
      %17 = sbr.rel (0) target = $region5
    $region4: #{vae_forward.10} parent=1 // pred_region
      _
    $region5: #{vae_forward.10} parent=1 // pred_fallthru
      _
    // Predicated region
    $region6: #{vae_forward.10} parent=1 // pred_check
      _
    $region7: #{vae_forward.10} parent=1 // pred_check_branch
      %19 = sbr.rel (0) target = $region9
    $region8: #{vae_forward.10} parent=1 // pred_region
      _
    $region9: #{vae_forward.10} parent=1 // pred_fallthru
      _
    // Predicated region
    $region10: #{vae_forward.10} parent=1 // pred_check
      _
    $region11: #{vae_forward.10} parent=1 // pred_check_branch
      %21 = sbr.rel (0) target = $region13
    $region12: #{vae_forward.10} parent=1 // pred_region
      _
    $region13: #{vae_forward.10} parent=1 // pred_fallthru
      _
    // Predicated region
    $region14: #{vae_forward.10} parent=1 // pred_check
      _
    $region15: #{vae_forward.10} parent=1 // pred_check_branch
      %23 = sbr.rel (0) target = $region17
    $region16: #{vae_forward.10} parent=1 // pred_region
      _
    $region17: #{vae_forward.10} parent=1 // pred_fallthru
      _
    // Predicated region
    $region18: #{vae_forward.10} parent=1 // pred_check
      _
    $region19: #{vae_forward.10} parent=1 // pred_check_branch
      %25 = sbr.rel (0) target = $region21
    $region20: #{vae_forward.10} parent=1 // pred_region
      _
    $region21: #{vae_forward.10} parent=1 // pred_fallthru
      _
    // Predicated region
    $region22: #{vae_forward.10} parent=1 // pred_check
      _
    $region23: #{vae_forward.10} parent=1 // pred_check_branch
      %27 = sbr.rel (0) target = $region25
    $region24: #{vae_forward.10} parent=1 // pred_region
      _
    $region25: #{vae_forward.10} parent=1 // pred_fallthru
      _
    %v29 = vld [vmem:[%s0] sm:$0x1]
    %v30 = vld [vmem:[%s1] sm:$0xf]
    %v31 = vld [vmem:[%s1 + $0x4] sm:$0xf]
    %v32 = vld [vmem:[%s1 + $0x8] sm:$0xf]
    %v33 = vld [vmem:[%s1 + $0xc] sm:$0xf]
    %v34 = vld [vmem:[%s1 + $0x10] sm:$0xf]
    %v35 = vld [vmem:[%s1 + $0x14] sm:$0xf]
    %v36 = vld [vmem:[%s1 + $0x18] sm:$0xf]
    %v37 = vld [vmem:[%s1 + $0x1c] sm:$0xf]
    %v38 = vld [vmem:[%s1 + $0x20] sm:$0xf]
    %v39 = vld [vmem:[%s1 + $0x24] sm:$0xf]
    %v40 = vld [vmem:[%s1 + $0x28] sm:$0xf]
    %v41 = vld [vmem:[%s1 + $0x2c] sm:$0xf]
    %v42 = vld [vmem:[%s1 + $0x30] sm:$0x3]
    %v43 = vld [vmem:[%s2] sm:$0x1]
    %v45 = vlaneseq
    %v46 = vshrl.u32 %v45, 7
    %v47 = vsub.s32 0, %v46
    %v48 = vrot.slane %v43, %v47
    %v63 = vunpack.c.l.b16 %v30
    %v64 = vunpack.c.l.b16 %v31
    %v65 = vunpack.c.l.b16 %v32
    %v66 = vunpack.c.l.b16 %v33
    %v67 = vunpack.c.l.b16 %v34
    %v68 = vunpack.c.l.b16 %v35
    %v69 = vunpack.c.l.b16 %v36
    %v70 = vunpack.c.l.b16 %v37
    %v71 = vunpack.c.l.b16 %v38
    %v72 = vunpack.c.l.b16 %v39
    %v73 = vunpack.c.l.b16 %v40
    %v74 = vunpack.c.l.b16 %v41
    %v75 = vunpack.c.l.b16 %v42
    %v76 = vpack.c.b16 %v64, %v63
    %v77 = vpack.c.b16 %v66, %v65
    %v78 = vpack.c.b16 %v68, %v67
    %v79 = vpack.c.b16 %v70, %v69
    %v80 = vpack.c.b16 %v72, %v71
    %v81 = vpack.c.b16 %v74, %v73
    %v82 = vpack.c.b16 %v75, %v75
    %vm89 = vcmask 818176
    %v91 = vsel %vm89, %v29, 0
    %vm93 = vcmask 1041408
    %v95 = vsel %vm93, %v82, 0
    %97 = vmatprep.subr.bf16.mxu0 0
    %98 = vmatpush1.bf16.msra.mxu0 0
    %99 = vmatprep.subr.bf16.mxu0 0
    %100 = vmatpush1.bf16.msra.mxu0 %v95
    %101 = vmatprep.subr.bf16.mxu0 0
    %102 = vmatpush1.bf16.msra.mxu0 %v81
    %103 = vmatprep.subr.bf16.mxu0 0
    %104 = vmatpush1.bf16.msra.mxu0 %v80
    %105 = vmatprep.subr.bf16.mxu0 0
    %106 = vmatpush1.bf16.msra.mxu0 %v79
    %107 = vmatprep.subr.bf16.mxu0 0
    %108 = vmatpush1.bf16.msra.mxu0 %v78
    %109 = vmatprep.subr.bf16.mxu0 0
    %110 = vmatpush1.bf16.msra.mxu0 %v77
    %111 = vmatprep.subr.bf16.mxu0 0
    %112 = vmatpush1.bf16.msra.mxu0 %v76
    %113 = vmatprep.subr.bf16.mxu0 0
    %114 = vmatpush2.bf16.msra.mxu0 0
    %115 = vmatprep.subr.bf16.mxu0 0
    %116 = vmatpush2.bf16.msra.mxu0 0
    %117 = vmatprep.subr.bf16.mxu0 0
    %118 = vmatpush2.bf16.msra.mxu0 0
    %119 = vmatprep.subr.bf16.mxu0 0
    %120 = vmatpush2.bf16.msra.mxu0 0
    %121 = vmatprep.subr.bf16.mxu0 0
    %122 = vmatpush2.bf16.msra.mxu0 0
    %123 = vmatprep.subr.bf16.mxu0 0
    %124 = vmatpush2.bf16.msra.mxu0 0
    %125 = vmatprep.subr.bf16.mxu0 0
    %126 = vmatpush2.bf16.msra.mxu0 0
    %127 = vmatprep.subr.bf16.mxu0 0
    %128 = vmatpush2.bf16.msra.mxu0 0
    %129 = vmatprep.mubr.bf16.mxu0 0
    %130 = vmatmul.mubr.bf16.gmra.mxu0 %v91
    %v131 = vpop.f32.mrf.mxu0
    %v132 = vadd.f32 %v48, %v131
    %v133 = vpop.f32.mrf.mxu0
    %v134 = vpop.f32.mrf.mxu0
    %v135 = vpop.f32.mrf.mxu0
    %136 = vdwg.mxu0
    %v137 = vld [vmem:[%s3] sm:$0xf]
    %v138 = vld [vmem:[%s3 + $0x4] sm:$0xf]
    %v139 = vld [vmem:[%s3 + $0x8] sm:$0xf]
    %v140 = vld [vmem:[%s3 + $0xc] sm:$0xf]
    %v141 = vld [vmem:[%s3 + $0x10] sm:$0xf]
    %v142 = vld [vmem:[%s3 + $0x14] sm:$0xf]
    %v143 = vld [vmem:[%s3 + $0x18] sm:$0xf]
    %v144 = vld [vmem:[%s3 + $0x1c] sm:$0xf]
    %v145 = vld [vmem:[%s3 + $0x20] sm:$0xf]
    %v146 = vld [vmem:[%s3 + $0x24] sm:$0xf]
    %v147 = vld [vmem:[%s3 + $0x28] sm:$0xf]
    %v148 = vld [vmem:[%s3 + $0x2c] sm:$0xf]
    %v149 = vld [vmem:[%s3 + $0x30] sm:$0x3]
    %v150 = vld [vmem:[%s4] sm:$0x1]
    %v152 = vlaneseq
    %v153 = vshrl.u32 %v152, 7
    %v154 = vsub.s32 0, %v153
    %v155 = vrot.slane %v150, %v154
    %v170 = vunpack.c.l.b16 %v137
    %v171 = vunpack.c.l.b16 %v138
    %v172 = vunpack.c.l.b16 %v139
    %v173 = vunpack.c.l.b16 %v140
    %v174 = vunpack.c.l.b16 %v141
    %v175 = vunpack.c.l.b16 %v142
    %v176 = vunpack.c.l.b16 %v143
    %v177 = vunpack.c.l.b16 %v144
    %v178 = vunpack.c.l.b16 %v145
    %v179 = vunpack.c.l.b16 %v146
    %v180 = vunpack.c.l.b16 %v147
    %v181 = vunpack.c.l.b16 %v148
    %v182 = vunpack.c.l.b16 %v149
    %v183 = vpack.c.b16 %v171, %v170
    %v184 = vpack.c.b16 %v173, %v172
    %v185 = vpack.c.b16 %v175, %v174
    %v186 = vpack.c.b16 %v177, %v176
    %v187 = vpack.c.b16 %v179, %v178
    %v188 = vpack.c.b16 %v181, %v180
    %v189 = vpack.c.b16 %v182, %v182
    %v197 = vsel %vm93, %v189, 0
    %199 = vmatprep.subr.bf16.mxu0 0
    %200 = vmatpush1.bf16.msra.mxu0 0
    %201 = vmatprep.subr.bf16.mxu0 0
    %202 = vmatpush1.bf16.msra.mxu0 %v197
    %203 = vmatprep.subr.bf16.mxu0 0
    %204 = vmatpush1.bf16.msra.mxu0 %v188
    %205 = vmatprep.subr.bf16.mxu0 0
    %206 = vmatpush1.bf16.msra.mxu0 %v187
    %207 = vmatprep.subr.bf16.mxu0 0
    %208 = vmatpush1.bf16.msra.mxu0 %v186
    %209 = vmatprep.subr.bf16.mxu0 0
    %210 = vmatpush1.bf16.msra.mxu0 %v185
    %211 = vmatprep.subr.bf16.mxu0 0
    %212 = vmatpush1.bf16.msra.mxu0 %v184
    %213 = vmatprep.subr.bf16.mxu0 0
    %214 = vmatpush1.bf16.msra.mxu0 %v183
    %215 = vmatprep.subr.bf16.mxu0 0
    %216 = vmatpush2.bf16.msra.mxu0 0
    %217 = vmatprep.subr.bf16.mxu0 0
    %218 = vmatpush2.bf16.msra.mxu0 0
    %219 = vmatprep.subr.bf16.mxu0 0
    %220 = vmatpush2.bf16.msra.mxu0 0
    %221 = vmatprep.subr.bf16.mxu0 0
    %222 = vmatpush2.bf16.msra.mxu0 0
    %223 = vmatprep.subr.bf16.mxu0 0
    %224 = vmatpush2.bf16.msra.mxu0 0
    %225 = vmatprep.subr.bf16.mxu0 0
    %226 = vmatpush2.bf16.msra.mxu0 0
    %227 = vmatprep.subr.bf16.mxu0 0
    %228 = vmatpush2.bf16.msra.mxu0 0
    %229 = vmatprep.subr.bf16.mxu0 0
    %230 = vmatpush2.bf16.msra.mxu0 0
    %231 = vmatprep.mubr.bf16.mxu0 0
    %232 = vmatmul.mubr.bf16.gmra.mxu0 %v91
    %v233 = vpop.f32.mrf.mxu0
    %v234 = vadd.f32 %v155, %v233
    %v235 = vpop.f32.mrf.mxu0
    %v236 = vpop.f32.mrf.mxu0
    %v237 = vpop.f32.mrf.mxu0
    %238 = vdwg.mxu0
    %v239 = vld [vmem:[%s5] sm:$0x3]
    %v240 = vmul.f32 %v234, 0.5
    %v241 = vmul.f32 %v240, 1.442695
    %v242 = vpow.pop %v241
    %v243 = vmul.f32 %v239, %v242
    %v244 = vadd.f32 %v243, %v132
    %vm245 = vcmask 123904
    %246 = vst.msk [vmem:[#allocation2] sm:$0x3] %vm245, %v132
    %247 = vst.msk [vmem:[#allocation4] sm:$0x3] %vm245, %v234
    %v248 = vpack.c.bf16 %v244, %v244
    %vm249 = vcmask 122880
    %250 = vst.msk [vmem:[%s8] sm:$0x1] %vm249, %v248
    // Predicated region
    $region26: #{vae_forward.10} parent=1 // pred_check
      _
    $region27: #{vae_forward.10} parent=1 // pred_check_branch
      %252 = sbr.rel (0) target = $region29
    $region28: #{vae_forward.10} parent=1 // pred_region
      %s254 = ssub.s32 32, 32
      %255 = vsyncadd [#allocation3], %s254
      %s257 = sshll.u32 [#allocation2], 4
      %s258 = int_to_ptr.vmem [resolvable:$true] %s257
      %260 = dma.vmem_to_hbm [thread:$0]  %s258, 32, %s6, [#allocation3]
    $region29: #{vae_forward.10} parent=1 // pred_fallthru
      _
    // Predicated region
    $region30: #{vae_forward.10} parent=1 // pred_check
      _
    $region31: #{vae_forward.10} parent=1 // pred_check_branch
      %262 = sbr.rel (0) target = $region33
    $region32: #{vae_forward.10} parent=1 // pred_region
      %s264 = ssub.s32 32, 32
      %265 = vsyncadd [#allocation5], %s264
      %s267 = sshll.u32 [#allocation4], 4
      %s268 = int_to_ptr.vmem [resolvable:$true] %s267
      %270 = dma.vmem_to_hbm [thread:$0]  %s268, 32, %s7, [#allocation5]
    $region33: #{vae_forward.10} parent=1 // pred_fallthru
      _
    // Predicated region
    $region34: #{vae_forward.10} parent=1 // pred_check
      _
    $region35: #{vae_forward.10} parent=1 // pred_check_branch
      %272 = sbr.rel (0) target = $region37
    $region36: #{vae_forward.10} parent=1 // pred_region
      _
    $region37: #{vae_forward.10} parent=1 // pred_fallthru
      _
    // Predicated region
    $region38: #{vae_forward.10} parent=1 // pred_check
      _
    $region39: #{vae_forward.10} parent=1 // pred_check_branch
      %274 = sbr.rel (0) target = $region41
    $region40: #{vae_forward.10} parent=1 // pred_region
      %275 = dma.done [#allocation3], 32
    $region41: #{vae_forward.10} parent=1 // pred_fallthru
      _
    // Predicated region
    $region42: #{vae_forward.10} parent=1 // pred_check
      _
    $region43: #{vae_forward.10} parent=1 // pred_check_branch
      %277 = sbr.rel (0) target = $region45
    $region44: #{vae_forward.10} parent=1 // pred_region
      %278 = dma.done [#allocation5], 32
    $region45: #{vae_forward.10} parent=1 // pred_fallthru
      _
    // Predicated region
    $region46: #{vae_forward.10} parent=1 // pred_check
      _
    $region47: #{vae_forward.10} parent=1 // pred_check_branch
      %280 = sbr.rel (0) target = $region49
    $region48: #{vae_forward.10} parent=1 // pred_region
      _
    $region49: #{vae_forward.10} parent=1 // pred_fallthru
      _
    %281 = vsyncpa [#allocation3], 1
    %282 = vsyncpa [#allocation5], 1

// kernel: vae_forward.11
$region0: #{vae_forward.11}
  #allocation0 [shape = 'u32[]', space=smem, size = 0x4, offset = 0x4, fixed_abs, tag = 'smem constant byte address 0x4 - core index']
  #allocation1 [shape = 'u32[144,128]{1,0:T(1,128)}', space=vmem, size = 0x12000, scoped, tag = 'internal scratch']
  #allocation2 [shape = 'f32[16,16]{1,0:T(8,128)}', space=vmem, size = 0x2000, scoped, tag = 'scratch operand']
  %s0 = inlined_call_operand.vmem [shape: bf16[16,1024], index: 0, kind: input, shape index: {}]
  %s1 = inlined_call_operand.vmem [shape: bf16[1024,16], index: 1, kind: input, shape index: {}]
  %s2 = inlined_call_operand.vmem [shape: f32[1,16], index: 2, kind: input, shape index: {}]
  %s3 = inlined_call_operand.vmem [shape: f32[1,16], index: 3, kind: input, shape index: {}]
  %s4 = inlined_call_operand.vmem [shape: f32[1,16], index: 4, kind: input, shape index: {}]
  %s5 = inlined_call_operand.vmem [shape: bf16[16,16], index: 5, kind: output, shape index: {}]
  %s6 = sld [smem:[#allocation0]]
  $region84: #{vae_forward.11} parent=0
    _
  %s8 = ssub.s32 1, %s6
  %s9 = scalar_select 0, %s8, %s6
  $region1: #{vae_forward.11} parent=0
    #allocation3 [shape = 'u8[32768]{0}', space=vmem, size = 0x8000, scoped, tag = 'input window, operand 0']
    loop: start=0, step=1, limit=4
    $region2: #{vae_forward.11} parent=1 // loop_pre_header
      _
    $region3: #{vae_forward.11} parent=1 // loop_header
      %s11 = sphi 0, %s15
      %p12 = scmp.ge.s32.totalorder %s11, 4
      %s21 = sphi 0, %s23
      %s24 = sphi 0, %s21
      %s25 = sphi 0, %s24
      %s41 = sphi 0, %s25
      %s47 = sphi 0, %s49
      %s50 = sphi 0, %s47
      %s51 = sphi 0, %s50
      %s67 = sphi 0, %s51
      %s71 = sphi 0, %s71
      %s73 = sphi 0, %s71
      %s74 = sphi 0, %s73
      %s88 = sphi 0, %s74
      %s92 = sphi 0, %s92
      %s94 = sphi 0, %s92
      %s95 = sphi 0, %s94
      %s109 = sphi 0, %s95
      %s113 = sphi 0, %s113
      %s115 = sphi 0, %s113
      %s116 = sphi 0, %s115
      %s130 = sphi 0, %s116
      %s134 = sphi 0, %s134
      %s136 = sphi 0, %s134
      %s137 = sphi 0, %s136
      %s151 = sphi 0, %s137
    $region4: #{vae_forward.11} parent=1 // loop_header_branch
      %14 = sbr.rel (%p12) target = $region8
    $region5: #{vae_forward.11} parent=1 // loop_body
      %s16 = ssub.s32 %s11, 1
      %s17 = ssub.s32 %s11, 2
      %s18 = sadd.s32 %s11, 1
      %s19 = ssub.s32 %s11, %s18
      %p20 = scmp.eq.s32.totalorder %s19, 0
      %s22 = sadd.s32 %s21, 1
      %s23 = scalar_select %p20, %s21, %s22
      %p26 = pneg %p20
      %p27 = scmp.eq.s32.totalorder %s11, 1
      %p28 = por %p26, %p27
      %p29 = scmp.ne.s32.totalorder %s21, %s24
      %p30 = scmp.eq.s32.totalorder %s11, 0
      %p31 = por %p29, %p30
      %p32 = scmp.ne.s32.totalorder %s21, %s24
      %p33 = scmp.eq.s32.totalorder %s16, 1
      %p34 = por %p32, %p33
      %p35 = scmp.ne.s32.totalorder %s24, %s25
      %p36 = scmp.eq.s32.totalorder %s16, 0
      %p37 = por %p35, %p36
      %p38 = scmp.ne.s32.totalorder %s24, %s25
      %p39 = scmp.eq.s32.totalorder %s17, 1
      %p40 = por %p38, %p39
      %p42 = scmp.ne.s32.totalorder %s25, %s41
      %p43 = scmp.eq.s32.totalorder %s17, 0
      %p44 = por %p42, %p43
      %s45 = ssub.s32 %s11, %s18
      %p46 = scmp.eq.s32.totalorder %s45, 0
      %s48 = sadd.s32 %s47, 1
      %s49 = scalar_select %p46, %s47, %s48
      %p52 = pneg %p46
      %p53 = scmp.eq.s32.totalorder %s11, 1
      %p54 = por %p52, %p53
      %p55 = scmp.ne.s32.totalorder %s47, %s50
      %p56 = scmp.eq.s32.totalorder %s11, 0
      %p57 = por %p55, %p56
      %p58 = scmp.ne.s32.totalorder %s47, %s50
      %p59 = scmp.eq.s32.totalorder %s16, 1
      %p60 = por %p58, %p59
      %p61 = scmp.ne.s32.totalorder %s50, %s51
      %p62 = scmp.eq.s32.totalorder %s16, 0
      %p63 = por %p61, %p62
      %p64 = scmp.ne.s32.totalorder %s50, %s51
      %p65 = scmp.eq.s32.totalorder %s17, 1
      %p66 = por %p64, %p65
      %p68 = scmp.ne.s32.totalorder %s51, %s67
      %p69 = scmp.eq.s32.totalorder %s17, 0
      %p70 = por %p68, %p69
      %s72 = sadd.s32 %s71, 1
      %p75 = scmp.eq.s32.totalorder %s11, 1
      %p76 = scmp.ne.s32.totalorder %s71, %s73
      %p77 = scmp.eq.s32.totalorder %s11, 0
      %p78 = por %p76, %p77
      %p79 = scmp.ne.s32.totalorder %s71, %s73
      %p80 = scmp.eq.s32.totalorder %s16, 1
      %p81 = por %p79, %p80
      %p82 = scmp.ne.s32.totalorder %s73, %s74
      %p83 = scmp.eq.s32.totalorder %s16, 0
      %p84 = por %p82, %p83
      %p85 = scmp.ne.s32.totalorder %s73, %s74
      %p86 = scmp.eq.s32.totalorder %s17, 1
      %p87 = por %p85, %p86
      %p89 = scmp.ne.s32.totalorder %s74, %s88
      %p90 = scmp.eq.s32.totalorder %s17, 0
      %p91 = por %p89, %p90
      %s93 = sadd.s32 %s92, 1
      %p96 = scmp.eq.s32.totalorder %s11, 1
      %p97 = scmp.ne.s32.totalorder %s92, %s94
      %p98 = scmp.eq.s32.totalorder %s11, 0
      %p99 = por %p97, %p98
      %p100 = scmp.ne.s32.totalorder %s92, %s94
      %p101 = scmp.eq.s32.totalorder %s16, 1
      %p102 = por %p100, %p101
      %p103 = scmp.ne.s32.totalorder %s94, %s95
      %p104 = scmp.eq.s32.totalorder %s16, 0
      %p105 = por %p103, %p104
      %p106 = scmp.ne.s32.totalorder %s94, %s95
      %p107 = scmp.eq.s32.totalorder %s17, 1
      %p108 = por %p106, %p107
      %p110 = scmp.ne.s32.totalorder %s95, %s109
      %p111 = scmp.eq.s32.totalorder %s17, 0
      %p112 = por %p110, %p111
      %s114 = sadd.s32 %s113, 1
      %p117 = scmp.eq.s32.totalorder %s11, 1
      %p118 = scmp.ne.s32.totalorder %s113, %s115
      %p119 = scmp.eq.s32.totalorder %s11, 0
      %p120 = por %p118, %p119
      %p121 = scmp.ne.s32.totalorder %s113, %s115
      %p122 = scmp.eq.s32.totalorder %s16, 1
      %p123 = por %p121, %p122
      %p124 = scmp.ne.s32.totalorder %s115, %s116
      %p125 = scmp.eq.s32.totalorder %s16, 0
      %p126 = por %p124, %p125
      %p127 = scmp.ne.s32.totalorder %s115, %s116
      %p128 = scmp.eq.s32.totalorder %s17, 1
      %p129 = por %p127, %p128
      %p131 = scmp.ne.s32.totalorder %s116, %s130
      %p132 = scmp.eq.s32.totalorder %s17, 0
      %p133 = por %p131, %p132
      %s135 = sadd.s32 %s134, 1
      %p138 = scmp.eq.s32.totalorder %s11, 1
      %p139 = scmp.ne.s32.totalorder %s134, %s136
      %p140 = scmp.eq.s32.totalorder %s11, 0
      %p141 = por %p139, %p140
      %p142 = scmp.ne.s32.totalorder %s134, %s136
      %p143 = scmp.eq.s32.totalorder %s16, 1
      %p144 = por %p142, %p143
      %p145 = scmp.ne.s32.totalorder %s136, %s137
      %p146 = scmp.eq.s32.totalorder %s16, 0
      %p147 = por %p145, %p146
      %p148 = scmp.ne.s32.totalorder %s136, %s137
      %p149 = scmp.eq.s32.totalorder %s17, 1
      %p150 = por %p148, %p149
      %p152 = scmp.ne.s32.totalorder %s137, %s151
      %p153 = scmp.eq.s32.totalorder %s17, 0
      %p154 = por %p152, %p153
      %p155 = scmp.le.s32.totalorder 1, %s11
      %p156 = scmp.lt.s32.totalorder %s11, 3
      %p157 = pnand %p155, %p156
      %p158 = pneg %p157
      // Predicated region
      $region9: #{vae_forward.11} parent=5 // pred_check
        _
      $region10: #{vae_forward.11} parent=5 // pred_check_branch
        %160 = sbr.rel (%p157) target = $region12
      $region11: #{vae_forward.11} parent=5 // pred_region
        %s161 = ssub.s32 %s11, 1
        // Predicated region
        $region13: #{vae_forward.11} parent=11 // pred_check
          %p162 = pneg %p84
        $region14: #{vae_forward.11} parent=11 // pred_check_branch
          %164 = sbr.rel (%p162) target = $region16
        $region15: #{vae_forward.11} parent=11 // pred_region
          _
        $region16: #{vae_forward.11} parent=11 // pred_fallthru
          _
        // Predicated region
        $region17: #{vae_forward.11} parent=11 // pred_check
          %p165 = pneg %p105
        $region18: #{vae_forward.11} parent=11 // pred_check_branch
          %167 = sbr.rel (%p165) target = $region20
        $region19: #{vae_forward.11} parent=11 // pred_region
          _
        $region20: #{vae_forward.11} parent=11 // pred_fallthru
          _
        // Predicated region
        $region21: #{vae_forward.11} parent=11 // pred_check
          %p168 = pneg %p126
        $region22: #{vae_forward.11} parent=11 // pred_check_branch
          %170 = sbr.rel (%p168) target = $region24
        $region23: #{vae_forward.11} parent=11 // pred_region
          _
        $region24: #{vae_forward.11} parent=11 // pred_fallthru
          _
      $region12: #{vae_forward.11} parent=5 // pred_fallthru
        _
      %p171 = scmp.lt.s32.totalorder %s11, 2
      // Predicated region
      $region25: #{vae_forward.11} parent=5 // pred_check
        %p172 = pneg %p171
      $region26: #{vae_forward.11} parent=5 // pred_check_branch
        %174 = sbr.rel (%p172) target = $region28
      $region27: #{vae_forward.11} parent=5 // pred_region
        // Predicated region
        $region29: #{vae_forward.11} parent=27 // pred_check
          %p175 = pneg %p31
        $region30: #{vae_forward.11} parent=27 // pred_check_branch
          %177 = sbr.rel (%p175) target = $region32
        $region31: #{vae_forward.11} parent=27 // pred_region
          %s178 = sand.u32 %s21, 1
          %s179 = sand.u32 %s21, 1
          %s180 = smul.addr %s179, 32
          %s181 = scalar_lea.vmem [#allocation3], %s180
          %s182 = smul.u32 4, %s11
          %s183 = smul.addr %s182, 4
          %s184 = scalar_lea.vmem %s0, %s183
          // Predicated region
          $region33: #{vae_forward.11} parent=31 // pred_check
            _
          $region34: #{vae_forward.11} parent=31 // pred_check_branch
            %186 = sbr.rel (0) target = $region36
          $region35: #{vae_forward.11} parent=31 // pred_region
            // Predicated region
            $region37: #{vae_forward.11} parent=35 // pred_check
              _
            $region38: #{vae_forward.11} parent=35 // pred_check_branch
              %188 = sbr.rel (0) target = $region40
            $region39: #{vae_forward.11} parent=35 // pred_region
              loop: start=0, step=1, limit=1
              $region41: #{vae_forward.11} parent=39 // loop_pre_header
                _
              $region42: #{vae_forward.11} parent=39 // loop_header
                %s190 = sphi 0, %s194
                %p191 = scmp.ge.s32.totalorder %s190, 1
                %s195 = sphi %s184, %s184
                %s196 = sphi %s181, %s181
              $region43: #{vae_forward.11} parent=39 // loop_header_branch
                %193 = sbr.rel (%p191) target = $region47
              $region44: #{vae_forward.11} parent=39 // loop_body
                %v197 = vld [vmem:[%s195] sm:$0xff]
                %198 = vst [vmem:[%s196] sm:$0xff] %v197
                %v199 = vld [vmem:[%s195 + $0x8] sm:$0xff]
                %200 = vst [vmem:[%s196 + $0x8] sm:$0xff] %v199
                %v201 = vld [vmem:[%s195 + $0x20] sm:$0xff]
                %202 = vst [vmem:[%s196 + $0x10] sm:$0xff] %v201
                %v203 = vld [vmem:[%s195 + $0x28] sm:$0xff]
                %204 = vst [vmem:[%s196 + $0x18] sm:$0xff] %v203
              $region45: #{vae_forward.11} parent=39 // loop_footer
                %s194 = sadd.s32 1, %s190
              $region46: #{vae_forward.11} parent=39 // loop_footer_branch
                %189 = sbr.rel target = $region42
              $region47: #{vae_forward.11} parent=39 // loop_exit
                _
            $region40: #{vae_forward.11} parent=35 // pred_fallthru
              _
            // Predicated region
            $region48: #{vae_forward.11} parent=35 // pred_check
              _
            $region49: #{vae_forward.11} parent=35 // pred_check_branch
              %206 = sbr.rel target = $region51
            $region50: #{vae_forward.11} parent=35 // pred_region
              _
            $region51: #{vae_forward.11} parent=35 // pred_fallthru
              _
          $region36: #{vae_forward.11} parent=31 // pred_fallthru
            _
          %207 = vnop
        $region32: #{vae_forward.11} parent=27 // pred_fallthru
          _
        // Predicated region
        $region52: #{vae_forward.11} parent=27 // pred_check
          %p208 = pneg %p57
        $region53: #{vae_forward.11} parent=27 // pred_check_branch
          %210 = sbr.rel (%p208) target = $region55
        $region54: #{vae_forward.11} parent=27 // pred_region
          %s211 = smul.u32 64, %s11
          %p212 = scmp.lt.s32.totalorder %s211, 127
          %s213 = scalar_select %p212, %s211, 127
          %s214 = smul.addr %s213, 4
          %s215 = scalar_lea.vmem %s1, %s214
          %s216 = smul.u32 64, %s11
        $region55: #{vae_forward.11} parent=27 // pred_fallthru
          _
      $region28: #{vae_forward.11} parent=5 // pred_fallthru
        _
      %p217 = scmp.le.s32.totalorder 1, %s11
      %p218 = scmp.lt.s32.totalorder %s11, 3
      %p219 = pnand %p217, %p218
      %p220 = pneg %p219
      // Predicated region
      $region56: #{vae_forward.11} parent=5 // pred_check
        _
      $region57: #{vae_forward.11} parent=5 // pred_check_branch
        %222 = sbr.rel (%p219) target = $region59
      $region58: #{vae_forward.11} parent=5 // pred_region
        %s223 = ssub.s32 %s11, 1
        %s224 = sand.u32 %s24, 1
        %s225 = sand.u32 %s24, 1
        %s226 = smul.addr %s225, 32
        %s227 = scalar_lea.vmem [#allocation3], %s226
        // Predicated region
        $region60: #{vae_forward.11} parent=58 // pred_check
          %p228 = pneg %p37
        $region61: #{vae_forward.11} parent=58 // pred_check_branch
          %230 = sbr.rel (%p228) target = $region63
        $region62: #{vae_forward.11} parent=58 // pred_region
          _
        $region63: #{vae_forward.11} parent=58 // pred_fallthru
          _
        %s231 = sand.u32 %s24, 1
        %s232 = sand.u32 %s24, 1
        %s233 = smul.addr %s232, 32
        %s234 = scalar_lea.vmem [#allocation3], %s233
        %p235 = pneg %p37
        %p236 = pneg %p34
        %s237 = smul.u32 64, %s16
        %p238 = scmp.lt.s32.totalorder %s237, 127
        %s239 = scalar_select %p238, %s237, 127
        %s240 = smul.addr %s239, 4
        %s241 = scalar_lea.vmem %s1, %s240
        %p242 = pneg %p63
        %p243 = pneg %p60
        %p244 = pneg %p84
        %p245 = pneg %p81
        %p246 = pneg %p105
        %p247 = pneg %p102
        %p248 = pneg %p126
        %p249 = pneg %p123
        %p250 = pneg %p147
        %p251 = pneg %p144
        %s252 = smul.u32 4, %s16
        %s253 = smul.u32 64, %s16
        %p254 = scmp.lt.s32.totalorder %s253, 127
        %s255 = scalar_select %p254, %s253, 127
        %s256 = smul.addr %s255, 4
        %s257 = scalar_lea.vmem %s1, %s256
        %s258 = smul.u32 64, %s16
        %p260 = scmp.eq.s32.totalorder %s16, 0
        // Predicated region
        $region64: #{vae_forward.11} parent=58 // pred_check
          %p261 = pneg %p260
        $region65: #{vae_forward.11} parent=58 // pred_check_branch
          %263 = sbr.rel (%p261) target = $region67
        $region66: #{vae_forward.11} parent=58 // pred_region
          %vm264 = vcmask 130048
          %265 = vst.msk [vmem:[#allocation2] sm:$0xff] %vm264, 0.0
          %266 = vst.msk [vmem:[#allocation2 + $0x8] sm:$0xff] %vm264, 0.0
        $region67: #{vae_forward.11} parent=58 // pred_fallthru
          _
        %v267 = vld [vmem:[#allocation2] sm:$0xff]
        %v268 = vld [vmem:[#allocation2 + $0x8] sm:$0xff]
        %v269 = vld [vmem:[%s227] sm:$0xff]
        %v270 = vld [vmem:[%s227 + $0x8] sm:$0xff]
        %v271 = vld [vmem:[%s227 + $0x10] sm:$0xff]
        %v272 = vld [vmem:[%s227 + $0x18] sm:$0xff]
        %v273 = vld [vmem:[%s257] sm:$0xf]
        %v274 = vld [vmem:[%s257 + $0x4] sm:$0xf]
        %v275 = vld [vmem:[%s257 + $0x8] sm:$0xf]
        %v276 = vld [vmem:[%s257 + $0xc] sm:$0xf]
        %v277 = vld [vmem:[%s257 + $0x10] sm:$0xf]
        %v278 = vld [vmem:[%s257 + $0x14] sm:$0xf]
        %v279 = vld [vmem:[%s257 + $0x18] sm:$0xf]
        %v280 = vld [vmem:[%s257 + $0x1c] sm:$0xf]
        %v281 = vld [vmem:[%s257 + $0x20] sm:$0xf]
        %v282 = vld [vmem:[%s257 + $0x24] sm:$0xf]
        %v283 = vld [vmem:[%s257 + $0x28] sm:$0xf]
        %v284 = vld [vmem:[%s257 + $0x2c] sm:$0xf]
        %v285 = vld [vmem:[%s257 + $0x30] sm:$0xf]
        %v286 = vld [vmem:[%s257 + $0x34] sm:$0xf]
        %v287 = vld [vmem:[%s257 + $0x38] sm:$0xf]
        %v288 = vld [vmem:[%s257 + $0x3c] sm:$0xf]
        %v289 = vld [vmem:[%s257 + $0x40] sm:$0xf]
        %v290 = vld [vmem:[%s257 + $0x44] sm:$0xf]
        %v291 = vld [vmem:[%s257 + $0x48] sm:$0xf]
        %v292 = vld [vmem:[%s257 + $0x4c] sm:$0xf]
        %v293 = vld [vmem:[%s257 + $0x50] sm:$0xf]
        %v294 = vld [vmem:[%s257 + $0x54] sm:$0xf]
        %v295 = vld [vmem:[%s257 + $0x58] sm:$0xf]
        %v296 = vld [vmem:[%s257 + $0x5c] sm:$0xf]
        %v297 = vld [vmem:[%s257 + $0x60] sm:$0xf]
        %v298 = vld [vmem:[%s257 + $0x64] sm:$0xf]
        %v299 = vld [vmem:[%s257 + $0x68] sm:$0xf]
        %v300 = vld [vmem:[%s257 + $0x6c] sm:$0xf]
        %v301 = vld [vmem:[%s257 + $0x70] sm:$0xf]
        %v302 = vld [vmem:[%s257 + $0x74] sm:$0xf]
        %v303 = vld [vmem:[%s257 + $0x78] sm:$0xf]
        %v304 = vld [vmem:[%s257 + $0x7c] sm:$0xf]
        %v305 = vld [vmem:[%s257 + $0x80] sm:$0xf]
        %v306 = vld [vmem:[%s257 + $0x84] sm:$0xf]
        %v307 = vld [vmem:[%s257 + $0x88] sm:$0xf]
        %v308 = vld [vmem:[%s257 + $0x8c] sm:$0xf]
        %v309 = vld [vmem:[%s257 + $0x90] sm:$0xf]
        %v310 = vld [vmem:[%s257 + $0x94] sm:$0xf]
        %v311 = vld [vmem:[%s257 + $0x98] sm:$0xf]
        %v312 = vld [vmem:[%s257 + $0x9c] sm:$0xf]
        %v313 = vld [vmem:[%s257 + $0xa0] sm:$0xf]
        %v314 = vld [vmem:[%s257 + $0xa4] sm:$0xf]
        %v315 = vld [vmem:[%s257 + $0xa8] sm:$0xf]
        %v316 = vld [vmem:[%s257 + $0xac] sm:$0xf]
        %v317 = vld [vmem:[%s257 + $0xb0] sm:$0xf]
        %v318 = vld [vmem:[%s257 + $0xb4] sm:$0xf]
        %v319 = vld [vmem:[%s257 + $0xb8] sm:$0xf]
        %v320 = vld [vmem:[%s257 + $0xbc] sm:$0xf]
        %v321 = vld [vmem:[%s257 + $0xc0] sm:$0xf]
        %v322 = vld [vmem:[%s257 + $0xc4] sm:$0xf]
        %v323 = vld [vmem:[%s257 + $0xc8] sm:$0xf]
        %v324 = vld [vmem:[%s257 + $0xcc] sm:$0xf]
        %v325 = vld [vmem:[%s257 + $0xd0] sm:$0xf]
        %v326 = vld [vmem:[%s257 + $0xd4] sm:$0xf]
        %v327 = vld [vmem:[%s257 + $0xd8] sm:$0xf]
        %v328 = vld [vmem:[%s257 + $0xdc] sm:$0xf]
        %v329 = vld [vmem:[%s257 + $0xe0] sm:$0xf]
        %v330 = vld [vmem:[%s257 + $0xe4] sm:$0xf]
        %v331 = vld [vmem:[%s257 + $0xe8] sm:$0xf]
        %v332 = vld [vmem:[%s257 + $0xec] sm:$0xf]
        %v333 = vld [vmem:[%s257 + $0xf0] sm:$0xf]
        %v334 = vld [vmem:[%s257 + $0xf4] sm:$0xf]
        %v335 = vld [vmem:[%s257 + $0xf8] sm:$0xf]
        %v336 = vld [vmem:[%s257 + $0xfc] sm:$0xf]
        %v341 = vunpack.c.l.b16 %v269
        %v342 = vunpack.c.h.b16 %v269
        %v343 = vunpack.c.l.b16 %v270
        %v344 = vunpack.c.h.b16 %v270
        %v345 = vunpack.c.l.b16 %v271
        %v346 = vunpack.c.h.b16 %v271
        %v347 = vunpack.c.l.b16 %v272
        %v348 = vunpack.c.h.b16 %v272
        %v349 = vpack.c.b16 %v345, %v341
        %v350 = vpack.c.b16 %v346, %v342
        %v351 = vpack.c.b16 %v347, %v343
        %v352 = vpack.c.b16 %v348, %v344
        %v421 = vunpack.c.l.b16 %v273
        %v422 = vunpack.c.l.b16 %v274
        %v423 = vunpack.c.l.b16 %v275
        %v424 = vunpack.c.l.b16 %v276
        %v425 = vunpack.c.l.b16 %v277
        %v426 = vunpack.c.l.b16 %v278
        %v427 = vunpack.c.l.b16 %v279
        %v428 = vunpack.c.l.b16 %v280
        %v429 = vunpack.c.l.b16 %v281
        %v430 = vunpack.c.l.b16 %v282
        %v431 = vunpack.c.l.b16 %v283
        %v432 = vunpack.c.l.b16 %v284
        %v433 = vunpack.c.l.b16 %v285
        %v434 = vunpack.c.l.b16 %v286
        %v435 = vunpack.c.l.b16 %v287
        %v436 = vunpack.c.l.b16 %v288
        %v437 = vunpack.c.l.b16 %v289
        %v438 = vunpack.c.l.b16 %v290
        %v439 = vunpack.c.l.b16 %v291
        %v440 = vunpack.c.l.b16 %v292
        %v441 = vunpack.c.l.b16 %v293
        %v442 = vunpack.c.l.b16 %v294
        %v443 = vunpack.c.l.b16 %v295
        %v444 = vunpack.c.l.b16 %v296
        %v445 = vunpack.c.l.b16 %v297
        %v446 = vunpack.c.l.b16 %v298
        %v447 = vunpack.c.l.b16 %v299
        %v448 = vunpack.c.l.b16 %v300
        %v449 = vunpack.c.l.b16 %v301
        %v450 = vunpack.c.l.b16 %v302
        %v451 = vunpack.c.l.b16 %v303
        %v452 = vunpack.c.l.b16 %v304
        %v453 = vunpack.c.l.b16 %v305
        %v454 = vunpack.c.l.b16 %v306
        %v455 = vunpack.c.l.b16 %v307
        %v456 = vunpack.c.l.b16 %v308
        %v457 = vunpack.c.l.b16 %v309
        %v458 = vunpack.c.l.b16 %v310
        %v459 = vunpack.c.l.b16 %v311
        %v460 = vunpack.c.l.b16 %v312
        %v461 = vunpack.c.l.b16 %v313
        %v462 = vunpack.c.l.b16 %v314
        %v463 = vunpack.c.l.b16 %v315
        %v464 = vunpack.c.l.b16 %v316
        %v465 = vunpack.c.l.b16 %v317
        %v466 = vunpack.c.l.b16 %v318
        %v467 = vunpack.c.l.b16 %v319
        %v468 = vunpack.c.l.b16 %v320
        %v469 = vunpack.c.l.b16 %v321
        %v470 = vunpack.c.l.b16 %v322
        %v471 = vunpack.c.l.b16 %v323
        %v472 = vunpack.c.l.b16 %v324
        %v473 = vunpack.c.l.b16 %v325
        %v474 = vunpack.c.l.b16 %v326
        %v475 = vunpack.c.l.b16 %v327
        %v476 = vunpack.c.l.b16 %v328
        %v477 = vunpack.c.l.b16 %v329
        %v478 = vunpack.c.l.b16 %v330
        %v479 = vunpack.c.l.b16 %v331
        %v480 = vunpack.c.l.b16 %v332
        %v481 = vunpack.c.l.b16 %v333
        %v482 = vunpack.c.l.b16 %v334
        %v483 = vunpack.c.l.b16 %v335
        %v484 = vunpack.c.l.b16 %v336
        %v485 = vpack.c.b16 %v422, %v421
        %v486 = vpack.c.b16 %v424, %v423
        %v487 = vpack.c.b16 %v426, %v425
        %v488 = vpack.c.b16 %v428, %v427
        %v489 = vpack.c.b16 %v430, %v429
        %v490 = vpack.c.b16 %v432, %v431
        %v491 = vpack.c.b16 %v434, %v433
        %v492 = vpack.c.b16 %v436, %v435
        %v493 = vpack.c.b16 %v438, %v437
        %v494 = vpack.c.b16 %v440, %v439
        %v495 = vpack.c.b16 %v442, %v441
        %v496 = vpack.c.b16 %v444, %v443
        %v497 = vpack.c.b16 %v446, %v445
        %v498 = vpack.c.b16 %v448, %v447
        %v499 = vpack.c.b16 %v450, %v449
        %v500 = vpack.c.b16 %v452, %v451
        %v501 = vpack.c.b16 %v454, %v453
        %v502 = vpack.c.b16 %v456, %v455
        %v503 = vpack.c.b16 %v458, %v457
        %v504 = vpack.c.b16 %v460, %v459
        %v505 = vpack.c.b16 %v462, %v461
        %v506 = vpack.c.b16 %v464, %v463
        %v507 = vpack.c.b16 %v466, %v465
        %v508 = vpack.c.b16 %v468, %v467
        %v509 = vpack.c.b16 %v470, %v469
        %v510 = vpack.c.b16 %v472, %v471
        %v511 = vpack.c.b16 %v474, %v473
        %v512 = vpack.c.b16 %v476, %v475
        %v513 = vpack.c.b16 %v478, %v477
        %v514 = vpack.c.b16 %v480, %v479
        %v515 = vpack.c.b16 %v482, %v481
        %v516 = vpack.c.b16 %v484, %v483
        %549 = vmatprep.subr.bf16.mxu0 0
        %550 = vmatpush1.bf16.msra.mxu0 %v492
        %551 = vmatprep.subr.bf16.mxu0 0
        %552 = vmatpush1.bf16.msra.mxu0 %v491
        %553 = vmatprep.subr.bf16.mxu0 0
        %554 = vmatpush1.bf16.msra.mxu0 %v490
        %555 = vmatprep.subr.bf16.mxu0 0
        %556 = vmatpush1.bf16.msra.mxu0 %v489
        %557 = vmatprep.subr.bf16.mxu0 0
        %558 = vmatpush1.bf16.msra.mxu0 %v488
        %559 = vmatprep.subr.bf16.mxu0 0
        %560 = vmatpush1.bf16.msra.mxu0 %v487
        %561 = vmatprep.subr.bf16.mxu0 0
        %562 = vmatpush1.bf16.msra.mxu0 %v486
        %563 = vmatprep.subr.bf16.mxu0 0
        %564 = vmatpush1.bf16.msra.mxu0 %v485
        %565 = vmatprep.subr.bf16.mxu0 0
        %566 = vmatpush2.bf16.msra.mxu0 %v500
        %567 = vmatprep.subr.bf16.mxu0 0
        %568 = vmatpush2.bf16.msra.mxu0 %v499
        %569 = vmatprep.subr.bf16.mxu0 0
        %570 = vmatpush2.bf16.msra.mxu0 %v498
        %571 = vmatprep.subr.bf16.mxu0 0
        %572 = vmatpush2.bf16.msra.mxu0 %v497
        %573 = vmatprep.subr.bf16.mxu0 0
        %574 = vmatpush2.bf16.msra.mxu0 %v496
        %575 = vmatprep.subr.bf16.mxu0 0
        %576 = vmatpush2.bf16.msra.mxu0 %v495
        %577 = vmatprep.subr.bf16.mxu0 0
        %578 = vmatpush2.bf16.msra.mxu0 %v494
        %579 = vmatprep.subr.bf16.mxu0 0
        %580 = vmatpush2.bf16.msra.mxu0 %v493
        %581 = vmatprep.mubr.bf16.mxu0 %v350
        %582 = vmatmul.mubr.bf16.gmra.mxu0 %v349
        %v583 = vpop.f32.mrf.mxu0
        %v584 = vadd.f32 0.0, %v583
        %v585 = vpop.f32.mrf.mxu0
        %v586 = vpop.f32.mrf.mxu0
        %v587 = vadd.f32 0.0, %v586
        %v588 = vpop.f32.mrf.mxu0
        %589 = vdwg.mxu0
        %590 = vmatprep.subr.bf16.mxu0 0
        %591 = vmatpush1.bf16.msra.mxu0 %v508
        %592 = vmatprep.subr.bf16.mxu0 0
        %593 = vmatpush1.bf16.msra.mxu0 %v507
        %594 = vmatprep.subr.bf16.mxu0 0
        %595 = vmatpush1.bf16.msra.mxu0 %v506
        %596 = vmatprep.subr.bf16.mxu0 0
        %597 = vmatpush1.bf16.msra.mxu0 %v505
        %598 = vmatprep.subr.bf16.mxu0 0
        %599 = vmatpush1.bf16.msra.mxu0 %v504
        %600 = vmatprep.subr.bf16.mxu0 0
        %601 = vmatpush1.bf16.msra.mxu0 %v503
        %602 = vmatprep.subr.bf16.mxu0 0
        %603 = vmatpush1.bf16.msra.mxu0 %v502
        %604 = vmatprep.subr.bf16.mxu0 0
        %605 = vmatpush1.bf16.msra.mxu0 %v501
        %606 = vmatprep.subr.bf16.mxu0 0
        %607 = vmatpush2.bf16.msra.mxu0 %v516
        %608 = vmatprep.subr.bf16.mxu0 0
        %609 = vmatpush2.bf16.msra.mxu0 %v515
        %610 = vmatprep.subr.bf16.mxu0 0
        %611 = vmatpush2.bf16.msra.mxu0 %v514
        %612 = vmatprep.subr.bf16.mxu0 0
        %613 = vmatpush2.bf16.msra.mxu0 %v513
        %614 = vmatprep.subr.bf16.mxu0 0
        %615 = vmatpush2.bf16.msra.mxu0 %v512
        %616 = vmatprep.subr.bf16.mxu0 0
        %617 = vmatpush2.bf16.msra.mxu0 %v511
        %618 = vmatprep.subr.bf16.mxu0 0
        %619 = vmatpush2.bf16.msra.mxu0 %v510
        %620 = vmatprep.subr.bf16.mxu0 0
        %621 = vmatpush2.bf16.msra.mxu0 %v509
        %622 = vmatprep.mubr.bf16.mxu0 %v352
        %623 = vmatmul.mubr.bf16.gmra.mxu0 %v351
        %v624 = vpop.f32.mrf.mxu0
        %v625 = vadd.f32 %v584, %v624
        %v626 = vpop.f32.mrf.mxu0
        %v627 = vpop.f32.mrf.mxu0
        %v628 = vadd.f32 %v587, %v627
        %v629 = vpop.f32.mrf.mxu0
        %630 = vdwg.mxu0
        %v631 = vadd.f32 %v267, %v625
        %v632 = vadd.f32 %v268, %v628
        %vm633 = vcmask 130048
        %634 = vst.msk [vmem:[#allocation2] sm:$0xff] %vm633, %v631
        %635 = vst.msk [vmem:[#allocation2 + $0x8] sm:$0xff] %vm633, %v632
        %p636 = scmp.eq.s32.totalorder %s16, 1
        // Predicated region
        $region68: #{vae_forward.11} parent=58 // pred_check
          %p637 = pneg %p636
        $region69: #{vae_forward.11} parent=58 // pred_check_branch
          %639 = sbr.rel (%p637) target = $region71
        $region70: #{vae_forward.11} parent=58 // pred_region
          %v640 = vld [vmem:[#allocation2] sm:$0xff]
          %v641 = vld [vmem:[#allocation2 + $0x8] sm:$0xff]
          %v642 = vld [vmem:[%s2] sm:$0x1]
          %v644 = vlaneseq
          %v645 = vshrl.u32 %v644, 7
          %v646 = vsub.s32 0, %v645
          %v647 = vrot.slane %v642, %v646
          %v649 = vadd.f32 %v640, %v647
          %v650 = vadd.f32 %v641, %v647
          %v651 = vsel %vm633, %v649, 0.0
          %v652 = vsel %vm633, %v650, 0.0
          %v653 = vadd.f32 %v651, %v652
          %v654 = vrot.slane %v653, 4
          %v655 = vadd.f32 %v653, %v654
          %v656 = vrot.slane %v655, 2
          %v657 = vadd.f32 %v655, %v656
          %v658 = vrot.slane %v657, 1
          %v659 = vadd.f32 %v657, %v658
          %v660 = vmul.f32 %v659, 0.0625
          %v661 = vmul.f32 %v649, %v649
          %v662 = vmul.f32 %v650, %v650
          %v663 = vsel %vm633, %v661, 0.0
          %v664 = vsel %vm633, %v662, 0.0
          %v665 = vadd.f32 %v663, %v664
          %v666 = vrot.slane %v665, 4
          %v667 = vadd.f32 %v665, %v666
          %v668 = vrot.slane %v667, 2
          %v669 = vadd.f32 %v667, %v668
          %v670 = vrot.slane %v669, 1
          %v671 = vadd.f32 %v669, %v670
          %v672 = vmul.f32 %v671, 0.0625
          %v673 = vmul.f32 %v660, %v660
          %v674 = vsub.f32 %v672, %v673
          %v675 = vmax.f32 %v674, 0.0
          %v676 = vsub.f32 %v649, %v660
          %v677 = vsub.f32 %v650, %v660
          %v678 = vadd.f32 %v675, 1e-05
          %v679 = vrsqrt.pop %v678
          %v680 = vmul.f32 %v676, %v679
          %v681 = vmul.f32 %v677, %v679
          %v682 = vld [vmem:[%s3] sm:$0x1]
          %v684 = vlaneseq
          %v685 = vshrl.u32 %v684, 7
          %v686 = vsub.s32 0, %v685
          %v687 = vrot.slane %v682, %v686
          %v689 = vmul.f32 %v680, %v687
          %v690 = vmul.f32 %v681, %v687
          %v691 = vld [vmem:[%s4] sm:$0x1]
          %v693 = vlaneseq
          %v694 = vshrl.u32 %v693, 7
          %v695 = vsub.s32 0, %v694
          %v696 = vrot.slane %v691, %v695
          %v698 = vadd.f32 %v689, %v696
          %v699 = vadd.f32 %v690, %v696
          %v700 = vmax.f32 %v698, 0.0
          %v701 = vmax.f32 %v699, 0.0
          %v702 = vpack.c.bf16 %v701, %v700
          %v704 = vunpack.c.l.b16 %v702
          %v705 = vunpack.c.h.b16 %v702
          %v706 = vpack.c.b16 %v704, %v704
          %v707 = vpack.c.b16 %v705, %v705
          %vm710 = vcmask 125952
          %711 = vst.msk [vmem:[%s5] sm:$0xf] %vm710, %v706
          %712 = vst.msk [vmem:[%s5 + $0x4] sm:$0xf] %vm710, %v707
        $region71: #{vae_forward.11} parent=58 // pred_fallthru
          _
        // Predicated region
        $region72: #{vae_forward.11} parent=58 // pred_check
          %p713 = pneg %p144
        $region73: #{vae_forward.11} parent=58 // pred_check_branch
          %715 = sbr.rel (%p713) target = $region75
        $region74: #{vae_forward.11} parent=58 // pred_region
          _
        $region75: #{vae_forward.11} parent=58 // pred_fallthru
          _
        // Predicated region
        $region76: #{vae_forward.11} parent=58 // pred_check
          %p716 = pneg %p144
        $region77: #{vae_forward.11} parent=58 // pred_check_branch
          %718 = sbr.rel (%p716) target = $region79
        $region78: #{vae_forward.11} parent=58 // pred_region
          _
        $region79: #{vae_forward.11} parent=58 // pred_fallthru
          _
      $region59: #{vae_forward.11} parent=5 // pred_fallthru
        _
      %p719 = scmp.le.s32.totalorder 2, %s11
      // Predicated region
      $region80: #{vae_forward.11} parent=5 // pred_check
        %p720 = pneg %p719
      $region81: #{vae_forward.11} parent=5 // pred_check_branch
        %722 = sbr.rel (%p720) target = $region83
      $region82: #{vae_forward.11} parent=5 // pred_region
        %s723 = ssub.s32 %s11, 2
      $region83: #{vae_forward.11} parent=5 // pred_fallthru
        _
    $region6: #{vae_forward.11} parent=1 // loop_footer
      %s15 = sadd.s32 1, %s11
    $region7: #{vae_forward.11} parent=1 // loop_footer_branch
      %10 = sbr.rel target = $region3
    $region8: #{vae_forward.11} parent=1 // loop_exit
      _

// kernel: vae_forward.12
$region0: #{vae_forward.12}
  #allocation0 [shape = 'u32[]', space=smem, size = 0x4, offset = 0x4, fixed_abs, tag = 'smem constant byte address 0x4 - core index']
  #allocation1 [shape = 'u32[144,128]{1,0:T(1,128)}', space=vmem, size = 0x12000, scoped, tag = 'internal scratch']
  #allocation2 [shape = 'f32[128,8]{1,0:T(8,128)}', space=vmem, size = 0x10000, scoped, tag = 'scratch operand']
  %s0 = inlined_call_operand.vmem [shape: bf16[128,1024], index: 0, kind: input, shape index: {}]
  %s1 = inlined_call_operand.vmem [shape: bf16[1024,8], index: 1, kind: input, shape index: {}]
  %s2 = inlined_call_operand.vmem [shape: f32[1,8], index: 2, kind: input, shape index: {}]
  %s3 = inlined_call_operand.vmem [shape: f32[1,8], index: 3, kind: input, shape index: {}]
  %s4 = inlined_call_operand.vmem [shape: f32[1,8], index: 4, kind: input, shape index: {}]
  %s5 = inlined_call_operand.vmem [shape: bf16[128,8], index: 5, kind: output, shape index: {}]
  %s6 = sld [smem:[#allocation0]]
  $region84: #{vae_forward.12} parent=0
    _
  %s8 = ssub.s32 1, %s6
  %s9 = scalar_select 0, %s8, %s6
  $region1: #{vae_forward.12} parent=0
    #allocation3 [shape = 'u8[262144]{0}', space=vmem, size = 0x40000, scoped, tag = 'input window, operand 0']
    loop: start=0, step=1, limit=4
    $region2: #{vae_forward.12} parent=1 // loop_pre_header
      _
    $region3: #{vae_forward.12} parent=1 // loop_header
      %s11 = sphi 0, %s15
      %p12 = scmp.ge.s32.totalorder %s11, 4
      %s21 = sphi 0, %s23
      %s24 = sphi 0, %s21
      %s25 = sphi 0, %s24
      %s41 = sphi 0, %s25
      %s47 = sphi 0, %s49
      %s50 = sphi 0, %s47
      %s51 = sphi 0, %s50
      %s67 = sphi 0, %s51
      %s71 = sphi 0, %s71
      %s73 = sphi 0, %s71
      %s74 = sphi 0, %s73
      %s88 = sphi 0, %s74
      %s92 = sphi 0, %s92
      %s94 = sphi 0, %s92
      %s95 = sphi 0, %s94
      %s109 = sphi 0, %s95
      %s113 = sphi 0, %s113
      %s115 = sphi 0, %s113
      %s116 = sphi 0, %s115
      %s130 = sphi 0, %s116
      %s134 = sphi 0, %s134
      %s136 = sphi 0, %s134
      %s137 = sphi 0, %s136
      %s151 = sphi 0, %s137
    $region4: #{vae_forward.12} parent=1 // loop_header_branch
      %14 = sbr.rel (%p12) target = $region8
    $region5: #{vae_forward.12} parent=1 // loop_body
      %s16 = ssub.s32 %s11, 1
      %s17 = ssub.s32 %s11, 2
      %s18 = sadd.s32 %s11, 1
      %s19 = ssub.s32 %s11, %s18
      %p20 = scmp.eq.s32.totalorder %s19, 0
      %s22 = sadd.s32 %s21, 1
      %s23 = scalar_select %p20, %s21, %s22
      %p26 = pneg %p20
      %p27 = scmp.eq.s32.totalorder %s11, 1
      %p28 = por %p26, %p27
      %p29 = scmp.ne.s32.totalorder %s21, %s24
      %p30 = scmp.eq.s32.totalorder %s11, 0
      %p31 = por %p29, %p30
      %p32 = scmp.ne.s32.totalorder %s21, %s24
      %p33 = scmp.eq.s32.totalorder %s16, 1
      %p34 = por %p32, %p33
      %p35 = scmp.ne.s32.totalorder %s24, %s25
      %p36 = scmp.eq.s32.totalorder %s16, 0
      %p37 = por %p35, %p36
      %p38 = scmp.ne.s32.totalorder %s24, %s25
      %p39 = scmp.eq.s32.totalorder %s17, 1
      %p40 = por %p38, %p39
      %p42 = scmp.ne.s32.totalorder %s25, %s41
      %p43 = scmp.eq.s32.totalorder %s17, 0
      %p44 = por %p42, %p43
      %s45 = ssub.s32 %s11, %s18
      %p46 = scmp.eq.s32.totalorder %s45, 0
      %s48 = sadd.s32 %s47, 1
      %s49 = scalar_select %p46, %s47, %s48
      %p52 = pneg %p46
      %p53 = scmp.eq.s32.totalorder %s11, 1
      %p54 = por %p52, %p53
      %p55 = scmp.ne.s32.totalorder %s47, %s50
      %p56 = scmp.eq.s32.totalorder %s11, 0
      %p57 = por %p55, %p56
      %p58 = scmp.ne.s32.totalorder %s47, %s50
      %p59 = scmp.eq.s32.totalorder %s16, 1
      %p60 = por %p58, %p59
      %p61 = scmp.ne.s32.totalorder %s50, %s51
      %p62 = scmp.eq.s32.totalorder %s16, 0
      %p63 = por %p61, %p62
      %p64 = scmp.ne.s32.totalorder %s50, %s51
      %p65 = scmp.eq.s32.totalorder %s17, 1
      %p66 = por %p64, %p65
      %p68 = scmp.ne.s32.totalorder %s51, %s67
      %p69 = scmp.eq.s32.totalorder %s17, 0
      %p70 = por %p68, %p69
      %s72 = sadd.s32 %s71, 1
      %p75 = scmp.eq.s32.totalorder %s11, 1
      %p76 = scmp.ne.s32.totalorder %s71, %s73
      %p77 = scmp.eq.s32.totalorder %s11, 0
      %p78 = por %p76, %p77
      %p79 = scmp.ne.s32.totalorder %s71, %s73
      %p80 = scmp.eq.s32.totalorder %s16, 1
      %p81 = por %p79, %p80
      %p82 = scmp.ne.s32.totalorder %s73, %s74
      %p83 = scmp.eq.s32.totalorder %s16, 0
      %p84 = por %p82, %p83
      %p85 = scmp.ne.s32.totalorder %s73, %s74
      %p86 = scmp.eq.s32.totalorder %s17, 1
      %p87 = por %p85, %p86
      %p89 = scmp.ne.s32.totalorder %s74, %s88
      %p90 = scmp.eq.s32.totalorder %s17, 0
      %p91 = por %p89, %p90
      %s93 = sadd.s32 %s92, 1
      %p96 = scmp.eq.s32.totalorder %s11, 1
      %p97 = scmp.ne.s32.totalorder %s92, %s94
      %p98 = scmp.eq.s32.totalorder %s11, 0
      %p99 = por %p97, %p98
      %p100 = scmp.ne.s32.totalorder %s92, %s94
      %p101 = scmp.eq.s32.totalorder %s16, 1
      %p102 = por %p100, %p101
      %p103 = scmp.ne.s32.totalorder %s94, %s95
      %p104 = scmp.eq.s32.totalorder %s16, 0
      %p105 = por %p103, %p104
      %p106 = scmp.ne.s32.totalorder %s94, %s95
      %p107 = scmp.eq.s32.totalorder %s17, 1
      %p108 = por %p106, %p107
      %p110 = scmp.ne.s32.totalorder %s95, %s109
      %p111 = scmp.eq.s32.totalorder %s17, 0
      %p112 = por %p110, %p111
      %s114 = sadd.s32 %s113, 1
      %p117 = scmp.eq.s32.totalorder %s11, 1
      %p118 = scmp.ne.s32.totalorder %s113, %s115
      %p119 = scmp.eq.s32.totalorder %s11, 0
      %p120 = por %p118, %p119
      %p121 = scmp.ne.s32.totalorder %s113, %s115
      %p122 = scmp.eq.s32.totalorder %s16, 1
      %p123 = por %p121, %p122
      %p124 = scmp.ne.s32.totalorder %s115, %s116
      %p125 = scmp.eq.s32.totalorder %s16, 0
      %p126 = por %p124, %p125
      %p127 = scmp.ne.s32.totalorder %s115, %s116
      %p128 = scmp.eq.s32.totalorder %s17, 1
      %p129 = por %p127, %p128
      %p131 = scmp.ne.s32.totalorder %s116, %s130
      %p132 = scmp.eq.s32.totalorder %s17, 0
      %p133 = por %p131, %p132
      %s135 = sadd.s32 %s134, 1
      %p138 = scmp.eq.s32.totalorder %s11, 1
      %p139 = scmp.ne.s32.totalorder %s134, %s136
      %p140 = scmp.eq.s32.totalorder %s11, 0
      %p141 = por %p139, %p140
      %p142 = scmp.ne.s32.totalorder %s134, %s136
      %p143 = scmp.eq.s32.totalorder %s16, 1
      %p144 = por %p142, %p143
      %p145 = scmp.ne.s32.totalorder %s136, %s137
      %p146 = scmp.eq.s32.totalorder %s16, 0
      %p147 = por %p145, %p146
      %p148 = scmp.ne.s32.totalorder %s136, %s137
      %p149 = scmp.eq.s32.totalorder %s17, 1
      %p150 = por %p148, %p149
      %p152 = scmp.ne.s32.totalorder %s137, %s151
      %p153 = scmp.eq.s32.totalorder %s17, 0
      %p154 = por %p152, %p153
      %p155 = scmp.le.s32.totalorder 1, %s11
      %p156 = scmp.lt.s32.totalorder %s11, 3
      %p157 = pnand %p155, %p156
      %p158 = pneg %p157
      // Predicated region
      $region9: #{vae_forward.12} parent=5 // pred_check
        _
      $region10: #{vae_forward.12} parent=5 // pred_check_branch
        %160 = sbr.rel (%p157) target = $region12
      $region11: #{vae_forward.12} parent=5 // pred_region
        %s161 = ssub.s32 %s11, 1
        // Predicated region
        $region13: #{vae_forward.12} parent=11 // pred_check
          %p162 = pneg %p84
        $region14: #{vae_forward.12} parent=11 // pred_check_branch
          %164 = sbr.rel (%p162) target = $region16
        $region15: #{vae_forward.12} parent=11 // pred_region
          _
        $region16: #{vae_forward.12} parent=11 // pred_fallthru
          _
        // Predicated region
        $region17: #{vae_forward.12} parent=11 // pred_check
          %p165 = pneg %p105
        $region18: #{vae_forward.12} parent=11 // pred_check_branch
          %167 = sbr.rel (%p165) target = $region20
        $region19: #{vae_forward.12} parent=11 // pred_region
          _
        $region20: #{vae_forward.12} parent=11 // pred_fallthru
          _
        // Predicated region
        $region21: #{vae_forward.12} parent=11 // pred_check
          %p168 = pneg %p126
        $region22: #{vae_forward.12} parent=11 // pred_check_branch
          %170 = sbr.rel (%p168) target = $region24
        $region23: #{vae_forward.12} parent=11 // pred_region
          _
        $region24: #{vae_forward.12} parent=11 // pred_fallthru
          _
      $region12: #{vae_forward.12} parent=5 // pred_fallthru
        _
      %p171 = scmp.lt.s32.totalorder %s11, 2
      // Predicated region
      $region25: #{vae_forward.12} parent=5 // pred_check
        %p172 = pneg %p171
      $region26: #{vae_forward.12} parent=5 // pred_check_branch
        %174 = sbr.rel (%p172) target = $region28
      $region27: #{vae_forward.12} parent=5 // pred_region
        // Predicated region
        $region29: #{vae_forward.12} parent=27 // pred_check
          %p175 = pneg %p31
        $region30: #{vae_forward.12} parent=27 // pred_check_branch
          %177 = sbr.rel (%p175) target = $region32
        $region31: #{vae_forward.12} parent=27 // pred_region
          %s178 = sand.u32 %s21, 1
          %s179 = sand.u32 %s21, 1
          %s180 = smul.addr %s179, 256
          %s181 = scalar_lea.vmem [#allocation3], %s180
          %s182 = smul.u32 4, %s11
          %s183 = smul.addr %s182, 4
          %s184 = scalar_lea.vmem %s0, %s183
          // Predicated region
          $region33: #{vae_forward.12} parent=31 // pred_check
            _
          $region34: #{vae_forward.12} parent=31 // pred_check_branch
            %186 = sbr.rel (0) target = $region36
          $region35: #{vae_forward.12} parent=31 // pred_region
            // Predicated region
            $region37: #{vae_forward.12} parent=35 // pred_check
              _
            $region38: #{vae_forward.12} parent=35 // pred_check_branch
              %188 = sbr.rel (0) target = $region40
            $region39: #{vae_forward.12} parent=35 // pred_region
              loop: start=0, step=1, limit=1
              $region41: #{vae_forward.12} parent=39 // loop_pre_header
                _
              $region42: #{vae_forward.12} parent=39 // loop_header
                %s190 = sphi 0, %s194
                %p191 = scmp.ge.s32.totalorder %s190, 1
                %s195 = sphi %s184, %s184
                %s196 = sphi %s181, %s181
              $region43: #{vae_forward.12} parent=39 // loop_header_branch
                %193 = sbr.rel (%p191) target = $region47
              $region44: #{vae_forward.12} parent=39 // loop_body
                %v197 = vld [vmem:[%s195] sm:$0xff]
                %198 = vst [vmem:[%s196] sm:$0xff] %v197
                %v199 = vld [vmem:[%s195 + $0x8] sm:$0xff]
                %200 = vst [vmem:[%s196 + $0x8] sm:$0xff] %v199
                %v201 = vld [vmem:[%s195 + $0x20] sm:$0xff]
                %202 = vst [vmem:[%s196 + $0x10] sm:$0xff] %v201
                %v203 = vld [vmem:[%s195 + $0x28] sm:$0xff]
                %204 = vst [vmem:[%s196 + $0x18] sm:$0xff] %v203
                %v205 = vld [vmem:[%s195 + $0x40] sm:$0xff]
                %206 = vst [vmem:[%s196 + $0x20] sm:$0xff] %v205
                %v207 = vld [vmem:[%s195 + $0x48] sm:$0xff]
                %208 = vst [vmem:[%s196 + $0x28] sm:$0xff] %v207
                %v209 = vld [vmem:[%s195 + $0x60] sm:$0xff]
                %210 = vst [vmem:[%s196 + $0x30] sm:$0xff] %v209
                %v211 = vld [vmem:[%s195 + $0x68] sm:$0xff]
                %212 = vst [vmem:[%s196 + $0x38] sm:$0xff] %v211
                %v213 = vld [vmem:[%s195 + $0x80] sm:$0xff]
                %214 = vst [vmem:[%s196 + $0x40] sm:$0xff] %v213
                %v215 = vld [vmem:[%s195 + $0x88] sm:$0xff]
                %216 = vst [vmem:[%s196 + $0x48] sm:$0xff] %v215
                %v217 = vld [vmem:[%s195 + $0xa0] sm:$0xff]
                %218 = vst [vmem:[%s196 + $0x50] sm:$0xff] %v217
                %v219 = vld [vmem:[%s195 + $0xa8] sm:$0xff]
                %220 = vst [vmem:[%s196 + $0x58] sm:$0xff] %v219
                %v221 = vld [vmem:[%s195 + $0xc0] sm:$0xff]
                %222 = vst [vmem:[%s196 + $0x60] sm:$0xff] %v221
                %v223 = vld [vmem:[%s195 + $0xc8] sm:$0xff]
                %224 = vst [vmem:[%s196 + $0x68] sm:$0xff] %v223
                %v225 = vld [vmem:[%s195 + $0xe0] sm:$0xff]
                %226 = vst [vmem:[%s196 + $0x70] sm:$0xff] %v225
                %v227 = vld [vmem:[%s195 + $0xe8] sm:$0xff]
                %228 = vst [vmem:[%s196 + $0x78] sm:$0xff] %v227
                %v229 = vld [vmem:[%s195 + $0x100] sm:$0xff]
                %230 = vst [vmem:[%s196 + $0x80] sm:$0xff] %v229
                %v231 = vld [vmem:[%s195 + $0x108] sm:$0xff]
                %232 = vst [vmem:[%s196 + $0x88] sm:$0xff] %v231
                %v233 = vld [vmem:[%s195 + $0x120] sm:$0xff]
                %234 = vst [vmem:[%s196 + $0x90] sm:$0xff] %v233
                %v235 = vld [vmem:[%s195 + $0x128] sm:$0xff]
                %236 = vst [vmem:[%s196 + $0x98] sm:$0xff] %v235
                %v237 = vld [vmem:[%s195 + $0x140] sm:$0xff]
                %238 = vst [vmem:[%s196 + $0xa0] sm:$0xff] %v237
                %v239 = vld [vmem:[%s195 + $0x148] sm:$0xff]
                %240 = vst [vmem:[%s196 + $0xa8] sm:$0xff] %v239
                %v241 = vld [vmem:[%s195 + $0x160] sm:$0xff]
                %242 = vst [vmem:[%s196 + $0xb0] sm:$0xff] %v241
                %v243 = vld [vmem:[%s195 + $0x168] sm:$0xff]
                %244 = vst [vmem:[%s196 + $0xb8] sm:$0xff] %v243
                %v245 = vld [vmem:[%s195 + $0x180] sm:$0xff]
                %246 = vst [vmem:[%s196 + $0xc0] sm:$0xff] %v245
                %v247 = vld [vmem:[%s195 + $0x188] sm:$0xff]
                %248 = vst [vmem:[%s196 + $0xc8] sm:$0xff] %v247
                %v249 = vld [vmem:[%s195 + $0x1a0] sm:$0xff]
                %250 = vst [vmem:[%s196 + $0xd0] sm:$0xff] %v249
                %v251 = vld [vmem:[%s195 + $0x1a8] sm:$0xff]
                %252 = vst [vmem:[%s196 + $0xd8] sm:$0xff] %v251
                %v253 = vld [vmem:[%s195 + $0x1c0] sm:$0xff]
                %254 = vst [vmem:[%s196 + $0xe0] sm:$0xff] %v253
                %v255 = vld [vmem:[%s195 + $0x1c8] sm:$0xff]
                %256 = vst [vmem:[%s196 + $0xe8] sm:$0xff] %v255
                %v257 = vld [vmem:[%s195 + $0x1e0] sm:$0xff]
                %258 = vst [vmem:[%s196 + $0xf0] sm:$0xff] %v257
                %v259 = vld [vmem:[%s195 + $0x1e8] sm:$0xff]
                %260 = vst [vmem:[%s196 + $0xf8] sm:$0xff] %v259
              $region45: #{vae_forward.12} parent=39 // loop_footer
                %s194 = sadd.s32 1, %s190
              $region46: #{vae_forward.12} parent=39 // loop_footer_branch
                %189 = sbr.rel target = $region42
              $region47: #{vae_forward.12} parent=39 // loop_exit
                _
            $region40: #{vae_forward.12} parent=35 // pred_fallthru
              _
            // Predicated region
            $region48: #{vae_forward.12} parent=35 // pred_check
              _
            $region49: #{vae_forward.12} parent=35 // pred_check_branch
              %262 = sbr.rel target = $region51
            $region50: #{vae_forward.12} parent=35 // pred_region
              _
            $region51: #{vae_forward.12} parent=35 // pred_fallthru
              _
          $region36: #{vae_forward.12} parent=31 // pred_fallthru
            _
          %263 = vnop
        $region32: #{vae_forward.12} parent=27 // pred_fallthru
          _
        // Predicated region
        $region52: #{vae_forward.12} parent=27 // pred_check
          %p264 = pneg %p57
        $region53: #{vae_forward.12} parent=27 // pred_check_branch
          %266 = sbr.rel (%p264) target = $region55
        $region54: #{vae_forward.12} parent=27 // pred_region
          %s267 = smul.u32 64, %s11
          %p268 = scmp.lt.s32.totalorder %s267, 127
          %s269 = scalar_select %p268, %s267, 127
          %s270 = smul.addr %s269, 4
          %s271 = scalar_lea.vmem %s1, %s270
          %s272 = smul.u32 64, %s11
        $region55: #{vae_forward.12} parent=27 // pred_fallthru
          _
      $region28: #{vae_forward.12} parent=5 // pred_fallthru
        _
      %p273 = scmp.le.s32.totalorder 1, %s11
      %p274 = scmp.lt.s32.totalorder %s11, 3
      %p275 = pnand %p273, %p274
      %p276 = pneg %p275
      // Predicated region
      $region56: #{vae_forward.12} parent=5 // pred_check
        _
      $region57: #{vae_forward.12} parent=5 // pred_check_branch
        %278 = sbr.rel (%p275) target = $region59
      $region58: #{vae_forward.12} parent=5 // pred_region
        %s279 = ssub.s32 %s11, 1
        %s280 = sand.u32 %s24, 1
        %s281 = sand.u32 %s24, 1
        %s282 = smul.addr %s281, 256
        %s283 = scalar_lea.vmem [#allocation3], %s282
        // Predicated region
        $region60: #{vae_forward.12} parent=58 // pred_check
          %p284 = pneg %p37
        $region61: #{vae_forward.12} parent=58 // pred_check_branch
          %286 = sbr.rel (%p284) target = $region63
        $region62: #{vae_forward.12} parent=58 // pred_region
          _
        $region63: #{vae_forward.12} parent=58 // pred_fallthru
          _
        %s287 = sand.u32 %s24, 1
        %s288 = sand.u32 %s24, 1
        %s289 = smul.addr %s288, 256
        %s290 = scalar_lea.vmem [#allocation3], %s289
        %p291 = pneg %p37
        %p292 = pneg %p34
        %s293 = smul.u32 64, %s16
        %p294 = scmp.lt.s32.totalorder %s293, 127
        %s295 = scalar_select %p294, %s293, 127
        %s296 = smul.addr %s295, 4
        %s297 = scalar_lea.vmem %s1, %s296
        %p298 = pneg %p63
        %p299 = pneg %p60
        %p300 = pneg %p84
        %p301 = pneg %p81
        %p302 = pneg %p105
        %p303 = pneg %p102
        %p304 = pneg %p126
        %p305 = pneg %p123
        %p306 = pneg %p147
        %p307 = pneg %p144
        %s308 = smul.u32 4, %s16
        %s309 = smul.u32 64, %s16
        %p310 = scmp.lt.s32.totalorder %s309, 127
        %s311 = scalar_select %p310, %s309, 127
        %s312 = smul.addr %s311, 4
        %s313 = scalar_lea.vmem %s1, %s312
        %s314 = smul.u32 64, %s16
        %p316 = scmp.eq.s32.totalorder %s16, 0
        // Predicated region
        $region64: #{vae_forward.12} parent=58 // pred_check
          %p317 = pneg %p316
        $region65: #{vae_forward.12} parent=58 // pred_check_branch
          %319 = sbr.rel (%p317) target = $region67
        $region66: #{vae_forward.12} parent=58 // pred_region
          %vm320 = vcmask 64512
          %321 = vst.msk [vmem:[#allocation2] sm:$0xff] %vm320, 0.0
          %322 = vst.msk [vmem:[#allocation2 + $0x8] sm:$0xff] %vm320, 0.0
          %323 = vst.msk [vmem:[#allocation2 + $0x10] sm:$0xff] %vm320, 0.0
          %324 = vst.msk [vmem:[#allocation2 + $0x18] sm:$0xff] %vm320, 0.0
          %325 = vst.msk [vmem:[#allocation2 + $0x20] sm:$0xff] %vm320, 0.0
          %326 = vst.msk [vmem:[#allocation2 + $0x28] sm:$0xff] %vm320, 0.0
          %327 = vst.msk [vmem:[#allocation2 + $0x30] sm:$0xff] %vm320, 0.0
          %328 = vst.msk [vmem:[#allocation2 + $0x38] sm:$0xff] %vm320, 0.0
          %329 = vst.msk [vmem:[#allocation2 + $0x40] sm:$0xff] %vm320, 0.0
          %330 = vst.msk [vmem:[#allocation2 + $0x48] sm:$0xff] %vm320, 0.0
          %331 = vst.msk [vmem:[#allocation2 + $0x50] sm:$0xff] %vm320, 0.0
          %332 = vst.msk [vmem:[#allocation2 + $0x58] sm:$0xff] %vm320, 0.0
          %333 = vst.msk [vmem:[#allocation2 + $0x60] sm:$0xff] %vm320, 0.0
          %334 = vst.msk [vmem:[#allocation2 + $0x68] sm:$0xff] %vm320, 0.0
          %335 = vst.msk [vmem:[#allocation2 + $0x70] sm:$0xff] %vm320, 0.0
          %336 = vst.msk [vmem:[#allocation2 + $0x78] sm:$0xff] %vm320, 0.0
        $region67: #{vae_forward.12} parent=58 // pred_fallthru
          _
        %v337 = vld [vmem:[#allocation2] sm:$0xff]
        %v338 = vld [vmem:[#allocation2 + $0x8] sm:$0xff]
        %v339 = vld [vmem:[#allocation2 + $0x10] sm:$0xff]
        %v340 = vld [vmem:[#allocation2 + $0x18] sm:$0xff]
        %v341 = vld [vmem:[#allocation2 + $0x20] sm:$0xff]
        %v342 = vld [vmem:[#allocation2 + $0x28] sm:$0xff]
        %v343 = vld [vmem:[#allocation2 + $0x30] sm:$0xff]
        %v344 = vld [vmem:[#allocation2 + $0x38] sm:$0xff]
        %v345 = vld [vmem:[#allocation2 + $0x40] sm:$0xff]
        %v346 = vld [vmem:[#allocation2 + $0x48] sm:$0xff]
        %v347 = vld [vmem:[#allocation2 + $0x50] sm:$0xff]
        %v348 = vld [vmem:[#allocation2 + $0x58] sm:$0xff]
        %v349 = vld [vmem:[#allocation2 + $0x60] sm:$0xff]
        %v350 = vld [vmem:[#allocation2 + $0x68] sm:$0xff]
        %v351 = vld [vmem:[#allocation2 + $0x70] sm:$0xff]
        %v352 = vld [vmem:[#allocation2 + $0x78] sm:$0xff]
        %v353 = vld [vmem:[%s283] sm:$0xff]
        %v354 = vld [vmem:[%s283 + $0x8] sm:$0xff]
        %v355 = vld [vmem:[%s283 + $0x10] sm:$0xff]
        %v356 = vld [vmem:[%s283 + $0x18] sm:$0xff]
        %v357 = vld [vmem:[%s283 + $0x20] sm:$0xff]
        %v358 = vld [vmem:[%s283 + $0x28] sm:$0xff]
        %v359 = vld [vmem:[%s283 + $0x30] sm:$0xff]
        %v360 = vld [vmem:[%s283 + $0x38] sm:$0xff]
        %v361 = vld [vmem:[%s283 + $0x40] sm:$0xff]
        %v362 = vld [vmem:[%s283 + $0x48] sm:$0xff]
        %v363 = vld [vmem:[%s283 + $0x50] sm:$0xff]
        %v364 = vld [vmem:[%s283 + $0x58] sm:$0xff]
        %v365 = vld [vmem:[%s283 + $0x60] sm:$0xff]
        %v366 = vld [vmem:[%s283 + $0x68] sm:$0xff]
        %v367 = vld [vmem:[%s283 + $0x70] sm:$0xff]
        %v368 = vld [vmem:[%s283 + $0x78] sm:$0xff]
        %v369 = vld [vmem:[%s283 + $0x80] sm:$0xff]
        %v370 = vld [vmem:[%s283 + $0x88] sm:$0xff]
        %v371 = vld [vmem:[%s283 + $0x90] sm:$0xff]
        %v372 = vld [vmem:[%s283 + $0x98] sm:$0xff]
        %v373 = vld [vmem:[%s283 + $0xa0] sm:$0xff]
        %v374 = vld [vmem:[%s283 + $0xa8] sm:$0xff]
        %v375 = vld [vmem:[%s283 + $0xb0] sm:$0xff]
        %v376 = vld [vmem:[%s283 + $0xb8] sm:$0xff]
        %v377 = vld [vmem:[%s283 + $0xc0] sm:$0xff]
        %v378 = vld [vmem:[%s283 + $0xc8] sm:$0xff]
        %v379 = vld [vmem:[%s283 + $0xd0] sm:$0xff]
        %v380 = vld [vmem:[%s283 + $0xd8] sm:$0xff]
        %v381 = vld [vmem:[%s283 + $0xe0] sm:$0xff]
        %v382 = vld [vmem:[%s283 + $0xe8] sm:$0xff]
        %v383 = vld [vmem:[%s283 + $0xf0] sm:$0xff]
        %v384 = vld [vmem:[%s283 + $0xf8] sm:$0xff]
        %v385 = vld [vmem:[%s313] sm:$0xf]
        %v386 = vld [vmem:[%s313 + $0x4] sm:$0xf]
        %v387 = vld [vmem:[%s313 + $0x8] sm:$0xf]
        %v388 = vld [vmem:[%s313 + $0xc] sm:$0xf]
        %v389 = vld [vmem:[%s313 + $0x10] sm:$0xf]
        %v390 = vld [vmem:[%s313 + $0x14] sm:$0xf]
        %v391 = vld [vmem:[%s313 + $0x18] sm:$0xf]
        %v392 = vld [vmem:[%s313 + $0x1c] sm:$0xf]
        %v393 = vld [vmem:[%s313 + $0x20] sm:$0xf]
        %v394 = vld [vmem:[%s313 + $0x24] sm:$0xf]
        %v395 = vld [vmem:[%s313 + $0x28] sm:$0xf]
        %v396 = vld [vmem:[%s313 + $0x2c] sm:$0xf]
        %v397 = vld [vmem:[%s313 + $0x30] sm:$0xf]
        %v398 = vld [vmem:[%s313 + $0x34] sm:$0xf]
        %v399 = vld [vmem:[%s313 + $0x38] sm:$0xf]
        %v400 = vld [vmem:[%s313 + $0x3c] sm:$0xf]
        %v401 = vld [vmem:[%s313 + $0x40] sm:$0xf]
        %v402 = vld [vmem:[%s313 + $0x44] sm:$0xf]
        %v403 = vld [vmem:[%s313 + $0x48] sm:$0xf]
        %v404 = vld [vmem:[%s313 + $0x4c] sm:$0xf]
        %v405 = vld [vmem:[%s313 + $0x50] sm:$0xf]
        %v406 = vld [vmem:[%s313 + $0x54] sm:$0xf]
        %v407 = vld [vmem:[%s313 + $0x58] sm:$0xf]
        %v408 = vld [vmem:[%s313 + $0x5c] sm:$0xf]
        %v409 = vld [vmem:[%s313 + $0x60] sm:$0xf]
        %v410 = vld [vmem:[%s313 + $0x64] sm:$0xf]
        %v411 = vld [vmem:[%s313 + $0x68] sm:$0xf]
        %v412 = vld [vmem:[%s313 + $0x6c] sm:$0xf]
        %v413 = vld [vmem:[%s313 + $0x70] sm:$0xf]
        %v414 = vld [vmem:[%s313 + $0x74] sm:$0xf]
        %v415 = vld [vmem:[%s313 + $0x78] sm:$0xf]
        %v416 = vld [vmem:[%s313 + $0x7c] sm:$0xf]
        %v417 = vld [vmem:[%s313 + $0x80] sm:$0xf]
        %v418 = vld [vmem:[%s313 + $0x84] sm:$0xf]
        %v419 = vld [vmem:[%s313 + $0x88] sm:$0xf]
        %v420 = vld [vmem:[%s313 + $0x8c] sm:$0xf]
        %v421 = vld [vmem:[%s313 + $0x90] sm:$0xf]
        %v422 = vld [vmem:[%s313 + $0x94] sm:$0xf]
        %v423 = vld [vmem:[%s313 + $0x98] sm:$0xf]
        %v424 = vld [vmem:[%s313 + $0x9c] sm:$0xf]
        %v425 = vld [vmem:[%s313 + $0xa0] sm:$0xf]
        %v426 = vld [vmem:[%s313 + $0xa4] sm:$0xf]
        %v427 = vld [vmem:[%s313 + $0xa8] sm:$0xf]
        %v428 = vld [vmem:[%s313 + $0xac] sm:$0xf]
        %v429 = vld [vmem:[%s313 + $0xb0] sm:$0xf]
        %v430 = vld [vmem:[%s313 + $0xb4] sm:$0xf]
        %v431 = vld [vmem:[%s313 + $0xb8] sm:$0xf]
        %v432 = vld [vmem:[%s313 + $0xbc] sm:$0xf]
        %v433 = vld [vmem:[%s313 + $0xc0] sm:$0xf]
        %v434 = vld [vmem:[%s313 + $0xc4] sm:$0xf]
        %v435 = vld [vmem:[%s313 + $0xc8] sm:$0xf]
        %v436 = vld [vmem:[%s313 + $0xcc] sm:$0xf]
        %v437 = vld [vmem:[%s313 + $0xd0] sm:$0xf]
        %v438 = vld [vmem:[%s313 + $0xd4] sm:$0xf]
        %v439 = vld [vmem:[%s313 + $0xd8] sm:$0xf]
        %v440 = vld [vmem:[%s313 + $0xdc] sm:$0xf]
        %v441 = vld [vmem:[%s313 + $0xe0] sm:$0xf]
        %v442 = vld [vmem:[%s313 + $0xe4] sm:$0xf]
        %v443 = vld [vmem:[%s313 + $0xe8] sm:$0xf]
        %v444 = vld [vmem:[%s313 + $0xec] sm:$0xf]
        %v445 = vld [vmem:[%s313 + $0xf0] sm:$0xf]
        %v446 = vld [vmem:[%s313 + $0xf4] sm:$0xf]
        %v447 = vld [vmem:[%s313 + $0xf8] sm:$0xf]
        %v448 = vld [vmem:[%s313 + $0xfc] sm:$0xf]
        %v481 = vunpack.c.l.b16 %v353
        %v482 = vunpack.c.h.b16 %v353
        %v483 = vunpack.c.l.b16 %v354
        %v484 = vunpack.c.h.b16 %v354
        %v485 = vunpack.c.l.b16 %v355
        %v486 = vunpack.c.h.b16 %v355
        %v487 = vunpack.c.l.b16 %v356
        %v488 = vunpack.c.h.b16 %v356
        %v489 = vunpack.c.l.b16 %v357
        %v490 = vunpack.c.h.b16 %v357
        %v491 = vunpack.c.l.b16 %v358
        %v492 = vunpack.c.h.b16 %v358
        %v493 = vunpack.c.l.b16 %v359
        %v494 = vunpack.c.h.b16 %v359
        %v495 = vunpack.c.l.b16 %v360
        %v496 = vunpack.c.h.b16 %v360
        %v497 = vunpack.c.l.b16 %v361
        %v498 = vunpack.c.h.b16 %v361
        %v499 = vunpack.c.l.b16 %v362
        %v500 = vunpack.c.h.b16 %v362
        %v501 = vunpack.c.l.b16 %v363
        %v502 = vunpack.c.h.b16 %v363
        %v503 = vunpack.c.l.b16 %v364
        %v504 = vunpack.c.h.b16 %v364
        %v505 = vunpack.c.l.b16 %v365
        %v506 = vunpack.c.h.b16 %v365
        %v507 = vunpack.c.l.b16 %v366
        %v508 = vunpack.c.h.b16 %v366
        %v509 = vunpack.c.l.b16 %v367
        %v510 = vunpack.c.h.b16 %v367
        %v511 = vunpack.c.l.b16 %v368
        %v512 = vunpack.c.h.b16 %v368
        %v513 = vunpack.c.l.b16 %v369
        %v514 = vunpack.c.h.b16 %v369
        %v515 = vunpack.c.l.b16 %v370
        %v516 = vunpack.c.h.b16 %v370
        %v517 = vunpack.c.l.b16 %v371
        %v518 = vunpack.c.h.b16 %v371
        %v519 = vunpack.c.l.b16 %v372
        %v520 = vunpack.c.h.b16 %v372
        %v521 = vunpack.c.l.b16 %v373
        %v522 = vunpack.c.h.b16 %v373
        %v523 = vunpack.c.l.b16 %v374
        %v524 = vunpack.c.h.b16 %v374
        %v525 = vunpack.c.l.b16 %v375
        %v526 = vunpack.c.h.b16 %v375
        %v527 = vunpack.c.l.b16 %v376
        %v528 = vunpack.c.h.b16 %v376
        %v529 = vunpack.c.l.b16 %v377
        %v530 = vunpack.c.h.b16 %v377
        %v531 = vunpack.c.l.b16 %v378
        %v532 = vunpack.c.h.b16 %v378
        %v533 = vunpack.c.l.b16 %v379
        %v534 = vunpack.c.h.b16 %v379
        %v535 = vunpack.c.l.b16 %v380
        %v536 = vunpack.c.h.b16 %v380
        %v537 = vunpack.c.l.b16 %v381
        %v538 = vunpack.c.h.b16 %v381
        %v539 = vunpack.c.l.b16 %v382
        %v540 = vunpack.c.h.b16 %v382
        %v541 = vunpack.c.l.b16 %v383
        %v542 = vunpack.c.h.b16 %v383
        %v543 = vunpack.c.l.b16 %v384
        %v544 = vunpack.c.h.b16 %v384
        %v545 = vpack.c.b16 %v485, %v481
        %v546 = vpack.c.b16 %v486, %v482
        %v547 = vpack.c.b16 %v487, %v483
        %v548 = vpack.c.b16 %v488, %v484
        %v549 = vpack.c.b16 %v493, %v489
        %v550 = vpack.c.b16 %v494, %v490
        %v551 = vpack.c.b16 %v495, %v491
        %v552 = vpack.c.b16 %v496, %v492
        %v553 = vpack.c.b16 %v501, %v497
        %v554 = vpack.c.b16 %v502, %v498
        %v555 = vpack.c.b16 %v503, %v499
        %v556 = vpack.c.b16 %v504, %v500
        %v557 = vpack.c.b16 %v509, %v505
        %v558 = vpack.c.b16 %v510, %v506
        %v559 = vpack.c.b16 %v511, %v507
        %v560 = vpack.c.b16 %v512, %v508
        %v561 = vpack.c.b16 %v517, %v513
        %v562 = vpack.c.b16 %v518, %v514
        %v563 = vpack.c.b16 %v519, %v515
        %v564 = vpack.c.b16 %v520, %v516
        %v565 = vpack.c.b16 %v525, %v521
        %v566 = vpack.c.b16 %v526, %v522
        %v567 = vpack.c.b16 %v527, %v523
        %v568 = vpack.c.b16 %v528, %v524
        %v569 = vpack.c.b16 %v533, %v529
        %v570 = vpack.c.b16 %v534, %v530
        %v571 = vpack.c.b16 %v535, %v531
        %v572 = vpack.c.b16 %v536, %v532
        %v573 = vpack.c.b16 %v541, %v537
        %v574 = vpack.c.b16 %v542, %v538
        %v575 = vpack.c.b16 %v543, %v539
        %v576 = vpack.c.b16 %v544, %v540
        %v673 = vunpack.c.l.b16 %v385
        %v674 = vunpack.c.l.b16 %v386
        %v675 = vunpack.c.l.b16 %v387
        %v676 = vunpack.c.l.b16 %v388
        %v677 = vunpack.c.l.b16 %v389
        %v678 = vunpack.c.l.b16 %v390
        %v679 = vunpack.c.l.b16 %v391
        %v680 = vunpack.c.l.b16 %v392
        %v681 = vunpack.c.l.b16 %v393
        %v682 = vunpack.c.l.b16 %v394
        %v683 = vunpack.c.l.b16 %v395
        %v684 = vunpack.c.l.b16 %v396
        %v685 = vunpack.c.l.b16 %v397
        %v686 = vunpack.c.l.b16 %v398
        %v687 = vunpack.c.l.b16 %v399
        %v688 = vunpack.c.l.b16 %v400
        %v689 = vunpack.c.l.b16 %v401
        %v690 = vunpack.c.l.b16 %v402
        %v691 = vunpack.c.l.b16 %v403
        %v692 = vunpack.c.l.b16 %v404
        %v693 = vunpack.c.l.b16 %v405
        %v694 = vunpack.c.l.b16 %v406
        %v695 = vunpack.c.l.b16 %v407
        %v696 = vunpack.c.l.b16 %v408
        %v697 = vunpack.c.l.b16 %v409
        %v698 = vunpack.c.l.b16 %v410
        %v699 = vunpack.c.l.b16 %v411
        %v700 = vunpack.c.l.b16 %v412
        %v701 = vunpack.c.l.b16 %v413
        %v702 = vunpack.c.l.b16 %v414
        %v703 = vunpack.c.l.b16 %v415
        %v704 = vunpack.c.l.b16 %v416
        %v705 = vunpack.c.l.b16 %v417
        %v706 = vunpack.c.l.b16 %v418
        %v707 = vunpack.c.l.b16 %v419
        %v708 = vunpack.c.l.b16 %v420
        %v709 = vunpack.c.l.b16 %v421
        %v710 = vunpack.c.l.b16 %v422
        %v711 = vunpack.c.l.b16 %v423
        %v712 = vunpack.c.l.b16 %v424
        %v713 = vunpack.c.l.b16 %v425
        %v714 = vunpack.c.l.b16 %v426
        %v715 = vunpack.c.l.b16 %v427
        %v716 = vunpack.c.l.b16 %v428
        %v717 = vunpack.c.l.b16 %v429
        %v718 = vunpack.c.l.b16 %v430
        %v719 = vunpack.c.l.b16 %v431
        %v720 = vunpack.c.l.b16 %v432
        %v721 = vunpack.c.l.b16 %v433
        %v722 = vunpack.c.l.b16 %v434
        %v723 = vunpack.c.l.b16 %v435
        %v724 = vunpack.c.l.b16 %v436
        %v725 = vunpack.c.l.b16 %v437
        %v726 = vunpack.c.l.b16 %v438
        %v727 = vunpack.c.l.b16 %v439
        %v728 = vunpack.c.l.b16 %v440
        %v729 = vunpack.c.l.b16 %v441
        %v730 = vunpack.c.l.b16 %v442
        %v731 = vunpack.c.l.b16 %v443
        %v732 = vunpack.c.l.b16 %v444
        %v733 = vunpack.c.l.b16 %v445
        %v734 = vunpack.c.l.b16 %v446
        %v735 = vunpack.c.l.b16 %v447
        %v736 = vunpack.c.l.b16 %v448
        %v737 = vpack.c.b16 %v674, %v673
        %v738 = vpack.c.b16 %v676, %v675
        %v739 = vpack.c.b16 %v678, %v677
        %v740 = vpack.c.b16 %v680, %v679
        %v741 = vpack.c.b16 %v682, %v681
        %v742 = vpack.c.b16 %v684, %v683
        %v743 = vpack.c.b16 %v686, %v685
        %v744 = vpack.c.b16 %v688, %v687
        %v745 = vpack.c.b16 %v690, %v689
        %v746 = vpack.c.b16 %v692, %v691
        %v747 = vpack.c.b16 %v694, %v693
        %v748 = vpack.c.b16 %v696, %v695
        %v749 = vpack.c.b16 %v698, %v697
        %v750 = vpack.c.b16 %v700, %v699
        %v751 = vpack.c.b16 %v702, %v701
        %v752 = vpack.c.b16 %v704, %v703
        %v753 = vpack.c.b16 %v706, %v705
        %v754 = vpack.c.b16 %v708, %v707
        %v755 = vpack.c.b16 %v710, %v709
        %v756 = vpack.c.b16 %v712, %v711
        %v757 = vpack.c.b16 %v714, %v713
        %v758 = vpack.c.b16 %v716, %v715
        %v759 = vpack.c.b16 %v718, %v717
        %v760 = vpack.c.b16 %v720, %v719
        %v761 = vpack.c.b16 %v722, %v721
        %v762 = vpack.c.b16 %v724, %v723
        %v763 = vpack.c.b16 %v726, %v725
        %v764 = vpack.c.b16 %v728, %v727
        %v765 = vpack.c.b16 %v730, %v729
        %v766 = vpack.c.b16 %v732, %v731
        %v767 = vpack.c.b16 %v734, %v733
        %v768 = vpack.c.b16 %v736, %v735
        %801 = vmatprep.subr.bf16.mxu0 0
        %802 = vmatpush1.bf16.msra.mxu0 %v744
        %803 = vmatprep.subr.bf16.mxu0 0
        %804 = vmatpush1.bf16.msra.mxu0 %v743
        %805 = vmatprep.subr.bf16.mxu0 0
        %806 = vmatpush1.bf16.msra.mxu0 %v742
        %807 = vmatprep.subr.bf16.mxu0 0
        %808 = vmatpush1.bf16.msra.mxu0 %v741
        %809 = vmatprep.subr.bf16.mxu0 0
        %810 = vmatpush1.bf16.msra.mxu0 %v740
        %811 = vmatprep.subr.bf16.mxu0 0
        %812 = vmatpush1.bf16.msra.mxu0 %v739
        %813 = vmatprep.subr.bf16.mxu0 0
        %814 = vmatpush1.bf16.msra.mxu0 %v738
        %815 = vmatprep.subr.bf16.mxu0 0
        %816 = vmatpush1.bf16.msra.mxu0 %v737
        %817 = vmatprep.subr.bf16.mxu0 0
        %818 = vmatpush2.bf16.msra.mxu0 %v752
        %819 = vmatprep.subr.bf16.mxu0 0
        %820 = vmatpush2.bf16.msra.mxu0 %v751
        %821 = vmatprep.subr.bf16.mxu0 0
        %822 = vmatpush2.bf16.msra.mxu0 %v750
        %823 = vmatprep.subr.bf16.mxu0 0
        %824 = vmatpush2.bf16.msra.mxu0 %v749
        %825 = vmatprep.subr.bf16.mxu0 0
        %826 = vmatpush2.bf16.msra.mxu0 %v748
        %827 = vmatprep.subr.bf16.mxu0 0
        %828 = vmatpush2.bf16.msra.mxu0 %v747
        %829 = vmatprep.subr.bf16.mxu0 0
        %830 = vmatpush2.bf16.msra.mxu0 %v746
        %831 = vmatprep.subr.bf16.mxu0 0
        %832 = vmatpush2.bf16.msra.mxu0 %v745
        %833 = vmatprep.mubr.bf16.mxu0 %v546
        %834 = vmatmul.mubr.bf16.gmra.mxu0 %v545
        %v835 = vpop.f32.mrf.mxu0
        %v836 = vadd.f32 0.0, %v835
        %v837 = vpop.f32.mrf.mxu0
        %v838 = vpop.f32.mrf.mxu0
        %v839 = vadd.f32 0.0, %v838
        %v840 = vpop.f32.mrf.mxu0
        %841 = vmatprep.mubr.bf16.mxu0 %v550
        %842 = vmatmul.mubr.bf16.gmra.mxu0 %v549
        %v843 = vpop.f32.mrf.mxu0
        %v844 = vadd.f32 0.0, %v843
        %v845 = vpop.f32.mrf.mxu0
        %v846 = vpop.f32.mrf.mxu0
        %v847 = vadd.f32 0.0, %v846
        %v848 = vpop.f32.mrf.mxu0
        %849 = vmatprep.mubr.bf16.mxu0 %v554
        %850 = vmatmul.mubr.bf16.gmra.mxu0 %v553
        %v851 = vpop.f32.mrf.mxu0
        %v852 = vadd.f32 0.0, %v851
        %v853 = vpop.f32.mrf.mxu0
        %v854 = vpop.f32.mrf.mxu0
        %v855 = vadd.f32 0.0, %v854
        %v856 = vpop.f32.mrf.mxu0
        %857 = vmatprep.mubr.bf16.mxu0 %v558
        %858 = vmatmul.mubr.bf16.gmra.mxu0 %v557
        %v859 = vpop.f32.mrf.mxu0
        %v860 = vadd.f32 0.0, %v859
        %v861 = vpop.f32.mrf.mxu0
        %v862 = vpop.f32.mrf.mxu0
        %v863 = vadd.f32 0.0, %v862
        %v864 = vpop.f32.mrf.mxu0
        %865 = vmatprep.mubr.bf16.mxu0 %v562
        %866 = vmatmul.mubr.bf16.gmra.mxu0 %v561
        %v867 = vpop.f32.mrf.mxu0
        %v868 = vadd.f32 0.0, %v867
        %v869 = vpop.f32.mrf.mxu0
        %v870 = vpop.f32.mrf.mxu0
        %v871 = vadd.f32 0.0, %v870
        %v872 = vpop.f32.mrf.mxu0
        %873 = vmatprep.mubr.bf16.mxu0 %v566
        %874 = vmatmul.mubr.bf16.gmra.mxu0 %v565
        %v875 = vpop.f32.mrf.mxu0
        %v876 = vadd.f32 0.0, %v875
        %v877 = vpop.f32.mrf.mxu0
        %v878 = vpop.f32.mrf.mxu0
        %v879 = vadd.f32 0.0, %v878
        %v880 = vpop.f32.mrf.mxu0
        %881 = vmatprep.mubr.bf16.mxu0 %v570
        %882 = vmatmul.mubr.bf16.gmra.mxu0 %v569
        %v883 = vpop.f32.mrf.mxu0
        %v884 = vadd.f32 0.0, %v883
        %v885 = vpop.f32.mrf.mxu0
        %v886 = vpop.f32.mrf.mxu0
        %v887 = vadd.f32 0.0, %v886
        %v888 = vpop.f32.mrf.mxu0
        %889 = vmatprep.mubr.bf16.mxu0 %v574
        %890 = vmatmul.mubr.bf16.gmra.mxu0 %v573
        %v891 = vpop.f32.mrf.mxu0
        %v892 = vadd.f32 0.0, %v891
        %v893 = vpop.f32.mrf.mxu0
        %v894 = vpop.f32.mrf.mxu0
        %v895 = vadd.f32 0.0, %v894
        %v896 = vpop.f32.mrf.mxu0
        %897 = vdwg.mxu0
        %898 = vmatprep.subr.bf16.mxu0 0
        %899 = vmatpush1.bf16.msra.mxu0 %v760
        %900 = vmatprep.subr.bf16.mxu0 0
        %901 = vmatpush1.bf16.msra.mxu0 %v759
        %902 = vmatprep.subr.bf16.mxu0 0
        %903 = vmatpush1.bf16.msra.mxu0 %v758
        %904 = vmatprep.subr.bf16.mxu0 0
        %905 = vmatpush1.bf16.msra.mxu0 %v757
        %906 = vmatprep.subr.bf16.mxu0 0
        %907 = vmatpush1.bf16.msra.mxu0 %v756
        %908 = vmatprep.subr.bf16.mxu0 0
        %909 = vmatpush1.bf16.msra.mxu0 %v755
        %910 = vmatprep.subr.bf16.mxu0 0
        %911 = vmatpush1.bf16.msra.mxu0 %v754
        %912 = vmatprep.subr.bf16.mxu0 0
        %913 = vmatpush1.bf16.msra.mxu0 %v753
        %914 = vmatprep.subr.bf16.mxu0 0
        %915 = vmatpush2.bf16.msra.mxu0 %v768
        %916 = vmatprep.subr.bf16.mxu0 0
        %917 = vmatpush2.bf16.msra.mxu0 %v767
        %918 = vmatprep.subr.bf16.mxu0 0
        %919 = vmatpush2.bf16.msra.mxu0 %v766
        %920 = vmatprep.subr.bf16.mxu0 0
        %921 = vmatpush2.bf16.msra.mxu0 %v765
        %922 = vmatprep.subr.bf16.mxu0 0
        %923 = vmatpush2.bf16.msra.mxu0 %v764
        %924 = vmatprep.subr.bf16.mxu0 0
        %925 = vmatpush2.bf16.msra.mxu0 %v763
        %926 = vmatprep.subr.bf16.mxu0 0
        %927 = vmatpush2.bf16.msra.mxu0 %v762
        %928 = vmatprep.subr.bf16.mxu0 0
        %929 = vmatpush2.bf16.msra.mxu0 %v761
        %930 = vmatprep.mubr.bf16.mxu0 %v548
        %931 = vmatmul.mubr.bf16.gmra.mxu0 %v547
        %v932 = vpop.f32.mrf.mxu0
        %v933 = vadd.f32 %v836, %v932
        %v934 = vpop.f32.mrf.mxu0
        %v935 = vpop.f32.mrf.mxu0
        %v936 = vadd.f32 %v839, %v935
        %v937 = vpop.f32.mrf.mxu0
        %938 = vmatprep.mubr.bf16.mxu0 %v552
        %939 = vmatmul.mubr.bf16.gmra.mxu0 %v551
        %v940 = vpop.f32.mrf.mxu0
        %v941 = vadd.f32 %v844, %v940
        %v942 = vpop.f32.mrf.mxu0
        %v943 = vpop.f32.mrf.mxu0
        %v944 = vadd.f32 %v847, %v943
        %v945 = vpop.f32.mrf.mxu0
        %946 = vmatprep.mubr.bf16.mxu0 %v556
        %947 = vmatmul.mubr.bf16.gmra.mxu0 %v555
        %v948 = vpop.f32.mrf.mxu0
        %v949 = vadd.f32 %v852, %v948
        %v950 = vpop.f32.mrf.mxu0
        %v951 = vpop.f32.mrf.mxu0
        %v952 = vadd.f32 %v855, %v951
        %v953 = vpop.f32.mrf.mxu0
        %954 = vmatprep.mubr.bf16.mxu0 %v560
        %955 = vmatmul.mubr.bf16.gmra.mxu0 %v559
        %v956 = vpop.f32.mrf.mxu0
        %v957 = vadd.f32 %v860, %v956
        %v958 = vpop.f32.mrf.mxu0
        %v959 = vpop.f32.mrf.mxu0
        %v960 = vadd.f32 %v863, %v959
        %v961 = vpop.f32.mrf.mxu0
        %962 = vmatprep.mubr.bf16.mxu0 %v564
        %963 = vmatmul.mubr.bf16.gmra.mxu0 %v563
        %v964 = vpop.f32.mrf.mxu0
        %v965 = vadd.f32 %v868, %v964
        %v966 = vpop.f32.mrf.mxu0
        %v967 = vpop.f32.mrf.mxu0
        %v968 = vadd.f32 %v871, %v967
        %v969 = vpop.f32.mrf.mxu0
        %970 = vmatprep.mubr.bf16.mxu0 %v568
        %971 = vmatmul.mubr.bf16.gmra.mxu0 %v567
        %v972 = vpop.f32.mrf.mxu0
        %v973 = vadd.f32 %v876, %v972
        %v974 = vpop.f32.mrf.mxu0
        %v975 = vpop.f32.mrf.mxu0
        %v976 = vadd.f32 %v879, %v975
        %v977 = vpop.f32.mrf.mxu0
        %978 = vmatprep.mubr.bf16.mxu0 %v572
        %979 = vmatmul.mubr.bf16.gmra.mxu0 %v571
        %v980 = vpop.f32.mrf.mxu0
        %v981 = vadd.f32 %v884, %v980
        %v982 = vpop.f32.mrf.mxu0
        %v983 = vpop.f32.mrf.mxu0
        %v984 = vadd.f32 %v887, %v983
        %v985 = vpop.f32.mrf.mxu0
        %986 = vmatprep.mubr.bf16.mxu0 %v576
        %987 = vmatmul.mubr.bf16.gmra.mxu0 %v575
        %v988 = vpop.f32.mrf.mxu0
        %v989 = vadd.f32 %v892, %v988
        %v990 = vpop.f32.mrf.mxu0
        %v991 = vpop.f32.mrf.mxu0
        %v992 = vadd.f32 %v895, %v991
        %v993 = vpop.f32.mrf.mxu0
        %994 = vdwg.mxu0
        %v995 = vadd.f32 %v337, %v933
        %v996 = vadd.f32 %v338, %v936
        %v997 = vadd.f32 %v339, %v941
        %v998 = vadd.f32 %v340, %v944
        %v999 = vadd.f32 %v341, %v949
        %v1000 = vadd.f32 %v342, %v952
        %v1001 = vadd.f32 %v343, %v957
        %v1002 = vadd.f32 %v344, %v960
        %v1003 = vadd.f32 %v345, %v965
        %v1004 = vadd.f32 %v346, %v968
        %v1005 = vadd.f32 %v347, %v973
        %v1006 = vadd.f32 %v348, %v976
        %v1007 = vadd.f32 %v349, %v981
        %v1008 = vadd.f32 %v350, %v984
        %v1009 = vadd.f32 %v351, %v989
        %v1010 = vadd.f32 %v352, %v992
        %vm1011 = vcmask 64512
        %1012 = vst.msk [vmem:[#allocation2] sm:$0xff] %vm1011, %v995
        %1013 = vst.msk [vmem:[#allocation2 + $0x8] sm:$0xff] %vm1011, %v996
        %1014 = vst.msk [vmem:[#allocation2 + $0x10] sm:$0xff] %vm1011, %v997
        %1015 = vst.msk [vmem:[#allocation2 + $0x18] sm:$0xff] %vm1011, %v998
        %1016 = vst.msk [vmem:[#allocation2 + $0x20] sm:$0xff] %vm1011, %v999
        %1017 = vst.msk [vmem:[#allocation2 + $0x28] sm:$0xff] %vm1011, %v1000
        %1018 = vst.msk [vmem:[#allocation2 + $0x30] sm:$0xff] %vm1011, %v1001
        %1019 = vst.msk [vmem:[#allocation2 + $0x38] sm:$0xff] %vm1011, %v1002
        %1020 = vst.msk [vmem:[#allocation2 + $0x40] sm:$0xff] %vm1011, %v1003
        %1021 = vst.msk [vmem:[#allocation2 + $0x48] sm:$0xff] %vm1011, %v1004
        %1022 = vst.msk [vmem:[#allocation2 + $0x50] sm:$0xff] %vm1011, %v1005
        %1023 = vst.msk [vmem:[#allocation2 + $0x58] sm:$0xff] %vm1011, %v1006
        %1024 = vst.msk [vmem:[#allocation2 + $0x60] sm:$0xff] %vm1011, %v1007
        %1025 = vst.msk [vmem:[#allocation2 + $0x68] sm:$0xff] %vm1011, %v1008
        %1026 = vst.msk [vmem:[#allocation2 + $0x70] sm:$0xff] %vm1011, %v1009
        %1027 = vst.msk [vmem:[#allocation2 + $0x78] sm:$0xff] %vm1011, %v1010
        %p1028 = scmp.eq.s32.totalorder %s16, 1
        // Predicated region
        $region68: #{vae_forward.12} parent=58 // pred_check
          %p1029 = pneg %p1028
        $region69: #{vae_forward.12} parent=58 // pred_check_branch
          %1031 = sbr.rel (%p1029) target = $region71
        $region70: #{vae_forward.12} parent=58 // pred_region
          %v1032 = vld [vmem:[#allocation2] sm:$0xff]
          %v1033 = vld [vmem:[#allocation2 + $0x8] sm:$0xff]
          %v1034 = vld [vmem:[#allocation2 + $0x10] sm:$0xff]
          %v1035 = vld [vmem:[#allocation2 + $0x18] sm:$0xff]
          %v1036 = vld [vmem:[#allocation2 + $0x20] sm:$0xff]
          %v1037 = vld [vmem:[#allocation2 + $0x28] sm:$0xff]
          %v1038 = vld [vmem:[#allocation2 + $0x30] sm:$0xff]
          %v1039 = vld [vmem:[#allocation2 + $0x38] sm:$0xff]
          %v1040 = vld [vmem:[#allocation2 + $0x40] sm:$0xff]
          %v1041 = vld [vmem:[#allocation2 + $0x48] sm:$0xff]
          %v1042 = vld [vmem:[#allocation2 + $0x50] sm:$0xff]
          %v1043 = vld [vmem:[#allocation2 + $0x58] sm:$0xff]
          %v1044 = vld [vmem:[#allocation2 + $0x60] sm:$0xff]
          %v1045 = vld [vmem:[#allocation2 + $0x68] sm:$0xff]
          %v1046 = vld [vmem:[#allocation2 + $0x70] sm:$0xff]
          %v1047 = vld [vmem:[#allocation2 + $0x78] sm:$0xff]
          %v1048 = vld [vmem:[%s2] sm:$0x1]
          %v1050 = vlaneseq
          %v1051 = vshrl.u32 %v1050, 7
          %v1052 = vsub.s32 0, %v1051
          %v1053 = vrot.slane %v1048, %v1052
          %v1055 = vadd.f32 %v1032, %v1053
          %v1056 = vadd.f32 %v1033, %v1053
          %v1057 = vadd.f32 %v1034, %v1053
          %v1058 = vadd.f32 %v1035, %v1053
          %v1059 = vadd.f32 %v1036, %v1053
          %v1060 = vadd.f32 %v1037, %v1053
          %v1061 = vadd.f32 %v1038, %v1053
          %v1062 = vadd.f32 %v1039, %v1053
          %v1063 = vadd.f32 %v1040, %v1053
          %v1064 = vadd.f32 %v1041, %v1053
          %v1065 = vadd.f32 %v1042, %v1053
          %v1066 = vadd.f32 %v1043, %v1053
          %v1067 = vadd.f32 %v1044, %v1053
          %v1068 = vadd.f32 %v1045, %v1053
          %v1069 = vadd.f32 %v1046, %v1053
          %v1070 = vadd.f32 %v1047, %v1053
          %v1071 = vsel %vm1011, %v1055, 0.0
          %v1072 = vsel %vm1011, %v1056, 0.0
          %v1073 = vadd.f32 %v1071, %v1072
          %v1074 = vsel %vm1011, %v1057, 0.0
          %v1075 = vadd.f32 %v1073, %v1074
          %v1076 = vsel %vm1011, %v1058, 0.0
          %v1077 = vadd.f32 %v1075, %v1076
          %v1078 = vsel %vm1011, %v1059, 0.0
          %v1079 = vadd.f32 %v1077, %v1078
          %v1080 = vsel %vm1011, %v1060, 0.0
          %v1081 = vadd.f32 %v1079, %v1080
          %v1082 = vsel %vm1011, %v1061, 0.0
          %v1083 = vadd.f32 %v1081, %v1082
          %v1084 = vsel %vm1011, %v1062, 0.0
          %v1085 = vadd.f32 %v1083, %v1084
          %v1086 = vsel %vm1011, %v1063, 0.0
          %v1087 = vadd.f32 %v1085, %v1086
          %v1088 = vsel %vm1011, %v1064, 0.0
          %v1089 = vadd.f32 %v1087, %v1088
          %v1090 = vsel %vm1011, %v1065, 0.0
          %v1091 = vadd.f32 %v1089, %v1090
          %v1092 = vsel %vm1011, %v1066, 0.0
          %v1093 = vadd.f32 %v1091, %v1092
          %v1094 = vsel %vm1011, %v1067, 0.0
          %v1095 = vadd.f32 %v1093, %v1094
          %v1096 = vsel %vm1011, %v1068, 0.0
          %v1097 = vadd.f32 %v1095, %v1096
          %v1098 = vsel %vm1011, %v1069, 0.0
          %v1099 = vadd.f32 %v1097, %v1098
          %v1100 = vsel %vm1011, %v1070, 0.0
          %v1101 = vadd.f32 %v1099, %v1100
          %v1102 = vrot.slane %v1101, 4
          %v1103 = vadd.f32 %v1101, %v1102
          %v1104 = vrot.slane %v1103, 2
          %v1105 = vadd.f32 %v1103, %v1104
          %v1106 = vrot.slane %v1105, 1
          %v1107 = vadd.f32 %v1105, %v1106
          %v1108 = vmul.f32 %v1107, 0.0078125
          %v1109 = vmul.f32 %v1055, %v1055
          %v1110 = vmul.f32 %v1056, %v1056
          %v1111 = vmul.f32 %v1057, %v1057
          %v1112 = vmul.f32 %v1058, %v1058
          %v1113 = vmul.f32 %v1059, %v1059
          %v1114 = vmul.f32 %v1060, %v1060
          %v1115 = vmul.f32 %v1061, %v1061
          %v1116 = vmul.f32 %v1062, %v1062
          %v1117 = vmul.f32 %v1063, %v1063
          %v1118 = vmul.f32 %v1064, %v1064
          %v1119 = vmul.f32 %v1065, %v1065
          %v1120 = vmul.f32 %v1066, %v1066
          %v1121 = vmul.f32 %v1067, %v1067
          %v1122 = vmul.f32 %v1068, %v1068
          %v1123 = vmul.f32 %v1069, %v1069
          %v1124 = vmul.f32 %v1070, %v1070
          %v1125 = vsel %vm1011, %v1109, 0.0
          %v1126 = vsel %vm1011, %v1110, 0.0
          %v1127 = vadd.f32 %v1125, %v1126
          %v1128 = vsel %vm1011, %v1111, 0.0
          %v1129 = vadd.f32 %v1127, %v1128
          %v1130 = vsel %vm1011, %v1112, 0.0
          %v1131 = vadd.f32 %v1129, %v1130
          %v1132 = vsel %vm1011, %v1113, 0.0
          %v1133 = vadd.f32 %v1131, %v1132
          %v1134 = vsel %vm1011, %v1114, 0.0
          %v1135 = vadd.f32 %v1133, %v1134
          %v1136 = vsel %vm1011, %v1115, 0.0
          %v1137 = vadd.f32 %v1135, %v1136
          %v1138 = vsel %vm1011, %v1116, 0.0
          %v1139 = vadd.f32 %v1137, %v1138
          %v1140 = vsel %vm1011, %v1117, 0.0
          %v1141 = vadd.f32 %v1139, %v1140
          %v1142 = vsel %vm1011, %v1118, 0.0
          %v1143 = vadd.f32 %v1141, %v1142
          %v1144 = vsel %vm1011, %v1119, 0.0
          %v1145 = vadd.f32 %v1143, %v1144
          %v1146 = vsel %vm1011, %v1120, 0.0
          %v1147 = vadd.f32 %v1145, %v1146
          %v1148 = vsel %vm1011, %v1121, 0.0
          %v1149 = vadd.f32 %v1147, %v1148
          %v1150 = vsel %vm1011, %v1122, 0.0
          %v1151 = vadd.f32 %v1149, %v1150
          %v1152 = vsel %vm1011, %v1123, 0.0
          %v1153 = vadd.f32 %v1151, %v1152
          %v1154 = vsel %vm1011, %v1124, 0.0
          %v1155 = vadd.f32 %v1153, %v1154
          %v1156 = vrot.slane %v1155, 4
          %v1157 = vadd.f32 %v1155, %v1156
          %v1158 = vrot.slane %v1157, 2
          %v1159 = vadd.f32 %v1157, %v1158
          %v1160 = vrot.slane %v1159, 1
          %v1161 = vadd.f32 %v1159, %v1160
          %v1162 = vmul.f32 %v1161, 0.0078125
          %v1163 = vmul.f32 %v1108, %v1108
          %v1164 = vsub.f32 %v1162, %v1163
          %v1165 = vmax.f32 %v1164, 0.0
          %v1166 = vsub.f32 %v1055, %v1108
          %v1167 = vsub.f32 %v1056, %v1108
          %v1168 = vsub.f32 %v1057, %v1108
          %v1169 = vsub.f32 %v1058, %v1108
          %v1170 = vsub.f32 %v1059, %v1108
          %v1171 = vsub.f32 %v1060, %v1108
          %v1172 = vsub.f32 %v1061, %v1108
          %v1173 = vsub.f32 %v1062, %v1108
          %v1174 = vsub.f32 %v1063, %v1108
          %v1175 = vsub.f32 %v1064, %v1108
          %v1176 = vsub.f32 %v1065, %v1108
          %v1177 = vsub.f32 %v1066, %v1108
          %v1178 = vsub.f32 %v1067, %v1108
          %v1179 = vsub.f32 %v1068, %v1108
          %v1180 = vsub.f32 %v1069, %v1108
          %v1181 = vsub.f32 %v1070, %v1108
          %v1182 = vadd.f32 %v1165, 1e-05
          %v1183 = vrsqrt.pop %v1182
          %v1184 = vmul.f32 %v1166, %v1183
          %v1185 = vmul.f32 %v1167, %v1183
          %v1186 = vmul.f32 %v1168, %v1183
          %v1187 = vmul.f32 %v1169, %v1183
          %v1188 = vmul.f32 %v1170, %v1183
          %v1189 = vmul.f32 %v1171, %v1183
          %v1190 = vmul.f32 %v1172, %v1183
          %v1191 = vmul.f32 %v1173, %v1183
          %v1192 = vmul.f32 %v1174, %v1183
          %v1193 = vmul.f32 %v1175, %v1183
          %v1194 = vmul.f32 %v1176, %v1183
          %v1195 = vmul.f32 %v1177, %v1183
          %v1196 = vmul.f32 %v1178, %v1183
          %v1197 = vmul.f32 %v1179, %v1183
          %v1198 = vmul.f32 %v1180, %v1183
          %v1199 = vmul.f32 %v1181, %v1183
          %v1200 = vld [vmem:[%s3] sm:$0x1]
          %v1202 = vlaneseq
          %v1203 = vshrl.u32 %v1202, 7
          %v1204 = vsub.s32 0, %v1203
          %v1205 = vrot.slane %v1200, %v1204
          %v1207 = vmul.f32 %v1184, %v1205
          %v1208 = vmul.f32 %v1185, %v1205
          %v1209 = vmul.f32 %v1186, %v1205
          %v1210 = vmul.f32 %v1187, %v1205
          %v1211 = vmul.f32 %v1188, %v1205
          %v1212 = vmul.f32 %v1189, %v1205
          %v1213 = vmul.f32 %v1190, %v1205
          %v1214 = vmul.f32 %v1191, %v1205
          %v1215 = vmul.f32 %v1192, %v1205
          %v1216 = vmul.f32 %v1193, %v1205
          %v1217 = vmul.f32 %v1194, %v1205
          %v1218 = vmul.f32 %v1195, %v1205
          %v1219 = vmul.f32 %v1196, %v1205
          %v1220 = vmul.f32 %v1197, %v1205
          %v1221 = vmul.f32 %v1198, %v1205
          %v1222 = vmul.f32 %v1199, %v1205
          %v1223 = vld [vmem:[%s4] sm:$0x1]
          %v1225 = vlaneseq
          %v1226 = vshrl.u32 %v1225, 7
          %v1227 = vsub.s32 0, %v1226
          %v1228 = vrot.slane %v1223, %v1227
          %v1230 = vadd.f32 %v1207, %v1228
          %v1231 = vadd.f32 %v1208, %v1228
          %v1232 = vadd.f32 %v1209, %v1228
          %v1233 = vadd.f32 %v1210, %v1228
          %v1234 = vadd.f32 %v1211, %v1228
          %v1235 = vadd.f32 %v1212, %v1228
          %v1236 = vadd.f32 %v1213, %v1228
          %v1237 = vadd.f32 %v1214, %v1228
          %v1238 = vadd.f32 %v1215, %v1228
          %v1239 = vadd.f32 %v1216, %v1228
          %v1240 = vadd.f32 %v1217, %v1228
          %v1241 = vadd.f32 %v1218, %v1228
          %v1242 = vadd.f32 %v1219, %v1228
          %v1243 = vadd.f32 %v1220, %v1228
          %v1244 = vadd.f32 %v1221, %v1228
          %v1245 = vadd.f32 %v1222, %v1228
          %v1246 = vmax.f32 %v1230, 0.0
          %v1247 = vmax.f32 %v1231, 0.0
          %v1248 = vmax.f32 %v1232, 0.0
          %v1249 = vmax.f32 %v1233, 0.0
          %v1250 = vmax.f32 %v1234, 0.0
          %v1251 = vmax.f32 %v1235, 0.0
          %v1252 = vmax.f32 %v1236, 0.0
          %v1253 = vmax.f32 %v1237, 0.0
          %v1254 = vmax.f32 %v1238, 0.0
          %v1255 = vmax.f32 %v1239, 0.0
          %v1256 = vmax.f32 %v1240, 0.0
          %v1257 = vmax.f32 %v1241, 0.0
          %v1258 = vmax.f32 %v1242, 0.0
          %v1259 = vmax.f32 %v1243, 0.0
          %v1260 = vmax.f32 %v1244, 0.0
          %v1261 = vmax.f32 %v1245, 0.0
          %v1262 = vpack.c.bf16 %v1247, %v1246
          %v1263 = vpack.c.bf16 %v1249, %v1248
          %v1264 = vpack.c.bf16 %v1251, %v1250
          %v1265 = vpack.c.bf16 %v1253, %v1252
          %v1266 = vpack.c.bf16 %v1255, %v1254
          %v1267 = vpack.c.bf16 %v1257, %v1256
          %v1268 = vpack.c.bf16 %v1259, %v1258
          %v1269 = vpack.c.bf16 %v1261, %v1260
          %v1278 = vunpack.c.l.b16 %v1262
          %v1279 = vunpack.c.h.b16 %v1262
          %v1280 = vunpack.c.l.b16 %v1263
          %v1281 = vunpack.c.h.b16 %v1263
          %v1282 = vunpack.c.l.b16 %v1264
          %v1283 = vunpack.c.h.b16 %v1264
          %v1284 = vunpack.c.l.b16 %v1265
          %v1285 = vunpack.c.h.b16 %v1265
          %v1286 = vunpack.c.l.b16 %v1266
          %v1287 = vunpack.c.h.b16 %v1266
          %v1288 = vunpack.c.l.b16 %v1267
          %v1289 = vunpack.c.h.b16 %v1267
          %v1290 = vunpack.c.l.b16 %v1268
          %v1291 = vunpack.c.h.b16 %v1268
          %v1292 = vunpack.c.l.b16 %v1269
          %v1293 = vunpack.c.h.b16 %v1269
          %v1294 = vpack.c.b16 %v1278, %v1278
          %v1295 = vpack.c.b16 %v1279, %v1279
          %v1296 = vpack.c.b16 %v1280, %v1280
          %v1297 = vpack.c.b16 %v1281, %v1281
          %v1298 = vpack.c.b16 %v1282, %v1282
          %v1299 = vpack.c.b16 %v1283, %v1283
          %v1300 = vpack.c.b16 %v1284, %v1284
          %v1301 = vpack.c.b16 %v1285, %v1285
          %v1302 = vpack.c.b16 %v1286, %v1286
          %v1303 = vpack.c.b16 %v1287, %v1287
          %v1304 = vpack.c.b16 %v1288, %v1288
          %v1305 = vpack.c.b16 %v1289, %v1289
          %v1306 = vpack.c.b16 %v1290, %v1290
          %v1307 = vpack.c.b16 %v1291, %v1291
          %v1308 = vpack.c.b16 %v1292, %v1292
          %v1309 = vpack.c.b16 %v1293, %v1293
          %vm1326 = vcmask 60416
          %1327 = vst.msk [vmem:[%s5] sm:$0xf] %vm1326, %v1294
          %1328 = vst.msk [vmem:[%s5 + $0x4] sm:$0xf] %vm1326, %v1295
          %1329 = vst.msk [vmem:[%s5 + $0x8] sm:$0xf] %vm1326, %v1296
          %1330 = vst.msk [vmem:[%s5 + $0xc] sm:$0xf] %vm1326, %v1297
          %1331 = vst.msk [vmem:[%s5 + $0x10] sm:$0xf] %vm1326, %v1298
          %1332 = vst.msk [vmem:[%s5 + $0x14] sm:$0xf] %vm1326, %v1299
          %1333 = vst.msk [vmem:[%s5 + $0x18] sm:$0xf] %vm1326, %v1300
          %1334 = vst.msk [vmem:[%s5 + $0x1c] sm:$0xf] %vm1326, %v1301
          %1335 = vst.msk [vmem:[%s5 + $0x20] sm:$0xf] %vm1326, %v1302
          %1336 = vst.msk [vmem:[%s5 + $0x24] sm:$0xf] %vm1326, %v1303
          %1337 = vst.msk [vmem:[%s5 + $0x28] sm:$0xf] %vm1326, %v1304
          %1338 = vst.msk [vmem:[%s5 + $0x2c] sm:$0xf] %vm1326, %v1305
          %1339 = vst.msk [vmem:[%s5 + $0x30] sm:$0xf] %vm1326, %v1306
          %1340 = vst.msk [vmem:[%s5 + $0x34] sm:$0xf] %vm1326, %v1307
          %1341 = vst.msk [vmem:[%s5 + $0x38] sm:$0xf] %vm1326, %v1308
          %1342 = vst.msk [vmem:[%s5 + $0x3c] sm:$0xf] %vm1326, %v1309
        $region71: #{vae_forward.12} parent=58 // pred_fallthru
          _
        // Predicated region
        $region72: #{vae_forward.12} parent=58 // pred_check
          %p1343 = pneg %p144
        $region73: #{vae_forward.12} parent=58 // pred_check_branch
          %1345 = sbr.rel (%p1343) target = $region75
        $region74: #{vae_forward.12} parent=58 // pred_region
          _
        $region75: #{vae_forward.12} parent=58 // pred_fallthru
          _
        // Predicated region
        $region76: #{vae_forward.12} parent=58 // pred_check
          %p1346 = pneg %p144
        $region77: #{vae_forward.12} parent=58 // pred_check_branch
          %1348 = sbr.rel (%p1346) target = $region79
        $region78: #{vae_forward.12} parent=58 // pred_region
          _
        $region79: #{vae_forward.12} parent=58 // pred_fallthru
          _
      $region59: #{vae_forward.12} parent=5 // pred_fallthru
        _
      %p1349 = scmp.le.s32.totalorder 2, %s11
      // Predicated region
      $region80: #{vae_forward.12} parent=5 // pred_check
        %p1350 = pneg %p1349
      $region81: #{vae_forward.12} parent=5 // pred_check_branch
        %1352 = sbr.rel (%p1350) target = $region83
      $region82: #{vae_forward.12} parent=5 // pred_region
        %s1353 = ssub.s32 %s11, 2
      $region83: #{vae_forward.12} parent=5 // pred_fallthru
        _
    $region6: #{vae_forward.12} parent=1 // loop_footer
      %s15 = sadd.s32 1, %s11
    $region7: #{vae_forward.12} parent=1 // loop_footer_branch
      %10 = sbr.rel target = $region3
    $region8: #{vae_forward.12} parent=1 // loop_exit
      _

// kernel: vae_forward.13
$region0: #{vae_forward.13}
  #allocation0 [shape = 'u32[]', space=smem, size = 0x4, offset = 0x4, fixed_abs, tag = 'smem constant byte address 0x4 - core index']
  #allocation1 [shape = 'u32[144,128]{1,0:T(1,128)}', space=vmem, size = 0x12000, scoped, tag = 'internal scratch']
  #allocation2 [shape = 'f32[1024,1]{1,0:T(8,128)}', space=vmem, size = 0x80000, scoped, tag = 'scratch operand']
  #allocation3 [shape = 'f32[1,1]{1,0:T(1,128)S(1)}', space=vmem, size = 0x200, scoped, tag = 'scoped memory for vae_forward.13']
  #allocation4 [shape = 'f32[1,1]{1,0:T(1,128)S(1)}', space=vmem, size = 0x200, scoped, tag = 'scoped memory for vae_forward.13']
  #allocation5 [shape = 'f32[1,1]{1,0:T(1,128)S(1)}', space=vmem, size = 0x200, scoped, tag = 'scoped memory for vae_forward.13']
  %s0 = inlined_call_operand.vmem [shape: bf16[1024,512], index: 0, kind: input, shape index: {}]
  %s1 = inlined_call_operand.vmem [shape: bf16[512,1], index: 1, kind: input, shape index: {}]
  %s2 = inlined_call_operand.<no memory space> [shape: f32[1,1], index: 2, kind: input, shape index: {}]
  %s3 = inlined_call_operand.<no memory space> [shape: f32[1,1], index: 3, kind: input, shape index: {}]
  %s4 = inlined_call_operand.<no memory space> [shape: f32[1,1], index: 4, kind: input, shape index: {}]
  %s5 = inlined_call_operand.vmem [shape: f32[1024,1], index: 5, kind: output, shape index: {}]
  %s6 = sld [smem:[#allocation0]]
  $region38: #{vae_forward.13} parent=0
    _
  %s8 = ssub.s32 1, %s6
  %s9 = scalar_select 0, %s8, %s6
  %v10 = vstv %s2
  %11 = vst [vmem:[#allocation3] sm:$0x1] %v10
  %v12 = vstv %s3
  %13 = vst [vmem:[#allocation4] sm:$0x1] %v12
  %v14 = vstv %s4
  %15 = vst [vmem:[#allocation5] sm:$0x1] %v14
  // Predicated region
  $region2: #{vae_forward.13} parent=0 // pred_check
    _
  $region3: #{vae_forward.13} parent=0 // pred_check_branch
    %17 = sbr.rel (0) target = $region5
  $region4: #{vae_forward.13} parent=0 // pred_region
    _
  $region5: #{vae_forward.13} parent=0 // pred_fallthru
    _
  // Predicated region
  $region6: #{vae_forward.13} parent=0 // pred_check
    _
  $region7: #{vae_forward.13} parent=0 // pred_check_branch
    %19 = sbr.rel (0) target = $region9
  $region8: #{vae_forward.13} parent=0 // pred_region
    _
  $region9: #{vae_forward.13} parent=0 // pred_fallthru
    _
  // Predicated region
  $region10: #{vae_forward.13} parent=0 // pred_check
    _
  $region11: #{vae_forward.13} parent=0 // pred_check_branch
    %21 = sbr.rel (0) target = $region13
  $region12: #{vae_forward.13} parent=0 // pred_region
    _
  $region13: #{vae_forward.13} parent=0 // pred_fallthru
    _
  // Predicated region
  $region14: #{vae_forward.13} parent=0 // pred_check
    _
  $region15: #{vae_forward.13} parent=0 // pred_check_branch
    %23 = sbr.rel (0) target = $region17
  $region16: #{vae_forward.13} parent=0 // pred_region
    _
  $region17: #{vae_forward.13} parent=0 // pred_fallthru
    _
  // Predicated region
  $region18: #{vae_forward.13} parent=0 // pred_check
    _
  $region19: #{vae_forward.13} parent=0 // pred_check_branch
    %25 = sbr.rel (0) target = $region21
  $region20: #{vae_forward.13} parent=0 // pred_region
    _
  $region21: #{vae_forward.13} parent=0 // pred_fallthru
    _
  %p27 = scmp.eq.s32.totalorder 0, 0
  // Predicated region
  $region22: #{vae_forward.13} parent=0 // pred_check
    %p28 = pneg %p27
  $region23: #{vae_forward.13} parent=0 // pred_check_branch
    %30 = sbr.rel (%p28) target = $region25
  $region24: #{vae_forward.13} parent=0 // pred_region
    %vm31 = vcmask 7168
    %32 = vst.msk [vmem:[#allocation2] sm:$0xff] %vm31, 0.0
    %33 = vst.msk [vmem:[#allocation2 + $0x8] sm:$0xff] %vm31, 0.0
    %34 = vst.msk [vmem:[#allocation2 + $0x10] sm:$0xff] %vm31, 0.0
    %35 = vst.msk [vmem:[#allocation2 + $0x18] sm:$0xff] %vm31, 0.0
    %36 = vst.msk [vmem:[#allocation2 + $0x20] sm:$0xff] %vm31, 0.0
    %37 = vst.msk [vmem:[#allocation2 + $0x28] sm:$0xff] %vm31, 0.0
    %38 = vst.msk [vmem:[#allocation2 + $0x30] sm:$0xff] %vm31, 0.0
    %39 = vst.msk [vmem:[#allocation2 + $0x38] sm:$0xff] %vm31, 0.0
    %40 = vst.msk [vmem:[#allocation2 + $0x40] sm:$0xff] %vm31, 0.0
    %41 = vst.msk [vmem:[#allocation2 + $0x48] sm:$0xff] %vm31, 0.0
    %42 = vst.msk [vmem:[#allocation2 + $0x50] sm:$0xff] %vm31, 0.0
    %43 = vst.msk [vmem:[#allocation2 + $0x58] sm:$0xff] %vm31, 0.0
    %44 = vst.msk [vmem:[#allocation2 + $0x60] sm:$0xff] %vm31, 0.0
    %45 = vst.msk [vmem:[#allocation2 + $0x68] sm:$0xff] %vm31, 0.0
    %46 = vst.msk [vmem:[#allocation2 + $0x70] sm:$0xff] %vm31, 0.0
    %47 = vst.msk [vmem:[#allocation2 + $0x78] sm:$0xff] %vm31, 0.0
    %48 = vst.msk [vmem:[#allocation2 + $0x80] sm:$0xff] %vm31, 0.0
    %49 = vst.msk [vmem:[#allocation2 + $0x88] sm:$0xff] %vm31, 0.0
    %50 = vst.msk [vmem:[#allocation2 + $0x90] sm:$0xff] %vm31, 0.0
    %51 = vst.msk [vmem:[#allocation2 + $0x98] sm:$0xff] %vm31, 0.0
    %52 = vst.msk [vmem:[#allocation2 + $0xa0] sm:$0xff] %vm31, 0.0
    %53 = vst.msk [vmem:[#allocation2 + $0xa8] sm:$0xff] %vm31, 0.0
    %54 = vst.msk [vmem:[#allocation2 + $0xb0] sm:$0xff] %vm31, 0.0
    %55 = vst.msk [vmem:[#allocation2 + $0xb8] sm:$0xff] %vm31, 0.0
    %56 = vst.msk [vmem:[#allocation2 + $0xc0] sm:$0xff] %vm31, 0.0
    %57 = vst.msk [vmem:[#allocation2 + $0xc8] sm:$0xff] %vm31, 0.0
    %58 = vst.msk [vmem:[#allocation2 + $0xd0] sm:$0xff] %vm31, 0.0
    %59 = vst.msk [vmem:[#allocation2 + $0xd8] sm:$0xff] %vm31, 0.0
    %60 = vst.msk [vmem:[#allocation2 + $0xe0] sm:$0xff] %vm31, 0.0
    %61 = vst.msk [vmem:[#allocation2 + $0xe8] sm:$0xff] %vm31, 0.0
    %62 = vst.msk [vmem:[#allocation2 + $0xf0] sm:$0xff] %vm31, 0.0
    %63 = vst.msk [vmem:[#allocation2 + $0xf8] sm:$0xff] %vm31, 0.0
    %64 = vst.msk [vmem:[#allocation2 + $0x100] sm:$0xff] %vm31, 0.0
    %65 = vst.msk [vmem:[#allocation2 + $0x108] sm:$0xff] %vm31, 0.0
    %66 = vst.msk [vmem:[#allocation2 + $0x110] sm:$0xff] %vm31, 0.0
    %67 = vst.msk [vmem:[#allocation2 + $0x118] sm:$0xff] %vm31, 0.0
    %68 = vst.msk [vmem:[#allocation2 + $0x120] sm:$0xff] %vm31, 0.0
    %69 = vst.msk [vmem:[#allocation2 + $0x128] sm:$0xff] %vm31, 0.0
    %70 = vst.msk [vmem:[#allocation2 + $0x130] sm:$0xff] %vm31, 0.0
    %71 = vst.msk [vmem:[#allocation2 + $0x138] sm:$0xff] %vm31, 0.0
    %72 = vst.msk [vmem:[#allocation2 + $0x140] sm:$0xff] %vm31, 0.0
    %73 = vst.msk [vmem:[#allocation2 + $0x148] sm:$0xff] %vm31, 0.0
    %74 = vst.msk [vmem:[#allocation2 + $0x150] sm:$0xff] %vm31, 0.0
    %75 = vst.msk [vmem:[#allocation2 + $0x158] sm:$0xff] %vm31, 0.0
    %76 = vst.msk [vmem:[#allocation2 + $0x160] sm:$0xff] %vm31, 0.0
    %77 = vst.msk [vmem:[#allocation2 + $0x168] sm:$0xff] %vm31, 0.0
    %78 = vst.msk [vmem:[#allocation2 + $0x170] sm:$0xff] %vm31, 0.0
    %79 = vst.msk [vmem:[#allocation2 + $0x178] sm:$0xff] %vm31, 0.0
    %80 = vst.msk [vmem:[#allocation2 + $0x180] sm:$0xff] %vm31, 0.0
    %81 = vst.msk [vmem:[#allocation2 + $0x188] sm:$0xff] %vm31, 0.0
    %82 = vst.msk [vmem:[#allocation2 + $0x190] sm:$0xff] %vm31, 0.0
    %83 = vst.msk [vmem:[#allocation2 + $0x198] sm:$0xff] %vm31, 0.0
    %84 = vst.msk [vmem:[#allocation2 + $0x1a0] sm:$0xff] %vm31, 0.0
    %85 = vst.msk [vmem:[#allocation2 + $0x1a8] sm:$0xff] %vm31, 0.0
    %86 = vst.msk [vmem:[#allocation2 + $0x1b0] sm:$0xff] %vm31, 0.0
    %87 = vst.msk [vmem:[#allocation2 + $0x1b8] sm:$0xff] %vm31, 0.0
    %88 = vst.msk [vmem:[#allocation2 + $0x1c0] sm:$0xff] %vm31, 0.0
    %89 = vst.msk [vmem:[#allocation2 + $0x1c8] sm:$0xff] %vm31, 0.0
    %90 = vst.msk [vmem:[#allocation2 + $0x1d0] sm:$0xff] %vm31, 0.0
    %91 = vst.msk [vmem:[#allocation2 + $0x1d8] sm:$0xff] %vm31, 0.0
    %92 = vst.msk [vmem:[#allocation2 + $0x1e0] sm:$0xff] %vm31, 0.0
    %93 = vst.msk [vmem:[#allocation2 + $0x1e8] sm:$0xff] %vm31, 0.0
    %94 = vst.msk [vmem:[#allocation2 + $0x1f0] sm:$0xff] %vm31, 0.0
    %95 = vst.msk [vmem:[#allocation2 + $0x1f8] sm:$0xff] %vm31, 0.0
    %96 = vst.msk [vmem:[#allocation2 + $0x200] sm:$0xff] %vm31, 0.0
    %97 = vst.msk [vmem:[#allocation2 + $0x208] sm:$0xff] %vm31, 0.0
    %98 = vst.msk [vmem:[#allocation2 + $0x210] sm:$0xff] %vm31, 0.0
    %99 = vst.msk [vmem:[#allocation2 + $0x218] sm:$0xff] %vm31, 0.0
    %100 = vst.msk [vmem:[#allocation2 + $0x220] sm:$0xff] %vm31, 0.0
    %101 = vst.msk [vmem:[#allocation2 + $0x228] sm:$0xff] %vm31, 0.0
    %102 = vst.msk [vmem:[#allocation2 + $0x230] sm:$0xff] %vm31, 0.0
    %103 = vst.msk [vmem:[#allocation2 + $0x238] sm:$0xff] %vm31, 0.0
    %104 = vst.msk [vmem:[#allocation2 + $0x240] sm:$0xff] %vm31, 0.0
    %105 = vst.msk [vmem:[#allocation2 + $0x248] sm:$0xff] %vm31, 0.0
    %106 = vst.msk [vmem:[#allocation2 + $0x250] sm:$0xff] %vm31, 0.0
    %107 = vst.msk [vmem:[#allocation2 + $0x258] sm:$0xff] %vm31, 0.0
    %108 = vst.msk [vmem:[#allocation2 + $0x260] sm:$0xff] %vm31, 0.0
    %109 = vst.msk [vmem:[#allocation2 + $0x268] sm:$0xff] %vm31, 0.0
    %110 = vst.msk [vmem:[#allocation2 + $0x270] sm:$0xff] %vm31, 0.0
    %111 = vst.msk [vmem:[#allocation2 + $0x278] sm:$0xff] %vm31, 0.0
    %112 = vst.msk [vmem:[#allocation2 + $0x280] sm:$0xff] %vm31, 0.0
    %113 = vst.msk [vmem:[#allocation2 + $0x288] sm:$0xff] %vm31, 0.0
    %114 = vst.msk [vmem:[#allocation2 + $0x290] sm:$0xff] %vm31, 0.0
    %115 = vst.msk [vmem:[#allocation2 + $0x298] sm:$0xff] %vm31, 0.0
    %116 = vst.msk [vmem:[#allocation2 + $0x2a0] sm:$0xff] %vm31, 0.0
    %117 = vst.msk [vmem:[#allocation2 + $0x2a8] sm:$0xff] %vm31, 0.0
    %118 = vst.msk [vmem:[#allocation2 + $0x2b0] sm:$0xff] %vm31, 0.0
    %119 = vst.msk [vmem:[#allocation2 + $0x2b8] sm:$0xff] %vm31, 0.0
    %120 = vst.msk [vmem:[#allocation2 + $0x2c0] sm:$0xff] %vm31, 0.0
    %121 = vst.msk [vmem:[#allocation2 + $0x2c8] sm:$0xff] %vm31, 0.0
    %122 = vst.msk [vmem:[#allocation2 + $0x2d0] sm:$0xff] %vm31, 0.0
    %123 = vst.msk [vmem:[#allocation2 + $0x2d8] sm:$0xff] %vm31, 0.0
    %124 = vst.msk [vmem:[#allocation2 + $0x2e0] sm:$0xff] %vm31, 0.0
    %125 = vst.msk [vmem:[#allocation2 + $0x2e8] sm:$0xff] %vm31, 0.0
    %126 = vst.msk [vmem:[#allocation2 + $0x2f0] sm:$0xff] %vm31, 0.0
    %127 = vst.msk [vmem:[#allocation2 + $0x2f8] sm:$0xff] %vm31, 0.0
    %128 = vst.msk [vmem:[#allocation2 + $0x300] sm:$0xff] %vm31, 0.0
    %129 = vst.msk [vmem:[#allocation2 + $0x308] sm:$0xff] %vm31, 0.0
    %130 = vst.msk [vmem:[#allocation2 + $0x310] sm:$0xff] %vm31, 0.0
    %131 = vst.msk [vmem:[#allocation2 + $0x318] sm:$0xff] %vm31, 0.0
    %132 = vst.msk [vmem:[#allocation2 + $0x320] sm:$0xff] %vm31, 0.0
    %133 = vst.msk [vmem:[#allocation2 + $0x328] sm:$0xff] %vm31, 0.0
    %134 = vst.msk [vmem:[#allocation2 + $0x330] sm:$0xff] %vm31, 0.0
    %135 = vst.msk [vmem:[#allocation2 + $0x338] sm:$0xff] %vm31, 0.0
    %136 = vst.msk [vmem:[#allocation2 + $0x340] sm:$0xff] %vm31, 0.0
    %137 = vst.msk [vmem:[#allocation2 + $0x348] sm:$0xff] %vm31, 0.0
    %138 = vst.msk [vmem:[#allocation2 + $0x350] sm:$0xff] %vm31, 0.0
    %139 = vst.msk [vmem:[#allocation2 + $0x358] sm:$0xff] %vm31, 0.0
    %140 = vst.msk [vmem:[#allocation2 + $0x360] sm:$0xff] %vm31, 0.0
    %141 = vst.msk [vmem:[#allocation2 + $0x368] sm:$0xff] %vm31, 0.0
    %142 = vst.msk [vmem:[#allocation2 + $0x370] sm:$0xff] %vm31, 0.0
    %143 = vst.msk [vmem:[#allocation2 + $0x378] sm:$0xff] %vm31, 0.0
    %144 = vst.msk [vmem:[#allocation2 + $0x380] sm:$0xff] %vm31, 0.0
    %145 = vst.msk [vmem:[#allocation2 + $0x388] sm:$0xff] %vm31, 0.0
    %146 = vst.msk [vmem:[#allocation2 + $0x390] sm:$0xff] %vm31, 0.0
    %147 = vst.msk [vmem:[#allocation2 + $0x398] sm:$0xff] %vm31, 0.0
    %148 = vst.msk [vmem:[#allocation2 + $0x3a0] sm:$0xff] %vm31, 0.0
    %149 = vst.msk [vmem:[#allocation2 + $0x3a8] sm:$0xff] %vm31, 0.0
    %150 = vst.msk [vmem:[#allocation2 + $0x3b0] sm:$0xff] %vm31, 0.0
    %151 = vst.msk [vmem:[#allocation2 + $0x3b8] sm:$0xff] %vm31, 0.0
    %152 = vst.msk [vmem:[#allocation2 + $0x3c0] sm:$0xff] %vm31, 0.0
    %153 = vst.msk [vmem:[#allocation2 + $0x3c8] sm:$0xff] %vm31, 0.0
    %154 = vst.msk [vmem:[#allocation2 + $0x3d0] sm:$0xff] %vm31, 0.0
    %155 = vst.msk [vmem:[#allocation2 + $0x3d8] sm:$0xff] %vm31, 0.0
    %156 = vst.msk [vmem:[#allocation2 + $0x3e0] sm:$0xff] %vm31, 0.0
    %157 = vst.msk [vmem:[#allocation2 + $0x3e8] sm:$0xff] %vm31, 0.0
    %158 = vst.msk [vmem:[#allocation2 + $0x3f0] sm:$0xff] %vm31, 0.0
    %159 = vst.msk [vmem:[#allocation2 + $0x3f8] sm:$0xff] %vm31, 0.0
  $region25: #{vae_forward.13} parent=0 // pred_fallthru
    _
  %v160 = vld [vmem:[#allocation2] sm:$0xff]
  %v161 = vld [vmem:[#allocation2 + $0x8] sm:$0xff]
  %v162 = vld [vmem:[#allocation2 + $0x10] sm:$0xff]
  %v163 = vld [vmem:[#allocation2 + $0x18] sm:$0xff]
  %v164 = vld [vmem:[#allocation2 + $0x20] sm:$0xff]
  %v165 = vld [vmem:[#allocation2 + $0x28] sm:$0xff]
  %v166 = vld [vmem:[#allocation2 + $0x30] sm:$0xff]
  %v167 = vld [vmem:[#allocation2 + $0x38] sm:$0xff]
  %v168 = vld [vmem:[#allocation2 + $0x40] sm:$0xff]
  %v169 = vld [vmem:[#allocation2 + $0x48] sm:$0xff]
  %v170 = vld [vmem:[#allocation2 + $0x50] sm:$0xff]
  %v171 = vld [vmem:[#allocation2 + $0x58] sm:$0xff]
  %v172 = vld [vmem:[#allocation2 + $0x60] sm:$0xff]
  %v173 = vld [vmem:[#allocation2 + $0x68] sm:$0xff]
  %v174 = vld [vmem:[#allocation2 + $0x70] sm:$0xff]
  %v175 = vld [vmem:[#allocation2 + $0x78] sm:$0xff]
  %v176 = vld [vmem:[#allocation2 + $0x80] sm:$0xff]
  %v177 = vld [vmem:[#allocation2 + $0x88] sm:$0xff]
  %v178 = vld [vmem:[#allocation2 + $0x90] sm:$0xff]
  %v179 = vld [vmem:[#allocation2 + $0x98] sm:$0xff]
  %v180 = vld [vmem:[#allocation2 + $0xa0] sm:$0xff]
  %v181 = vld [vmem:[#allocation2 + $0xa8] sm:$0xff]
  %v182 = vld [vmem:[#allocation2 + $0xb0] sm:$0xff]
  %v183 = vld [vmem:[#allocation2 + $0xb8] sm:$0xff]
  %v184 = vld [vmem:[#allocation2 + $0xc0] sm:$0xff]
  %v185 = vld [vmem:[#allocation2 + $0xc8] sm:$0xff]
  %v186 = vld [vmem:[#allocation2 + $0xd0] sm:$0xff]
  %v187 = vld [vmem:[#allocation2 + $0xd8] sm:$0xff]
  %v188 = vld [vmem:[#allocation2 + $0xe0] sm:$0xff]
  %v189 = vld [vmem:[#allocation2 + $0xe8] sm:$0xff]
  %v190 = vld [vmem:[#allocation2 + $0xf0] sm:$0xff]
  %v191 = vld [vmem:[#allocation2 + $0xf8] sm:$0xff]
  %v192 = vld [vmem:[#allocation2 + $0x100] sm:$0xff]
  %v193 = vld [vmem:[#allocation2 + $0x108] sm:$0xff]
  %v194 = vld [vmem:[#allocation2 + $0x110] sm:$0xff]
  %v195 = vld [vmem:[#allocation2 + $0x118] sm:$0xff]
  %v196 = vld [vmem:[#allocation2 + $0x120] sm:$0xff]
  %v197 = vld [vmem:[#allocation2 + $0x128] sm:$0xff]
  %v198 = vld [vmem:[#allocation2 + $0x130] sm:$0xff]
  %v199 = vld [vmem:[#allocation2 + $0x138] sm:$0xff]
  %v200 = vld [vmem:[#allocation2 + $0x140] sm:$0xff]
  %v201 = vld [vmem:[#allocation2 + $0x148] sm:$0xff]
  %v202 = vld [vmem:[#allocation2 + $0x150] sm:$0xff]
  %v203 = vld [vmem:[#allocation2 + $0x158] sm:$0xff]
  %v204 = vld [vmem:[#allocation2 + $0x160] sm:$0xff]
  %v205 = vld [vmem:[#allocation2 + $0x168] sm:$0xff]
  %v206 = vld [vmem:[#allocation2 + $0x170] sm:$0xff]
  %v207 = vld [vmem:[#allocation2 + $0x178] sm:$0xff]
  %v208 = vld [vmem:[#allocation2 + $0x180] sm:$0xff]
  %v209 = vld [vmem:[#allocation2 + $0x188] sm:$0xff]
  %v210 = vld [vmem:[#allocation2 + $0x190] sm:$0xff]
  %v211 = vld [vmem:[#allocation2 + $0x198] sm:$0xff]
  %v212 = vld [vmem:[#allocation2 + $0x1a0] sm:$0xff]
  %v213 = vld [vmem:[#allocation2 + $0x1a8] sm:$0xff]
  %v214 = vld [vmem:[#allocation2 + $0x1b0] sm:$0xff]
  %v215 = vld [vmem:[#allocation2 + $0x1b8] sm:$0xff]
  %v216 = vld [vmem:[#allocation2 + $0x1c0] sm:$0xff]
  %v217 = vld [vmem:[#allocation2 + $0x1c8] sm:$0xff]
  %v218 = vld [vmem:[#allocation2 + $0x1d0] sm:$0xff]
  %v219 = vld [vmem:[#allocation2 + $0x1d8] sm:$0xff]
  %v220 = vld [vmem:[#allocation2 + $0x1e0] sm:$0xff]
  %v221 = vld [vmem:[#allocation2 + $0x1e8] sm:$0xff]
  %v222 = vld [vmem:[#allocation2 + $0x1f0] sm:$0xff]
  %v223 = vld [vmem:[#allocation2 + $0x1f8] sm:$0xff]
  %v224 = vld [vmem:[#allocation2 + $0x200] sm:$0xff]
  %v225 = vld [vmem:[#allocation2 + $0x208] sm:$0xff]
  %v226 = vld [vmem:[#allocation2 + $0x210] sm:$0xff]
  %v227 = vld [vmem:[#allocation2 + $0x218] sm:$0xff]
  %v228 = vld [vmem:[#allocation2 + $0x220] sm:$0xff]
  %v229 = vld [vmem:[#allocation2 + $0x228] sm:$0xff]
  %v230 = vld [vmem:[#allocation2 + $0x230] sm:$0xff]
  %v231 = vld [vmem:[#allocation2 + $0x238] sm:$0xff]
  %v232 = vld [vmem:[#allocation2 + $0x240] sm:$0xff]
  %v233 = vld [vmem:[#allocation2 + $0x248] sm:$0xff]
  %v234 = vld [vmem:[#allocation2 + $0x250] sm:$0xff]
  %v235 = vld [vmem:[#allocation2 + $0x258] sm:$0xff]
  %v236 = vld [vmem:[#allocation2 + $0x260] sm:$0xff]
  %v237 = vld [vmem:[#allocation2 + $0x268] sm:$0xff]
  %v238 = vld [vmem:[#allocation2 + $0x270] sm:$0xff]
  %v239 = vld [vmem:[#allocation2 + $0x278] sm:$0xff]
  %v240 = vld [vmem:[#allocation2 + $0x280] sm:$0xff]
  %v241 = vld [vmem:[#allocation2 + $0x288] sm:$0xff]
  %v242 = vld [vmem:[#allocation2 + $0x290] sm:$0xff]
  %v243 = vld [vmem:[#allocation2 + $0x298] sm:$0xff]
  %v244 = vld [vmem:[#allocation2 + $0x2a0] sm:$0xff]
  %v245 = vld [vmem:[#allocation2 + $0x2a8] sm:$0xff]
  %v246 = vld [vmem:[#allocation2 + $0x2b0] sm:$0xff]
  %v247 = vld [vmem:[#allocation2 + $0x2b8] sm:$0xff]
  %v248 = vld [vmem:[#allocation2 + $0x2c0] sm:$0xff]
  %v249 = vld [vmem:[#allocation2 + $0x2c8] sm:$0xff]
  %v250 = vld [vmem:[#allocation2 + $0x2d0] sm:$0xff]
  %v251 = vld [vmem:[#allocation2 + $0x2d8] sm:$0xff]
  %v252 = vld [vmem:[#allocation2 + $0x2e0] sm:$0xff]
  %v253 = vld [vmem:[#allocation2 + $0x2e8] sm:$0xff]
  %v254 = vld [vmem:[#allocation2 + $0x2f0] sm:$0xff]
  %v255 = vld [vmem:[#allocation2 + $0x2f8] sm:$0xff]
  %v256 = vld [vmem:[#allocation2 + $0x300] sm:$0xff]
  %v257 = vld [vmem:[#allocation2 + $0x308] sm:$0xff]
  %v258 = vld [vmem:[#allocation2 + $0x310] sm:$0xff]
  %v259 = vld [vmem:[#allocation2 + $0x318] sm:$0xff]
  %v260 = vld [vmem:[#allocation2 + $0x320] sm:$0xff]
  %v261 = vld [vmem:[#allocation2 + $0x328] sm:$0xff]
  %v262 = vld [vmem:[#allocation2 + $0x330] sm:$0xff]
  %v263 = vld [vmem:[#allocation2 + $0x338] sm:$0xff]
  %v264 = vld [vmem:[#allocation2 + $0x340] sm:$0xff]
  %v265 = vld [vmem:[#allocation2 + $0x348] sm:$0xff]
  %v266 = vld [vmem:[#allocation2 + $0x350] sm:$0xff]
  %v267 = vld [vmem:[#allocation2 + $0x358] sm:$0xff]
  %v268 = vld [vmem:[#allocation2 + $0x360] sm:$0xff]
  %v269 = vld [vmem:[#allocation2 + $0x368] sm:$0xff]
  %v270 = vld [vmem:[#allocation2 + $0x370] sm:$0xff]
  %v271 = vld [vmem:[#allocation2 + $0x378] sm:$0xff]
  %v272 = vld [vmem:[#allocation2 + $0x380] sm:$0xff]
  %v273 = vld [vmem:[#allocation2 + $0x388] sm:$0xff]
  %v274 = vld [vmem:[#allocation2 + $0x390] sm:$0xff]
  %v275 = vld [vmem:[#allocation2 + $0x398] sm:$0xff]
  %v276 = vld [vmem:[#allocation2 + $0x3a0] sm:$0xff]
  %v277 = vld [vmem:[#allocation2 + $0x3a8] sm:$0xff]
  %v278 = vld [vmem:[#allocation2 + $0x3b0] sm:$0xff]
  %v279 = vld [vmem:[#allocation2 + $0x3b8] sm:$0xff]
  %v280 = vld [vmem:[#allocation2 + $0x3c0] sm:$0xff]
  %v281 = vld [vmem:[#allocation2 + $0x3c8] sm:$0xff]
  %v282 = vld [vmem:[#allocation2 + $0x3d0] sm:$0xff]
  %v283 = vld [vmem:[#allocation2 + $0x3d8] sm:$0xff]
  %v284 = vld [vmem:[#allocation2 + $0x3e0] sm:$0xff]
  %v285 = vld [vmem:[#allocation2 + $0x3e8] sm:$0xff]
  %v286 = vld [vmem:[#allocation2 + $0x3f0] sm:$0xff]
  %v287 = vld [vmem:[#allocation2 + $0x3f8] sm:$0xff]
  %v288 = vld [vmem:[%s0] sm:$0xff]
  %v289 = vld [vmem:[%s0 + $0x8] sm:$0xff]
  %v290 = vld [vmem:[%s0 + $0x10] sm:$0xff]
  %v291 = vld [vmem:[%s0 + $0x18] sm:$0xff]
  %v292 = vld [vmem:[%s0 + $0x20] sm:$0xff]
  %v293 = vld [vmem:[%s0 + $0x28] sm:$0xff]
  %v294 = vld [vmem:[%s0 + $0x30] sm:$0xff]
  %v295 = vld [vmem:[%s0 + $0x38] sm:$0xff]
  %v296 = vld [vmem:[%s0 + $0x40] sm:$0xff]
  %v297 = vld [vmem:[%s0 + $0x48] sm:$0xff]
  %v298 = vld [vmem:[%s0 + $0x50] sm:$0xff]
  %v299 = vld [vmem:[%s0 + $0x58] sm:$0xff]
  %v300 = vld [vmem:[%s0 + $0x60] sm:$0xff]
  %v301 = vld [vmem:[%s0 + $0x68] sm:$0xff]
  %v302 = vld [vmem:[%s0 + $0x70] sm:$0xff]
  %v303 = vld [vmem:[%s0 + $0x78] sm:$0xff]
  %v304 = vld [vmem:[%s0 + $0x80] sm:$0xff]
  %v305 = vld [vmem:[%s0 + $0x88] sm:$0xff]
  %v306 = vld [vmem:[%s0 + $0x90] sm:$0xff]
  %v307 = vld [vmem:[%s0 + $0x98] sm:$0xff]
  %v308 = vld [vmem:[%s0 + $0xa0] sm:$0xff]
  %v309 = vld [vmem:[%s0 + $0xa8] sm:$0xff]
  %v310 = vld [vmem:[%s0 + $0xb0] sm:$0xff]
  %v311 = vld [vmem:[%s0 + $0xb8] sm:$0xff]
  %v312 = vld [vmem:[%s0 + $0xc0] sm:$0xff]
  %v313 = vld [vmem:[%s0 + $0xc8] sm:$0xff]
  %v314 = vld [vmem:[%s0 + $0xd0] sm:$0xff]
  %v315 = vld [vmem:[%s0 + $0xd8] sm:$0xff]
  %v316 = vld [vmem:[%s0 + $0xe0] sm:$0xff]
  %v317 = vld [vmem:[%s0 + $0xe8] sm:$0xff]
  %v318 = vld [vmem:[%s0 + $0xf0] sm:$0xff]
  %v319 = vld [vmem:[%s0 + $0xf8] sm:$0xff]
  %v320 = vld [vmem:[%s0 + $0x100] sm:$0xff]
  %v321 = vld [vmem:[%s0 + $0x108] sm:$0xff]
  %v322 = vld [vmem:[%s0 + $0x110] sm:$0xff]
  %v323 = vld [vmem:[%s0 + $0x118] sm:$0xff]
  %v324 = vld [vmem:[%s0 + $0x120] sm:$0xff]
  %v325 = vld [vmem:[%s0 + $0x128] sm:$0xff]
  %v326 = vld [vmem:[%s0 + $0x130] sm:$0xff]
  %v327 = vld [vmem:[%s0 + $0x138] sm:$0xff]
  %v328 = vld [vmem:[%s0 + $0x140] sm:$0xff]
  %v329 = vld [vmem:[%s0 + $0x148] sm:$0xff]
  %v330 = vld [vmem:[%s0 + $0x150] sm:$0xff]
  %v331 = vld [vmem:[%s0 + $0x158] sm:$0xff]
  %v332 = vld [vmem:[%s0 + $0x160] sm:$0xff]
  %v333 = vld [vmem:[%s0 + $0x168] sm:$0xff]
  %v334 = vld [vmem:[%s0 + $0x170] sm:$0xff]
  %v335 = vld [vmem:[%s0 + $0x178] sm:$0xff]
  %v336 = vld [vmem:[%s0 + $0x180] sm:$0xff]
  %v337 = vld [vmem:[%s0 + $0x188] sm:$0xff]
  %v338 = vld [vmem:[%s0 + $0x190] sm:$0xff]
  %v339 = vld [vmem:[%s0 + $0x198] sm:$0xff]
  %v340 = vld [vmem:[%s0 + $0x1a0] sm:$0xff]
  %v341 = vld [vmem:[%s0 + $0x1a8] sm:$0xff]
  %v342 = vld [vmem:[%s0 + $0x1b0] sm:$0xff]
  %v343 = vld [vmem:[%s0 + $0x1b8] sm:$0xff]
  %v344 = vld [vmem:[%s0 + $0x1c0] sm:$0xff]
  %v345 = vld [vmem:[%s0 + $0x1c8] sm:$0xff]
  %v346 = vld [vmem:[%s0 + $0x1d0] sm:$0xff]
  %v347 = vld [vmem:[%s0 + $0x1d8] sm:$0xff]
  %v348 = vld [vmem:[%s0 + $0x1e0] sm:$0xff]
  %v349 = vld [vmem:[%s0 + $0x1e8] sm:$0xff]
  %v350 = vld [vmem:[%s0 + $0x1f0] sm:$0xff]
  %v351 = vld [vmem:[%s0 + $0x1f8] sm:$0xff]
  %v352 = vld [vmem:[%s0 + $0x200] sm:$0xff]
  %v353 = vld [vmem:[%s0 + $0x208] sm:$0xff]
  %v354 = vld [vmem:[%s0 + $0x210] sm:$0xff]
  %v355 = vld [vmem:[%s0 + $0x218] sm:$0xff]
  %v356 = vld [vmem:[%s0 + $0x220] sm:$0xff]
  %v357 = vld [vmem:[%s0 + $0x228] sm:$0xff]
  %v358 = vld [vmem:[%s0 + $0x230] sm:$0xff]
  %v359 = vld [vmem:[%s0 + $0x238] sm:$0xff]
  %v360 = vld [vmem:[%s0 + $0x240] sm:$0xff]
  %v361 = vld [vmem:[%s0 + $0x248] sm:$0xff]
  %v362 = vld [vmem:[%s0 + $0x250] sm:$0xff]
  %v363 = vld [vmem:[%s0 + $0x258] sm:$0xff]
  %v364 = vld [vmem:[%s0 + $0x260] sm:$0xff]
  %v365 = vld [vmem:[%s0 + $0x268] sm:$0xff]
  %v366 = vld [vmem:[%s0 + $0x270] sm:$0xff]
  %v367 = vld [vmem:[%s0 + $0x278] sm:$0xff]
  %v368 = vld [vmem:[%s0 + $0x280] sm:$0xff]
  %v369 = vld [vmem:[%s0 + $0x288] sm:$0xff]
  %v370 = vld [vmem:[%s0 + $0x290] sm:$0xff]
  %v371 = vld [vmem:[%s0 + $0x298] sm:$0xff]
  %v372 = vld [vmem:[%s0 + $0x2a0] sm:$0xff]
  %v373 = vld [vmem:[%s0 + $0x2a8] sm:$0xff]
  %v374 = vld [vmem:[%s0 + $0x2b0] sm:$0xff]
  %v375 = vld [vmem:[%s0 + $0x2b8] sm:$0xff]
  %v376 = vld [vmem:[%s0 + $0x2c0] sm:$0xff]
  %v377 = vld [vmem:[%s0 + $0x2c8] sm:$0xff]
  %v378 = vld [vmem:[%s0 + $0x2d0] sm:$0xff]
  %v379 = vld [vmem:[%s0 + $0x2d8] sm:$0xff]
  %v380 = vld [vmem:[%s0 + $0x2e0] sm:$0xff]
  %v381 = vld [vmem:[%s0 + $0x2e8] sm:$0xff]
  %v382 = vld [vmem:[%s0 + $0x2f0] sm:$0xff]
  %v383 = vld [vmem:[%s0 + $0x2f8] sm:$0xff]
  %v384 = vld [vmem:[%s0 + $0x300] sm:$0xff]
  %v385 = vld [vmem:[%s0 + $0x308] sm:$0xff]
  %v386 = vld [vmem:[%s0 + $0x310] sm:$0xff]
  %v387 = vld [vmem:[%s0 + $0x318] sm:$0xff]
  %v388 = vld [vmem:[%s0 + $0x320] sm:$0xff]
  %v389 = vld [vmem:[%s0 + $0x328] sm:$0xff]
  %v390 = vld [vmem:[%s0 + $0x330] sm:$0xff]
  %v391 = vld [vmem:[%s0 + $0x338] sm:$0xff]
  %v392 = vld [vmem:[%s0 + $0x340] sm:$0xff]
  %v393 = vld [vmem:[%s0 + $0x348] sm:$0xff]
  %v394 = vld [vmem:[%s0 + $0x350] sm:$0xff]
  %v395 = vld [vmem:[%s0 + $0x358] sm:$0xff]
  %v396 = vld [vmem:[%s0 + $0x360] sm:$0xff]
  %v397 = vld [vmem:[%s0 + $0x368] sm:$0xff]
  %v398 = vld [vmem:[%s0 + $0x370] sm:$0xff]
  %v399 = vld [vmem:[%s0 + $0x378] sm:$0xff]
  %v400 = vld [vmem:[%s0 + $0x380] sm:$0xff]
  %v401 = vld [vmem:[%s0 + $0x388] sm:$0xff]
  %v402 = vld [vmem:[%s0 + $0x390] sm:$0xff]
  %v403 = vld [vmem:[%s0 + $0x398] sm:$0xff]
  %v404 = vld [vmem:[%s0 + $0x3a0] sm:$0xff]
  %v405 = vld [vmem:[%s0 + $0x3a8] sm:$0xff]
  %v406 = vld [vmem:[%s0 + $0x3b0] sm:$0xff]
  %v407 = vld [vmem:[%s0 + $0x3b8] sm:$0xff]
  %v408 = vld [vmem:[%s0 + $0x3c0] sm:$0xff]
  %v409 = vld [vmem:[%s0 + $0x3c8] sm:$0xff]
  %v410 = vld [vmem:[%s0 + $0x3d0] sm:$0xff]
  %v411 = vld [vmem:[%s0 + $0x3d8] sm:$0xff]
  %v412 = vld [vmem:[%s0 + $0x3e0] sm:$0xff]
  %v413 = vld [vmem:[%s0 + $0x3e8] sm:$0xff]
  %v414 = vld [vmem:[%s0 + $0x3f0] sm:$0xff]
  %v415 = vld [vmem:[%s0 + $0x3f8] sm:$0xff]
  %v416 = vld [vmem:[%s0 + $0x400] sm:$0xff]
  %v417 = vld [vmem:[%s0 + $0x408] sm:$0xff]
  %v418 = vld [vmem:[%s0 + $0x410] sm:$0xff]
  %v419 = vld [vmem:[%s0 + $0x418] sm:$0xff]
  %v420 = vld [vmem:[%s0 + $0x420] sm:$0xff]
  %v421 = vld [vmem:[%s0 + $0x428] sm:$0xff]
  %v422 = vld [vmem:[%s0 + $0x430] sm:$0xff]
  %v423 = vld [vmem:[%s0 + $0x438] sm:$0xff]
  %v424 = vld [vmem:[%s0 + $0x440] sm:$0xff]
  %v425 = vld [vmem:[%s0 + $0x448] sm:$0xff]
  %v426 = vld [vmem:[%s0 + $0x450] sm:$0xff]
  %v427 = vld [vmem:[%s0 + $0x458] sm:$0xff]
  %v428 = vld [vmem:[%s0 + $0x460] sm:$0xff]
  %v429 = vld [vmem:[%s0 + $0x468] sm:$0xff]
  %v430 = vld [vmem:[%s0 + $0x470] sm:$0xff]
  %v431 = vld [vmem:[%s0 + $0x478] sm:$0xff]
  %v432 = vld [vmem:[%s0 + $0x480] sm:$0xff]
  %v433 = vld [vmem:[%s0 + $0x488] sm:$0xff]
  %v434 = vld [vmem:[%s0 + $0x490] sm:$0xff]
  %v435 = vld [vmem:[%s0 + $0x498] sm:$0xff]
  %v436 = vld [vmem:[%s0 + $0x4a0] sm:$0xff]
  %v437 = vld [vmem:[%s0 + $0x4a8] sm:$0xff]
  %v438 = vld [vmem:[%s0 + $0x4b0] sm:$0xff]
  %v439 = vld [vmem:[%s0 + $0x4b8] sm:$0xff]
  %v440 = vld [vmem:[%s0 + $0x4c0] sm:$0xff]
  %v441 = vld [vmem:[%s0 + $0x4c8] sm:$0xff]
  %v442 = vld [vmem:[%s0 + $0x4d0] sm:$0xff]
  %v443 = vld [vmem:[%s0 + $0x4d8] sm:$0xff]
  %v444 = vld [vmem:[%s0 + $0x4e0] sm:$0xff]
  %v445 = vld [vmem:[%s0 + $0x4e8] sm:$0xff]
  %v446 = vld [vmem:[%s0 + $0x4f0] sm:$0xff]
  %v447 = vld [vmem:[%s0 + $0x4f8] sm:$0xff]
  %v448 = vld [vmem:[%s0 + $0x500] sm:$0xff]
  %v449 = vld [vmem:[%s0 + $0x508] sm:$0xff]
  %v450 = vld [vmem:[%s0 + $0x510] sm:$0xff]
  %v451 = vld [vmem:[%s0 + $0x518] sm:$0xff]
  %v452 = vld [vmem:[%s0 + $0x520] sm:$0xff]
  %v453 = vld [vmem:[%s0 + $0x528] sm:$0xff]
  %v454 = vld [vmem:[%s0 + $0x530] sm:$0xff]
  %v455 = vld [vmem:[%s0 + $0x538] sm:$0xff]
  %v456 = vld [vmem:[%s0 + $0x540] sm:$0xff]
  %v457 = vld [vmem:[%s0 + $0x548] sm:$0xff]
  %v458 = vld [vmem:[%s0 + $0x550] sm:$0xff]
  %v459 = vld [vmem:[%s0 + $0x558] sm:$0xff]
  %v460 = vld [vmem:[%s0 + $0x560] sm:$0xff]
  %v461 = vld [vmem:[%s0 + $0x568] sm:$0xff]
  %v462 = vld [vmem:[%s0 + $0x570] sm:$0xff]
  %v463 = vld [vmem:[%s0 + $0x578] sm:$0xff]
  %v464 = vld [vmem:[%s0 + $0x580] sm:$0xff]
  %v465 = vld [vmem:[%s0 + $0x588] sm:$0xff]
  %v466 = vld [vmem:[%s0 + $0x590] sm:$0xff]
  %v467 = vld [vmem:[%s0 + $0x598] sm:$0xff]
  %v468 = vld [vmem:[%s0 + $0x5a0] sm:$0xff]
  %v469 = vld [vmem:[%s0 + $0x5a8] sm:$0xff]
  %v470 = vld [vmem:[%s0 + $0x5b0] sm:$0xff]
  %v471 = vld [vmem:[%s0 + $0x5b8] sm:$0xff]
  %v472 = vld [vmem:[%s0 + $0x5c0] sm:$0xff]
  %v473 = vld [vmem:[%s0 + $0x5c8] sm:$0xff]
  %v474 = vld [vmem:[%s0 + $0x5d0] sm:$0xff]
  %v475 = vld [vmem:[%s0 + $0x5d8] sm:$0xff]
  %v476 = vld [vmem:[%s0 + $0x5e0] sm:$0xff]
  %v477 = vld [vmem:[%s0 + $0x5e8] sm:$0xff]
  %v478 = vld [vmem:[%s0 + $0x5f0] sm:$0xff]
  %v479 = vld [vmem:[%s0 + $0x5f8] sm:$0xff]
  %v480 = vld [vmem:[%s0 + $0x600] sm:$0xff]
  %v481 = vld [vmem:[%s0 + $0x608] sm:$0xff]
  %v482 = vld [vmem:[%s0 + $0x610] sm:$0xff]
  %v483 = vld [vmem:[%s0 + $0x618] sm:$0xff]
  %v484 = vld [vmem:[%s0 + $0x620] sm:$0xff]
  %v485 = vld [vmem:[%s0 + $0x628] sm:$0xff]
  %v486 = vld [vmem:[%s0 + $0x630] sm:$0xff]
  %v487 = vld [vmem:[%s0 + $0x638] sm:$0xff]
  %v488 = vld [vmem:[%s0 + $0x640] sm:$0xff]
  %v489 = vld [vmem:[%s0 + $0x648] sm:$0xff]
  %v490 = vld [vmem:[%s0 + $0x650] sm:$0xff]
  %v491 = vld [vmem:[%s0 + $0x658] sm:$0xff]
  %v492 = vld [vmem:[%s0 + $0x660] sm:$0xff]
  %v493 = vld [vmem:[%s0 + $0x668] sm:$0xff]
  %v494 = vld [vmem:[%s0 + $0x670] sm:$0xff]
  %v495 = vld [vmem:[%s0 + $0x678] sm:$0xff]
  %v496 = vld [vmem:[%s0 + $0x680] sm:$0xff]
  %v497 = vld [vmem:[%s0 + $0x688] sm:$0xff]
  %v498 = vld [vmem:[%s0 + $0x690] sm:$0xff]
  %v499 = vld [vmem:[%s0 + $0x698] sm:$0xff]
  %v500 = vld [vmem:[%s0 + $0x6a0] sm:$0xff]
  %v501 = vld [vmem:[%s0 + $0x6a8] sm:$0xff]
  %v502 = vld [vmem:[%s0 + $0x6b0] sm:$0xff]
  %v503 = vld [vmem:[%s0 + $0x6b8] sm:$0xff]
  %v504 = vld [vmem:[%s0 + $0x6c0] sm:$0xff]
  %v505 = vld [vmem:[%s0 + $0x6c8] sm:$0xff]
  %v506 = vld [vmem:[%s0 + $0x6d0] sm:$0xff]
  %v507 = vld [vmem:[%s0 + $0x6d8] sm:$0xff]
  %v508 = vld [vmem:[%s0 + $0x6e0] sm:$0xff]
  %v509 = vld [vmem:[%s0 + $0x6e8] sm:$0xff]
  %v510 = vld [vmem:[%s0 + $0x6f0] sm:$0xff]
  %v511 = vld [vmem:[%s0 + $0x6f8] sm:$0xff]
  %v512 = vld [vmem:[%s0 + $0x700] sm:$0xff]
  %v513 = vld [vmem:[%s0 + $0x708] sm:$0xff]
  %v514 = vld [vmem:[%s0 + $0x710] sm:$0xff]
  %v515 = vld [vmem:[%s0 + $0x718] sm:$0xff]
  %v516 = vld [vmem:[%s0 + $0x720] sm:$0xff]
  %v517 = vld [vmem:[%s0 + $0x728] sm:$0xff]
  %v518 = vld [vmem:[%s0 + $0x730] sm:$0xff]
  %v519 = vld [vmem:[%s0 + $0x738] sm:$0xff]
  %v520 = vld [vmem:[%s0 + $0x740] sm:$0xff]
  %v521 = vld [vmem:[%s0 + $0x748] sm:$0xff]
  %v522 = vld [vmem:[%s0 + $0x750] sm:$0xff]
  %v523 = vld [vmem:[%s0 + $0x758] sm:$0xff]
  %v524 = vld [vmem:[%s0 + $0x760] sm:$0xff]
  %v525 = vld [vmem:[%s0 + $0x768] sm:$0xff]
  %v526 = vld [vmem:[%s0 + $0x770] sm:$0xff]
  %v527 = vld [vmem:[%s0 + $0x778] sm:$0xff]
  %v528 = vld [vmem:[%s0 + $0x780] sm:$0xff]
  %v529 = vld [vmem:[%s0 + $0x788] sm:$0xff]
  %v530 = vld [vmem:[%s0 + $0x790] sm:$0xff]
  %v531 = vld [vmem:[%s0 + $0x798] sm:$0xff]
  %v532 = vld [vmem:[%s0 + $0x7a0] sm:$0xff]
  %v533 = vld [vmem:[%s0 + $0x7a8] sm:$0xff]
  %v534 = vld [vmem:[%s0 + $0x7b0] sm:$0xff]
  %v535 = vld [vmem:[%s0 + $0x7b8] sm:$0xff]
  %v536 = vld [vmem:[%s0 + $0x7c0] sm:$0xff]
  %v537 = vld [vmem:[%s0 + $0x7c8] sm:$0xff]
  %v538 = vld [vmem:[%s0 + $0x7d0] sm:$0xff]
  %v539 = vld [vmem:[%s0 + $0x7d8] sm:$0xff]
  %v540 = vld [vmem:[%s0 + $0x7e0] sm:$0xff]
  %v541 = vld [vmem:[%s0 + $0x7e8] sm:$0xff]
  %v542 = vld [vmem:[%s0 + $0x7f0] sm:$0xff]
  %v543 = vld [vmem:[%s0 + $0x7f8] sm:$0xff]
  %v544 = vld [vmem:[%s1] sm:$0xf]
  %v545 = vld [vmem:[%s1 + $0x4] sm:$0xf]
  %v546 = vld [vmem:[%s1 + $0x8] sm:$0xf]
  %v547 = vld [vmem:[%s1 + $0xc] sm:$0xf]
  %v548 = vld [vmem:[%s1 + $0x10] sm:$0xf]
  %v549 = vld [vmem:[%s1 + $0x14] sm:$0xf]
  %v550 = vld [vmem:[%s1 + $0x18] sm:$0xf]
  %v551 = vld [vmem:[%s1 + $0x1c] sm:$0xf]
  %v552 = vld [vmem:[%s1 + $0x20] sm:$0xf]
  %v553 = vld [vmem:[%s1 + $0x24] sm:$0xf]
  %v554 = vld [vmem:[%s1 + $0x28] sm:$0xf]
  %v555 = vld [vmem:[%s1 + $0x2c] sm:$0xf]
  %v556 = vld [vmem:[%s1 + $0x30] sm:$0xf]
  %v557 = vld [vmem:[%s1 + $0x34] sm:$0xf]
  %v558 = vld [vmem:[%s1 + $0x38] sm:$0xf]
  %v559 = vld [vmem:[%s1 + $0x3c] sm:$0xf]
  %v560 = vld [vmem:[%s1 + $0x40] sm:$0xf]
  %v561 = vld [vmem:[%s1 + $0x44] sm:$0xf]
  %v562 = vld [vmem:[%s1 + $0x48] sm:$0xf]
  %v563 = vld [vmem:[%s1 + $0x4c] sm:$0xf]
  %v564 = vld [vmem:[%s1 + $0x50] sm:$0xf]
  %v565 = vld [vmem:[%s1 + $0x54] sm:$0xf]
  %v566 = vld [vmem:[%s1 + $0x58] sm:$0xf]
  %v567 = vld [vmem:[%s1 + $0x5c] sm:$0xf]
  %v568 = vld [vmem:[%s1 + $0x60] sm:$0xf]
  %v569 = vld [vmem:[%s1 + $0x64] sm:$0xf]
  %v570 = vld [vmem:[%s1 + $0x68] sm:$0xf]
  %v571 = vld [vmem:[%s1 + $0x6c] sm:$0xf]
  %v572 = vld [vmem:[%s1 + $0x70] sm:$0xf]
  %v573 = vld [vmem:[%s1 + $0x74] sm:$0xf]
  %v574 = vld [vmem:[%s1 + $0x78] sm:$0xf]
  %v575 = vld [vmem:[%s1 + $0x7c] sm:$0xf]
  %v576 = vld [vmem:[%s1 + $0x80] sm:$0xf]
  %v577 = vld [vmem:[%s1 + $0x84] sm:$0xf]
  %v578 = vld [vmem:[%s1 + $0x88] sm:$0xf]
  %v579 = vld [vmem:[%s1 + $0x8c] sm:$0xf]
  %v580 = vld [vmem:[%s1 + $0x90] sm:$0xf]
  %v581 = vld [vmem:[%s1 + $0x94] sm:$0xf]
  %v582 = vld [vmem:[%s1 + $0x98] sm:$0xf]
  %v583 = vld [vmem:[%s1 + $0x9c] sm:$0xf]
  %v584 = vld [vmem:[%s1 + $0xa0] sm:$0xf]
  %v585 = vld [vmem:[%s1 + $0xa4] sm:$0xf]
  %v586 = vld [vmem:[%s1 + $0xa8] sm:$0xf]
  %v587 = vld [vmem:[%s1 + $0xac] sm:$0xf]
  %v588 = vld [vmem:[%s1 + $0xb0] sm:$0xf]
  %v589 = vld [vmem:[%s1 + $0xb4] sm:$0xf]
  %v590 = vld [vmem:[%s1 + $0xb8] sm:$0xf]
  %v591 = vld [vmem:[%s1 + $0xbc] sm:$0xf]
  %v592 = vld [vmem:[%s1 + $0xc0] sm:$0xf]
  %v593 = vld [vmem:[%s1 + $0xc4] sm:$0xf]
  %v594 = vld [vmem:[%s1 + $0xc8] sm:$0xf]
  %v595 = vld [vmem:[%s1 + $0xcc] sm:$0xf]
  %v596 = vld [vmem:[%s1 + $0xd0] sm:$0xf]
  %v597 = vld [vmem:[%s1 + $0xd4] sm:$0xf]
  %v598 = vld [vmem:[%s1 + $0xd8] sm:$0xf]
  %v599 = vld [vmem:[%s1 + $0xdc] sm:$0xf]
  %v600 = vld [vmem:[%s1 + $0xe0] sm:$0xf]
  %v601 = vld [vmem:[%s1 + $0xe4] sm:$0xf]
  %v602 = vld [vmem:[%s1 + $0xe8] sm:$0xf]
  %v603 = vld [vmem:[%s1 + $0xec] sm:$0xf]
  %v604 = vld [vmem:[%s1 + $0xf0] sm:$0xf]
  %v605 = vld [vmem:[%s1 + $0xf4] sm:$0xf]
  %v606 = vld [vmem:[%s1 + $0xf8] sm:$0xf]
  %v607 = vld [vmem:[%s1 + $0xfc] sm:$0xf]
  %v864 = vunpack.c.l.b16 %v288
  %v865 = vunpack.c.h.b16 %v288
  %v866 = vunpack.c.l.b16 %v289
  %v867 = vunpack.c.h.b16 %v289
  %v868 = vunpack.c.l.b16 %v290
  %v869 = vunpack.c.h.b16 %v290
  %v870 = vunpack.c.l.b16 %v291
  %v871 = vunpack.c.h.b16 %v291
  %v872 = vunpack.c.l.b16 %v292
  %v873 = vunpack.c.h.b16 %v292
  %v874 = vunpack.c.l.b16 %v293
  %v875 = vunpack.c.h.b16 %v293
  %v876 = vunpack.c.l.b16 %v294
  %v877 = vunpack.c.h.b16 %v294
  %v878 = vunpack.c.l.b16 %v295
  %v879 = vunpack.c.h.b16 %v295
  %v880 = vunpack.c.l.b16 %v296
  %v881 = vunpack.c.h.b16 %v296
  %v882 = vunpack.c.l.b16 %v297
  %v883 = vunpack.c.h.b16 %v297
  %v884 = vunpack.c.l.b16 %v298
  %v885 = vunpack.c.h.b16 %v298
  %v886 = vunpack.c.l.b16 %v299
  %v887 = vunpack.c.h.b16 %v299
  %v888 = vunpack.c.l.b16 %v300
  %v889 = vunpack.c.h.b16 %v300
  %v890 = vunpack.c.l.b16 %v301
  %v891 = vunpack.c.h.b16 %v301
  %v892 = vunpack.c.l.b16 %v302
  %v893 = vunpack.c.h.b16 %v302
  %v894 = vunpack.c.l.b16 %v303
  %v895 = vunpack.c.h.b16 %v303
  %v896 = vunpack.c.l.b16 %v304
  %v897 = vunpack.c.h.b16 %v304
  %v898 = vunpack.c.l.b16 %v305
  %v899 = vunpack.c.h.b16 %v305
  %v900 = vunpack.c.l.b16 %v306
  %v901 = vunpack.c.h.b16 %v306
  %v902 = vunpack.c.l.b16 %v307
  %v903 = vunpack.c.h.b16 %v307
  %v904 = vunpack.c.l.b16 %v308
  %v905 = vunpack.c.h.b16 %v308
  %v906 = vunpack.c.l.b16 %v309
  %v907 = vunpack.c.h.b16 %v309
  %v908 = vunpack.c.l.b16 %v310
  %v909 = vunpack.c.h.b16 %v310
  %v910 = vunpack.c.l.b16 %v311
  %v911 = vunpack.c.h.b16 %v311
  %v912 = vunpack.c.l.b16 %v312
  %v913 = vunpack.c.h.b16 %v312
  %v914 = vunpack.c.l.b16 %v313
  %v915 = vunpack.c.h.b16 %v313
  %v916 = vunpack.c.l.b16 %v314
  %v917 = vunpack.c.h.b16 %v314
  %v918 = vunpack.c.l.b16 %v315
  %v919 = vunpack.c.h.b16 %v315
  %v920 = vunpack.c.l.b16 %v316
  %v921 = vunpack.c.h.b16 %v316
  %v922 = vunpack.c.l.b16 %v317
  %v923 = vunpack.c.h.b16 %v317
  %v924 = vunpack.c.l.b16 %v318
  %v925 = vunpack.c.h.b16 %v318
  %v926 = vunpack.c.l.b16 %v319
  %v927 = vunpack.c.h.b16 %v319
  %v928 = vunpack.c.l.b16 %v320
  %v929 = vunpack.c.h.b16 %v320
  %v930 = vunpack.c.l.b16 %v321
  %v931 = vunpack.c.h.b16 %v321
  %v932 = vunpack.c.l.b16 %v322
  %v933 = vunpack.c.h.b16 %v322
  %v934 = vunpack.c.l.b16 %v323
  %v935 = vunpack.c.h.b16 %v323
  %v936 = vunpack.c.l.b16 %v324
  %v937 = vunpack.c.h.b16 %v324
  %v938 = vunpack.c.l.b16 %v325
  %v939 = vunpack.c.h.b16 %v325
  %v940 = vunpack.c.l.b16 %v326
  %v941 = vunpack.c.h.b16 %v326
  %v942 = vunpack.c.l.b16 %v327
  %v943 = vunpack.c.h.b16 %v327
  %v944 = vunpack.c.l.b16 %v328
  %v945 = vunpack.c.h.b16 %v328
  %v946 = vunpack.c.l.b16 %v329
  %v947 = vunpack.c.h.b16 %v329
  %v948 = vunpack.c.l.b16 %v330
  %v949 = vunpack.c.h.b16 %v330
  %v950 = vunpack.c.l.b16 %v331
  %v951 = vunpack.c.h.b16 %v331
  %v952 = vunpack.c.l.b16 %v332
  %v953 = vunpack.c.h.b16 %v332
  %v954 = vunpack.c.l.b16 %v333
  %v955 = vunpack.c.h.b16 %v333
  %v956 = vunpack.c.l.b16 %v334
  %v957 = vunpack.c.h.b16 %v334
  %v958 = vunpack.c.l.b16 %v335
  %v959 = vunpack.c.h.b16 %v335
  %v960 = vunpack.c.l.b16 %v336
  %v961 = vunpack.c.h.b16 %v336
  %v962 = vunpack.c.l.b16 %v337
  %v963 = vunpack.c.h.b16 %v337
  %v964 = vunpack.c.l.b16 %v338
  %v965 = vunpack.c.h.b16 %v338
  %v966 = vunpack.c.l.b16 %v339
  %v967 = vunpack.c.h.b16 %v339
  %v968 = vunpack.c.l.b16 %v340
  %v969 = vunpack.c.h.b16 %v340
  %v970 = vunpack.c.l.b16 %v341
  %v971 = vunpack.c.h.b16 %v341
  %v972 = vunpack.c.l.b16 %v342
  %v973 = vunpack.c.h.b16 %v342
  %v974 = vunpack.c.l.b16 %v343
  %v975 = vunpack.c.h.b16 %v343
  %v976 = vunpack.c.l.b16 %v344
  %v977 = vunpack.c.h.b16 %v344
  %v978 = vunpack.c.l.b16 %v345
  %v979 = vunpack.c.h.b16 %v345
  %v980 = vunpack.c.l.b16 %v346
  %v981 = vunpack.c.h.b16 %v346
  %v982 = vunpack.c.l.b16 %v347
  %v983 = vunpack.c.h.b16 %v347
  %v984 = vunpack.c.l.b16 %v348
  %v985 = vunpack.c.h.b16 %v348
  %v986 = vunpack.c.l.b16 %v349
  %v987 = vunpack.c.h.b16 %v349
  %v988 = vunpack.c.l.b16 %v350
  %v989 = vunpack.c.h.b16 %v350
  %v990 = vunpack.c.l.b16 %v351
  %v991 = vunpack.c.h.b16 %v351
  %v992 = vunpack.c.l.b16 %v352
  %v993 = vunpack.c.h.b16 %v352
  %v994 = vunpack.c.l.b16 %v353
  %v995 = vunpack.c.h.b16 %v353
  %v996 = vunpack.c.l.b16 %v354
  %v997 = vunpack.c.h.b16 %v354
  %v998 = vunpack.c.l.b16 %v355
  %v999 = vunpack.c.h.b16 %v355
  %v1000 = vunpack.c.l.b16 %v356
  %v1001 = vunpack.c.h.b16 %v356
  %v1002 = vunpack.c.l.b16 %v357
  %v1003 = vunpack.c.h.b16 %v357
  %v1004 = vunpack.c.l.b16 %v358
  %v1005 = vunpack.c.h.b16 %v358
  %v1006 = vunpack.c.l.b16 %v359
  %v1007 = vunpack.c.h.b16 %v359
  %v1008 = vunpack.c.l.b16 %v360
  %v1009 = vunpack.c.h.b16 %v360
  %v1010 = vunpack.c.l.b16 %v361
  %v1011 = vunpack.c.h.b16 %v361
  %v1012 = vunpack.c.l.b16 %v362
  %v1013 = vunpack.c.h.b16 %v362
  %v1014 = vunpack.c.l.b16 %v363
  %v1015 = vunpack.c.h.b16 %v363
  %v1016 = vunpack.c.l.b16 %v364
  %v1017 = vunpack.c.h.b16 %v364
  %v1018 = vunpack.c.l.b16 %v365
  %v1019 = vunpack.c.h.b16 %v365
  %v1020 = vunpack.c.l.b16 %v366
  %v1021 = vunpack.c.h.b16 %v366
  %v1022 = vunpack.c.l.b16 %v367
  %v1023 = vunpack.c.h.b16 %v367
  %v1024 = vunpack.c.l.b16 %v368
  %v1025 = vunpack.c.h.b16 %v368
  %v1026 = vunpack.c.l.b16 %v369
  %v1027 = vunpack.c.h.b16 %v369
  %v1028 = vunpack.c.l.b16 %v370
  %v1029 = vunpack.c.h.b16 %v370
  %v1030 = vunpack.c.l.b16 %v371
  %v1031 = vunpack.c.h.b16 %v371
  %v1032 = vunpack.c.l.b16 %v372
  %v1033 = vunpack.c.h.b16 %v372
  %v1034 = vunpack.c.l.b16 %v373
  %v1035 = vunpack.c.h.b16 %v373
  %v1036 = vunpack.c.l.b16 %v374
  %v1037 = vunpack.c.h.b16 %v374
  %v1038 = vunpack.c.l.b16 %v375
  %v1039 = vunpack.c.h.b16 %v375
  %v1040 = vunpack.c.l.b16 %v376
  %v1041 = vunpack.c.h.b16 %v376
  %v1042 = vunpack.c.l.b16 %v377
  %v1043 = vunpack.c.h.b16 %v377
  %v1044 = vunpack.c.l.b16 %v378
  %v1045 = vunpack.c.h.b16 %v378
  %v1046 = vunpack.c.l.b16 %v379
  %v1047 = vunpack.c.h.b16 %v379
  %v1048 = vunpack.c.l.b16 %v380
  %v1049 = vunpack.c.h.b16 %v380
  %v1050 = vunpack.c.l.b16 %v381
  %v1051 = vunpack.c.h.b16 %v381
  %v1052 = vunpack.c.l.b16 %v382
  %v1053 = vunpack.c.h.b16 %v382
  %v1054 = vunpack.c.l.b16 %v383
  %v1055 = vunpack.c.h.b16 %v383
  %v1056 = vunpack.c.l.b16 %v384
  %v1057 = vunpack.c.h.b16 %v384
  %v1058 = vunpack.c.l.b16 %v385
  %v1059 = vunpack.c.h.b16 %v385
  %v1060 = vunpack.c.l.b16 %v386
  %v1061 = vunpack.c.h.b16 %v386
  %v1062 = vunpack.c.l.b16 %v387
  %v1063 = vunpack.c.h.b16 %v387
  %v1064 = vunpack.c.l.b16 %v388
  %v1065 = vunpack.c.h.b16 %v388
  %v1066 = vunpack.c.l.b16 %v389
  %v1067 = vunpack.c.h.b16 %v389
  %v1068 = vunpack.c.l.b16 %v390
  %v1069 = vunpack.c.h.b16 %v390
  %v1070 = vunpack.c.l.b16 %v391
  %v1071 = vunpack.c.h.b16 %v391
  %v1072 = vunpack.c.l.b16 %v392
  %v1073 = vunpack.c.h.b16 %v392
  %v1074 = vunpack.c.l.b16 %v393
  %v1075 = vunpack.c.h.b16 %v393
  %v1076 = vunpack.c.l.b16 %v394
  %v1077 = vunpack.c.h.b16 %v394
  %v1078 = vunpack.c.l.b16 %v395
  %v1079 = vunpack.c.h.b16 %v395
  %v1080 = vunpack.c.l.b16 %v396
  %v1081 = vunpack.c.h.b16 %v396
  %v1082 = vunpack.c.l.b16 %v397
  %v1083 = vunpack.c.h.b16 %v397
  %v1084 = vunpack.c.l.b16 %v398
  %v1085 = vunpack.c.h.b16 %v398
  %v1086 = vunpack.c.l.b16 %v399
  %v1087 = vunpack.c.h.b16 %v399
  %v1088 = vunpack.c.l.b16 %v400
  %v1089 = vunpack.c.h.b16 %v400
  %v1090 = vunpack.c.l.b16 %v401
  %v1091 = vunpack.c.h.b16 %v401
  %v1092 = vunpack.c.l.b16 %v402
  %v1093 = vunpack.c.h.b16 %v402
  %v1094 = vunpack.c.l.b16 %v403
  %v1095 = vunpack.c.h.b16 %v403
  %v1096 = vunpack.c.l.b16 %v404
  %v1097 = vunpack.c.h.b16 %v404
  %v1098 = vunpack.c.l.b16 %v405
  %v1099 = vunpack.c.h.b16 %v405
  %v1100 = vunpack.c.l.b16 %v406
  %v1101 = vunpack.c.h.b16 %v406
  %v1102 = vunpack.c.l.b16 %v407
  %v1103 = vunpack.c.h.b16 %v407
  %v1104 = vunpack.c.l.b16 %v408
  %v1105 = vunpack.c.h.b16 %v408
  %v1106 = vunpack.c.l.b16 %v409
  %v1107 = vunpack.c.h.b16 %v409
  %v1108 = vunpack.c.l.b16 %v410
  %v1109 = vunpack.c.h.b16 %v410
  %v1110 = vunpack.c.l.b16 %v411
  %v1111 = vunpack.c.h.b16 %v411
  %v1112 = vunpack.c.l.b16 %v412
  %v1113 = vunpack.c.h.b16 %v412
  %v1114 = vunpack.c.l.b16 %v413
  %v1115 = vunpack.c.h.b16 %v413
  %v1116 = vunpack.c.l.b16 %v414
  %v1117 = vunpack.c.h.b16 %v414
  %v1118 = vunpack.c.l.b16 %v415
  %v1119 = vunpack.c.h.b16 %v415
  %v1120 = vunpack.c.l.b16 %v416
  %v1121 = vunpack.c.h.b16 %v416
  %v1122 = vunpack.c.l.b16 %v417
  %v1123 = vunpack.c.h.b16 %v417
  %v1124 = vunpack.c.l.b16 %v418
  %v1125 = vunpack.c.h.b16 %v418
  %v1126 = vunpack.c.l.b16 %v419
  %v1127 = vunpack.c.h.b16 %v419
  %v1128 = vunpack.c.l.b16 %v420
  %v1129 = vunpack.c.h.b16 %v420
  %v1130 = vunpack.c.l.b16 %v421
  %v1131 = vunpack.c.h.b16 %v421
  %v1132 = vunpack.c.l.b16 %v422
  %v1133 = vunpack.c.h.b16 %v422
  %v1134 = vunpack.c.l.b16 %v423
  %v1135 = vunpack.c.h.b16 %v423
  %v1136 = vunpack.c.l.b16 %v424
  %v1137 = vunpack.c.h.b16 %v424
  %v1138 = vunpack.c.l.b16 %v425
  %v1139 = vunpack.c.h.b16 %v425
  %v1140 = vunpack.c.l.b16 %v426
  %v1141 = vunpack.c.h.b16 %v426
  %v1142 = vunpack.c.l.b16 %v427
  %v1143 = vunpack.c.h.b16 %v427
  %v1144 = vunpack.c.l.b16 %v428
  %v1145 = vunpack.c.h.b16 %v428
  %v1146 = vunpack.c.l.b16 %v429
  %v1147 = vunpack.c.h.b16 %v429
  %v1148 = vunpack.c.l.b16 %v430
  %v1149 = vunpack.c.h.b16 %v430
  %v1150 = vunpack.c.l.b16 %v431
  %v1151 = vunpack.c.h.b16 %v431
  %v1152 = vunpack.c.l.b16 %v432
  %v1153 = vunpack.c.h.b16 %v432
  %v1154 = vunpack.c.l.b16 %v433
  %v1155 = vunpack.c.h.b16 %v433
  %v1156 = vunpack.c.l.b16 %v434
  %v1157 = vunpack.c.h.b16 %v434
  %v1158 = vunpack.c.l.b16 %v435
  %v1159 = vunpack.c.h.b16 %v435
  %v1160 = vunpack.c.l.b16 %v436
  %v1161 = vunpack.c.h.b16 %v436
  %v1162 = vunpack.c.l.b16 %v437
  %v1163 = vunpack.c.h.b16 %v437
  %v1164 = vunpack.c.l.b16 %v438
  %v1165 = vunpack.c.h.b16 %v438
  %v1166 = vunpack.c.l.b16 %v439
  %v1167 = vunpack.c.h.b16 %v439
  %v1168 = vunpack.c.l.b16 %v440
  %v1169 = vunpack.c.h.b16 %v440
  %v1170 = vunpack.c.l.b16 %v441
  %v1171 = vunpack.c.h.b16 %v441
  %v1172 = vunpack.c.l.b16 %v442
  %v1173 = vunpack.c.h.b16 %v442
  %v1174 = vunpack.c.l.b16 %v443
  %v1175 = vunpack.c.h.b16 %v443
  %v1176 = vunpack.c.l.b16 %v444
  %v1177 = vunpack.c.h.b16 %v444
  %v1178 = vunpack.c.l.b16 %v445
  %v1179 = vunpack.c.h.b16 %v445
  %v1180 = vunpack.c.l.b16 %v446
  %v1181 = vunpack.c.h.b16 %v446
  %v1182 = vunpack.c.l.b16 %v447
  %v1183 = vunpack.c.h.b16 %v447
  %v1184 = vunpack.c.l.b16 %v448
  %v1185 = vunpack.c.h.b16 %v448
  %v1186 = vunpack.c.l.b16 %v449
  %v1187 = vunpack.c.h.b16 %v449
  %v1188 = vunpack.c.l.b16 %v450
  %v1189 = vunpack.c.h.b16 %v450
  %v1190 = vunpack.c.l.b16 %v451
  %v1191 = vunpack.c.h.b16 %v451
  %v1192 = vunpack.c.l.b16 %v452
  %v1193 = vunpack.c.h.b16 %v452
  %v1194 = vunpack.c.l.b16 %v453
  %v1195 = vunpack.c.h.b16 %v453
  %v1196 = vunpack.c.l.b16 %v454
  %v1197 = vunpack.c.h.b16 %v454
  %v1198 = vunpack.c.l.b16 %v455
  %v1199 = vunpack.c.h.b16 %v455
  %v1200 = vunpack.c.l.b16 %v456
  %v1201 = vunpack.c.h.b16 %v456
  %v1202 = vunpack.c.l.b16 %v457
  %v1203 = vunpack.c.h.b16 %v457
  %v1204 = vunpack.c.l.b16 %v458
  %v1205 = vunpack.c.h.b16 %v458
  %v1206 = vunpack.c.l.b16 %v459
  %v1207 = vunpack.c.h.b16 %v459
  %v1208 = vunpack.c.l.b16 %v460
  %v1209 = vunpack.c.h.b16 %v460
  %v1210 = vunpack.c.l.b16 %v461
  %v1211 = vunpack.c.h.b16 %v461
  %v1212 = vunpack.c.l.b16 %v462
  %v1213 = vunpack.c.h.b16 %v462
  %v1214 = vunpack.c.l.b16 %v463
  %v1215 = vunpack.c.h.b16 %v463
  %v1216 = vunpack.c.l.b16 %v464
  %v1217 = vunpack.c.h.b16 %v464
  %v1218 = vunpack.c.l.b16 %v465
  %v1219 = vunpack.c.h.b16 %v465
  %v1220 = vunpack.c.l.b16 %v466
  %v1221 = vunpack.c.h.b16 %v466
  %v1222 = vunpack.c.l.b16 %v467
  %v1223 = vunpack.c.h.b16 %v467
  %v1224 = vunpack.c.l.b16 %v468
  %v1225 = vunpack.c.h.b16 %v468
  %v1226 = vunpack.c.l.b16 %v469
  %v1227 = vunpack.c.h.b16 %v469
  %v1228 = vunpack.c.l.b16 %v470
  %v1229 = vunpack.c.h.b16 %v470
  %v1230 = vunpack.c.l.b16 %v471
  %v1231 = vunpack.c.h.b16 %v471
  %v1232 = vunpack.c.l.b16 %v472
  %v1233 = vunpack.c.h.b16 %v472
  %v1234 = vunpack.c.l.b16 %v473
  %v1235 = vunpack.c.h.b16 %v473
  %v1236 = vunpack.c.l.b16 %v474
  %v1237 = vunpack.c.h.b16 %v474
  %v1238 = vunpack.c.l.b16 %v475
  %v1239 = vunpack.c.h.b16 %v475
  %v1240 = vunpack.c.l.b16 %v476
  %v1241 = vunpack.c.h.b16 %v476
  %v1242 = vunpack.c.l.b16 %v477
  %v1243 = vunpack.c.h.b16 %v477
  %v1244 = vunpack.c.l.b16 %v478
  %v1245 = vunpack.c.h.b16 %v478
  %v1246 = vunpack.c.l.b16 %v479
  %v1247 = vunpack.c.h.b16 %v479
  %v1248 = vunpack.c.l.b16 %v480
  %v1249 = vunpack.c.h.b16 %v480
  %v1250 = vunpack.c.l.b16 %v481
  %v1251 = vunpack.c.h.b16 %v481
  %v1252 = vunpack.c.l.b16 %v482
  %v1253 = vunpack.c.h.b16 %v482
  %v1254 = vunpack.c.l.b16 %v483
  %v1255 = vunpack.c.h.b16 %v483
  %v1256 = vunpack.c.l.b16 %v484
  %v1257 = vunpack.c.h.b16 %v484
  %v1258 = vunpack.c.l.b16 %v485
  %v1259 = vunpack.c.h.b16 %v485
  %v1260 = vunpack.c.l.b16 %v486
  %v1261 = vunpack.c.h.b16 %v486
  %v1262 = vunpack.c.l.b16 %v487
  %v1263 = vunpack.c.h.b16 %v487
  %v1264 = vunpack.c.l.b16 %v488
  %v1265 = vunpack.c.h.b16 %v488
  %v1266 = vunpack.c.l.b16 %v489
  %v1267 = vunpack.c.h.b16 %v489
  %v1268 = vunpack.c.l.b16 %v490
  %v1269 = vunpack.c.h.b16 %v490
  %v1270 = vunpack.c.l.b16 %v491
  %v1271 = vunpack.c.h.b16 %v491
  %v1272 = vunpack.c.l.b16 %v492
  %v1273 = vunpack.c.h.b16 %v492
  %v1274 = vunpack.c.l.b16 %v493
  %v1275 = vunpack.c.h.b16 %v493
  %v1276 = vunpack.c.l.b16 %v494
  %v1277 = vunpack.c.h.b16 %v494
  %v1278 = vunpack.c.l.b16 %v495
  %v1279 = vunpack.c.h.b16 %v495
  %v1280 = vunpack.c.l.b16 %v496
  %v1281 = vunpack.c.h.b16 %v496
  %v1282 = vunpack.c.l.b16 %v497
  %v1283 = vunpack.c.h.b16 %v497
  %v1284 = vunpack.c.l.b16 %v498
  %v1285 = vunpack.c.h.b16 %v498
  %v1286 = vunpack.c.l.b16 %v499
  %v1287 = vunpack.c.h.b16 %v499
  %v1288 = vunpack.c.l.b16 %v500
  %v1289 = vunpack.c.h.b16 %v500
  %v1290 = vunpack.c.l.b16 %v501
  %v1291 = vunpack.c.h.b16 %v501
  %v1292 = vunpack.c.l.b16 %v502
  %v1293 = vunpack.c.h.b16 %v502
  %v1294 = vunpack.c.l.b16 %v503
  %v1295 = vunpack.c.h.b16 %v503
  %v1296 = vunpack.c.l.b16 %v504
  %v1297 = vunpack.c.h.b16 %v504
  %v1298 = vunpack.c.l.b16 %v505
  %v1299 = vunpack.c.h.b16 %v505
  %v1300 = vunpack.c.l.b16 %v506
  %v1301 = vunpack.c.h.b16 %v506
  %v1302 = vunpack.c.l.b16 %v507
  %v1303 = vunpack.c.h.b16 %v507
  %v1304 = vunpack.c.l.b16 %v508
  %v1305 = vunpack.c.h.b16 %v508
  %v1306 = vunpack.c.l.b16 %v509
  %v1307 = vunpack.c.h.b16 %v509
  %v1308 = vunpack.c.l.b16 %v510
  %v1309 = vunpack.c.h.b16 %v510
  %v1310 = vunpack.c.l.b16 %v511
  %v1311 = vunpack.c.h.b16 %v511
  %v1312 = vunpack.c.l.b16 %v512
  %v1313 = vunpack.c.h.b16 %v512
  %v1314 = vunpack.c.l.b16 %v513
  %v1315 = vunpack.c.h.b16 %v513
  %v1316 = vunpack.c.l.b16 %v514
  %v1317 = vunpack.c.h.b16 %v514
  %v1318 = vunpack.c.l.b16 %v515
  %v1319 = vunpack.c.h.b16 %v515
  %v1320 = vunpack.c.l.b16 %v516
  %v1321 = vunpack.c.h.b16 %v516
  %v1322 = vunpack.c.l.b16 %v517
  %v1323 = vunpack.c.h.b16 %v517
  %v1324 = vunpack.c.l.b16 %v518
  %v1325 = vunpack.c.h.b16 %v518
  %v1326 = vunpack.c.l.b16 %v519
  %v1327 = vunpack.c.h.b16 %v519
  %v1328 = vunpack.c.l.b16 %v520
  %v1329 = vunpack.c.h.b16 %v520
  %v1330 = vunpack.c.l.b16 %v521
  %v1331 = vunpack.c.h.b16 %v521
  %v1332 = vunpack.c.l.b16 %v522
  %v1333 = vunpack.c.h.b16 %v522
  %v1334 = vunpack.c.l.b16 %v523
  %v1335 = vunpack.c.h.b16 %v523
  %v1336 = vunpack.c.l.b16 %v524
  %v1337 = vunpack.c.h.b16 %v524
  %v1338 = vunpack.c.l.b16 %v525
  %v1339 = vunpack.c.h.b16 %v525
  %v1340 = vunpack.c.l.b16 %v526
  %v1341 = vunpack.c.h.b16 %v526
  %v1342 = vunpack.c.l.b16 %v527
  %v1343 = vunpack.c.h.b16 %v527
  %v1344 = vunpack.c.l.b16 %v528
  %v1345 = vunpack.c.h.b16 %v528
  %v1346 = vunpack.c.l.b16 %v529
  %v1347 = vunpack.c.h.b16 %v529
  %v1348 = vunpack.c.l.b16 %v530
  %v1349 = vunpack.c.h.b16 %v530
  %v1350 = vunpack.c.l.b16 %v531
  %v1351 = vunpack.c.h.b16 %v531
  %v1352 = vunpack.c.l.b16 %v532
  %v1353 = vunpack.c.h.b16 %v532
  %v1354 = vunpack.c.l.b16 %v533
  %v1355 = vunpack.c.h.b16 %v533
  %v1356 = vunpack.c.l.b16 %v534
  %v1357 = vunpack.c.h.b16 %v534
  %v1358 = vunpack.c.l.b16 %v535
  %v1359 = vunpack.c.h.b16 %v535
  %v1360 = vunpack.c.l.b16 %v536
  %v1361 = vunpack.c.h.b16 %v536
  %v1362 = vunpack.c.l.b16 %v537
  %v1363 = vunpack.c.h.b16 %v537
  %v1364 = vunpack.c.l.b16 %v538
  %v1365 = vunpack.c.h.b16 %v538
  %v1366 = vunpack.c.l.b16 %v539
  %v1367 = vunpack.c.h.b16 %v539
  %v1368 = vunpack.c.l.b16 %v540
  %v1369 = vunpack.c.h.b16 %v540
  %v1370 = vunpack.c.l.b16 %v541
  %v1371 = vunpack.c.h.b16 %v541
  %v1372 = vunpack.c.l.b16 %v542
  %v1373 = vunpack.c.h.b16 %v542
  %v1374 = vunpack.c.l.b16 %v543
  %v1375 = vunpack.c.h.b16 %v543
  %v1376 = vpack.c.b16 %v868, %v864
  %v1377 = vpack.c.b16 %v869, %v865
  %v1378 = vpack.c.b16 %v870, %v866
  %v1379 = vpack.c.b16 %v871, %v867
  %v1380 = vpack.c.b16 %v876, %v872
  %v1381 = vpack.c.b16 %v877, %v873
  %v1382 = vpack.c.b16 %v878, %v874
  %v1383 = vpack.c.b16 %v879, %v875
  %v1384 = vpack.c.b16 %v884, %v880
  %v1385 = vpack.c.b16 %v885, %v881
  %v1386 = vpack.c.b16 %v886, %v882
  %v1387 = vpack.c.b16 %v887, %v883
  %v1388 = vpack.c.b16 %v892, %v888
  %v1389 = vpack.c.b16 %v893, %v889
  %v1390 = vpack.c.b16 %v894, %v890
  %v1391 = vpack.c.b16 %v895, %v891
  %v1392 = vpack.c.b16 %v900, %v896
  %v1393 = vpack.c.b16 %v901, %v897
  %v1394 = vpack.c.b16 %v902, %v898
  %v1395 = vpack.c.b16 %v903, %v899
  %v1396 = vpack.c.b16 %v908, %v904
  %v1397 = vpack.c.b16 %v909, %v905
  %v1398 = vpack.c.b16 %v910, %v906
  %v1399 = vpack.c.b16 %v911, %v907
  %v1400 = vpack.c.b16 %v916, %v912
  %v1401 = vpack.c.b16 %v917, %v913
  %v1402 = vpack.c.b16 %v918, %v914
  %v1403 = vpack.c.b16 %v919, %v915
  %v1404 = vpack.c.b16 %v924, %v920
  %v1405 = vpack.c.b16 %v925, %v921
  %v1406 = vpack.c.b16 %v926, %v922
  %v1407 = vpack.c.b16 %v927, %v923
  %v1408 = vpack.c.b16 %v932, %v928
  %v1409 = vpack.c.b16 %v933, %v929
  %v1410 = vpack.c.b16 %v934, %v930
  %v1411 = vpack.c.b16 %v935, %v931
  %v1412 = vpack.c.b16 %v940, %v936
  %v1413 = vpack.c.b16 %v941, %v937
  %v1414 = vpack.c.b16 %v942, %v938
  %v1415 = vpack.c.b16 %v943, %v939
  %v1416 = vpack.c.b16 %v948, %v944
  %v1417 = vpack.c.b16 %v949, %v945
  %v1418 = vpack.c.b16 %v950, %v946
  %v1419 = vpack.c.b16 %v951, %v947
  %v1420 = vpack.c.b16 %v956, %v952
  %v1421 = vpack.c.b16 %v957, %v953
  %v1422 = vpack.c.b16 %v958, %v954
  %v1423 = vpack.c.b16 %v959, %v955
  %v1424 = vpack.c.b16 %v964, %v960
  %v1425 = vpack.c.b16 %v965, %v961
  %v1426 = vpack.c.b16 %v966, %v962
  %v1427 = vpack.c.b16 %v967, %v963
  %v1428 = vpack.c.b16 %v972, %v968
  %v1429 = vpack.c.b16 %v973, %v969
  %v1430 = vpack.c.b16 %v974, %v970
  %v1431 = vpack.c.b16 %v975, %v971
  %v1432 = vpack.c.b16 %v980, %v976
  %v1433 = vpack.c.b16 %v981, %v977
  %v1434 = vpack.c.b16 %v982, %v978
  %v1435 = vpack.c.b16 %v983, %v979
  %v1436 = vpack.c.b16 %v988, %v984
  %v1437 = vpack.c.b16 %v989, %v985
  %v1438 = vpack.c.b16 %v990, %v986
  %v1439 = vpack.c.b16 %v991, %v987
  %v1440 = vpack.c.b16 %v996, %v992
  %v1441 = vpack.c.b16 %v997, %v993
  %v1442 = vpack.c.b16 %v998, %v994
  %v1443 = vpack.c.b16 %v999, %v995
  %v1444 = vpack.c.b16 %v1004, %v1000
  %v1445 = vpack.c.b16 %v1005, %v1001
  %v1446 = vpack.c.b16 %v1006, %v1002
  %v1447 = vpack.c.b16 %v1007, %v1003
  %v1448 = vpack.c.b16 %v1012, %v1008
  %v1449 = vpack.c.b16 %v1013, %v1009
  %v1450 = vpack.c.b16 %v1014, %v1010
  %v1451 = vpack.c.b16 %v1015, %v1011
  %v1452 = vpack.c.b16 %v1020, %v1016
  %v1453 = vpack.c.b16 %v1021, %v1017
  %v1454 = vpack.c.b16 %v1022, %v1018
  %v1455 = vpack.c.b16 %v1023, %v1019
  %v1456 = vpack.c.b16 %v1028, %v1024
  %v1457 = vpack.c.b16 %v1029, %v1025
  %v1458 = vpack.c.b16 %v1030, %v1026
  %v1459 = vpack.c.b16 %v1031, %v1027
  %v1460 = vpack.c.b16 %v1036, %v1032
  %v1461 = vpack.c.b16 %v1037, %v1033
  %v1462 = vpack.c.b16 %v1038, %v1034
  %v1463 = vpack.c.b16 %v1039, %v1035
  %v1464 = vpack.c.b16 %v1044, %v1040
  %v1465 = vpack.c.b16 %v1045, %v1041
  %v1466 = vpack.c.b16 %v1046, %v1042
  %v1467 = vpack.c.b16 %v1047, %v1043
  %v1468 = vpack.c.b16 %v1052, %v1048
  %v1469 = vpack.c.b16 %v1053, %v1049
  %v1470 = vpack.c.b16 %v1054, %v1050
  %v1471 = vpack.c.b16 %v1055, %v1051
  %v1472 = vpack.c.b16 %v1060, %v1056
  %v1473 = vpack.c.b16 %v1061, %v1057
  %v1474 = vpack.c.b16 %v1062, %v1058
  %v1475 = vpack.c.b16 %v1063, %v1059
  %v1476 = vpack.c.b16 %v1068, %v1064
  %v1477 = vpack.c.b16 %v1069, %v1065
  %v1478 = vpack.c.b16 %v1070, %v1066
  %v1479 = vpack.c.b16 %v1071, %v1067
  %v1480 = vpack.c.b16 %v1076, %v1072
  %v1481 = vpack.c.b16 %v1077, %v1073
  %v1482 = vpack.c.b16 %v1078, %v1074
  %v1483 = vpack.c.b16 %v1079, %v1075
  %v1484 = vpack.c.b16 %v1084, %v1080
  %v1485 = vpack.c.b16 %v1085, %v1081
  %v1486 = vpack.c.b16 %v1086, %v1082
  %v1487 = vpack.c.b16 %v1087, %v1083
  %v1488 = vpack.c.b16 %v1092, %v1088
  %v1489 = vpack.c.b16 %v1093, %v1089
  %v1490 = vpack.c.b16 %v1094, %v1090
  %v1491 = vpack.c.b16 %v1095, %v1091
  %v1492 = vpack.c.b16 %v1100, %v1096
  %v1493 = vpack.c.b16 %v1101, %v1097
  %v1494 = vpack.c.b16 %v1102, %v1098
  %v1495 = vpack.c.b16 %v1103, %v1099
  %v1496 = vpack.c.b16 %v1108, %v1104
  %v1497 = vpack.c.b16 %v1109, %v1105
  %v1498 = vpack.c.b16 %v1110, %v1106
  %v1499 = vpack.c.b16 %v1111, %v1107
  %v1500 = vpack.c.b16 %v1116, %v1112
  %v1501 = vpack.c.b16 %v1117, %v1113
  %v1502 = vpack.c.b16 %v1118, %v1114
  %v1503 = vpack.c.b16 %v1119, %v1115
  %v1504 = vpack.c.b16 %v1124, %v1120
  %v1505 = vpack.c.b16 %v1125, %v1121
  %v1506 = vpack.c.b16 %v1126, %v1122
  %v1507 = vpack.c.b16 %v1127, %v1123
  %v1508 = vpack.c.b16 %v1132, %v1128
  %v1509 = vpack.c.b16 %v1133, %v1129
  %v1510 = vpack.c.b16 %v1134, %v1130
  %v1511 = vpack.c.b16 %v1135, %v1131
  %v1512 = vpack.c.b16 %v1140, %v1136
  %v1513 = vpack.c.b16 %v1141, %v1137
  %v1514 = vpack.c.b16 %v1142, %v1138
  %v1515 = vpack.c.b16 %v1143, %v1139
  %v1516 = vpack.c.b16 %v1148, %v1144
  %v1517 = vpack.c.b16 %v1149, %v1145
  %v1518 = vpack.c.b16 %v1150, %v1146
  %v1519 = vpack.c.b16 %v1151, %v1147
  %v1520 = vpack.c.b16 %v1156, %v1152
  %v1521 = vpack.c.b16 %v1157, %v1153
  %v1522 = vpack.c.b16 %v1158, %v1154
  %v1523 = vpack.c.b16 %v1159, %v1155
  %v1524 = vpack.c.b16 %v1164, %v1160
  %v1525 = vpack.c.b16 %v1165, %v1161
  %v1526 = vpack.c.b16 %v1166, %v1162
  %v1527 = vpack.c.b16 %v1167, %v1163
  %v1528 = vpack.c.b16 %v1172, %v1168
  %v1529 = vpack.c.b16 %v1173, %v1169
  %v1530 = vpack.c.b16 %v1174, %v1170
  %v1531 = vpack.c.b16 %v1175, %v1171
  %v1532 = vpack.c.b16 %v1180, %v1176
  %v1533 = vpack.c.b16 %v1181, %v1177
  %v1534 = vpack.c.b16 %v1182, %v1178
  %v1535 = vpack.c.b16 %v1183, %v1179
  %v1536 = vpack.c.b16 %v1188, %v1184
  %v1537 = vpack.c.b16 %v1189, %v1185
  %v1538 = vpack.c.b16 %v1190, %v1186
  %v1539 = vpack.c.b16 %v1191, %v1187
  %v1540 = vpack.c.b16 %v1196, %v1192
  %v1541 = vpack.c.b16 %v1197, %v1193
  %v1542 = vpack.c.b16 %v1198, %v1194
  %v1543 = vpack.c.b16 %v1199, %v1195
  %v1544 = vpack.c.b16 %v1204, %v1200
  %v1545 = vpack.c.b16 %v1205, %v1201
  %v1546 = vpack.c.b16 %v1206, %v1202
  %v1547 = vpack.c.b16 %v1207, %v1203
  %v1548 = vpack.c.b16 %v1212, %v1208
  %v1549 = vpack.c.b16 %v1213, %v1209
  %v1550 = vpack.c.b16 %v1214, %v1210
  %v1551 = vpack.c.b16 %v1215, %v1211
  %v1552 = vpack.c.b16 %v1220, %v1216
  %v1553 = vpack.c.b16 %v1221, %v1217
  %v1554 = vpack.c.b16 %v1222, %v1218
  %v1555 = vpack.c.b16 %v1223, %v1219
  %v1556 = vpack.c.b16 %v1228, %v1224
  %v1557 = vpack.c.b16 %v1229, %v1225
  %v1558 = vpack.c.b16 %v1230, %v1226
  %v1559 = vpack.c.b16 %v1231, %v1227
  %v1560 = vpack.c.b16 %v1236, %v1232
  %v1561 = vpack.c.b16 %v1237, %v1233
  %v1562 = vpack.c.b16 %v1238, %v1234
  %v1563 = vpack.c.b16 %v1239, %v1235
  %v1564 = vpack.c.b16 %v1244, %v1240
  %v1565 = vpack.c.b16 %v1245, %v1241
  %v1566 = vpack.c.b16 %v1246, %v1242
  %v1567 = vpack.c.b16 %v1247, %v1243
  %v1568 = vpack.c.b16 %v1252, %v1248
  %v1569 = vpack.c.b16 %v1253, %v1249
  %v1570 = vpack.c.b16 %v1254, %v1250
  %v1571 = vpack.c.b16 %v1255, %v1251
  %v1572 = vpack.c.b16 %v1260, %v1256
  %v1573 = vpack.c.b16 %v1261, %v1257
  %v1574 = vpack.c.b16 %v1262, %v1258
  %v1575 = vpack.c.b16 %v1263, %v1259
  %v1576 = vpack.c.b16 %v1268, %v1264
  %v1577 = vpack.c.b16 %v1269, %v1265
  %v1578 = vpack.c.b16 %v1270, %v1266
  %v1579 = vpack.c.b16 %v1271, %v1267
  %v1580 = vpack.c.b16 %v1276, %v1272
  %v1581 = vpack.c.b16 %v1277, %v1273
  %v1582 = vpack.c.b16 %v1278, %v1274
  %v1583 = vpack.c.b16 %v1279, %v1275
  %v1584 = vpack.c.b16 %v1284, %v1280
  %v1585 = vpack.c.b16 %v1285, %v1281
  %v1586 = vpack.c.b16 %v1286, %v1282
  %v1587 = vpack.c.b16 %v1287, %v1283
  %v1588 = vpack.c.b16 %v1292, %v1288
  %v1589 = vpack.c.b16 %v1293, %v1289
  %v1590 = vpack.c.b16 %v1294, %v1290
  %v1591 = vpack.c.b16 %v1295, %v1291
  %v1592 = vpack.c.b16 %v1300, %v1296
  %v1593 = vpack.c.b16 %v1301, %v1297
  %v1594 = vpack.c.b16 %v1302, %v1298
  %v1595 = vpack.c.b16 %v1303, %v1299
  %v1596 = vpack.c.b16 %v1308, %v1304
  %v1597 = vpack.c.b16 %v1309, %v1305
  %v1598 = vpack.c.b16 %v1310, %v1306
  %v1599 = vpack.c.b16 %v1311, %v1307
  %v1600 = vpack.c.b16 %v1316, %v1312
  %v1601 = vpack.c.b16 %v1317, %v1313
  %v1602 = vpack.c.b16 %v1318, %v1314
  %v1603 = vpack.c.b16 %v1319, %v1315
  %v1604 = vpack.c.b16 %v1324, %v1320
  %v1605 = vpack.c.b16 %v1325, %v1321
  %v1606 = vpack.c.b16 %v1326, %v1322
  %v1607 = vpack.c.b16 %v1327, %v1323
  %v1608 = vpack.c.b16 %v1332, %v1328
  %v1609 = vpack.c.b16 %v1333, %v1329
  %v1610 = vpack.c.b16 %v1334, %v1330
  %v1611 = vpack.c.b16 %v1335, %v1331
  %v1612 = vpack.c.b16 %v1340, %v1336
  %v1613 = vpack.c.b16 %v1341, %v1337
  %v1614 = vpack.c.b16 %v1342, %v1338
  %v1615 = vpack.c.b16 %v1343, %v1339
  %v1616 = vpack.c.b16 %v1348, %v1344
  %v1617 = vpack.c.b16 %v1349, %v1345
  %v1618 = vpack.c.b16 %v1350, %v1346
  %v1619 = vpack.c.b16 %v1351, %v1347
  %v1620 = vpack.c.b16 %v1356, %v1352
  %v1621 = vpack.c.b16 %v1357, %v1353
  %v1622 = vpack.c.b16 %v1358, %v1354
  %v1623 = vpack.c.b16 %v1359, %v1355
  %v1624 = vpack.c.b16 %v1364, %v1360
  %v1625 = vpack.c.b16 %v1365, %v1361
  %v1626 = vpack.c.b16 %v1366, %v1362
  %v1627 = vpack.c.b16 %v1367, %v1363
  %v1628 = vpack.c.b16 %v1372, %v1368
  %v1629 = vpack.c.b16 %v1373, %v1369
  %v1630 = vpack.c.b16 %v1374, %v1370
  %v1631 = vpack.c.b16 %v1375, %v1371
  %v1952 = vunpack.c.l.b16 %v544
  %v1953 = vunpack.c.l.b16 %v545
  %v1954 = vunpack.c.l.b16 %v546
  %v1955 = vunpack.c.l.b16 %v547
  %v1956 = vunpack.c.l.b16 %v548
  %v1957 = vunpack.c.l.b16 %v549
  %v1958 = vunpack.c.l.b16 %v550
  %v1959 = vunpack.c.l.b16 %v551
  %v1960 = vunpack.c.l.b16 %v552
  %v1961 = vunpack.c.l.b16 %v553
  %v1962 = vunpack.c.l.b16 %v554
  %v1963 = vunpack.c.l.b16 %v555
  %v1964 = vunpack.c.l.b16 %v556
  %v1965 = vunpack.c.l.b16 %v557
  %v1966 = vunpack.c.l.b16 %v558
  %v1967 = vunpack.c.l.b16 %v559
  %v1968 = vunpack.c.l.b16 %v560
  %v1969 = vunpack.c.l.b16 %v561
  %v1970 = vunpack.c.l.b16 %v562
  %v1971 = vunpack.c.l.b16 %v563
  %v1972 = vunpack.c.l.b16 %v564
  %v1973 = vunpack.c.l.b16 %v565
  %v1974 = vunpack.c.l.b16 %v566
  %v1975 = vunpack.c.l.b16 %v567
  %v1976 = vunpack.c.l.b16 %v568
  %v1977 = vunpack.c.l.b16 %v569
  %v1978 = vunpack.c.l.b16 %v570
  %v1979 = vunpack.c.l.b16 %v571
  %v1980 = vunpack.c.l.b16 %v572
  %v1981 = vunpack.c.l.b16 %v573
  %v1982 = vunpack.c.l.b16 %v574
  %v1983 = vunpack.c.l.b16 %v575
  %v1984 = vunpack.c.l.b16 %v576
  %v1985 = vunpack.c.l.b16 %v577
  %v1986 = vunpack.c.l.b16 %v578
  %v1987 = vunpack.c.l.b16 %v579
  %v1988 = vunpack.c.l.b16 %v580
  %v1989 = vunpack.c.l.b16 %v581
  %v1990 = vunpack.c.l.b16 %v582
  %v1991 = vunpack.c.l.b16 %v583
  %v1992 = vunpack.c.l.b16 %v584
  %v1993 = vunpack.c.l.b16 %v585
  %v1994 = vunpack.c.l.b16 %v586
  %v1995 = vunpack.c.l.b16 %v587
  %v1996 = vunpack.c.l.b16 %v588
  %v1997 = vunpack.c.l.b16 %v589
  %v1998 = vunpack.c.l.b16 %v590
  %v1999 = vunpack.c.l.b16 %v591
  %v2000 = vunpack.c.l.b16 %v592
  %v2001 = vunpack.c.l.b16 %v593
  %v2002 = vunpack.c.l.b16 %v594
  %v2003 = vunpack.c.l.b16 %v595
  %v2004 = vunpack.c.l.b16 %v596
  %v2005 = vunpack.c.l.b16 %v597
  %v2006 = vunpack.c.l.b16 %v598
  %v2007 = vunpack.c.l.b16 %v599
  %v2008 = vunpack.c.l.b16 %v600
  %v2009 = vunpack.c.l.b16 %v601
  %v2010 = vunpack.c.l.b16 %v602
  %v2011 = vunpack.c.l.b16 %v603
  %v2012 = vunpack.c.l.b16 %v604
  %v2013 = vunpack.c.l.b16 %v605
  %v2014 = vunpack.c.l.b16 %v606
  %v2015 = vunpack.c.l.b16 %v607
  %v2016 = vpack.c.b16 %v1953, %v1952
  %v2017 = vpack.c.b16 %v1955, %v1954
  %v2018 = vpack.c.b16 %v1957, %v1956
  %v2019 = vpack.c.b16 %v1959, %v1958
  %v2020 = vpack.c.b16 %v1961, %v1960
  %v2021 = vpack.c.b16 %v1963, %v1962
  %v2022 = vpack.c.b16 %v1965, %v1964
  %v2023 = vpack.c.b16 %v1967, %v1966
  %v2024 = vpack.c.b16 %v1969, %v1968
  %v2025 = vpack.c.b16 %v1971, %v1970
  %v2026 = vpack.c.b16 %v1973, %v1972
  %v2027 = vpack.c.b16 %v1975, %v1974
  %v2028 = vpack.c.b16 %v1977, %v1976
  %v2029 = vpack.c.b16 %v1979, %v1978
  %v2030 = vpack.c.b16 %v1981, %v1980
  %v2031 = vpack.c.b16 %v1983, %v1982
  %v2032 = vpack.c.b16 %v1985, %v1984
  %v2033 = vpack.c.b16 %v1987, %v1986
  %v2034 = vpack.c.b16 %v1989, %v1988
  %v2035 = vpack.c.b16 %v1991, %v1990
  %v2036 = vpack.c.b16 %v1993, %v1992
  %v2037 = vpack.c.b16 %v1995, %v1994
  %v2038 = vpack.c.b16 %v1997, %v1996
  %v2039 = vpack.c.b16 %v1999, %v1998
  %v2040 = vpack.c.b16 %v2001, %v2000
  %v2041 = vpack.c.b16 %v2003, %v2002
  %v2042 = vpack.c.b16 %v2005, %v2004
  %v2043 = vpack.c.b16 %v2007, %v2006
  %v2044 = vpack.c.b16 %v2009, %v2008
  %v2045 = vpack.c.b16 %v2011, %v2010
  %v2046 = vpack.c.b16 %v2013, %v2012
  %v2047 = vpack.c.b16 %v2015, %v2014
  %2080 = vmatprep.subr.bf16.mxu0 0
  %2081 = vmatpush1.bf16.msra.mxu0 %v2023
  %2082 = vmatprep.subr.bf16.mxu0 0
  %2083 = vmatpush1.bf16.msra.mxu0 %v2022
  %2084 = vmatprep.subr.bf16.mxu0 0
  %2085 = vmatpush1.bf16.msra.mxu0 %v2021
  %2086 = vmatprep.subr.bf16.mxu0 0
  %2087 = vmatpush1.bf16.msra.mxu0 %v2020
  %2088 = vmatprep.subr.bf16.mxu0 0
  %2089 = vmatpush1.bf16.msra.mxu0 %v2019
  %2090 = vmatprep.subr.bf16.mxu0 0
  %2091 = vmatpush1.bf16.msra.mxu0 %v2018
  %2092 = vmatprep.subr.bf16.mxu0 0
  %2093 = vmatpush1.bf16.msra.mxu0 %v2017
  %2094 = vmatprep.subr.bf16.mxu0 0
  %2095 = vmatpush1.bf16.msra.mxu0 %v2016
  %2096 = vmatprep.subr.bf16.mxu0 0
  %2097 = vmatpush2.bf16.msra.mxu0 %v2031
  %2098 = vmatprep.subr.bf16.mxu0 0
  %2099 = vmatpush2.bf16.msra.mxu0 %v2030
  %2100 = vmatprep.subr.bf16.mxu0 0
  %2101 = vmatpush2.bf16.msra.mxu0 %v2029
  %2102 = vmatprep.subr.bf16.mxu0 0
  %2103 = vmatpush2.bf16.msra.mxu0 %v2028
  %2104 = vmatprep.subr.bf16.mxu0 0
  %2105 = vmatpush2.bf16.msra.mxu0 %v2027
  %2106 = vmatprep.subr.bf16.mxu0 0
  %2107 = vmatpush2.bf16.msra.mxu0 %v2026
  %2108 = vmatprep.subr.bf16.mxu0 0
  %2109 = vmatpush2.bf16.msra.mxu0 %v2025
  %2110 = vmatprep.subr.bf16.mxu0 0
  %2111 = vmatpush2.bf16.msra.mxu0 %v2024
  %2112 = vmatprep.mubr.bf16.mxu0 %v1377
  %2113 = vmatmul.mubr.bf16.gmra.mxu0 %v1376
  %v2114 = vpop.f32.mrf.mxu0
  %v2115 = vadd.f32 0.0, %v2114
  %v2116 = vpop.f32.mrf.mxu0
  %v2117 = vpop.f32.mrf.mxu0
  %v2118 = vadd.f32 0.0, %v2117
  %v2119 = vpop.f32.mrf.mxu0
  %2120 = vmatprep.mubr.bf16.mxu0 %v1381
  %2121 = vmatmul.mubr.bf16.gmra.mxu0 %v1380
  %v2122 = vpop.f32.mrf.mxu0
  %v2123 = vadd.f32 0.0, %v2122
  %v2124 = vpop.f32.mrf.mxu0
  %v2125 = vpop.f32.mrf.mxu0
  %v2126 = vadd.f32 0.0, %v2125
  %v2127 = vpop.f32.mrf.mxu0
  %2128 = vmatprep.mubr.bf16.mxu0 %v1385
  %2129 = vmatmul.mubr.bf16.gmra.mxu0 %v1384
  %v2130 = vpop.f32.mrf.mxu0
  %v2131 = vadd.f32 0.0, %v2130
  %v2132 = vpop.f32.mrf.mxu0
  %v2133 = vpop.f32.mrf.mxu0
  %v2134 = vadd.f32 0.0, %v2133
  %v2135 = vpop.f32.mrf.mxu0
  %2136 = vmatprep.mubr.bf16.mxu0 %v1389
  %2137 = vmatmul.mubr.bf16.gmra.mxu0 %v1388
  %v2138 = vpop.f32.mrf.mxu0
  %v2139 = vadd.f32 0.0, %v2138
  %v2140 = vpop.f32.mrf.mxu0
  %v2141 = vpop.f32.mrf.mxu0
  %v2142 = vadd.f32 0.0, %v2141
  %v2143 = vpop.f32.mrf.mxu0
  %2144 = vmatprep.mubr.bf16.mxu0 %v1393
  %2145 = vmatmul.mubr.bf16.gmra.mxu0 %v1392
  %v2146 = vpop.f32.mrf.mxu0
  %v2147 = vadd.f32 0.0, %v2146
  %v2148 = vpop.f32.mrf.mxu0
  %v2149 = vpop.f32.mrf.mxu0
  %v2150 = vadd.f32 0.0, %v2149
  %v2151 = vpop.f32.mrf.mxu0
  %2152 = vmatprep.mubr.bf16.mxu0 %v1397
  %2153 = vmatmul.mubr.bf16.gmra.mxu0 %v1396
  %v2154 = vpop.f32.mrf.mxu0
  %v2155 = vadd.f32 0.0, %v2154
  %v2156 = vpop.f32.mrf.mxu0
  %v2157 = vpop.f32.mrf.mxu0
  %v2158 = vadd.f32 0.0, %v2157
  %v2159 = vpop.f32.mrf.mxu0
  %2160 = vmatprep.mubr.bf16.mxu0 %v1401
  %2161 = vmatmul.mubr.bf16.gmra.mxu0 %v1400
  %v2162 = vpop.f32.mrf.mxu0
  %v2163 = vadd.f32 0.0, %v2162
  %v2164 = vpop.f32.mrf.mxu0
  %v2165 = vpop.f32.mrf.mxu0
  %v2166 = vadd.f32 0.0, %v2165
  %v2167 = vpop.f32.mrf.mxu0
  %2168 = vmatprep.mubr.bf16.mxu0 %v1405
  %2169 = vmatmul.mubr.bf16.gmra.mxu0 %v1404
  %v2170 = vpop.f32.mrf.mxu0
  %v2171 = vadd.f32 0.0, %v2170
  %v2172 = vpop.f32.mrf.mxu0
  %v2173 = vpop.f32.mrf.mxu0
  %v2174 = vadd.f32 0.0, %v2173
  %v2175 = vpop.f32.mrf.mxu0
  %2176 = vmatprep.mubr.bf16.mxu0 %v1409
  %2177 = vmatmul.mubr.bf16.gmra.mxu0 %v1408
  %v2178 = vpop.f32.mrf.mxu0
  %v2179 = vadd.f32 0.0, %v2178
  %v2180 = vpop.f32.mrf.mxu0
  %v2181 = vpop.f32.mrf.mxu0
  %v2182 = vadd.f32 0.0, %v2181
  %v2183 = vpop.f32.mrf.mxu0
  %2184 = vmatprep.mubr.bf16.mxu0 %v1413
  %2185 = vmatmul.mubr.bf16.gmra.mxu0 %v1412
  %v2186 = vpop.f32.mrf.mxu0
  %v2187 = vadd.f32 0.0, %v2186
  %v2188 = vpop.f32.mrf.mxu0
  %v2189 = vpop.f32.mrf.mxu0
  %v2190 = vadd.f32 0.0, %v2189
  %v2191 = vpop.f32.mrf.mxu0
  %2192 = vmatprep.mubr.bf16.mxu0 %v1417
  %2193 = vmatmul.mubr.bf16.gmra.mxu0 %v1416
  %v2194 = vpop.f32.mrf.mxu0
  %v2195 = vadd.f32 0.0, %v2194
  %v2196 = vpop.f32.mrf.mxu0
  %v2197 = vpop.f32.mrf.mxu0
  %v2198 = vadd.f32 0.0, %v2197
  %v2199 = vpop.f32.mrf.mxu0
  %2200 = vmatprep.mubr.bf16.mxu0 %v1421
  %2201 = vmatmul.mubr.bf16.gmra.mxu0 %v1420
  %v2202 = vpop.f32.mrf.mxu0
  %v2203 = vadd.f32 0.0, %v2202
  %v2204 = vpop.f32.mrf.mxu0
  %v2205 = vpop.f32.mrf.mxu0
  %v2206 = vadd.f32 0.0, %v2205
  %v2207 = vpop.f32.mrf.mxu0
  %2208 = vmatprep.mubr.bf16.mxu0 %v1425
  %2209 = vmatmul.mubr.bf16.gmra.mxu0 %v1424
  %v2210 = vpop.f32.mrf.mxu0
  %v2211 = vadd.f32 0.0, %v2210
  %v2212 = vpop.f32.mrf.mxu0
  %v2213 = vpop.f32.mrf.mxu0
  %v2214 = vadd.f32 0.0, %v2213
  %v2215 = vpop.f32.mrf.mxu0
  %2216 = vmatprep.mubr.bf16.mxu0 %v1429
  %2217 = vmatmul.mubr.bf16.gmra.mxu0 %v1428
  %v2218 = vpop.f32.mrf.mxu0
  %v2219 = vadd.f32 0.0, %v2218
  %v2220 = vpop.f32.mrf.mxu0
  %v2221 = vpop.f32.mrf.mxu0
  %v2222 = vadd.f32 0.0, %v2221
  %v2223 = vpop.f32.mrf.mxu0
  %2224 = vmatprep.mubr.bf16.mxu0 %v1433
  %2225 = vmatmul.mubr.bf16.gmra.mxu0 %v1432
  %v2226 = vpop.f32.mrf.mxu0
  %v2227 = vadd.f32 0.0, %v2226
  %v2228 = vpop.f32.mrf.mxu0
  %v2229 = vpop.f32.mrf.mxu0
  %v2230 = vadd.f32 0.0, %v2229
  %v2231 = vpop.f32.mrf.mxu0
  %2232 = vmatprep.mubr.bf16.mxu0 %v1437
  %2233 = vmatmul.mubr.bf16.gmra.mxu0 %v1436
  %v2234 = vpop.f32.mrf.mxu0
  %v2235 = vadd.f32 0.0, %v2234
  %v2236 = vpop.f32.mrf.mxu0
  %v2237 = vpop.f32.mrf.mxu0
  %v2238 = vadd.f32 0.0, %v2237
  %v2239 = vpop.f32.mrf.mxu0
  %2240 = vmatprep.mubr.bf16.mxu0 %v1441
  %2241 = vmatmul.mubr.bf16.gmra.mxu0 %v1440
  %v2242 = vpop.f32.mrf.mxu0
  %v2243 = vadd.f32 0.0, %v2242
  %v2244 = vpop.f32.mrf.mxu0
  %v2245 = vpop.f32.mrf.mxu0
  %v2246 = vadd.f32 0.0, %v2245
  %v2247 = vpop.f32.mrf.mxu0
  %2248 = vmatprep.mubr.bf16.mxu0 %v1445
  %2249 = vmatmul.mubr.bf16.gmra.mxu0 %v1444
  %v2250 = vpop.f32.mrf.mxu0
  %v2251 = vadd.f32 0.0, %v2250
  %v2252 = vpop.f32.mrf.mxu0
  %v2253 = vpop.f32.mrf.mxu0
  %v2254 = vadd.f32 0.0, %v2253
  %v2255 = vpop.f32.mrf.mxu0
  %2256 = vmatprep.mubr.bf16.mxu0 %v1449
  %2257 = vmatmul.mubr.bf16.gmra.mxu0 %v1448
  %v2258 = vpop.f32.mrf.mxu0
  %v2259 = vadd.f32 0.0, %v2258
  %v2260 = vpop.f32.mrf.mxu0
  %v2261 = vpop.f32.mrf.mxu0
  %v2262 = vadd.f32 0.0, %v2261
  %v2263 = vpop.f32.mrf.mxu0
  %2264 = vmatprep.mubr.bf16.mxu0 %v1453
  %2265 = vmatmul.mubr.bf16.gmra.mxu0 %v1452
  %v2266 = vpop.f32.mrf.mxu0
  %v2267 = vadd.f32 0.0, %v2266
  %v2268 = vpop.f32.mrf.mxu0
  %v2269 = vpop.f32.mrf.mxu0
  %v2270 = vadd.f32 0.0, %v2269
  %v2271 = vpop.f32.mrf.mxu0
  %2272 = vmatprep.mubr.bf16.mxu0 %v1457
  %2273 = vmatmul.mubr.bf16.gmra.mxu0 %v1456
  %v2274 = vpop.f32.mrf.mxu0
  %v2275 = vadd.f32 0.0, %v2274
  %v2276 = vpop.f32.mrf.mxu0
  %v2277 = vpop.f32.mrf.mxu0
  %v2278 = vadd.f32 0.0, %v2277
  %v2279 = vpop.f32.mrf.mxu0
  %2280 = vmatprep.mubr.bf16.mxu0 %v1461
  %2281 = vmatmul.mubr.bf16.gmra.mxu0 %v1460
  %v2282 = vpop.f32.mrf.mxu0
  %v2283 = vadd.f32 0.0, %v2282
  %v2284 = vpop.f32.mrf.mxu0
  %v2285 = vpop.f32.mrf.mxu0
  %v2286 = vadd.f32 0.0, %v2285
  %v2287 = vpop.f32.mrf.mxu0
  %2288 = vmatprep.mubr.bf16.mxu0 %v1465
  %2289 = vmatmul.mubr.bf16.gmra.mxu0 %v1464
  %v2290 = vpop.f32.mrf.mxu0
  %v2291 = vadd.f32 0.0, %v2290
  %v2292 = vpop.f32.mrf.mxu0
  %v2293 = vpop.f32.mrf.mxu0
  %v2294 = vadd.f32 0.0, %v2293
  %v2295 = vpop.f32.mrf.mxu0
  %2296 = vmatprep.mubr.bf16.mxu0 %v1469
  %2297 = vmatmul.mubr.bf16.gmra.mxu0 %v1468
  %v2298 = vpop.f32.mrf.mxu0
  %v2299 = vadd.f32 0.0, %v2298
  %v2300 = vpop.f32.mrf.mxu0
  %v2301 = vpop.f32.mrf.mxu0
  %v2302 = vadd.f32 0.0, %v2301
  %v2303 = vpop.f32.mrf.mxu0
  %2304 = vmatprep.mubr.bf16.mxu0 %v1473
  %2305 = vmatmul.mubr.bf16.gmra.mxu0 %v1472
  %v2306 = vpop.f32.mrf.mxu0
  %v2307 = vadd.f32 0.0, %v2306
  %v2308 = vpop.f32.mrf.mxu0
  %v2309 = vpop.f32.mrf.mxu0
  %v2310 = vadd.f32 0.0, %v2309
  %v2311 = vpop.f32.mrf.mxu0
  %2312 = vmatprep.mubr.bf16.mxu0 %v1477
  %2313 = vmatmul.mubr.bf16.gmra.mxu0 %v1476
  %v2314 = vpop.f32.mrf.mxu0
  %v2315 = vadd.f32 0.0, %v2314
  %v2316 = vpop.f32.mrf.mxu0
  %v2317 = vpop.f32.mrf.mxu0
  %v2318 = vadd.f32 0.0, %v2317
  %v2319 = vpop.f32.mrf.mxu0
  %2320 = vmatprep.mubr.bf16.mxu0 %v1481
  %2321 = vmatmul.mubr.bf16.gmra.mxu0 %v1480
  %v2322 = vpop.f32.mrf.mxu0
  %v2323 = vadd.f32 0.0, %v2322
  %v2324 = vpop.f32.mrf.mxu0
  %v2325 = vpop.f32.mrf.mxu0
  %v2326 = vadd.f32 0.0, %v2325
  %v2327 = vpop.f32.mrf.mxu0
  %2328 = vmatprep.mubr.bf16.mxu0 %v1485
  %2329 = vmatmul.mubr.bf16.gmra.mxu0 %v1484
  %v2330 = vpop.f32.mrf.mxu0
  %v2331 = vadd.f32 0.0, %v2330
  %v2332 = vpop.f32.mrf.mxu0
  %v2333 = vpop.f32.mrf.mxu0
  %v2334 = vadd.f32 0.0, %v2333
  %v2335 = vpop.f32.mrf.mxu0
  %2336 = vmatprep.mubr.bf16.mxu0 %v1489
  %2337 = vmatmul.mubr.bf16.gmra.mxu0 %v1488
  %v2338 = vpop.f32.mrf.mxu0
  %v2339 = vadd.f32 0.0, %v2338
  %v2340 = vpop.f32.mrf.mxu0
  %v2341 = vpop.f32.mrf.mxu0
  %v2342 = vadd.f32 0.0, %v2341
  %v2343 = vpop.f32.mrf.mxu0
  %2344 = vmatprep.mubr.bf16.mxu0 %v1493
  %2345 = vmatmul.mubr.bf16.gmra.mxu0 %v1492
  %v2346 = vpop.f32.mrf.mxu0
  %v2347 = vadd.f32 0.0, %v2346
  %v2348 = vpop.f32.mrf.mxu0
  %v2349 = vpop.f32.mrf.mxu0
  %v2350 = vadd.f32 0.0, %v2349
  %v2351 = vpop.f32.mrf.mxu0
  %2352 = vmatprep.mubr.bf16.mxu0 %v1497
  %2353 = vmatmul.mubr.bf16.gmra.mxu0 %v1496
  %v2354 = vpop.f32.mrf.mxu0
  %v2355 = vadd.f32 0.0, %v2354
  %v2356 = vpop.f32.mrf.mxu0
  %v2357 = vpop.f32.mrf.mxu0
  %v2358 = vadd.f32 0.0, %v2357
  %v2359 = vpop.f32.mrf.mxu0
  %2360 = vmatprep.mubr.bf16.mxu0 %v1501
  %2361 = vmatmul.mubr.bf16.gmra.mxu0 %v1500
  %v2362 = vpop.f32.mrf.mxu0
  %v2363 = vadd.f32 0.0, %v2362
  %v2364 = vpop.f32.mrf.mxu0
  %v2365 = vpop.f32.mrf.mxu0
  %v2366 = vadd.f32 0.0, %v2365
  %v2367 = vpop.f32.mrf.mxu0
  %2368 = vmatprep.mubr.bf16.mxu0 %v1505
  %2369 = vmatmul.mubr.bf16.gmra.mxu0 %v1504
  %v2370 = vpop.f32.mrf.mxu0
  %v2371 = vadd.f32 0.0, %v2370
  %v2372 = vpop.f32.mrf.mxu0
  %v2373 = vpop.f32.mrf.mxu0
  %v2374 = vadd.f32 0.0, %v2373
  %v2375 = vpop.f32.mrf.mxu0
  %2376 = vmatprep.mubr.bf16.mxu0 %v1509
  %2377 = vmatmul.mubr.bf16.gmra.mxu0 %v1508
  %v2378 = vpop.f32.mrf.mxu0
  %v2379 = vadd.f32 0.0, %v2378
  %v2380 = vpop.f32.mrf.mxu0
  %v2381 = vpop.f32.mrf.mxu0
  %v2382 = vadd.f32 0.0, %v2381
  %v2383 = vpop.f32.mrf.mxu0
  %2384 = vmatprep.mubr.bf16.mxu0 %v1513
  %2385 = vmatmul.mubr.bf16.gmra.mxu0 %v1512
  %v2386 = vpop.f32.mrf.mxu0
  %v2387 = vadd.f32 0.0, %v2386
  %v2388 = vpop.f32.mrf.mxu0
  %v2389 = vpop.f32.mrf.mxu0
  %v2390 = vadd.f32 0.0, %v2389
  %v2391 = vpop.f32.mrf.mxu0
  %2392 = vmatprep.mubr.bf16.mxu0 %v1517
  %2393 = vmatmul.mubr.bf16.gmra.mxu0 %v1516
  %v2394 = vpop.f32.mrf.mxu0
  %v2395 = vadd.f32 0.0, %v2394
  %v2396 = vpop.f32.mrf.mxu0
  %v2397 = vpop.f32.mrf.mxu0
  %v2398 = vadd.f32 0.0, %v2397
  %v2399 = vpop.f32.mrf.mxu0
  %2400 = vmatprep.mubr.bf16.mxu0 %v1521
  %2401 = vmatmul.mubr.bf16.gmra.mxu0 %v1520
  %v2402 = vpop.f32.mrf.mxu0
  %v2403 = vadd.f32 0.0, %v2402
  %v2404 = vpop.f32.mrf.mxu0
  %v2405 = vpop.f32.mrf.mxu0
  %v2406 = vadd.f32 0.0, %v2405
  %v2407 = vpop.f32.mrf.mxu0
  %2408 = vmatprep.mubr.bf16.mxu0 %v1525
  %2409 = vmatmul.mubr.bf16.gmra.mxu0 %v1524
  %v2410 = vpop.f32.mrf.mxu0
  %v2411 = vadd.f32 0.0, %v2410
  %v2412 = vpop.f32.mrf.mxu0
  %v2413 = vpop.f32.mrf.mxu0
  %v2414 = vadd.f32 0.0, %v2413
  %v2415 = vpop.f32.mrf.mxu0
  %2416 = vmatprep.mubr.bf16.mxu0 %v1529
  %2417 = vmatmul.mubr.bf16.gmra.mxu0 %v1528
  %v2418 = vpop.f32.mrf.mxu0
  %v2419 = vadd.f32 0.0, %v2418
  %v2420 = vpop.f32.mrf.mxu0
  %v2421 = vpop.f32.mrf.mxu0
  %v2422 = vadd.f32 0.0, %v2421
  %v2423 = vpop.f32.mrf.mxu0
  %2424 = vmatprep.mubr.bf16.mxu0 %v1533
  %2425 = vmatmul.mubr.bf16.gmra.mxu0 %v1532
  %v2426 = vpop.f32.mrf.mxu0
  %v2427 = vadd.f32 0.0, %v2426
  %v2428 = vpop.f32.mrf.mxu0
  %v2429 = vpop.f32.mrf.mxu0
  %v2430 = vadd.f32 0.0, %v2429
  %v2431 = vpop.f32.mrf.mxu0
  %2432 = vmatprep.mubr.bf16.mxu0 %v1537
  %2433 = vmatmul.mubr.bf16.gmra.mxu0 %v1536
  %v2434 = vpop.f32.mrf.mxu0
  %v2435 = vadd.f32 0.0, %v2434
  %v2436 = vpop.f32.mrf.mxu0
  %v2437 = vpop.f32.mrf.mxu0
  %v2438 = vadd.f32 0.0, %v2437
  %v2439 = vpop.f32.mrf.mxu0
  %2440 = vmatprep.mubr.bf16.mxu0 %v1541
  %2441 = vmatmul.mubr.bf16.gmra.mxu0 %v1540
  %v2442 = vpop.f32.mrf.mxu0
  %v2443 = vadd.f32 0.0, %v2442
  %v2444 = vpop.f32.mrf.mxu0
  %v2445 = vpop.f32.mrf.mxu0
  %v2446 = vadd.f32 0.0, %v2445
  %v2447 = vpop.f32.mrf.mxu0
  %2448 = vmatprep.mubr.bf16.mxu0 %v1545
  %2449 = vmatmul.mubr.bf16.gmra.mxu0 %v1544
  %v2450 = vpop.f32.mrf.mxu0
  %v2451 = vadd.f32 0.0, %v2450
  %v2452 = vpop.f32.mrf.mxu0
  %v2453 = vpop.f32.mrf.mxu0
  %v2454 = vadd.f32 0.0, %v2453
  %v2455 = vpop.f32.mrf.mxu0
  %2456 = vmatprep.mubr.bf16.mxu0 %v1549
  %2457 = vmatmul.mubr.bf16.gmra.mxu0 %v1548
  %v2458 = vpop.f32.mrf.mxu0
  %v2459 = vadd.f32 0.0, %v2458
  %v2460 = vpop.f32.mrf.mxu0
  %v2461 = vpop.f32.mrf.mxu0
  %v2462 = vadd.f32 0.0, %v2461
  %v2463 = vpop.f32.mrf.mxu0
  %2464 = vmatprep.mubr.bf16.mxu0 %v1553
  %2465 = vmatmul.mubr.bf16.gmra.mxu0 %v1552
  %v2466 = vpop.f32.mrf.mxu0
  %v2467 = vadd.f32 0.0, %v2466
  %v2468 = vpop.f32.mrf.mxu0
  %v2469 = vpop.f32.mrf.mxu0
  %v2470 = vadd.f32 0.0, %v2469
  %v2471 = vpop.f32.mrf.mxu0
  %2472 = vmatprep.mubr.bf16.mxu0 %v1557
  %2473 = vmatmul.mubr.bf16.gmra.mxu0 %v1556
  %v2474 = vpop.f32.mrf.mxu0
  %v2475 = vadd.f32 0.0, %v2474
  %v2476 = vpop.f32.mrf.mxu0
  %v2477 = vpop.f32.mrf.mxu0
  %v2478 = vadd.f32 0.0, %v2477
  %v2479 = vpop.f32.mrf.mxu0
  %2480 = vmatprep.mubr.bf16.mxu0 %v1561
  %2481 = vmatmul.mubr.bf16.gmra.mxu0 %v1560
  %v2482 = vpop.f32.mrf.mxu0
  %v2483 = vadd.f32 0.0, %v2482
  %v2484 = vpop.f32.mrf.mxu0
  %v2485 = vpop.f32.mrf.mxu0
  %v2486 = vadd.f32 0.0, %v2485
  %v2487 = vpop.f32.mrf.mxu0
  %2488 = vmatprep.mubr.bf16.mxu0 %v1565
  %2489 = vmatmul.mubr.bf16.gmra.mxu0 %v1564
  %v2490 = vpop.f32.mrf.mxu0
  %v2491 = vadd.f32 0.0, %v2490
  %v2492 = vpop.f32.mrf.mxu0
  %v2493 = vpop.f32.mrf.mxu0
  %v2494 = vadd.f32 0.0, %v2493
  %v2495 = vpop.f32.mrf.mxu0
  %2496 = vmatprep.mubr.bf16.mxu0 %v1569
  %2497 = vmatmul.mubr.bf16.gmra.mxu0 %v1568
  %v2498 = vpop.f32.mrf.mxu0
  %v2499 = vadd.f32 0.0, %v2498
  %v2500 = vpop.f32.mrf.mxu0
  %v2501 = vpop.f32.mrf.mxu0
  %v2502 = vadd.f32 0.0, %v2501
  %v2503 = vpop.f32.mrf.mxu0
  %2504 = vmatprep.mubr.bf16.mxu0 %v1573
  %2505 = vmatmul.mubr.bf16.gmra.mxu0 %v1572
  %v2506 = vpop.f32.mrf.mxu0
  %v2507 = vadd.f32 0.0, %v2506
  %v2508 = vpop.f32.mrf.mxu0
  %v2509 = vpop.f32.mrf.mxu0
  %v2510 = vadd.f32 0.0, %v2509
  %v2511 = vpop.f32.mrf.mxu0
  %2512 = vmatprep.mubr.bf16.mxu0 %v1577
  %2513 = vmatmul.mubr.bf16.gmra.mxu0 %v1576
  %v2514 = vpop.f32.mrf.mxu0
  %v2515 = vadd.f32 0.0, %v2514
  %v2516 = vpop.f32.mrf.mxu0
  %v2517 = vpop.f32.mrf.mxu0
  %v2518 = vadd.f32 0.0, %v2517
  %v2519 = vpop.f32.mrf.mxu0
  %2520 = vmatprep.mubr.bf16.mxu0 %v1581
  %2521 = vmatmul.mubr.bf16.gmra.mxu0 %v1580
  %v2522 = vpop.f32.mrf.mxu0
  %v2523 = vadd.f32 0.0, %v2522
  %v2524 = vpop.f32.mrf.mxu0
  %v2525 = vpop.f32.mrf.mxu0
  %v2526 = vadd.f32 0.0, %v2525
  %v2527 = vpop.f32.mrf.mxu0
  %2528 = vmatprep.mubr.bf16.mxu0 %v1585
  %2529 = vmatmul.mubr.bf16.gmra.mxu0 %v1584
  %v2530 = vpop.f32.mrf.mxu0
  %v2531 = vadd.f32 0.0, %v2530
  %v2532 = vpop.f32.mrf.mxu0
  %v2533 = vpop.f32.mrf.mxu0
  %v2534 = vadd.f32 0.0, %v2533
  %v2535 = vpop.f32.mrf.mxu0
  %2536 = vmatprep.mubr.bf16.mxu0 %v1589
  %2537 = vmatmul.mubr.bf16.gmra.mxu0 %v1588
  %v2538 = vpop.f32.mrf.mxu0
  %v2539 = vadd.f32 0.0, %v2538
  %v2540 = vpop.f32.mrf.mxu0
  %v2541 = vpop.f32.mrf.mxu0
  %v2542 = vadd.f32 0.0, %v2541
  %v2543 = vpop.f32.mrf.mxu0
  %2544 = vmatprep.mubr.bf16.mxu0 %v1593
  %2545 = vmatmul.mubr.bf16.gmra.mxu0 %v1592
  %v2546 = vpop.f32.mrf.mxu0
  %v2547 = vadd.f32 0.0, %v2546
  %v2548 = vpop.f32.mrf.mxu0
  %v2549 = vpop.f32.mrf.mxu0
  %v2550 = vadd.f32 0.0, %v2549
  %v2551 = vpop.f32.mrf.mxu0
  %2552 = vmatprep.mubr.bf16.mxu0 %v1597
  %2553 = vmatmul.mubr.bf16.gmra.mxu0 %v1596
  %v2554 = vpop.f32.mrf.mxu0
  %v2555 = vadd.f32 0.0, %v2554
  %v2556 = vpop.f32.mrf.mxu0
  %v2557 = vpop.f32.mrf.mxu0
  %v2558 = vadd.f32 0.0, %v2557
  %v2559 = vpop.f32.mrf.mxu0
  %2560 = vmatprep.mubr.bf16.mxu0 %v1601
  %2561 = vmatmul.mubr.bf16.gmra.mxu0 %v1600
  %v2562 = vpop.f32.mrf.mxu0
  %v2563 = vadd.f32 0.0, %v2562
  %v2564 = vpop.f32.mrf.mxu0
  %v2565 = vpop.f32.mrf.mxu0
  %v2566 = vadd.f32 0.0, %v2565
  %v2567 = vpop.f32.mrf.mxu0
  %2568 = vmatprep.mubr.bf16.mxu0 %v1605
  %2569 = vmatmul.mubr.bf16.gmra.mxu0 %v1604
  %v2570 = vpop.f32.mrf.mxu0
  %v2571 = vadd.f32 0.0, %v2570
  %v2572 = vpop.f32.mrf.mxu0
  %v2573 = vpop.f32.mrf.mxu0
  %v2574 = vadd.f32 0.0, %v2573
  %v2575 = vpop.f32.mrf.mxu0
  %2576 = vmatprep.mubr.bf16.mxu0 %v1609
  %2577 = vmatmul.mubr.bf16.gmra.mxu0 %v1608
  %v2578 = vpop.f32.mrf.mxu0
  %v2579 = vadd.f32 0.0, %v2578
  %v2580 = vpop.f32.mrf.mxu0
  %v2581 = vpop.f32.mrf.mxu0
  %v2582 = vadd.f32 0.0, %v2581
  %v2583 = vpop.f32.mrf.mxu0
  %2584 = vmatprep.mubr.bf16.mxu0 %v1613
  %2585 = vmatmul.mubr.bf16.gmra.mxu0 %v1612
  %v2586 = vpop.f32.mrf.mxu0
  %v2587 = vadd.f32 0.0, %v2586
  %v2588 = vpop.f32.mrf.mxu0
  %v2589 = vpop.f32.mrf.mxu0
  %v2590 = vadd.f32 0.0, %v2589
  %v2591 = vpop.f32.mrf.mxu0
  %2592 = vmatprep.mubr.bf16.mxu0 %v1617
  %2593 = vmatmul.mubr.bf16.gmra.mxu0 %v1616
  %v2594 = vpop.f32.mrf.mxu0
  %v2595 = vadd.f32 0.0, %v2594
  %v2596 = vpop.f32.mrf.mxu0
  %v2597 = vpop.f32.mrf.mxu0
  %v2598 = vadd.f32 0.0, %v2597
  %v2599 = vpop.f32.mrf.mxu0
  %2600 = vmatprep.mubr.bf16.mxu0 %v1621
  %2601 = vmatmul.mubr.bf16.gmra.mxu0 %v1620
  %v2602 = vpop.f32.mrf.mxu0
  %v2603 = vadd.f32 0.0, %v2602
  %v2604 = vpop.f32.mrf.mxu0
  %v2605 = vpop.f32.mrf.mxu0
  %v2606 = vadd.f32 0.0, %v2605
  %v2607 = vpop.f32.mrf.mxu0
  %2608 = vmatprep.mubr.bf16.mxu0 %v1625
  %2609 = vmatmul.mubr.bf16.gmra.mxu0 %v1624
  %v2610 = vpop.f32.mrf.mxu0
  %v2611 = vadd.f32 0.0, %v2610
  %v2612 = vpop.f32.mrf.mxu0
  %v2613 = vpop.f32.mrf.mxu0
  %v2614 = vadd.f32 0.0, %v2613
  %v2615 = vpop.f32.mrf.mxu0
  %2616 = vmatprep.mubr.bf16.mxu0 %v1629
  %2617 = vmatmul.mubr.bf16.gmra.mxu0 %v1628
  %v2618 = vpop.f32.mrf.mxu0
  %v2619 = vadd.f32 0.0, %v2618
  %v2620 = vpop.f32.mrf.mxu0
  %v2621 = vpop.f32.mrf.mxu0
  %v2622 = vadd.f32 0.0, %v2621
  %v2623 = vpop.f32.mrf.mxu0
  %2624 = vdwg.mxu0
  %2625 = vmatprep.subr.bf16.mxu0 0
  %2626 = vmatpush1.bf16.msra.mxu0 %v2039
  %2627 = vmatprep.subr.bf16.mxu0 0
  %2628 = vmatpush1.bf16.msra.mxu0 %v2038
  %2629 = vmatprep.subr.bf16.mxu0 0
  %2630 = vmatpush1.bf16.msra.mxu0 %v2037
  %2631 = vmatprep.subr.bf16.mxu0 0
  %2632 = vmatpush1.bf16.msra.mxu0 %v2036
  %2633 = vmatprep.subr.bf16.mxu0 0
  %2634 = vmatpush1.bf16.msra.mxu0 %v2035
  %2635 = vmatprep.subr.bf16.mxu0 0
  %2636 = vmatpush1.bf16.msra.mxu0 %v2034
  %2637 = vmatprep.subr.bf16.mxu0 0
  %2638 = vmatpush1.bf16.msra.mxu0 %v2033
  %2639 = vmatprep.subr.bf16.mxu0 0
  %2640 = vmatpush1.bf16.msra.mxu0 %v2032
  %2641 = vmatprep.subr.bf16.mxu0 0
  %2642 = vmatpush2.bf16.msra.mxu0 %v2047
  %2643 = vmatprep.subr.bf16.mxu0 0
  %2644 = vmatpush2.bf16.msra.mxu0 %v2046
  %2645 = vmatprep.subr.bf16.mxu0 0
  %2646 = vmatpush2.bf16.msra.mxu0 %v2045
  %2647 = vmatprep.subr.bf16.mxu0 0
  %2648 = vmatpush2.bf16.msra.mxu0 %v2044
  %2649 = vmatprep.subr.bf16.mxu0 0
  %2650 = vmatpush2.bf16.msra.mxu0 %v2043
  %2651 = vmatprep.subr.bf16.mxu0 0
  %2652 = vmatpush2.bf16.msra.mxu0 %v2042
  %2653 = vmatprep.subr.bf16.mxu0 0
  %2654 = vmatpush2.bf16.msra.mxu0 %v2041
  %2655 = vmatprep.subr.bf16.mxu0 0
  %2656 = vmatpush2.bf16.msra.mxu0 %v2040
  %2657 = vmatprep.mubr.bf16.mxu0 %v1379
  %2658 = vmatmul.mubr.bf16.gmra.mxu0 %v1378
  %v2659 = vpop.f32.mrf.mxu0
  %v2660 = vadd.f32 %v2115, %v2659
  %v2661 = vpop.f32.mrf.mxu0
  %v2662 = vpop.f32.mrf.mxu0
  %v2663 = vadd.f32 %v2118, %v2662
  %v2664 = vpop.f32.mrf.mxu0
  %2665 = vmatprep.mubr.bf16.mxu0 %v1383
  %2666 = vmatmul.mubr.bf16.gmra.mxu0 %v1382
  %v2667 = vpop.f32.mrf.mxu0
  %v2668 = vadd.f32 %v2123, %v2667
  %v2669 = vpop.f32.mrf.mxu0
  %v2670 = vpop.f32.mrf.mxu0
  %v2671 = vadd.f32 %v2126, %v2670
  %v2672 = vpop.f32.mrf.mxu0
  %2673 = vmatprep.mubr.bf16.mxu0 %v1387
  %2674 = vmatmul.mubr.bf16.gmra.mxu0 %v1386
  %v2675 = vpop.f32.mrf.mxu0
  %v2676 = vadd.f32 %v2131, %v2675
  %v2677 = vpop.f32.mrf.mxu0
  %v2678 = vpop.f32.mrf.mxu0
  %v2679 = vadd.f32 %v2134, %v2678
  %v2680 = vpop.f32.mrf.mxu0
  %2681 = vmatprep.mubr.bf16.mxu0 %v1391
  %2682 = vmatmul.mubr.bf16.gmra.mxu0 %v1390
  %v2683 = vpop.f32.mrf.mxu0
  %v2684 = vadd.f32 %v2139, %v2683
  %v2685 = vpop.f32.mrf.mxu0
  %v2686 = vpop.f32.mrf.mxu0
  %v2687 = vadd.f32 %v2142, %v2686
  %v2688 = vpop.f32.mrf.mxu0
  %2689 = vmatprep.mubr.bf16.mxu0 %v1395
  %2690 = vmatmul.mubr.bf16.gmra.mxu0 %v1394
  %v2691 = vpop.f32.mrf.mxu0
  %v2692 = vadd.f32 %v2147, %v2691
  %v2693 = vpop.f32.mrf.mxu0
  %v2694 = vpop.f32.mrf.mxu0
  %v2695 = vadd.f32 %v2150, %v2694
  %v2696 = vpop.f32.mrf.mxu0
  %2697 = vmatprep.mubr.bf16.mxu0 %v1399
  %2698 = vmatmul.mubr.bf16.gmra.mxu0 %v1398
  %v2699 = vpop.f32.mrf.mxu0
  %v2700 = vadd.f32 %v2155, %v2699
  %v2701 = vpop.f32.mrf.mxu0
  %v2702 = vpop.f32.mrf.mxu0
  %v2703 = vadd.f32 %v2158, %v2702
  %v2704 = vpop.f32.mrf.mxu0
  %2705 = vmatprep.mubr.bf16.mxu0 %v1403
  %2706 = vmatmul.mubr.bf16.gmra.mxu0 %v1402
  %v2707 = vpop.f32.mrf.mxu0
  %v2708 = vadd.f32 %v2163, %v2707
  %v2709 = vpop.f32.mrf.mxu0
  %v2710 = vpop.f32.mrf.mxu0
  %v2711 = vadd.f32 %v2166, %v2710
  %v2712 = vpop.f32.mrf.mxu0
  %2713 = vmatprep.mubr.bf16.mxu0 %v1407
  %2714 = vmatmul.mubr.bf16.gmra.mxu0 %v1406
  %v2715 = vpop.f32.mrf.mxu0
  %v2716 = vadd.f32 %v2171, %v2715
  %v2717 = vpop.f32.mrf.mxu0
  %v2718 = vpop.f32.mrf.mxu0
  %v2719 = vadd.f32 %v2174, %v2718
  %v2720 = vpop.f32.mrf.mxu0
  %2721 = vmatprep.mubr.bf16.mxu0 %v1411
  %2722 = vmatmul.mubr.bf16.gmra.mxu0 %v1410
  %v2723 = vpop.f32.mrf.mxu0
  %v2724 = vadd.f32 %v2179, %v2723
  %v2725 = vpop.f32.mrf.mxu0
  %v2726 = vpop.f32.mrf.mxu0
  %v2727 = vadd.f32 %v2182, %v2726
  %v2728 = vpop.f32.mrf.mxu0
  %2729 = vmatprep.mubr.bf16.mxu0 %v1415
  %2730 = vmatmul.mubr.bf16.gmra.mxu0 %v1414
  %v2731 = vpop.f32.mrf.mxu0
  %v2732 = vadd.f32 %v2187, %v2731
  %v2733 = vpop.f32.mrf.mxu0
  %v2734 = vpop.f32.mrf.mxu0
  %v2735 = vadd.f32 %v2190, %v2734
  %v2736 = vpop.f32.mrf.mxu0
  %2737 = vmatprep.mubr.bf16.mxu0 %v1419
  %2738 = vmatmul.mubr.bf16.gmra.mxu0 %v1418
  %v2739 = vpop.f32.mrf.mxu0
  %v2740 = vadd.f32 %v2195, %v2739
  %v2741 = vpop.f32.mrf.mxu0
  %v2742 = vpop.f32.mrf.mxu0
  %v2743 = vadd.f32 %v2198, %v2742
  %v2744 = vpop.f32.mrf.mxu0
  %2745 = vmatprep.mubr.bf16.mxu0 %v1423
  %2746 = vmatmul.mubr.bf16.gmra.mxu0 %v1422
  %v2747 = vpop.f32.mrf.mxu0
  %v2748 = vadd.f32 %v2203, %v2747
  %v2749 = vpop.f32.mrf.mxu0
  %v2750 = vpop.f32.mrf.mxu0
  %v2751 = vadd.f32 %v2206, %v2750
  %v2752 = vpop.f32.mrf.mxu0
  %2753 = vmatprep.mubr.bf16.mxu0 %v1427
  %2754 = vmatmul.mubr.bf16.gmra.mxu0 %v1426
  %v2755 = vpop.f32.mrf.mxu0
  %v2756 = vadd.f32 %v2211, %v2755
  %v2757 = vpop.f32.mrf.mxu0
  %v2758 = vpop.f32.mrf.mxu0
  %v2759 = vadd.f32 %v2214, %v2758
  %v2760 = vpop.f32.mrf.mxu0
  %2761 = vmatprep.mubr.bf16.mxu0 %v1431
  %2762 = vmatmul.mubr.bf16.gmra.mxu0 %v1430
  %v2763 = vpop.f32.mrf.mxu0
  %v2764 = vadd.f32 %v2219, %v2763
  %v2765 = vpop.f32.mrf.mxu0
  %v2766 = vpop.f32.mrf.mxu0
  %v2767 = vadd.f32 %v2222, %v2766
  %v2768 = vpop.f32.mrf.mxu0
  %2769 = vmatprep.mubr.bf16.mxu0 %v1435
  %2770 = vmatmul.mubr.bf16.gmra.mxu0 %v1434
  %v2771 = vpop.f32.mrf.mxu0
  %v2772 = vadd.f32 %v2227, %v2771
  %v2773 = vpop.f32.mrf.mxu0
  %v2774 = vpop.f32.mrf.mxu0
  %v2775 = vadd.f32 %v2230, %v2774
  %v2776 = vpop.f32.mrf.mxu0
  %2777 = vmatprep.mubr.bf16.mxu0 %v1439
  %2778 = vmatmul.mubr.bf16.gmra.mxu0 %v1438
  %v2779 = vpop.f32.mrf.mxu0
  %v2780 = vadd.f32 %v2235, %v2779
  %v2781 = vpop.f32.mrf.mxu0
  %v2782 = vpop.f32.mrf.mxu0
  %v2783 = vadd.f32 %v2238, %v2782
  %v2784 = vpop.f32.mrf.mxu0
  %2785 = vmatprep.mubr.bf16.mxu0 %v1443
  %2786 = vmatmul.mubr.bf16.gmra.mxu0 %v1442
  %v2787 = vpop.f32.mrf.mxu0
  %v2788 = vadd.f32 %v2243, %v2787
  %v2789 = vpop.f32.mrf.mxu0
  %v2790 = vpop.f32.mrf.mxu0
  %v2791 = vadd.f32 %v2246, %v2790
  %v2792 = vpop.f32.mrf.mxu0
  %2793 = vmatprep.mubr.bf16.mxu0 %v1447
  %2794 = vmatmul.mubr.bf16.gmra.mxu0 %v1446
  %v2795 = vpop.f32.mrf.mxu0
  %v2796 = vadd.f32 %v2251, %v2795
  %v2797 = vpop.f32.mrf.mxu0
  %v2798 = vpop.f32.mrf.mxu0
  %v2799 = vadd.f32 %v2254, %v2798
  %v2800 = vpop.f32.mrf.mxu0
  %2801 = vmatprep.mubr.bf16.mxu0 %v1451
  %2802 = vmatmul.mubr.bf16.gmra.mxu0 %v1450
  %v2803 = vpop.f32.mrf.mxu0
  %v2804 = vadd.f32 %v2259, %v2803
  %v2805 = vpop.f32.mrf.mxu0
  %v2806 = vpop.f32.mrf.mxu0
  %v2807 = vadd.f32 %v2262, %v2806
  %v2808 = vpop.f32.mrf.mxu0
  %2809 = vmatprep.mubr.bf16.mxu0 %v1455
  %2810 = vmatmul.mubr.bf16.gmra.mxu0 %v1454
  %v2811 = vpop.f32.mrf.mxu0
  %v2812 = vadd.f32 %v2267, %v2811
  %v2813 = vpop.f32.mrf.mxu0
  %v2814 = vpop.f32.mrf.mxu0
  %v2815 = vadd.f32 %v2270, %v2814
  %v2816 = vpop.f32.mrf.mxu0
  %2817 = vmatprep.mubr.bf16.mxu0 %v1459
  %2818 = vmatmul.mubr.bf16.gmra.mxu0 %v1458
  %v2819 = vpop.f32.mrf.mxu0
  %v2820 = vadd.f32 %v2275, %v2819
  %v2821 = vpop.f32.mrf.mxu0
  %v2822 = vpop.f32.mrf.mxu0
  %v2823 = vadd.f32 %v2278, %v2822
  %v2824 = vpop.f32.mrf.mxu0
  %2825 = vmatprep.mubr.bf16.mxu0 %v1463
  %2826 = vmatmul.mubr.bf16.gmra.mxu0 %v1462
  %v2827 = vpop.f32.mrf.mxu0
  %v2828 = vadd.f32 %v2283, %v2827
  %v2829 = vpop.f32.mrf.mxu0
  %v2830 = vpop.f32.mrf.mxu0
  %v2831 = vadd.f32 %v2286, %v2830
  %v2832 = vpop.f32.mrf.mxu0
  %2833 = vmatprep.mubr.bf16.mxu0 %v1467
  %2834 = vmatmul.mubr.bf16.gmra.mxu0 %v1466
  %v2835 = vpop.f32.mrf.mxu0
  %v2836 = vadd.f32 %v2291, %v2835
  %v2837 = vpop.f32.mrf.mxu0
  %v2838 = vpop.f32.mrf.mxu0
  %v2839 = vadd.f32 %v2294, %v2838
  %v2840 = vpop.f32.mrf.mxu0
  %2841 = vmatprep.mubr.bf16.mxu0 %v1471
  %2842 = vmatmul.mubr.bf16.gmra.mxu0 %v1470
  %v2843 = vpop.f32.mrf.mxu0
  %v2844 = vadd.f32 %v2299, %v2843
  %v2845 = vpop.f32.mrf.mxu0
  %v2846 = vpop.f32.mrf.mxu0
  %v2847 = vadd.f32 %v2302, %v2846
  %v2848 = vpop.f32.mrf.mxu0
  %2849 = vmatprep.mubr.bf16.mxu0 %v1475
  %2850 = vmatmul.mubr.bf16.gmra.mxu0 %v1474
  %v2851 = vpop.f32.mrf.mxu0
  %v2852 = vadd.f32 %v2307, %v2851
  %v2853 = vpop.f32.mrf.mxu0
  %v2854 = vpop.f32.mrf.mxu0
  %v2855 = vadd.f32 %v2310, %v2854
  %v2856 = vpop.f32.mrf.mxu0
  %2857 = vmatprep.mubr.bf16.mxu0 %v1479
  %2858 = vmatmul.mubr.bf16.gmra.mxu0 %v1478
  %v2859 = vpop.f32.mrf.mxu0
  %v2860 = vadd.f32 %v2315, %v2859
  %v2861 = vpop.f32.mrf.mxu0
  %v2862 = vpop.f32.mrf.mxu0
  %v2863 = vadd.f32 %v2318, %v2862
  %v2864 = vpop.f32.mrf.mxu0
  %2865 = vmatprep.mubr.bf16.mxu0 %v1483
  %2866 = vmatmul.mubr.bf16.gmra.mxu0 %v1482
  %v2867 = vpop.f32.mrf.mxu0
  %v2868 = vadd.f32 %v2323, %v2867
  %v2869 = vpop.f32.mrf.mxu0
  %v2870 = vpop.f32.mrf.mxu0
  %v2871 = vadd.f32 %v2326, %v2870
  %v2872 = vpop.f32.mrf.mxu0
  %2873 = vmatprep.mubr.bf16.mxu0 %v1487
  %2874 = vmatmul.mubr.bf16.gmra.mxu0 %v1486
  %v2875 = vpop.f32.mrf.mxu0
  %v2876 = vadd.f32 %v2331, %v2875
  %v2877 = vpop.f32.mrf.mxu0
  %v2878 = vpop.f32.mrf.mxu0
  %v2879 = vadd.f32 %v2334, %v2878
  %v2880 = vpop.f32.mrf.mxu0
  %2881 = vmatprep.mubr.bf16.mxu0 %v1491
  %2882 = vmatmul.mubr.bf16.gmra.mxu0 %v1490
  %v2883 = vpop.f32.mrf.mxu0
  %v2884 = vadd.f32 %v2339, %v2883
  %v2885 = vpop.f32.mrf.mxu0
  %v2886 = vpop.f32.mrf.mxu0
  %v2887 = vadd.f32 %v2342, %v2886
  %v2888 = vpop.f32.mrf.mxu0
  %2889 = vmatprep.mubr.bf16.mxu0 %v1495
  %2890 = vmatmul.mubr.bf16.gmra.mxu0 %v1494
  %v2891 = vpop.f32.mrf.mxu0
  %v2892 = vadd.f32 %v2347, %v2891
  %v2893 = vpop.f32.mrf.mxu0
  %v2894 = vpop.f32.mrf.mxu0
  %v2895 = vadd.f32 %v2350, %v2894
  %v2896 = vpop.f32.mrf.mxu0
  %2897 = vmatprep.mubr.bf16.mxu0 %v1499
  %2898 = vmatmul.mubr.bf16.gmra.mxu0 %v1498
  %v2899 = vpop.f32.mrf.mxu0
  %v2900 = vadd.f32 %v2355, %v2899
  %v2901 = vpop.f32.mrf.mxu0
  %v2902 = vpop.f32.mrf.mxu0
  %v2903 = vadd.f32 %v2358, %v2902
  %v2904 = vpop.f32.mrf.mxu0
  %2905 = vmatprep.mubr.bf16.mxu0 %v1503
  %2906 = vmatmul.mubr.bf16.gmra.mxu0 %v1502
  %v2907 = vpop.f32.mrf.mxu0
  %v2908 = vadd.f32 %v2363, %v2907
  %v2909 = vpop.f32.mrf.mxu0
  %v2910 = vpop.f32.mrf.mxu0
  %v2911 = vadd.f32 %v2366, %v2910
  %v2912 = vpop.f32.mrf.mxu0
  %2913 = vmatprep.mubr.bf16.mxu0 %v1507
  %2914 = vmatmul.mubr.bf16.gmra.mxu0 %v1506
  %v2915 = vpop.f32.mrf.mxu0
  %v2916 = vadd.f32 %v2371, %v2915
  %v2917 = vpop.f32.mrf.mxu0
  %v2918 = vpop.f32.mrf.mxu0
  %v2919 = vadd.f32 %v2374, %v2918
  %v2920 = vpop.f32.mrf.mxu0
  %2921 = vmatprep.mubr.bf16.mxu0 %v1511
  %2922 = vmatmul.mubr.bf16.gmra.mxu0 %v1510
  %v2923 = vpop.f32.mrf.mxu0
  %v2924 = vadd.f32 %v2379, %v2923
  %v2925 = vpop.f32.mrf.mxu0
  %v2926 = vpop.f32.mrf.mxu0
  %v2927 = vadd.f32 %v2382, %v2926
  %v2928 = vpop.f32.mrf.mxu0
  %2929 = vmatprep.mubr.bf16.mxu0 %v1515
  %2930 = vmatmul.mubr.bf16.gmra.mxu0 %v1514
  %v2931 = vpop.f32.mrf.mxu0
  %v2932 = vadd.f32 %v2387, %v2931
  %v2933 = vpop.f32.mrf.mxu0
  %v2934 = vpop.f32.mrf.mxu0
  %v2935 = vadd.f32 %v2390, %v2934
  %v2936 = vpop.f32.mrf.mxu0
  %2937 = vmatprep.mubr.bf16.mxu0 %v1519
  %2938 = vmatmul.mubr.bf16.gmra.mxu0 %v1518
  %v2939 = vpop.f32.mrf.mxu0
  %v2940 = vadd.f32 %v2395, %v2939
  %v2941 = vpop.f32.mrf.mxu0
  %v2942 = vpop.f32.mrf.mxu0
  %v2943 = vadd.f32 %v2398, %v2942
  %v2944 = vpop.f32.mrf.mxu0
  %2945 = vmatprep.mubr.bf16.mxu0 %v1523
  %2946 = vmatmul.mubr.bf16.gmra.mxu0 %v1522
  %v2947 = vpop.f32.mrf.mxu0
  %v2948 = vadd.f32 %v2403, %v2947
  %v2949 = vpop.f32.mrf.mxu0
  %v2950 = vpop.f32.mrf.mxu0
  %v2951 = vadd.f32 %v2406, %v2950
  %v2952 = vpop.f32.mrf.mxu0
  %2953 = vmatprep.mubr.bf16.mxu0 %v1527
  %2954 = vmatmul.mubr.bf16.gmra.mxu0 %v1526
  %v2955 = vpop.f32.mrf.mxu0
  %v2956 = vadd.f32 %v2411, %v2955
  %v2957 = vpop.f32.mrf.mxu0
  %v2958 = vpop.f32.mrf.mxu0
  %v2959 = vadd.f32 %v2414, %v2958
  %v2960 = vpop.f32.mrf.mxu0
  %2961 = vmatprep.mubr.bf16.mxu0 %v1531
  %2962 = vmatmul.mubr.bf16.gmra.mxu0 %v1530
  %v2963 = vpop.f32.mrf.mxu0
  %v2964 = vadd.f32 %v2419, %v2963
  %v2965 = vpop.f32.mrf.mxu0
  %v2966 = vpop.f32.mrf.mxu0
  %v2967 = vadd.f32 %v2422, %v2966
  %v2968 = vpop.f32.mrf.mxu0
  %2969 = vmatprep.mubr.bf16.mxu0 %v1535
  %2970 = vmatmul.mubr.bf16.gmra.mxu0 %v1534
  %v2971 = vpop.f32.mrf.mxu0
  %v2972 = vadd.f32 %v2427, %v2971
  %v2973 = vpop.f32.mrf.mxu0
  %v2974 = vpop.f32.mrf.mxu0
  %v2975 = vadd.f32 %v2430, %v2974
  %v2976 = vpop.f32.mrf.mxu0
  %2977 = vmatprep.mubr.bf16.mxu0 %v1539
  %2978 = vmatmul.mubr.bf16.gmra.mxu0 %v1538
  %v2979 = vpop.f32.mrf.mxu0
  %v2980 = vadd.f32 %v2435, %v2979
  %v2981 = vpop.f32.mrf.mxu0
  %v2982 = vpop.f32.mrf.mxu0
  %v2983 = vadd.f32 %v2438, %v2982
  %v2984 = vpop.f32.mrf.mxu0
  %2985 = vmatprep.mubr.bf16.mxu0 %v1543
  %2986 = vmatmul.mubr.bf16.gmra.mxu0 %v1542
  %v2987 = vpop.f32.mrf.mxu0
  %v2988 = vadd.f32 %v2443, %v2987
  %v2989 = vpop.f32.mrf.mxu0
  %v2990 = vpop.f32.mrf.mxu0
  %v2991 = vadd.f32 %v2446, %v2990
  %v2992 = vpop.f32.mrf.mxu0
  %2993 = vmatprep.mubr.bf16.mxu0 %v1547
  %2994 = vmatmul.mubr.bf16.gmra.mxu0 %v1546
  %v2995 = vpop.f32.mrf.mxu0
  %v2996 = vadd.f32 %v2451, %v2995
  %v2997 = vpop.f32.mrf.mxu0
  %v2998 = vpop.f32.mrf.mxu0
  %v2999 = vadd.f32 %v2454, %v2998
  %v3000 = vpop.f32.mrf.mxu0
  %3001 = vmatprep.mubr.bf16.mxu0 %v1551
  %3002 = vmatmul.mubr.bf16.gmra.mxu0 %v1550
  %v3003 = vpop.f32.mrf.mxu0
  %v3004 = vadd.f32 %v2459, %v3003
  %v3005 = vpop.f32.mrf.mxu0
  %v3006 = vpop.f32.mrf.mxu0
  %v3007 = vadd.f32 %v2462, %v3006
  %v3008 = vpop.f32.mrf.mxu0
  %3009 = vmatprep.mubr.bf16.mxu0 %v1555
  %3010 = vmatmul.mubr.bf16.gmra.mxu0 %v1554
  %v3011 = vpop.f32.mrf.mxu0
  %v3012 = vadd.f32 %v2467, %v3011
  %v3013 = vpop.f32.mrf.mxu0
  %v3014 = vpop.f32.mrf.mxu0
  %v3015 = vadd.f32 %v2470, %v3014
  %v3016 = vpop.f32.mrf.mxu0
  %3017 = vmatprep.mubr.bf16.mxu0 %v1559
  %3018 = vmatmul.mubr.bf16.gmra.mxu0 %v1558
  %v3019 = vpop.f32.mrf.mxu0
  %v3020 = vadd.f32 %v2475, %v3019
  %v3021 = vpop.f32.mrf.mxu0
  %v3022 = vpop.f32.mrf.mxu0
  %v3023 = vadd.f32 %v2478, %v3022
  %v3024 = vpop.f32.mrf.mxu0
  %3025 = vmatprep.mubr.bf16.mxu0 %v1563
  %3026 = vmatmul.mubr.bf16.gmra.mxu0 %v1562
  %v3027 = vpop.f32.mrf.mxu0
  %v3028 = vadd.f32 %v2483, %v3027
  %v3029 = vpop.f32.mrf.mxu0
  %v3030 = vpop.f32.mrf.mxu0
  %v3031 = vadd.f32 %v2486, %v3030
  %v3032 = vpop.f32.mrf.mxu0
  %3033 = vmatprep.mubr.bf16.mxu0 %v1567
  %3034 = vmatmul.mubr.bf16.gmra.mxu0 %v1566
  %v3035 = vpop.f32.mrf.mxu0
  %v3036 = vadd.f32 %v2491, %v3035
  %v3037 = vpop.f32.mrf.mxu0
  %v3038 = vpop.f32.mrf.mxu0
  %v3039 = vadd.f32 %v2494, %v3038
  %v3040 = vpop.f32.mrf.mxu0
  %3041 = vmatprep.mubr.bf16.mxu0 %v1571
  %3042 = vmatmul.mubr.bf16.gmra.mxu0 %v1570
  %v3043 = vpop.f32.mrf.mxu0
  %v3044 = vadd.f32 %v2499, %v3043
  %v3045 = vpop.f32.mrf.mxu0
  %v3046 = vpop.f32.mrf.mxu0
  %v3047 = vadd.f32 %v2502, %v3046
  %v3048 = vpop.f32.mrf.mxu0
  %3049 = vmatprep.mubr.bf16.mxu0 %v1575
  %3050 = vmatmul.mubr.bf16.gmra.mxu0 %v1574
  %v3051 = vpop.f32.mrf.mxu0
  %v3052 = vadd.f32 %v2507, %v3051
  %v3053 = vpop.f32.mrf.mxu0
  %v3054 = vpop.f32.mrf.mxu0
  %v3055 = vadd.f32 %v2510, %v3054
  %v3056 = vpop.f32.mrf.mxu0
  %3057 = vmatprep.mubr.bf16.mxu0 %v1579
  %3058 = vmatmul.mubr.bf16.gmra.mxu0 %v1578
  %v3059 = vpop.f32.mrf.mxu0
  %v3060 = vadd.f32 %v2515, %v3059
  %v3061 = vpop.f32.mrf.mxu0
  %v3062 = vpop.f32.mrf.mxu0
  %v3063 = vadd.f32 %v2518, %v3062
  %v3064 = vpop.f32.mrf.mxu0
  %3065 = vmatprep.mubr.bf16.mxu0 %v1583
  %3066 = vmatmul.mubr.bf16.gmra.mxu0 %v1582
  %v3067 = vpop.f32.mrf.mxu0
  %v3068 = vadd.f32 %v2523, %v3067
  %v3069 = vpop.f32.mrf.mxu0
  %v3070 = vpop.f32.mrf.mxu0
  %v3071 = vadd.f32 %v2526, %v3070
  %v3072 = vpop.f32.mrf.mxu0
  %3073 = vmatprep.mubr.bf16.mxu0 %v1587
  %3074 = vmatmul.mubr.bf16.gmra.mxu0 %v1586
  %v3075 = vpop.f32.mrf.mxu0
  %v3076 = vadd.f32 %v2531, %v3075
  %v3077 = vpop.f32.mrf.mxu0
  %v3078 = vpop.f32.mrf.mxu0
  %v3079 = vadd.f32 %v2534, %v3078
  %v3080 = vpop.f32.mrf.mxu0
  %3081 = vmatprep.mubr.bf16.mxu0 %v1591
  %3082 = vmatmul.mubr.bf16.gmra.mxu0 %v1590
  %v3083 = vpop.f32.mrf.mxu0
  %v3084 = vadd.f32 %v2539, %v3083
  %v3085 = vpop.f32.mrf.mxu0
  %v3086 = vpop.f32.mrf.mxu0
  %v3087 = vadd.f32 %v2542, %v3086
  %v3088 = vpop.f32.mrf.mxu0
  %3089 = vmatprep.mubr.bf16.mxu0 %v1595
  %3090 = vmatmul.mubr.bf16.gmra.mxu0 %v1594
  %v3091 = vpop.f32.mrf.mxu0
  %v3092 = vadd.f32 %v2547, %v3091
  %v3093 = vpop.f32.mrf.mxu0
  %v3094 = vpop.f32.mrf.mxu0
  %v3095 = vadd.f32 %v2550, %v3094
  %v3096 = vpop.f32.mrf.mxu0
  %3097 = vmatprep.mubr.bf16.mxu0 %v1599
  %3098 = vmatmul.mubr.bf16.gmra.mxu0 %v1598
  %v3099 = vpop.f32.mrf.mxu0
  %v3100 = vadd.f32 %v2555, %v3099
  %v3101 = vpop.f32.mrf.mxu0
  %v3102 = vpop.f32.mrf.mxu0
  %v3103 = vadd.f32 %v2558, %v3102
  %v3104 = vpop.f32.mrf.mxu0
  %3105 = vmatprep.mubr.bf16.mxu0 %v1603
  %3106 = vmatmul.mubr.bf16.gmra.mxu0 %v1602
  %v3107 = vpop.f32.mrf.mxu0
  %v3108 = vadd.f32 %v2563, %v3107
  %v3109 = vpop.f32.mrf.mxu0
  %v3110 = vpop.f32.mrf.mxu0
  %v3111 = vadd.f32 %v2566, %v3110
  %v3112 = vpop.f32.mrf.mxu0
  %3113 = vmatprep.mubr.bf16.mxu0 %v1607
  %3114 = vmatmul.mubr.bf16.gmra.mxu0 %v1606
  %v3115 = vpop.f32.mrf.mxu0
  %v3116 = vadd.f32 %v2571, %v3115
  %v3117 = vpop.f32.mrf.mxu0
  %v3118 = vpop.f32.mrf.mxu0
  %v3119 = vadd.f32 %v2574, %v3118
  %v3120 = vpop.f32.mrf.mxu0
  %3121 = vmatprep.mubr.bf16.mxu0 %v1611
  %3122 = vmatmul.mubr.bf16.gmra.mxu0 %v1610
  %v3123 = vpop.f32.mrf.mxu0
  %v3124 = vadd.f32 %v2579, %v3123
  %v3125 = vpop.f32.mrf.mxu0
  %v3126 = vpop.f32.mrf.mxu0
  %v3127 = vadd.f32 %v2582, %v3126
  %v3128 = vpop.f32.mrf.mxu0
  %3129 = vmatprep.mubr.bf16.mxu0 %v1615
  %3130 = vmatmul.mubr.bf16.gmra.mxu0 %v1614
  %v3131 = vpop.f32.mrf.mxu0
  %v3132 = vadd.f32 %v2587, %v3131
  %v3133 = vpop.f32.mrf.mxu0
  %v3134 = vpop.f32.mrf.mxu0
  %v3135 = vadd.f32 %v2590, %v3134
  %v3136 = vpop.f32.mrf.mxu0
  %3137 = vmatprep.mubr.bf16.mxu0 %v1619
  %3138 = vmatmul.mubr.bf16.gmra.mxu0 %v1618
  %v3139 = vpop.f32.mrf.mxu0
  %v3140 = vadd.f32 %v2595, %v3139
  %v3141 = vpop.f32.mrf.mxu0
  %v3142 = vpop.f32.mrf.mxu0
  %v3143 = vadd.f32 %v2598, %v3142
  %v3144 = vpop.f32.mrf.mxu0
  %3145 = vmatprep.mubr.bf16.mxu0 %v1623
  %3146 = vmatmul.mubr.bf16.gmra.mxu0 %v1622
  %v3147 = vpop.f32.mrf.mxu0
  %v3148 = vadd.f32 %v2603, %v3147
  %v3149 = vpop.f32.mrf.mxu0
  %v3150 = vpop.f32.mrf.mxu0
  %v3151 = vadd.f32 %v2606, %v3150
  %v3152 = vpop.f32.mrf.mxu0
  %3153 = vmatprep.mubr.bf16.mxu0 %v1627
  %3154 = vmatmul.mubr.bf16.gmra.mxu0 %v1626
  %v3155 = vpop.f32.mrf.mxu0
  %v3156 = vadd.f32 %v2611, %v3155
  %v3157 = vpop.f32.mrf.mxu0
  %v3158 = vpop.f32.mrf.mxu0
  %v3159 = vadd.f32 %v2614, %v3158
  %v3160 = vpop.f32.mrf.mxu0
  %3161 = vmatprep.mubr.bf16.mxu0 %v1631
  %3162 = vmatmul.mubr.bf16.gmra.mxu0 %v1630
  %v3163 = vpop.f32.mrf.mxu0
  %v3164 = vadd.f32 %v2619, %v3163
  %v3165 = vpop.f32.mrf.mxu0
  %v3166 = vpop.f32.mrf.mxu0
  %v3167 = vadd.f32 %v2622, %v3166
  %v3168 = vpop.f32.mrf.mxu0
  %3169 = vdwg.mxu0
  %v3170 = vadd.f32 %v160, %v2660
  %v3171 = vadd.f32 %v161, %v2663
  %v3172 = vadd.f32 %v162, %v2668
  %v3173 = vadd.f32 %v163, %v2671
  %v3174 = vadd.f32 %v164, %v2676
  %v3175 = vadd.f32 %v165, %v2679
  %v3176 = vadd.f32 %v166, %v2684
  %v3177 = vadd.f32 %v167, %v2687
  %v3178 = vadd.f32 %v168, %v2692
  %v3179 = vadd.f32 %v169, %v2695
  %v3180 = vadd.f32 %v170, %v2700
  %v3181 = vadd.f32 %v171, %v2703
  %v3182 = vadd.f32 %v172, %v2708
  %v3183 = vadd.f32 %v173, %v2711
  %v3184 = vadd.f32 %v174, %v2716
  %v3185 = vadd.f32 %v175, %v2719
  %v3186 = vadd.f32 %v176, %v2724
  %v3187 = vadd.f32 %v177, %v2727
  %v3188 = vadd.f32 %v178, %v2732
  %v3189 = vadd.f32 %v179, %v2735
  %v3190 = vadd.f32 %v180, %v2740
  %v3191 = vadd.f32 %v181, %v2743
  %v3192 = vadd.f32 %v182, %v2748
  %v3193 = vadd.f32 %v183, %v2751
  %v3194 = vadd.f32 %v184, %v2756
  %v3195 = vadd.f32 %v185, %v2759
  %v3196 = vadd.f32 %v186, %v2764
  %v3197 = vadd.f32 %v187, %v2767
  %v3198 = vadd.f32 %v188, %v2772
  %v3199 = vadd.f32 %v189, %v2775
  %v3200 = vadd.f32 %v190, %v2780
  %v3201 = vadd.f32 %v191, %v2783
  %v3202 = vadd.f32 %v192, %v2788
  %v3203 = vadd.f32 %v193, %v2791
  %v3204 = vadd.f32 %v194, %v2796
  %v3205 = vadd.f32 %v195, %v2799
  %v3206 = vadd.f32 %v196, %v2804
  %v3207 = vadd.f32 %v197, %v2807
  %v3208 = vadd.f32 %v198, %v2812
  %v3209 = vadd.f32 %v199, %v2815
  %v3210 = vadd.f32 %v200, %v2820
  %v3211 = vadd.f32 %v201, %v2823
  %v3212 = vadd.f32 %v202, %v2828
  %v3213 = vadd.f32 %v203, %v2831
  %v3214 = vadd.f32 %v204, %v2836
  %v3215 = vadd.f32 %v205, %v2839
  %v3216 = vadd.f32 %v206, %v2844
  %v3217 = vadd.f32 %v207, %v2847
  %v3218 = vadd.f32 %v208, %v2852
  %v3219 = vadd.f32 %v209, %v2855
  %v3220 = vadd.f32 %v210, %v2860
  %v3221 = vadd.f32 %v211, %v2863
  %v3222 = vadd.f32 %v212, %v2868
  %v3223 = vadd.f32 %v213, %v2871
  %v3224 = vadd.f32 %v214, %v2876
  %v3225 = vadd.f32 %v215, %v2879
  %v3226 = vadd.f32 %v216, %v2884
  %v3227 = vadd.f32 %v217, %v2887
  %v3228 = vadd.f32 %v218, %v2892
  %v3229 = vadd.f32 %v219, %v2895
  %v3230 = vadd.f32 %v220, %v2900
  %v3231 = vadd.f32 %v221, %v2903
  %v3232 = vadd.f32 %v222, %v2908
  %v3233 = vadd.f32 %v223, %v2911
  %v3234 = vadd.f32 %v224, %v2916
  %v3235 = vadd.f32 %v225, %v2919
  %v3236 = vadd.f32 %v226, %v2924
  %v3237 = vadd.f32 %v227, %v2927
  %v3238 = vadd.f32 %v228, %v2932
  %v3239 = vadd.f32 %v229, %v2935
  %v3240 = vadd.f32 %v230, %v2940
  %v3241 = vadd.f32 %v231, %v2943
  %v3242 = vadd.f32 %v232, %v2948
  %v3243 = vadd.f32 %v233, %v2951
  %v3244 = vadd.f32 %v234, %v2956
  %v3245 = vadd.f32 %v235, %v2959
  %v3246 = vadd.f32 %v236, %v2964
  %v3247 = vadd.f32 %v237, %v2967
  %v3248 = vadd.f32 %v238, %v2972
  %v3249 = vadd.f32 %v239, %v2975
  %v3250 = vadd.f32 %v240, %v2980
  %v3251 = vadd.f32 %v241, %v2983
  %v3252 = vadd.f32 %v242, %v2988
  %v3253 = vadd.f32 %v243, %v2991
  %v3254 = vadd.f32 %v244, %v2996
  %v3255 = vadd.f32 %v245, %v2999
  %v3256 = vadd.f32 %v246, %v3004
  %v3257 = vadd.f32 %v247, %v3007
  %v3258 = vadd.f32 %v248, %v3012
  %v3259 = vadd.f32 %v249, %v3015
  %v3260 = vadd.f32 %v250, %v3020
  %v3261 = vadd.f32 %v251, %v3023
  %v3262 = vadd.f32 %v252, %v3028
  %v3263 = vadd.f32 %v253, %v3031
  %v3264 = vadd.f32 %v254, %v3036
  %v3265 = vadd.f32 %v255, %v3039
  %v3266 = vadd.f32 %v256, %v3044
  %v3267 = vadd.f32 %v257, %v3047
  %v3268 = vadd.f32 %v258, %v3052
  %v3269 = vadd.f32 %v259, %v3055
  %v3270 = vadd.f32 %v260, %v3060
  %v3271 = vadd.f32 %v261, %v3063
  %v3272 = vadd.f32 %v262, %v3068
  %v3273 = vadd.f32 %v263, %v3071
  %v3274 = vadd.f32 %v264, %v3076
  %v3275 = vadd.f32 %v265, %v3079
  %v3276 = vadd.f32 %v266, %v3084
  %v3277 = vadd.f32 %v267, %v3087
  %v3278 = vadd.f32 %v268, %v3092
  %v3279 = vadd.f32 %v269, %v3095
  %v3280 = vadd.f32 %v270, %v3100
  %v3281 = vadd.f32 %v271, %v3103
  %v3282 = vadd.f32 %v272, %v3108
  %v3283 = vadd.f32 %v273, %v3111
  %v3284 = vadd.f32 %v274, %v3116
  %v3285 = vadd.f32 %v275, %v3119
  %v3286 = vadd.f32 %v276, %v3124
  %v3287 = vadd.f32 %v277, %v3127
  %v3288 = vadd.f32 %v278, %v3132
  %v3289 = vadd.f32 %v279, %v3135
  %v3290 = vadd.f32 %v280, %v3140
  %v3291 = vadd.f32 %v281, %v3143
  %v3292 = vadd.f32 %v282, %v3148
  %v3293 = vadd.f32 %v283, %v3151
  %v3294 = vadd.f32 %v284, %v3156
  %v3295 = vadd.f32 %v285, %v3159
  %v3296 = vadd.f32 %v286, %v3164
  %v3297 = vadd.f32 %v287, %v3167
  %vm3298 = vcmask 7168
  %3299 = vst.msk [vmem:[#allocation2] sm:$0xff] %vm3298, %v3170
  %3300 = vst.msk [vmem:[#allocation2 + $0x8] sm:$0xff] %vm3298, %v3171
  %3301 = vst.msk [vmem:[#allocation2 + $0x10] sm:$0xff] %vm3298, %v3172
  %3302 = vst.msk [vmem:[#allocation2 + $0x18] sm:$0xff] %vm3298, %v3173
  %3303 = vst.msk [vmem:[#allocation2 + $0x20] sm:$0xff] %vm3298, %v3174
  %3304 = vst.msk [vmem:[#allocation2 + $0x28] sm:$0xff] %vm3298, %v3175
  %3305 = vst.msk [vmem:[#allocation2 + $0x30] sm:$0xff] %vm3298, %v3176
  %3306 = vst.msk [vmem:[#allocation2 + $0x38] sm:$0xff] %vm3298, %v3177
  %3307 = vst.msk [vmem:[#allocation2 + $0x40] sm:$0xff] %vm3298, %v3178
  %3308 = vst.msk [vmem:[#allocation2 + $0x48] sm:$0xff] %vm3298, %v3179
  %3309 = vst.msk [vmem:[#allocation2 + $0x50] sm:$0xff] %vm3298, %v3180
  %3310 = vst.msk [vmem:[#allocation2 + $0x58] sm:$0xff] %vm3298, %v3181
  %3311 = vst.msk [vmem:[#allocation2 + $0x60] sm:$0xff] %vm3298, %v3182
  %3312 = vst.msk [vmem:[#allocation2 + $0x68] sm:$0xff] %vm3298, %v3183
  %3313 = vst.msk [vmem:[#allocation2 + $0x70] sm:$0xff] %vm3298, %v3184
  %3314 = vst.msk [vmem:[#allocation2 + $0x78] sm:$0xff] %vm3298, %v3185
  %3315 = vst.msk [vmem:[#allocation2 + $0x80] sm:$0xff] %vm3298, %v3186
  %3316 = vst.msk [vmem:[#allocation2 + $0x88] sm:$0xff] %vm3298, %v3187
  %3317 = vst.msk [vmem:[#allocation2 + $0x90] sm:$0xff] %vm3298, %v3188
  %3318 = vst.msk [vmem:[#allocation2 + $0x98] sm:$0xff] %vm3298, %v3189
  %3319 = vst.msk [vmem:[#allocation2 + $0xa0] sm:$0xff] %vm3298, %v3190
  %3320 = vst.msk [vmem:[#allocation2 + $0xa8] sm:$0xff] %vm3298, %v3191
  %3321 = vst.msk [vmem:[#allocation2 + $0xb0] sm:$0xff] %vm3298, %v3192
  %3322 = vst.msk [vmem:[#allocation2 + $0xb8] sm:$0xff] %vm3298, %v3193
  %3323 = vst.msk [vmem:[#allocation2 + $0xc0] sm:$0xff] %vm3298, %v3194
  %3324 = vst.msk [vmem:[#allocation2 + $0xc8] sm:$0xff] %vm3298, %v3195
  %3325 = vst.msk [vmem:[#allocation2 + $0xd0] sm:$0xff] %vm3298, %v3196
  %3326 = vst.msk [vmem:[#allocation2 + $0xd8] sm:$0xff] %vm3298, %v3197
  %3327 = vst.msk [vmem:[#allocation2 + $0xe0] sm:$0xff] %vm3298, %v3198
  %3328 = vst.msk [vmem:[#allocation2 + $0xe8] sm:$0xff] %vm3298, %v3199
  %3329 = vst.msk [vmem:[#allocation2 + $0xf0] sm:$0xff] %vm3298, %v3200
  %3330 = vst.msk [vmem:[#allocation2 + $0xf8] sm:$0xff] %vm3298, %v3201
  %3331 = vst.msk [vmem:[#allocation2 + $0x100] sm:$0xff] %vm3298, %v3202
  %3332 = vst.msk [vmem:[#allocation2 + $0x108] sm:$0xff] %vm3298, %v3203
  %3333 = vst.msk [vmem:[#allocation2 + $0x110] sm:$0xff] %vm3298, %v3204
  %3334 = vst.msk [vmem:[#allocation2 + $0x118] sm:$0xff] %vm3298, %v3205
  %3335 = vst.msk [vmem:[#allocation2 + $0x120] sm:$0xff] %vm3298, %v3206
  %3336 = vst.msk [vmem:[#allocation2 + $0x128] sm:$0xff] %vm3298, %v3207
  %3337 = vst.msk [vmem:[#allocation2 + $0x130] sm:$0xff] %vm3298, %v3208
  %3338 = vst.msk [vmem:[#allocation2 + $0x138] sm:$0xff] %vm3298, %v3209
  %3339 = vst.msk [vmem:[#allocation2 + $0x140] sm:$0xff] %vm3298, %v3210
  %3340 = vst.msk [vmem:[#allocation2 + $0x148] sm:$0xff] %vm3298, %v3211
  %3341 = vst.msk [vmem:[#allocation2 + $0x150] sm:$0xff] %vm3298, %v3212
  %3342 = vst.msk [vmem:[#allocation2 + $0x158] sm:$0xff] %vm3298, %v3213
  %3343 = vst.msk [vmem:[#allocation2 + $0x160] sm:$0xff] %vm3298, %v3214
  %3344 = vst.msk [vmem:[#allocation2 + $0x168] sm:$0xff] %vm3298, %v3215
  %3345 = vst.msk [vmem:[#allocation2 + $0x170] sm:$0xff] %vm3298, %v3216
  %3346 = vst.msk [vmem:[#allocation2 + $0x178] sm:$0xff] %vm3298, %v3217
  %3347 = vst.msk [vmem:[#allocation2 + $0x180] sm:$0xff] %vm3298, %v3218
  %3348 = vst.msk [vmem:[#allocation2 + $0x188] sm:$0xff] %vm3298, %v3219
  %3349 = vst.msk [vmem:[#allocation2 + $0x190] sm:$0xff] %vm3298, %v3220
  %3350 = vst.msk [vmem:[#allocation2 + $0x198] sm:$0xff] %vm3298, %v3221
  %3351 = vst.msk [vmem:[#allocation2 + $0x1a0] sm:$0xff] %vm3298, %v3222
  %3352 = vst.msk [vmem:[#allocation2 + $0x1a8] sm:$0xff] %vm3298, %v3223
  %3353 = vst.msk [vmem:[#allocation2 + $0x1b0] sm:$0xff] %vm3298, %v3224
  %3354 = vst.msk [vmem:[#allocation2 + $0x1b8] sm:$0xff] %vm3298, %v3225
  %3355 = vst.msk [vmem:[#allocation2 + $0x1c0] sm:$0xff] %vm3298, %v3226
  %3356 = vst.msk [vmem:[#allocation2 + $0x1c8] sm:$0xff] %vm3298, %v3227
  %3357 = vst.msk [vmem:[#allocation2 + $0x1d0] sm:$0xff] %vm3298, %v3228
  %3358 = vst.msk [vmem:[#allocation2 + $0x1d8] sm:$0xff] %vm3298, %v3229
  %3359 = vst.msk [vmem:[#allocation2 + $0x1e0] sm:$0xff] %vm3298, %v3230
  %3360 = vst.msk [vmem:[#allocation2 + $0x1e8] sm:$0xff] %vm3298, %v3231
  %3361 = vst.msk [vmem:[#allocation2 + $0x1f0] sm:$0xff] %vm3298, %v3232
  %3362 = vst.msk [vmem:[#allocation2 + $0x1f8] sm:$0xff] %vm3298, %v3233
  %3363 = vst.msk [vmem:[#allocation2 + $0x200] sm:$0xff] %vm3298, %v3234
  %3364 = vst.msk [vmem:[#allocation2 + $0x208] sm:$0xff] %vm3298, %v3235
  %3365 = vst.msk [vmem:[#allocation2 + $0x210] sm:$0xff] %vm3298, %v3236
  %3366 = vst.msk [vmem:[#allocation2 + $0x218] sm:$0xff] %vm3298, %v3237
  %3367 = vst.msk [vmem:[#allocation2 + $0x220] sm:$0xff] %vm3298, %v3238
  %3368 = vst.msk [vmem:[#allocation2 + $0x228] sm:$0xff] %vm3298, %v3239
  %3369 = vst.msk [vmem:[#allocation2 + $0x230] sm:$0xff] %vm3298, %v3240
  %3370 = vst.msk [vmem:[#allocation2 + $0x238] sm:$0xff] %vm3298, %v3241
  %3371 = vst.msk [vmem:[#allocation2 + $0x240] sm:$0xff] %vm3298, %v3242
  %3372 = vst.msk [vmem:[#allocation2 + $0x248] sm:$0xff] %vm3298, %v3243
  %3373 = vst.msk [vmem:[#allocation2 + $0x250] sm:$0xff] %vm3298, %v3244
  %3374 = vst.msk [vmem:[#allocation2 + $0x258] sm:$0xff] %vm3298, %v3245
  %3375 = vst.msk [vmem:[#allocation2 + $0x260] sm:$0xff] %vm3298, %v3246
  %3376 = vst.msk [vmem:[#allocation2 + $0x268] sm:$0xff] %vm3298, %v3247
  %3377 = vst.msk [vmem:[#allocation2 + $0x270] sm:$0xff] %vm3298, %v3248
  %3378 = vst.msk [vmem:[#allocation2 + $0x278] sm:$0xff] %vm3298, %v3249
  %3379 = vst.msk [vmem:[#allocation2 + $0x280] sm:$0xff] %vm3298, %v3250
  %3380 = vst.msk [vmem:[#allocation2 + $0x288] sm:$0xff] %vm3298, %v3251
  %3381 = vst.msk [vmem:[#allocation2 + $0x290] sm:$0xff] %vm3298, %v3252
  %3382 = vst.msk [vmem:[#allocation2 + $0x298] sm:$0xff] %vm3298, %v3253
  %3383 = vst.msk [vmem:[#allocation2 + $0x2a0] sm:$0xff] %vm3298, %v3254
  %3384 = vst.msk [vmem:[#allocation2 + $0x2a8] sm:$0xff] %vm3298, %v3255
  %3385 = vst.msk [vmem:[#allocation2 + $0x2b0] sm:$0xff] %vm3298, %v3256
  %3386 = vst.msk [vmem:[#allocation2 + $0x2b8] sm:$0xff] %vm3298, %v3257
  %3387 = vst.msk [vmem:[#allocation2 + $0x2c0] sm:$0xff] %vm3298, %v3258
  %3388 = vst.msk [vmem:[#allocation2 + $0x2c8] sm:$0xff] %vm3298, %v3259
  %3389 = vst.msk [vmem:[#allocation2 + $0x2d0] sm:$0xff] %vm3298, %v3260
  %3390 = vst.msk [vmem:[#allocation2 + $0x2d8] sm:$0xff] %vm3298, %v3261
  %3391 = vst.msk [vmem:[#allocation2 + $0x2e0] sm:$0xff] %vm3298, %v3262
  %3392 = vst.msk [vmem:[#allocation2 + $0x2e8] sm:$0xff] %vm3298, %v3263
  %3393 = vst.msk [vmem:[#allocation2 + $0x2f0] sm:$0xff] %vm3298, %v3264
  %3394 = vst.msk [vmem:[#allocation2 + $0x2f8] sm:$0xff] %vm3298, %v3265
  %3395 = vst.msk [vmem:[#allocation2 + $0x300] sm:$0xff] %vm3298, %v3266
  %3396 = vst.msk [vmem:[#allocation2 + $0x308] sm:$0xff] %vm3298, %v3267
  %3397 = vst.msk [vmem:[#allocation2 + $0x310] sm:$0xff] %vm3298, %v3268
  %3398 = vst.msk [vmem:[#allocation2 + $0x318] sm:$0xff] %vm3298, %v3269
  %3399 = vst.msk [vmem:[#allocation2 + $0x320] sm:$0xff] %vm3298, %v3270
  %3400 = vst.msk [vmem:[#allocation2 + $0x328] sm:$0xff] %vm3298, %v3271
  %3401 = vst.msk [vmem:[#allocation2 + $0x330] sm:$0xff] %vm3298, %v3272
  %3402 = vst.msk [vmem:[#allocation2 + $0x338] sm:$0xff] %vm3298, %v3273
  %3403 = vst.msk [vmem:[#allocation2 + $0x340] sm:$0xff] %vm3298, %v3274
  %3404 = vst.msk [vmem:[#allocation2 + $0x348] sm:$0xff] %vm3298, %v3275
  %3405 = vst.msk [vmem:[#allocation2 + $0x350] sm:$0xff] %vm3298, %v3276
  %3406 = vst.msk [vmem:[#allocation2 + $0x358] sm:$0xff] %vm3298, %v3277
  %3407 = vst.msk [vmem:[#allocation2 + $0x360] sm:$0xff] %vm3298, %v3278
  %3408 = vst.msk [vmem:[#allocation2 + $0x368] sm:$0xff] %vm3298, %v3279
  %3409 = vst.msk [vmem:[#allocation2 + $0x370] sm:$0xff] %vm3298, %v3280
  %3410 = vst.msk [vmem:[#allocation2 + $0x378] sm:$0xff] %vm3298, %v3281
  %3411 = vst.msk [vmem:[#allocation2 + $0x380] sm:$0xff] %vm3298, %v3282
  %3412 = vst.msk [vmem:[#allocation2 + $0x388] sm:$0xff] %vm3298, %v3283
  %3413 = vst.msk [vmem:[#allocation2 + $0x390] sm:$0xff] %vm3298, %v3284
  %3414 = vst.msk [vmem:[#allocation2 + $0x398] sm:$0xff] %vm3298, %v3285
  %3415 = vst.msk [vmem:[#allocation2 + $0x3a0] sm:$0xff] %vm3298, %v3286
  %3416 = vst.msk [vmem:[#allocation2 + $0x3a8] sm:$0xff] %vm3298, %v3287
  %3417 = vst.msk [vmem:[#allocation2 + $0x3b0] sm:$0xff] %vm3298, %v3288
  %3418 = vst.msk [vmem:[#allocation2 + $0x3b8] sm:$0xff] %vm3298, %v3289
  %3419 = vst.msk [vmem:[#allocation2 + $0x3c0] sm:$0xff] %vm3298, %v3290
  %3420 = vst.msk [vmem:[#allocation2 + $0x3c8] sm:$0xff] %vm3298, %v3291
  %3421 = vst.msk [vmem:[#allocation2 + $0x3d0] sm:$0xff] %vm3298, %v3292
  %3422 = vst.msk [vmem:[#allocation2 + $0x3d8] sm:$0xff] %vm3298, %v3293
  %3423 = vst.msk [vmem:[#allocation2 + $0x3e0] sm:$0xff] %vm3298, %v3294
  %3424 = vst.msk [vmem:[#allocation2 + $0x3e8] sm:$0xff] %vm3298, %v3295
  %3425 = vst.msk [vmem:[#allocation2 + $0x3f0] sm:$0xff] %vm3298, %v3296
  %3426 = vst.msk [vmem:[#allocation2 + $0x3f8] sm:$0xff] %vm3298, %v3297
  // Predicated region
  $region26: #{vae_forward.13} parent=0 // pred_check
    %p3427 = pneg %p27
  $region27: #{vae_forward.13} parent=0 // pred_check_branch
    %3429 = sbr.rel (%p3427) target = $region29
  $region28: #{vae_forward.13} parent=0 // pred_region
    %v3430 = vld [vmem:[#allocation2] sm:$0xff]
    %v3431 = vld [vmem:[#allocation2 + $0x8] sm:$0xff]
    %v3432 = vld [vmem:[#allocation2 + $0x10] sm:$0xff]
    %v3433 = vld [vmem:[#allocation2 + $0x18] sm:$0xff]
    %v3434 = vld [vmem:[#allocation2 + $0x20] sm:$0xff]
    %v3435 = vld [vmem:[#allocation2 + $0x28] sm:$0xff]
    %v3436 = vld [vmem:[#allocation2 + $0x30] sm:$0xff]
    %v3437 = vld [vmem:[#allocation2 + $0x38] sm:$0xff]
    %v3438 = vld [vmem:[#allocation2 + $0x40] sm:$0xff]
    %v3439 = vld [vmem:[#allocation2 + $0x48] sm:$0xff]
    %v3440 = vld [vmem:[#allocation2 + $0x50] sm:$0xff]
    %v3441 = vld [vmem:[#allocation2 + $0x58] sm:$0xff]
    %v3442 = vld [vmem:[#allocation2 + $0x60] sm:$0xff]
    %v3443 = vld [vmem:[#allocation2 + $0x68] sm:$0xff]
    %v3444 = vld [vmem:[#allocation2 + $0x70] sm:$0xff]
    %v3445 = vld [vmem:[#allocation2 + $0x78] sm:$0xff]
    %v3446 = vld [vmem:[#allocation2 + $0x80] sm:$0xff]
    %v3447 = vld [vmem:[#allocation2 + $0x88] sm:$0xff]
    %v3448 = vld [vmem:[#allocation2 + $0x90] sm:$0xff]
    %v3449 = vld [vmem:[#allocation2 + $0x98] sm:$0xff]
    %v3450 = vld [vmem:[#allocation2 + $0xa0] sm:$0xff]
    %v3451 = vld [vmem:[#allocation2 + $0xa8] sm:$0xff]
    %v3452 = vld [vmem:[#allocation2 + $0xb0] sm:$0xff]
    %v3453 = vld [vmem:[#allocation2 + $0xb8] sm:$0xff]
    %v3454 = vld [vmem:[#allocation2 + $0xc0] sm:$0xff]
    %v3455 = vld [vmem:[#allocation2 + $0xc8] sm:$0xff]
    %v3456 = vld [vmem:[#allocation2 + $0xd0] sm:$0xff]
    %v3457 = vld [vmem:[#allocation2 + $0xd8] sm:$0xff]
    %v3458 = vld [vmem:[#allocation2 + $0xe0] sm:$0xff]
    %v3459 = vld [vmem:[#allocation2 + $0xe8] sm:$0xff]
    %v3460 = vld [vmem:[#allocation2 + $0xf0] sm:$0xff]
    %v3461 = vld [vmem:[#allocation2 + $0xf8] sm:$0xff]
    %v3462 = vld [vmem:[#allocation2 + $0x100] sm:$0xff]
    %v3463 = vld [vmem:[#allocation2 + $0x108] sm:$0xff]
    %v3464 = vld [vmem:[#allocation2 + $0x110] sm:$0xff]
    %v3465 = vld [vmem:[#allocation2 + $0x118] sm:$0xff]
    %v3466 = vld [vmem:[#allocation2 + $0x120] sm:$0xff]
    %v3467 = vld [vmem:[#allocation2 + $0x128] sm:$0xff]
    %v3468 = vld [vmem:[#allocation2 + $0x130] sm:$0xff]
    %v3469 = vld [vmem:[#allocation2 + $0x138] sm:$0xff]
    %v3470 = vld [vmem:[#allocation2 + $0x140] sm:$0xff]
    %v3471 = vld [vmem:[#allocation2 + $0x148] sm:$0xff]
    %v3472 = vld [vmem:[#allocation2 + $0x150] sm:$0xff]
    %v3473 = vld [vmem:[#allocation2 + $0x158] sm:$0xff]
    %v3474 = vld [vmem:[#allocation2 + $0x160] sm:$0xff]
    %v3475 = vld [vmem:[#allocation2 + $0x168] sm:$0xff]
    %v3476 = vld [vmem:[#allocation2 + $0x170] sm:$0xff]
    %v3477 = vld [vmem:[#allocation2 + $0x178] sm:$0xff]
    %v3478 = vld [vmem:[#allocation2 + $0x180] sm:$0xff]
    %v3479 = vld [vmem:[#allocation2 + $0x188] sm:$0xff]
    %v3480 = vld [vmem:[#allocation2 + $0x190] sm:$0xff]
    %v3481 = vld [vmem:[#allocation2 + $0x198] sm:$0xff]
    %v3482 = vld [vmem:[#allocation2 + $0x1a0] sm:$0xff]
    %v3483 = vld [vmem:[#allocation2 + $0x1a8] sm:$0xff]
    %v3484 = vld [vmem:[#allocation2 + $0x1b0] sm:$0xff]
    %v3485 = vld [vmem:[#allocation2 + $0x1b8] sm:$0xff]
    %v3486 = vld [vmem:[#allocation2 + $0x1c0] sm:$0xff]
    %v3487 = vld [vmem:[#allocation2 + $0x1c8] sm:$0xff]
    %v3488 = vld [vmem:[#allocation2 + $0x1d0] sm:$0xff]
    %v3489 = vld [vmem:[#allocation2 + $0x1d8] sm:$0xff]
    %v3490 = vld [vmem:[#allocation2 + $0x1e0] sm:$0xff]
    %v3491 = vld [vmem:[#allocation2 + $0x1e8] sm:$0xff]
    %v3492 = vld [vmem:[#allocation2 + $0x1f0] sm:$0xff]
    %v3493 = vld [vmem:[#allocation2 + $0x1f8] sm:$0xff]
    %v3494 = vld [vmem:[#allocation2 + $0x200] sm:$0xff]
    %v3495 = vld [vmem:[#allocation2 + $0x208] sm:$0xff]
    %v3496 = vld [vmem:[#allocation2 + $0x210] sm:$0xff]
    %v3497 = vld [vmem:[#allocation2 + $0x218] sm:$0xff]
    %v3498 = vld [vmem:[#allocation2 + $0x220] sm:$0xff]
    %v3499 = vld [vmem:[#allocation2 + $0x228] sm:$0xff]
    %v3500 = vld [vmem:[#allocation2 + $0x230] sm:$0xff]
    %v3501 = vld [vmem:[#allocation2 + $0x238] sm:$0xff]
    %v3502 = vld [vmem:[#allocation2 + $0x240] sm:$0xff]
    %v3503 = vld [vmem:[#allocation2 + $0x248] sm:$0xff]
    %v3504 = vld [vmem:[#allocation2 + $0x250] sm:$0xff]
    %v3505 = vld [vmem:[#allocation2 + $0x258] sm:$0xff]
    %v3506 = vld [vmem:[#allocation2 + $0x260] sm:$0xff]
    %v3507 = vld [vmem:[#allocation2 + $0x268] sm:$0xff]
    %v3508 = vld [vmem:[#allocation2 + $0x270] sm:$0xff]
    %v3509 = vld [vmem:[#allocation2 + $0x278] sm:$0xff]
    %v3510 = vld [vmem:[#allocation2 + $0x280] sm:$0xff]
    %v3511 = vld [vmem:[#allocation2 + $0x288] sm:$0xff]
    %v3512 = vld [vmem:[#allocation2 + $0x290] sm:$0xff]
    %v3513 = vld [vmem:[#allocation2 + $0x298] sm:$0xff]
    %v3514 = vld [vmem:[#allocation2 + $0x2a0] sm:$0xff]
    %v3515 = vld [vmem:[#allocation2 + $0x2a8] sm:$0xff]
    %v3516 = vld [vmem:[#allocation2 + $0x2b0] sm:$0xff]
    %v3517 = vld [vmem:[#allocation2 + $0x2b8] sm:$0xff]
    %v3518 = vld [vmem:[#allocation2 + $0x2c0] sm:$0xff]
    %v3519 = vld [vmem:[#allocation2 + $0x2c8] sm:$0xff]
    %v3520 = vld [vmem:[#allocation2 + $0x2d0] sm:$0xff]
    %v3521 = vld [vmem:[#allocation2 + $0x2d8] sm:$0xff]
    %v3522 = vld [vmem:[#allocation2 + $0x2e0] sm:$0xff]
    %v3523 = vld [vmem:[#allocation2 + $0x2e8] sm:$0xff]
    %v3524 = vld [vmem:[#allocation2 + $0x2f0] sm:$0xff]
    %v3525 = vld [vmem:[#allocation2 + $0x2f8] sm:$0xff]
    %v3526 = vld [vmem:[#allocation2 + $0x300] sm:$0xff]
    %v3527 = vld [vmem:[#allocation2 + $0x308] sm:$0xff]
    %v3528 = vld [vmem:[#allocation2 + $0x310] sm:$0xff]
    %v3529 = vld [vmem:[#allocation2 + $0x318] sm:$0xff]
    %v3530 = vld [vmem:[#allocation2 + $0x320] sm:$0xff]
    %v3531 = vld [vmem:[#allocation2 + $0x328] sm:$0xff]
    %v3532 = vld [vmem:[#allocation2 + $0x330] sm:$0xff]
    %v3533 = vld [vmem:[#allocation2 + $0x338] sm:$0xff]
    %v3534 = vld [vmem:[#allocation2 + $0x340] sm:$0xff]
    %v3535 = vld [vmem:[#allocation2 + $0x348] sm:$0xff]
    %v3536 = vld [vmem:[#allocation2 + $0x350] sm:$0xff]
    %v3537 = vld [vmem:[#allocation2 + $0x358] sm:$0xff]
    %v3538 = vld [vmem:[#allocation2 + $0x360] sm:$0xff]
    %v3539 = vld [vmem:[#allocation2 + $0x368] sm:$0xff]
    %v3540 = vld [vmem:[#allocation2 + $0x370] sm:$0xff]
    %v3541 = vld [vmem:[#allocation2 + $0x378] sm:$0xff]
    %v3542 = vld [vmem:[#allocation2 + $0x380] sm:$0xff]
    %v3543 = vld [vmem:[#allocation2 + $0x388] sm:$0xff]
    %v3544 = vld [vmem:[#allocation2 + $0x390] sm:$0xff]
    %v3545 = vld [vmem:[#allocation2 + $0x398] sm:$0xff]
    %v3546 = vld [vmem:[#allocation2 + $0x3a0] sm:$0xff]
    %v3547 = vld [vmem:[#allocation2 + $0x3a8] sm:$0xff]
    %v3548 = vld [vmem:[#allocation2 + $0x3b0] sm:$0xff]
    %v3549 = vld [vmem:[#allocation2 + $0x3b8] sm:$0xff]
    %v3550 = vld [vmem:[#allocation2 + $0x3c0] sm:$0xff]
    %v3551 = vld [vmem:[#allocation2 + $0x3c8] sm:$0xff]
    %v3552 = vld [vmem:[#allocation2 + $0x3d0] sm:$0xff]
    %v3553 = vld [vmem:[#allocation2 + $0x3d8] sm:$0xff]
    %v3554 = vld [vmem:[#allocation2 + $0x3e0] sm:$0xff]
    %v3555 = vld [vmem:[#allocation2 + $0x3e8] sm:$0xff]
    %v3556 = vld [vmem:[#allocation2 + $0x3f0] sm:$0xff]
    %v3557 = vld [vmem:[#allocation2 + $0x3f8] sm:$0xff]
    %v3558 = vld [vmem:[#allocation3] sm:$0x1]
    %v3560 = vlaneseq
    %v3561 = vshrl.u32 %v3560, 7
    %v3562 = vsub.s32 0, %v3561
    %v3563 = vrot.slane %v3558, %v3562
    %v3565 = vadd.f32 %v3430, %v3563
    %v3566 = vadd.f32 %v3431, %v3563
    %v3567 = vadd.f32 %v3432, %v3563
    %v3568 = vadd.f32 %v3433, %v3563
    %v3569 = vadd.f32 %v3434, %v3563
    %v3570 = vadd.f32 %v3435, %v3563
    %v3571 = vadd.f32 %v3436, %v3563
    %v3572 = vadd.f32 %v3437, %v3563
    %v3573 = vadd.f32 %v3438, %v3563
    %v3574 = vadd.f32 %v3439, %v3563
    %v3575 = vadd.f32 %v3440, %v3563
    %v3576 = vadd.f32 %v3441, %v3563
    %v3577 = vadd.f32 %v3442, %v3563
    %v3578 = vadd.f32 %v3443, %v3563
    %v3579 = vadd.f32 %v3444, %v3563
    %v3580 = vadd.f32 %v3445, %v3563
    %v3581 = vadd.f32 %v3446, %v3563
    %v3582 = vadd.f32 %v3447, %v3563
    %v3583 = vadd.f32 %v3448, %v3563
    %v3584 = vadd.f32 %v3449, %v3563
    %v3585 = vadd.f32 %v3450, %v3563
    %v3586 = vadd.f32 %v3451, %v3563
    %v3587 = vadd.f32 %v3452, %v3563
    %v3588 = vadd.f32 %v3453, %v3563
    %v3589 = vadd.f32 %v3454, %v3563
    %v3590 = vadd.f32 %v3455, %v3563
    %v3591 = vadd.f32 %v3456, %v3563
    %v3592 = vadd.f32 %v3457, %v3563
    %v3593 = vadd.f32 %v3458, %v3563
    %v3594 = vadd.f32 %v3459, %v3563
    %v3595 = vadd.f32 %v3460, %v3563
    %v3596 = vadd.f32 %v3461, %v3563
    %v3597 = vadd.f32 %v3462, %v3563
    %v3598 = vadd.f32 %v3463, %v3563
    %v3599 = vadd.f32 %v3464, %v3563
    %v3600 = vadd.f32 %v3465, %v3563
    %v3601 = vadd.f32 %v3466, %v3563
    %v3602 = vadd.f32 %v3467, %v3563
    %v3603 = vadd.f32 %v3468, %v3563
    %v3604 = vadd.f32 %v3469, %v3563
    %v3605 = vadd.f32 %v3470, %v3563
    %v3606 = vadd.f32 %v3471, %v3563
    %v3607 = vadd.f32 %v3472, %v3563
    %v3608 = vadd.f32 %v3473, %v3563
    %v3609 = vadd.f32 %v3474, %v3563
    %v3610 = vadd.f32 %v3475, %v3563
    %v3611 = vadd.f32 %v3476, %v3563
    %v3612 = vadd.f32 %v3477, %v3563
    %v3613 = vadd.f32 %v3478, %v3563
    %v3614 = vadd.f32 %v3479, %v3563
    %v3615 = vadd.f32 %v3480, %v3563
    %v3616 = vadd.f32 %v3481, %v3563
    %v3617 = vadd.f32 %v3482, %v3563
    %v3618 = vadd.f32 %v3483, %v3563
    %v3619 = vadd.f32 %v3484, %v3563
    %v3620 = vadd.f32 %v3485, %v3563
    %v3621 = vadd.f32 %v3486, %v3563
    %v3622 = vadd.f32 %v3487, %v3563
    %v3623 = vadd.f32 %v3488, %v3563
    %v3624 = vadd.f32 %v3489, %v3563
    %v3625 = vadd.f32 %v3490, %v3563
    %v3626 = vadd.f32 %v3491, %v3563
    %v3627 = vadd.f32 %v3492, %v3563
    %v3628 = vadd.f32 %v3493, %v3563
    %v3629 = vadd.f32 %v3494, %v3563
    %v3630 = vadd.f32 %v3495, %v3563
    %v3631 = vadd.f32 %v3496, %v3563
    %v3632 = vadd.f32 %v3497, %v3563
    %v3633 = vadd.f32 %v3498, %v3563
    %v3634 = vadd.f32 %v3499, %v3563
    %v3635 = vadd.f32 %v3500, %v3563
    %v3636 = vadd.f32 %v3501, %v3563
    %v3637 = vadd.f32 %v3502, %v3563
    %v3638 = vadd.f32 %v3503, %v3563
    %v3639 = vadd.f32 %v3504, %v3563
    %v3640 = vadd.f32 %v3505, %v3563
    %v3641 = vadd.f32 %v3506, %v3563
    %v3642 = vadd.f32 %v3507, %v3563
    %v3643 = vadd.f32 %v3508, %v3563
    %v3644 = vadd.f32 %v3509, %v3563
    %v3645 = vadd.f32 %v3510, %v3563
    %v3646 = vadd.f32 %v3511, %v3563
    %v3647 = vadd.f32 %v3512, %v3563
    %v3648 = vadd.f32 %v3513, %v3563
    %v3649 = vadd.f32 %v3514, %v3563
    %v3650 = vadd.f32 %v3515, %v3563
    %v3651 = vadd.f32 %v3516, %v3563
    %v3652 = vadd.f32 %v3517, %v3563
    %v3653 = vadd.f32 %v3518, %v3563
    %v3654 = vadd.f32 %v3519, %v3563
    %v3655 = vadd.f32 %v3520, %v3563
    %v3656 = vadd.f32 %v3521, %v3563
    %v3657 = vadd.f32 %v3522, %v3563
    %v3658 = vadd.f32 %v3523, %v3563
    %v3659 = vadd.f32 %v3524, %v3563
    %v3660 = vadd.f32 %v3525, %v3563
    %v3661 = vadd.f32 %v3526, %v3563
    %v3662 = vadd.f32 %v3527, %v3563
    %v3663 = vadd.f32 %v3528, %v3563
    %v3664 = vadd.f32 %v3529, %v3563
    %v3665 = vadd.f32 %v3530, %v3563
    %v3666 = vadd.f32 %v3531, %v3563
    %v3667 = vadd.f32 %v3532, %v3563
    %v3668 = vadd.f32 %v3533, %v3563
    %v3669 = vadd.f32 %v3534, %v3563
    %v3670 = vadd.f32 %v3535, %v3563
    %v3671 = vadd.f32 %v3536, %v3563
    %v3672 = vadd.f32 %v3537, %v3563
    %v3673 = vadd.f32 %v3538, %v3563
    %v3674 = vadd.f32 %v3539, %v3563
    %v3675 = vadd.f32 %v3540, %v3563
    %v3676 = vadd.f32 %v3541, %v3563
    %v3677 = vadd.f32 %v3542, %v3563
    %v3678 = vadd.f32 %v3543, %v3563
    %v3679 = vadd.f32 %v3544, %v3563
    %v3680 = vadd.f32 %v3545, %v3563
    %v3681 = vadd.f32 %v3546, %v3563
    %v3682 = vadd.f32 %v3547, %v3563
    %v3683 = vadd.f32 %v3548, %v3563
    %v3684 = vadd.f32 %v3549, %v3563
    %v3685 = vadd.f32 %v3550, %v3563
    %v3686 = vadd.f32 %v3551, %v3563
    %v3687 = vadd.f32 %v3552, %v3563
    %v3688 = vadd.f32 %v3553, %v3563
    %v3689 = vadd.f32 %v3554, %v3563
    %v3690 = vadd.f32 %v3555, %v3563
    %v3691 = vadd.f32 %v3556, %v3563
    %v3692 = vadd.f32 %v3557, %v3563
    %v3693 = vand.u32 2147483647, %v3565
    %v3694 = vand.u32 2147483647, %v3566
    %v3695 = vand.u32 2147483647, %v3567
    %v3696 = vand.u32 2147483647, %v3568
    %v3697 = vand.u32 2147483647, %v3569
    %v3698 = vand.u32 2147483647, %v3570
    %v3699 = vand.u32 2147483647, %v3571
    %v3700 = vand.u32 2147483647, %v3572
    %v3701 = vand.u32 2147483647, %v3573
    %v3702 = vand.u32 2147483647, %v3574
    %v3703 = vand.u32 2147483647, %v3575
    %v3704 = vand.u32 2147483647, %v3576
    %v3705 = vand.u32 2147483647, %v3577
    %v3706 = vand.u32 2147483647, %v3578
    %v3707 = vand.u32 2147483647, %v3579
    %v3708 = vand.u32 2147483647, %v3580
    %v3709 = vand.u32 2147483647, %v3581
    %v3710 = vand.u32 2147483647, %v3582
    %v3711 = vand.u32 2147483647, %v3583
    %v3712 = vand.u32 2147483647, %v3584
    %v3713 = vand.u32 2147483647, %v3585
    %v3714 = vand.u32 2147483647, %v3586
    %v3715 = vand.u32 2147483647, %v3587
    %v3716 = vand.u32 2147483647, %v3588
    %v3717 = vand.u32 2147483647, %v3589
    %v3718 = vand.u32 2147483647, %v3590
    %v3719 = vand.u32 2147483647, %v3591
    %v3720 = vand.u32 2147483647, %v3592
    %v3721 = vand.u32 2147483647, %v3593
    %v3722 = vand.u32 2147483647, %v3594
    %v3723 = vand.u32 2147483647, %v3595
    %v3724 = vand.u32 2147483647, %v3596
    %v3725 = vand.u32 2147483647, %v3597
    %v3726 = vand.u32 2147483647, %v3598
    %v3727 = vand.u32 2147483647, %v3599
    %v3728 = vand.u32 2147483647, %v3600
    %v3729 = vand.u32 2147483647, %v3601
    %v3730 = vand.u32 2147483647, %v3602
    %v3731 = vand.u32 2147483647, %v3603
    %v3732 = vand.u32 2147483647, %v3604
    %v3733 = vand.u32 2147483647, %v3605
    %v3734 = vand.u32 2147483647, %v3606
    %v3735 = vand.u32 2147483647, %v3607
    %v3736 = vand.u32 2147483647, %v3608
    %v3737 = vand.u32 2147483647, %v3609
    %v3738 = vand.u32 2147483647, %v3610
    %v3739 = vand.u32 2147483647, %v3611
    %v3740 = vand.u32 2147483647, %v3612
    %v3741 = vand.u32 2147483647, %v3613
    %v3742 = vand.u32 2147483647, %v3614
    %v3743 = vand.u32 2147483647, %v3615
    %v3744 = vand.u32 2147483647, %v3616
    %v3745 = vand.u32 2147483647, %v3617
    %v3746 = vand.u32 2147483647, %v3618
    %v3747 = vand.u32 2147483647, %v3619
    %v3748 = vand.u32 2147483647, %v3620
    %v3749 = vand.u32 2147483647, %v3621
    %v3750 = vand.u32 2147483647, %v3622
    %v3751 = vand.u32 2147483647, %v3623
    %v3752 = vand.u32 2147483647, %v3624
    %v3753 = vand.u32 2147483647, %v3625
    %v3754 = vand.u32 2147483647, %v3626
    %v3755 = vand.u32 2147483647, %v3627
    %v3756 = vand.u32 2147483647, %v3628
    %v3757 = vand.u32 2147483647, %v3629
    %v3758 = vand.u32 2147483647, %v3630
    %v3759 = vand.u32 2147483647, %v3631
    %v3760 = vand.u32 2147483647, %v3632
    %v3761 = vand.u32 2147483647, %v3633
    %v3762 = vand.u32 2147483647, %v3634
    %v3763 = vand.u32 2147483647, %v3635
    %v3764 = vand.u32 2147483647, %v3636
    %v3765 = vand.u32 2147483647, %v3637
    %v3766 = vand.u32 2147483647, %v3638
    %v3767 = vand.u32 2147483647, %v3639
    %v3768 = vand.u32 2147483647, %v3640
    %v3769 = vand.u32 2147483647, %v3641
    %v3770 = vand.u32 2147483647, %v3642
    %v3771 = vand.u32 2147483647, %v3643
    %v3772 = vand.u32 2147483647, %v3644
    %v3773 = vand.u32 2147483647, %v3645
    %v3774 = vand.u32 2147483647, %v3646
    %v3775 = vand.u32 2147483647, %v3647
    %v3776 = vand.u32 2147483647, %v3648
    %v3777 = vand.u32 2147483647, %v3649
    %v3778 = vand.u32 2147483647, %v3650
    %v3779 = vand.u32 2147483647, %v3651
    %v3780 = vand.u32 2147483647, %v3652
    %v3781 = vand.u32 2147483647, %v3653
    %v3782 = vand.u32 2147483647, %v3654
    %v3783 = vand.u32 2147483647, %v3655
    %v3784 = vand.u32 2147483647, %v3656
    %v3785 = vand.u32 2147483647, %v3657
    %v3786 = vand.u32 2147483647, %v3658
    %v3787 = vand.u32 2147483647, %v3659
    %v3788 = vand.u32 2147483647, %v3660
    %v3789 = vand.u32 2147483647, %v3661
    %v3790 = vand.u32 2147483647, %v3662
    %v3791 = vand.u32 2147483647, %v3663
    %v3792 = vand.u32 2147483647, %v3664
    %v3793 = vand.u32 2147483647, %v3665
    %v3794 = vand.u32 2147483647, %v3666
    %v3795 = vand.u32 2147483647, %v3667
    %v3796 = vand.u32 2147483647, %v3668
    %v3797 = vand.u32 2147483647, %v3669
    %v3798 = vand.u32 2147483647, %v3670
    %v3799 = vand.u32 2147483647, %v3671
    %v3800 = vand.u32 2147483647, %v3672
    %v3801 = vand.u32 2147483647, %v3673
    %v3802 = vand.u32 2147483647, %v3674
    %v3803 = vand.u32 2147483647, %v3675
    %v3804 = vand.u32 2147483647, %v3676
    %v3805 = vand.u32 2147483647, %v3677
    %v3806 = vand.u32 2147483647, %v3678
    %v3807 = vand.u32 2147483647, %v3679
    %v3808 = vand.u32 2147483647, %v3680
    %v3809 = vand.u32 2147483647, %v3681
    %v3810 = vand.u32 2147483647, %v3682
    %v3811 = vand.u32 2147483647, %v3683
    %v3812 = vand.u32 2147483647, %v3684
    %v3813 = vand.u32 2147483647, %v3685
    %v3814 = vand.u32 2147483647, %v3686
    %v3815 = vand.u32 2147483647, %v3687
    %v3816 = vand.u32 2147483647, %v3688
    %v3817 = vand.u32 2147483647, %v3689
    %v3818 = vand.u32 2147483647, %v3690
    %v3819 = vand.u32 2147483647, %v3691
    %v3820 = vand.u32 2147483647, %v3692
    %v3821 = vsub.f32 0.0, %v3693
    %v3822 = vsub.f32 0.0, %v3694
    %v3823 = vsub.f32 0.0, %v3695
    %v3824 = vsub.f32 0.0, %v3696
    %v3825 = vsub.f32 0.0, %v3697
    %v3826 = vsub.f32 0.0, %v3698
    %v3827 = vsub.f32 0.0, %v3699
    %v3828 = vsub.f32 0.0, %v3700
    %v3829 = vsub.f32 0.0, %v3701
    %v3830 = vsub.f32 0.0, %v3702
    %v3831 = vsub.f32 0.0, %v3703
    %v3832 = vsub.f32 0.0, %v3704
    %v3833 = vsub.f32 0.0, %v3705
    %v3834 = vsub.f32 0.0, %v3706
    %v3835 = vsub.f32 0.0, %v3707
    %v3836 = vsub.f32 0.0, %v3708
    %v3837 = vsub.f32 0.0, %v3709
    %v3838 = vsub.f32 0.0, %v3710
    %v3839 = vsub.f32 0.0, %v3711
    %v3840 = vsub.f32 0.0, %v3712
    %v3841 = vsub.f32 0.0, %v3713
    %v3842 = vsub.f32 0.0, %v3714
    %v3843 = vsub.f32 0.0, %v3715
    %v3844 = vsub.f32 0.0, %v3716
    %v3845 = vsub.f32 0.0, %v3717
    %v3846 = vsub.f32 0.0, %v3718
    %v3847 = vsub.f32 0.0, %v3719
    %v3848 = vsub.f32 0.0, %v3720
    %v3849 = vsub.f32 0.0, %v3721
    %v3850 = vsub.f32 0.0, %v3722
    %v3851 = vsub.f32 0.0, %v3723
    %v3852 = vsub.f32 0.0, %v3724
    %v3853 = vsub.f32 0.0, %v3725
    %v3854 = vsub.f32 0.0, %v3726
    %v3855 = vsub.f32 0.0, %v3727
    %v3856 = vsub.f32 0.0, %v3728
    %v3857 = vsub.f32 0.0, %v3729
    %v3858 = vsub.f32 0.0, %v3730
    %v3859 = vsub.f32 0.0, %v3731
    %v3860 = vsub.f32 0.0, %v3732
    %v3861 = vsub.f32 0.0, %v3733
    %v3862 = vsub.f32 0.0, %v3734
    %v3863 = vsub.f32 0.0, %v3735
    %v3864 = vsub.f32 0.0, %v3736
    %v3865 = vsub.f32 0.0, %v3737
    %v3866 = vsub.f32 0.0, %v3738
    %v3867 = vsub.f32 0.0, %v3739
    %v3868 = vsub.f32 0.0, %v3740
    %v3869 = vsub.f32 0.0, %v3741
    %v3870 = vsub.f32 0.0, %v3742
    %v3871 = vsub.f32 0.0, %v3743
    %v3872 = vsub.f32 0.0, %v3744
    %v3873 = vsub.f32 0.0, %v3745
    %v3874 = vsub.f32 0.0, %v3746
    %v3875 = vsub.f32 0.0, %v3747
    %v3876 = vsub.f32 0.0, %v3748
    %v3877 = vsub.f32 0.0, %v3749
    %v3878 = vsub.f32 0.0, %v3750
    %v3879 = vsub.f32 0.0, %v3751
    %v3880 = vsub.f32 0.0, %v3752
    %v3881 = vsub.f32 0.0, %v3753
    %v3882 = vsub.f32 0.0, %v3754
    %v3883 = vsub.f32 0.0, %v3755
    %v3884 = vsub.f32 0.0, %v3756
    %v3885 = vsub.f32 0.0, %v3757
    %v3886 = vsub.f32 0.0, %v3758
    %v3887 = vsub.f32 0.0, %v3759
    %v3888 = vsub.f32 0.0, %v3760
    %v3889 = vsub.f32 0.0, %v3761
    %v3890 = vsub.f32 0.0, %v3762
    %v3891 = vsub.f32 0.0, %v3763
    %v3892 = vsub.f32 0.0, %v3764
    %v3893 = vsub.f32 0.0, %v3765
    %v3894 = vsub.f32 0.0, %v3766
    %v3895 = vsub.f32 0.0, %v3767
    %v3896 = vsub.f32 0.0, %v3768
    %v3897 = vsub.f32 0.0, %v3769
    %v3898 = vsub.f32 0.0, %v3770
    %v3899 = vsub.f32 0.0, %v3771
    %v3900 = vsub.f32 0.0, %v3772
    %v3901 = vsub.f32 0.0, %v3773
    %v3902 = vsub.f32 0.0, %v3774
    %v3903 = vsub.f32 0.0, %v3775
    %v3904 = vsub.f32 0.0, %v3776
    %v3905 = vsub.f32 0.0, %v3777
    %v3906 = vsub.f32 0.0, %v3778
    %v3907 = vsub.f32 0.0, %v3779
    %v3908 = vsub.f32 0.0, %v3780
    %v3909 = vsub.f32 0.0, %v3781
    %v3910 = vsub.f32 0.0, %v3782
    %v3911 = vsub.f32 0.0, %v3783
    %v3912 = vsub.f32 0.0, %v3784
    %v3913 = vsub.f32 0.0, %v3785
    %v3914 = vsub.f32 0.0, %v3786
    %v3915 = vsub.f32 0.0, %v3787
    %v3916 = vsub.f32 0.0, %v3788
    %v3917 = vsub.f32 0.0, %v3789
    %v3918 = vsub.f32 0.0, %v3790
    %v3919 = vsub.f32 0.0, %v3791
    %v3920 = vsub.f32 0.0, %v3792
    %v3921 = vsub.f32 0.0, %v3793
    %v3922 = vsub.f32 0.0, %v3794
    %v3923 = vsub.f32 0.0, %v3795
    %v3924 = vsub.f32 0.0, %v3796
    %v3925 = vsub.f32 0.0, %v3797
    %v3926 = vsub.f32 0.0, %v3798
    %v3927 = vsub.f32 0.0, %v3799
    %v3928 = vsub.f32 0.0, %v3800
    %v3929 = vsub.f32 0.0, %v3801
    %v3930 = vsub.f32 0.0, %v3802
    %v3931 = vsub.f32 0.0, %v3803
    %v3932 = vsub.f32 0.0, %v3804
    %v3933 = vsub.f32 0.0, %v3805
    %v3934 = vsub.f32 0.0, %v3806
    %v3935 = vsub.f32 0.0, %v3807
    %v3936 = vsub.f32 0.0, %v3808
    %v3937 = vsub.f32 0.0, %v3809
    %v3938 = vsub.f32 0.0, %v3810
    %v3939 = vsub.f32 0.0, %v3811
    %v3940 = vsub.f32 0.0, %v3812
    %v3941 = vsub.f32 0.0, %v3813
    %v3942 = vsub.f32 0.0, %v3814
    %v3943 = vsub.f32 0.0, %v3815
    %v3944 = vsub.f32 0.0, %v3816
    %v3945 = vsub.f32 0.0, %v3817
    %v3946 = vsub.f32 0.0, %v3818
    %v3947 = vsub.f32 0.0, %v3819
    %v3948 = vsub.f32 0.0, %v3820
    %v3949 = vmul.f32 %v3821, 1.442695
    %v3950 = vpow.pop %v3949
    %v3951 = vmul.f32 %v3822, 1.442695
    %v3952 = vpow.pop %v3951
    %v3953 = vmul.f32 %v3823, 1.442695
    %v3954 = vpow.pop %v3953
    %v3955 = vmul.f32 %v3824, 1.442695
    %v3956 = vpow.pop %v3955
    %v3957 = vmul.f32 %v3825, 1.442695
    %v3958 = vpow.pop %v3957
    %v3959 = vmul.f32 %v3826, 1.442695
    %v3960 = vpow.pop %v3959
    %v3961 = vmul.f32 %v3827, 1.442695
    %v3962 = vpow.pop %v3961
    %v3963 = vmul.f32 %v3828, 1.442695
    %v3964 = vpow.pop %v3963
    %v3965 = vmul.f32 %v3829, 1.442695
    %v3966 = vpow.pop %v3965
    %v3967 = vmul.f32 %v3830, 1.442695
    %v3968 = vpow.pop %v3967
    %v3969 = vmul.f32 %v3831, 1.442695
    %v3970 = vpow.pop %v3969
    %v3971 = vmul.f32 %v3832, 1.442695
    %v3972 = vpow.pop %v3971
    %v3973 = vmul.f32 %v3833, 1.442695
    %v3974 = vpow.pop %v3973
    %v3975 = vmul.f32 %v3834, 1.442695
    %v3976 = vpow.pop %v3975
    %v3977 = vmul.f32 %v3835, 1.442695
    %v3978 = vpow.pop %v3977
    %v3979 = vmul.f32 %v3836, 1.442695
    %v3980 = vpow.pop %v3979
    %v3981 = vmul.f32 %v3837, 1.442695
    %v3982 = vpow.pop %v3981
    %v3983 = vmul.f32 %v3838, 1.442695
    %v3984 = vpow.pop %v3983
    %v3985 = vmul.f32 %v3839, 1.442695
    %v3986 = vpow.pop %v3985
    %v3987 = vmul.f32 %v3840, 1.442695
    %v3988 = vpow.pop %v3987
    %v3989 = vmul.f32 %v3841, 1.442695
    %v3990 = vpow.pop %v3989
    %v3991 = vmul.f32 %v3842, 1.442695
    %v3992 = vpow.pop %v3991
    %v3993 = vmul.f32 %v3843, 1.442695
    %v3994 = vpow.pop %v3993
    %v3995 = vmul.f32 %v3844, 1.442695
    %v3996 = vpow.pop %v3995
    %v3997 = vmul.f32 %v3845, 1.442695
    %v3998 = vpow.pop %v3997
    %v3999 = vmul.f32 %v3846, 1.442695
    %v4000 = vpow.pop %v3999
    %v4001 = vmul.f32 %v3847, 1.442695
    %v4002 = vpow.pop %v4001
    %v4003 = vmul.f32 %v3848, 1.442695
    %v4004 = vpow.pop %v4003
    %v4005 = vmul.f32 %v3849, 1.442695
    %v4006 = vpow.pop %v4005
    %v4007 = vmul.f32 %v3850, 1.442695
    %v4008 = vpow.pop %v4007
    %v4009 = vmul.f32 %v3851, 1.442695
    %v4010 = vpow.pop %v4009
    %v4011 = vmul.f32 %v3852, 1.442695
    %v4012 = vpow.pop %v4011
    %v4013 = vmul.f32 %v3853, 1.442695
    %v4014 = vpow.pop %v4013
    %v4015 = vmul.f32 %v3854, 1.442695
    %v4016 = vpow.pop %v4015
    %v4017 = vmul.f32 %v3855, 1.442695
    %v4018 = vpow.pop %v4017
    %v4019 = vmul.f32 %v3856, 1.442695
    %v4020 = vpow.pop %v4019
    %v4021 = vmul.f32 %v3857, 1.442695
    %v4022 = vpow.pop %v4021
    %v4023 = vmul.f32 %v3858, 1.442695
    %v4024 = vpow.pop %v4023
    %v4025 = vmul.f32 %v3859, 1.442695
    %v4026 = vpow.pop %v4025
    %v4027 = vmul.f32 %v3860, 1.442695
    %v4028 = vpow.pop %v4027
    %v4029 = vmul.f32 %v3861, 1.442695
    %v4030 = vpow.pop %v4029
    %v4031 = vmul.f32 %v3862, 1.442695
    %v4032 = vpow.pop %v4031
    %v4033 = vmul.f32 %v3863, 1.442695
    %v4034 = vpow.pop %v4033
    %v4035 = vmul.f32 %v3864, 1.442695
    %v4036 = vpow.pop %v4035
    %v4037 = vmul.f32 %v3865, 1.442695
    %v4038 = vpow.pop %v4037
    %v4039 = vmul.f32 %v3866, 1.442695
    %v4040 = vpow.pop %v4039
    %v4041 = vmul.f32 %v3867, 1.442695
    %v4042 = vpow.pop %v4041
    %v4043 = vmul.f32 %v3868, 1.442695
    %v4044 = vpow.pop %v4043
    %v4045 = vmul.f32 %v3869, 1.442695
    %v4046 = vpow.pop %v4045
    %v4047 = vmul.f32 %v3870, 1.442695
    %v4048 = vpow.pop %v4047
    %v4049 = vmul.f32 %v3871, 1.442695
    %v4050 = vpow.pop %v4049
    %v4051 = vmul.f32 %v3872, 1.442695
    %v4052 = vpow.pop %v4051
    %v4053 = vmul.f32 %v3873, 1.442695
    %v4054 = vpow.pop %v4053
    %v4055 = vmul.f32 %v3874, 1.442695
    %v4056 = vpow.pop %v4055
    %v4057 = vmul.f32 %v3875, 1.442695
    %v4058 = vpow.pop %v4057
    %v4059 = vmul.f32 %v3876, 1.442695
    %v4060 = vpow.pop %v4059
    %v4061 = vmul.f32 %v3877, 1.442695
    %v4062 = vpow.pop %v4061
    %v4063 = vmul.f32 %v3878, 1.442695
    %v4064 = vpow.pop %v4063
    %v4065 = vmul.f32 %v3879, 1.442695
    %v4066 = vpow.pop %v4065
    %v4067 = vmul.f32 %v3880, 1.442695
    %v4068 = vpow.pop %v4067
    %v4069 = vmul.f32 %v3881, 1.442695
    %v4070 = vpow.pop %v4069
    %v4071 = vmul.f32 %v3882, 1.442695
    %v4072 = vpow.pop %v4071
    %v4073 = vmul.f32 %v3883, 1.442695
    %v4074 = vpow.pop %v4073
    %v4075 = vmul.f32 %v3884, 1.442695
    %v4076 = vpow.pop %v4075
    %v4077 = vmul.f32 %v3885, 1.442695
    %v4078 = vpow.pop %v4077
    %v4079 = vmul.f32 %v3886, 1.442695
    %v4080 = vpow.pop %v4079
    %v4081 = vmul.f32 %v3887, 1.442695
    %v4082 = vpow.pop %v4081
    %v4083 = vmul.f32 %v3888, 1.442695
    %v4084 = vpow.pop %v4083
    %v4085 = vmul.f32 %v3889, 1.442695
    %v4086 = vpow.pop %v4085
    %v4087 = vmul.f32 %v3890, 1.442695
    %v4088 = vpow.pop %v4087
    %v4089 = vmul.f32 %v3891, 1.442695
    %v4090 = vpow.pop %v4089
    %v4091 = vmul.f32 %v3892, 1.442695
    %v4092 = vpow.pop %v4091
    %v4093 = vmul.f32 %v3893, 1.442695
    %v4094 = vpow.pop %v4093
    %v4095 = vmul.f32 %v3894, 1.442695
    %v4096 = vpow.pop %v4095
    %v4097 = vmul.f32 %v3895, 1.442695
    %v4098 = vpow.pop %v4097
    %v4099 = vmul.f32 %v3896, 1.442695
    %v4100 = vpow.pop %v4099
    %v4101 = vmul.f32 %v3897, 1.442695
    %v4102 = vpow.pop %v4101
    %v4103 = vmul.f32 %v3898, 1.442695
    %v4104 = vpow.pop %v4103
    %v4105 = vmul.f32 %v3899, 1.442695
    %v4106 = vpow.pop %v4105
    %v4107 = vmul.f32 %v3900, 1.442695
    %v4108 = vpow.pop %v4107
    %v4109 = vmul.f32 %v3901, 1.442695
    %v4110 = vpow.pop %v4109
    %v4111 = vmul.f32 %v3902, 1.442695
    %v4112 = vpow.pop %v4111
    %v4113 = vmul.f32 %v3903, 1.442695
    %v4114 = vpow.pop %v4113
    %v4115 = vmul.f32 %v3904, 1.442695
    %v4116 = vpow.pop %v4115
    %v4117 = vmul.f32 %v3905, 1.442695
    %v4118 = vpow.pop %v4117
    %v4119 = vmul.f32 %v3906, 1.442695
    %v4120 = vpow.pop %v4119
    %v4121 = vmul.f32 %v3907, 1.442695
    %v4122 = vpow.pop %v4121
    %v4123 = vmul.f32 %v3908, 1.442695
    %v4124 = vpow.pop %v4123
    %v4125 = vmul.f32 %v3909, 1.442695
    %v4126 = vpow.pop %v4125
    %v4127 = vmul.f32 %v3910, 1.442695
    %v4128 = vpow.pop %v4127
    %v4129 = vmul.f32 %v3911, 1.442695
    %v4130 = vpow.pop %v4129
    %v4131 = vmul.f32 %v3912, 1.442695
    %v4132 = vpow.pop %v4131
    %v4133 = vmul.f32 %v3913, 1.442695
    %v4134 = vpow.pop %v4133
    %v4135 = vmul.f32 %v3914, 1.442695
    %v4136 = vpow.pop %v4135
    %v4137 = vmul.f32 %v3915, 1.442695
    %v4138 = vpow.pop %v4137
    %v4139 = vmul.f32 %v3916, 1.442695
    %v4140 = vpow.pop %v4139
    %v4141 = vmul.f32 %v3917, 1.442695
    %v4142 = vpow.pop %v4141
    %v4143 = vmul.f32 %v3918, 1.442695
    %v4144 = vpow.pop %v4143
    %v4145 = vmul.f32 %v3919, 1.442695
    %v4146 = vpow.pop %v4145
    %v4147 = vmul.f32 %v3920, 1.442695
    %v4148 = vpow.pop %v4147
    %v4149 = vmul.f32 %v3921, 1.442695
    %v4150 = vpow.pop %v4149
    %v4151 = vmul.f32 %v3922, 1.442695
    %v4152 = vpow.pop %v4151
    %v4153 = vmul.f32 %v3923, 1.442695
    %v4154 = vpow.pop %v4153
    %v4155 = vmul.f32 %v3924, 1.442695
    %v4156 = vpow.pop %v4155
    %v4157 = vmul.f32 %v3925, 1.442695
    %v4158 = vpow.pop %v4157
    %v4159 = vmul.f32 %v3926, 1.442695
    %v4160 = vpow.pop %v4159
    %v4161 = vmul.f32 %v3927, 1.442695
    %v4162 = vpow.pop %v4161
    %v4163 = vmul.f32 %v3928, 1.442695
    %v4164 = vpow.pop %v4163
    %v4165 = vmul.f32 %v3929, 1.442695
    %v4166 = vpow.pop %v4165
    %v4167 = vmul.f32 %v3930, 1.442695
    %v4168 = vpow.pop %v4167
    %v4169 = vmul.f32 %v3931, 1.442695
    %v4170 = vpow.pop %v4169
    %v4171 = vmul.f32 %v3932, 1.442695
    %v4172 = vpow.pop %v4171
    %v4173 = vmul.f32 %v3933, 1.442695
    %v4174 = vpow.pop %v4173
    %v4175 = vmul.f32 %v3934, 1.442695
    %v4176 = vpow.pop %v4175
    %v4177 = vmul.f32 %v3935, 1.442695
    %v4178 = vpow.pop %v4177
    %v4179 = vmul.f32 %v3936, 1.442695
    %v4180 = vpow.pop %v4179
    %v4181 = vmul.f32 %v3937, 1.442695
    %v4182 = vpow.pop %v4181
    %v4183 = vmul.f32 %v3938, 1.442695
    %v4184 = vpow.pop %v4183
    %v4185 = vmul.f32 %v3939, 1.442695
    %v4186 = vpow.pop %v4185
    %v4187 = vmul.f32 %v3940, 1.442695
    %v4188 = vpow.pop %v4187
    %v4189 = vmul.f32 %v3941, 1.442695
    %v4190 = vpow.pop %v4189
    %v4191 = vmul.f32 %v3942, 1.442695
    %v4192 = vpow.pop %v4191
    %v4193 = vmul.f32 %v3943, 1.442695
    %v4194 = vpow.pop %v4193
    %v4195 = vmul.f32 %v3944, 1.442695
    %v4196 = vpow.pop %v4195
    %v4197 = vmul.f32 %v3945, 1.442695
    %v4198 = vpow.pop %v4197
    %v4199 = vmul.f32 %v3946, 1.442695
    %v4200 = vpow.pop %v4199
    %v4201 = vmul.f32 %v3947, 1.442695
    %v4202 = vpow.pop %v4201
    %v4203 = vmul.f32 %v3948, 1.442695
    %v4204 = vpow.pop %v4203
    %vm4205 = vcmp.ge.f32.partialorder %v3565, 0.0
    %vm4206 = vcmp.ge.f32.partialorder %v3566, 0.0
    %vm4207 = vcmp.ge.f32.partialorder %v3567, 0.0
    %vm4208 = vcmp.ge.f32.partialorder %v3568, 0.0
    %vm4209 = vcmp.ge.f32.partialorder %v3569, 0.0
    %vm4210 = vcmp.ge.f32.partialorder %v3570, 0.0
    %vm4211 = vcmp.ge.f32.partialorder %v3571, 0.0
    %vm4212 = vcmp.ge.f32.partialorder %v3572, 0.0
    %vm4213 = vcmp.ge.f32.partialorder %v3573, 0.0
    %vm4214 = vcmp.ge.f32.partialorder %v3574, 0.0
    %vm4215 = vcmp.ge.f32.partialorder %v3575, 0.0
    %vm4216 = vcmp.ge.f32.partialorder %v3576, 0.0
    %vm4217 = vcmp.ge.f32.partialorder %v3577, 0.0
    %vm4218 = vcmp.ge.f32.partialorder %v3578, 0.0
    %vm4219 = vcmp.ge.f32.partialorder %v3579, 0.0
    %vm4220 = vcmp.ge.f32.partialorder %v3580, 0.0
    %vm4221 = vcmp.ge.f32.partialorder %v3581, 0.0
    %vm4222 = vcmp.ge.f32.partialorder %v3582, 0.0
    %vm4223 = vcmp.ge.f32.partialorder %v3583, 0.0
    %vm4224 = vcmp.ge.f32.partialorder %v3584, 0.0
    %vm4225 = vcmp.ge.f32.partialorder %v3585, 0.0
    %vm4226 = vcmp.ge.f32.partialorder %v3586, 0.0
    %vm4227 = vcmp.ge.f32.partialorder %v3587, 0.0
    %vm4228 = vcmp.ge.f32.partialorder %v3588, 0.0
    %vm4229 = vcmp.ge.f32.partialorder %v3589, 0.0
    %vm4230 = vcmp.ge.f32.partialorder %v3590, 0.0
    %vm4231 = vcmp.ge.f32.partialorder %v3591, 0.0
    %vm4232 = vcmp.ge.f32.partialorder %v3592, 0.0
    %vm4233 = vcmp.ge.f32.partialorder %v3593, 0.0
    %vm4234 = vcmp.ge.f32.partialorder %v3594, 0.0
    %vm4235 = vcmp.ge.f32.partialorder %v3595, 0.0
    %vm4236 = vcmp.ge.f32.partialorder %v3596, 0.0
    %vm4237 = vcmp.ge.f32.partialorder %v3597, 0.0
    %vm4238 = vcmp.ge.f32.partialorder %v3598, 0.0
    %vm4239 = vcmp.ge.f32.partialorder %v3599, 0.0
    %vm4240 = vcmp.ge.f32.partialorder %v3600, 0.0
    %vm4241 = vcmp.ge.f32.partialorder %v3601, 0.0
    %vm4242 = vcmp.ge.f32.partialorder %v3602, 0.0
    %vm4243 = vcmp.ge.f32.partialorder %v3603, 0.0
    %vm4244 = vcmp.ge.f32.partialorder %v3604, 0.0
    %vm4245 = vcmp.ge.f32.partialorder %v3605, 0.0
    %vm4246 = vcmp.ge.f32.partialorder %v3606, 0.0
    %vm4247 = vcmp.ge.f32.partialorder %v3607, 0.0
    %vm4248 = vcmp.ge.f32.partialorder %v3608, 0.0
    %vm4249 = vcmp.ge.f32.partialorder %v3609, 0.0
    %vm4250 = vcmp.ge.f32.partialorder %v3610, 0.0
    %vm4251 = vcmp.ge.f32.partialorder %v3611, 0.0
    %vm4252 = vcmp.ge.f32.partialorder %v3612, 0.0
    %vm4253 = vcmp.ge.f32.partialorder %v3613, 0.0
    %vm4254 = vcmp.ge.f32.partialorder %v3614, 0.0
    %vm4255 = vcmp.ge.f32.partialorder %v3615, 0.0
    %vm4256 = vcmp.ge.f32.partialorder %v3616, 0.0
    %vm4257 = vcmp.ge.f32.partialorder %v3617, 0.0
    %vm4258 = vcmp.ge.f32.partialorder %v3618, 0.0
    %vm4259 = vcmp.ge.f32.partialorder %v3619, 0.0
    %vm4260 = vcmp.ge.f32.partialorder %v3620, 0.0
    %vm4261 = vcmp.ge.f32.partialorder %v3621, 0.0
    %vm4262 = vcmp.ge.f32.partialorder %v3622, 0.0
    %vm4263 = vcmp.ge.f32.partialorder %v3623, 0.0
    %vm4264 = vcmp.ge.f32.partialorder %v3624, 0.0
    %vm4265 = vcmp.ge.f32.partialorder %v3625, 0.0
    %vm4266 = vcmp.ge.f32.partialorder %v3626, 0.0
    %vm4267 = vcmp.ge.f32.partialorder %v3627, 0.0
    %vm4268 = vcmp.ge.f32.partialorder %v3628, 0.0
    %vm4269 = vcmp.ge.f32.partialorder %v3629, 0.0
    %vm4270 = vcmp.ge.f32.partialorder %v3630, 0.0
    %vm4271 = vcmp.ge.f32.partialorder %v3631, 0.0
    %vm4272 = vcmp.ge.f32.partialorder %v3632, 0.0
    %vm4273 = vcmp.ge.f32.partialorder %v3633, 0.0
    %vm4274 = vcmp.ge.f32.partialorder %v3634, 0.0
    %vm4275 = vcmp.ge.f32.partialorder %v3635, 0.0
    %vm4276 = vcmp.ge.f32.partialorder %v3636, 0.0
    %vm4277 = vcmp.ge.f32.partialorder %v3637, 0.0
    %vm4278 = vcmp.ge.f32.partialorder %v3638, 0.0
    %vm4279 = vcmp.ge.f32.partialorder %v3639, 0.0
    %vm4280 = vcmp.ge.f32.partialorder %v3640, 0.0
    %vm4281 = vcmp.ge.f32.partialorder %v3641, 0.0
    %vm4282 = vcmp.ge.f32.partialorder %v3642, 0.0
    %vm4283 = vcmp.ge.f32.partialorder %v3643, 0.0
    %vm4284 = vcmp.ge.f32.partialorder %v3644, 0.0
    %vm4285 = vcmp.ge.f32.partialorder %v3645, 0.0
    %vm4286 = vcmp.ge.f32.partialorder %v3646, 0.0
    %vm4287 = vcmp.ge.f32.partialorder %v3647, 0.0
    %vm4288 = vcmp.ge.f32.partialorder %v3648, 0.0
    %vm4289 = vcmp.ge.f32.partialorder %v3649, 0.0
    %vm4290 = vcmp.ge.f32.partialorder %v3650, 0.0
    %vm4291 = vcmp.ge.f32.partialorder %v3651, 0.0
    %vm4292 = vcmp.ge.f32.partialorder %v3652, 0.0
    %vm4293 = vcmp.ge.f32.partialorder %v3653, 0.0
    %vm4294 = vcmp.ge.f32.partialorder %v3654, 0.0
    %vm4295 = vcmp.ge.f32.partialorder %v3655, 0.0
    %vm4296 = vcmp.ge.f32.partialorder %v3656, 0.0
    %vm4297 = vcmp.ge.f32.partialorder %v3657, 0.0
    %vm4298 = vcmp.ge.f32.partialorder %v3658, 0.0
    %vm4299 = vcmp.ge.f32.partialorder %v3659, 0.0
    %vm4300 = vcmp.ge.f32.partialorder %v3660, 0.0
    %vm4301 = vcmp.ge.f32.partialorder %v3661, 0.0
    %vm4302 = vcmp.ge.f32.partialorder %v3662, 0.0
    %vm4303 = vcmp.ge.f32.partialorder %v3663, 0.0
    %vm4304 = vcmp.ge.f32.partialorder %v3664, 0.0
    %vm4305 = vcmp.ge.f32.partialorder %v3665, 0.0
    %vm4306 = vcmp.ge.f32.partialorder %v3666, 0.0
    %vm4307 = vcmp.ge.f32.partialorder %v3667, 0.0
    %vm4308 = vcmp.ge.f32.partialorder %v3668, 0.0
    %vm4309 = vcmp.ge.f32.partialorder %v3669, 0.0
    %vm4310 = vcmp.ge.f32.partialorder %v3670, 0.0
    %vm4311 = vcmp.ge.f32.partialorder %v3671, 0.0
    %vm4312 = vcmp.ge.f32.partialorder %v3672, 0.0
    %vm4313 = vcmp.ge.f32.partialorder %v3673, 0.0
    %vm4314 = vcmp.ge.f32.partialorder %v3674, 0.0
    %vm4315 = vcmp.ge.f32.partialorder %v3675, 0.0
    %vm4316 = vcmp.ge.f32.partialorder %v3676, 0.0
    %vm4317 = vcmp.ge.f32.partialorder %v3677, 0.0
    %vm4318 = vcmp.ge.f32.partialorder %v3678, 0.0
    %vm4319 = vcmp.ge.f32.partialorder %v3679, 0.0
    %vm4320 = vcmp.ge.f32.partialorder %v3680, 0.0
    %vm4321 = vcmp.ge.f32.partialorder %v3681, 0.0
    %vm4322 = vcmp.ge.f32.partialorder %v3682, 0.0
    %vm4323 = vcmp.ge.f32.partialorder %v3683, 0.0
    %vm4324 = vcmp.ge.f32.partialorder %v3684, 0.0
    %vm4325 = vcmp.ge.f32.partialorder %v3685, 0.0
    %vm4326 = vcmp.ge.f32.partialorder %v3686, 0.0
    %vm4327 = vcmp.ge.f32.partialorder %v3687, 0.0
    %vm4328 = vcmp.ge.f32.partialorder %v3688, 0.0
    %vm4329 = vcmp.ge.f32.partialorder %v3689, 0.0
    %vm4330 = vcmp.ge.f32.partialorder %v3690, 0.0
    %vm4331 = vcmp.ge.f32.partialorder %v3691, 0.0
    %vm4332 = vcmp.ge.f32.partialorder %v3692, 0.0
    %v4333 = vadd.f32 %v3950, 1.0
    %v4334 = vadd.f32 %v3952, 1.0
    %v4335 = vadd.f32 %v3954, 1.0
    %v4336 = vadd.f32 %v3956, 1.0
    %v4337 = vadd.f32 %v3958, 1.0
    %v4338 = vadd.f32 %v3960, 1.0
    %v4339 = vadd.f32 %v3962, 1.0
    %v4340 = vadd.f32 %v3964, 1.0
    %v4341 = vadd.f32 %v3966, 1.0
    %v4342 = vadd.f32 %v3968, 1.0
    %v4343 = vadd.f32 %v3970, 1.0
    %v4344 = vadd.f32 %v3972, 1.0
    %v4345 = vadd.f32 %v3974, 1.0
    %v4346 = vadd.f32 %v3976, 1.0
    %v4347 = vadd.f32 %v3978, 1.0
    %v4348 = vadd.f32 %v3980, 1.0
    %v4349 = vadd.f32 %v3982, 1.0
    %v4350 = vadd.f32 %v3984, 1.0
    %v4351 = vadd.f32 %v3986, 1.0
    %v4352 = vadd.f32 %v3988, 1.0
    %v4353 = vadd.f32 %v3990, 1.0
    %v4354 = vadd.f32 %v3992, 1.0
    %v4355 = vadd.f32 %v3994, 1.0
    %v4356 = vadd.f32 %v3996, 1.0
    %v4357 = vadd.f32 %v3998, 1.0
    %v4358 = vadd.f32 %v4000, 1.0
    %v4359 = vadd.f32 %v4002, 1.0
    %v4360 = vadd.f32 %v4004, 1.0
    %v4361 = vadd.f32 %v4006, 1.0
    %v4362 = vadd.f32 %v4008, 1.0
    %v4363 = vadd.f32 %v4010, 1.0
    %v4364 = vadd.f32 %v4012, 1.0
    %v4365 = vadd.f32 %v4014, 1.0
    %v4366 = vadd.f32 %v4016, 1.0
    %v4367 = vadd.f32 %v4018, 1.0
    %v4368 = vadd.f32 %v4020, 1.0
    %v4369 = vadd.f32 %v4022, 1.0
    %v4370 = vadd.f32 %v4024, 1.0
    %v4371 = vadd.f32 %v4026, 1.0
    %v4372 = vadd.f32 %v4028, 1.0
    %v4373 = vadd.f32 %v4030, 1.0
    %v4374 = vadd.f32 %v4032, 1.0
    %v4375 = vadd.f32 %v4034, 1.0
    %v4376 = vadd.f32 %v4036, 1.0
    %v4377 = vadd.f32 %v4038, 1.0
    %v4378 = vadd.f32 %v4040, 1.0
    %v4379 = vadd.f32 %v4042, 1.0
    %v4380 = vadd.f32 %v4044, 1.0
    %v4381 = vadd.f32 %v4046, 1.0
    %v4382 = vadd.f32 %v4048, 1.0
    %v4383 = vadd.f32 %v4050, 1.0
    %v4384 = vadd.f32 %v4052, 1.0
    %v4385 = vadd.f32 %v4054, 1.0
    %v4386 = vadd.f32 %v4056, 1.0
    %v4387 = vadd.f32 %v4058, 1.0
    %v4388 = vadd.f32 %v4060, 1.0
    %v4389 = vadd.f32 %v4062, 1.0
    %v4390 = vadd.f32 %v4064, 1.0
    %v4391 = vadd.f32 %v4066, 1.0
    %v4392 = vadd.f32 %v4068, 1.0
    %v4393 = vadd.f32 %v4070, 1.0
    %v4394 = vadd.f32 %v4072, 1.0
    %v4395 = vadd.f32 %v4074, 1.0
    %v4396 = vadd.f32 %v4076, 1.0
    %v4397 = vadd.f32 %v4078, 1.0
    %v4398 = vadd.f32 %v4080, 1.0
    %v4399 = vadd.f32 %v4082, 1.0
    %v4400 = vadd.f32 %v4084, 1.0
    %v4401 = vadd.f32 %v4086, 1.0
    %v4402 = vadd.f32 %v4088, 1.0
    %v4403 = vadd.f32 %v4090, 1.0
    %v4404 = vadd.f32 %v4092, 1.0
    %v4405 = vadd.f32 %v4094, 1.0
    %v4406 = vadd.f32 %v4096, 1.0
    %v4407 = vadd.f32 %v4098, 1.0
    %v4408 = vadd.f32 %v4100, 1.0
    %v4409 = vadd.f32 %v4102, 1.0
    %v4410 = vadd.f32 %v4104, 1.0
    %v4411 = vadd.f32 %v4106, 1.0
    %v4412 = vadd.f32 %v4108, 1.0
    %v4413 = vadd.f32 %v4110, 1.0
    %v4414 = vadd.f32 %v4112, 1.0
    %v4415 = vadd.f32 %v4114, 1.0
    %v4416 = vadd.f32 %v4116, 1.0
    %v4417 = vadd.f32 %v4118, 1.0
    %v4418 = vadd.f32 %v4120, 1.0
    %v4419 = vadd.f32 %v4122, 1.0
    %v4420 = vadd.f32 %v4124, 1.0
    %v4421 = vadd.f32 %v4126, 1.0
    %v4422 = vadd.f32 %v4128, 1.0
    %v4423 = vadd.f32 %v4130, 1.0
    %v4424 = vadd.f32 %v4132, 1.0
    %v4425 = vadd.f32 %v4134, 1.0
    %v4426 = vadd.f32 %v4136, 1.0
    %v4427 = vadd.f32 %v4138, 1.0
    %v4428 = vadd.f32 %v4140, 1.0
    %v4429 = vadd.f32 %v4142, 1.0
    %v4430 = vadd.f32 %v4144, 1.0
    %v4431 = vadd.f32 %v4146, 1.0
    %v4432 = vadd.f32 %v4148, 1.0
    %v4433 = vadd.f32 %v4150, 1.0
    %v4434 = vadd.f32 %v4152, 1.0
    %v4435 = vadd.f32 %v4154, 1.0
    %v4436 = vadd.f32 %v4156, 1.0
    %v4437 = vadd.f32 %v4158, 1.0
    %v4438 = vadd.f32 %v4160, 1.0
    %v4439 = vadd.f32 %v4162, 1.0
    %v4440 = vadd.f32 %v4164, 1.0
    %v4441 = vadd.f32 %v4166, 1.0
    %v4442 = vadd.f32 %v4168, 1.0
    %v4443 = vadd.f32 %v4170, 1.0
    %v4444 = vadd.f32 %v4172, 1.0
    %v4445 = vadd.f32 %v4174, 1.0
    %v4446 = vadd.f32 %v4176, 1.0
    %v4447 = vadd.f32 %v4178, 1.0
    %v4448 = vadd.f32 %v4180, 1.0
    %v4449 = vadd.f32 %v4182, 1.0
    %v4450 = vadd.f32 %v4184, 1.0
    %v4451 = vadd.f32 %v4186, 1.0
    %v4452 = vadd.f32 %v4188, 1.0
    %v4453 = vadd.f32 %v4190, 1.0
    %v4454 = vadd.f32 %v4192, 1.0
    %v4455 = vadd.f32 %v4194, 1.0
    %v4456 = vadd.f32 %v4196, 1.0
    %v4457 = vadd.f32 %v4198, 1.0
    %v4458 = vadd.f32 %v4200, 1.0
    %v4459 = vadd.f32 %v4202, 1.0
    %v4460 = vadd.f32 %v4204, 1.0
    %v4461 = vrcp.pop %v4333
    %v4462 = vmul.f32 1.0, %v4461
    %v4463 = vrcp.pop %v4334
    %v4464 = vmul.f32 1.0, %v4463
    %v4465 = vrcp.pop %v4335
    %v4466 = vmul.f32 1.0, %v4465
    %v4467 = vrcp.pop %v4336
    %v4468 = vmul.f32 1.0, %v4467
    %v4469 = vrcp.pop %v4337
    %v4470 = vmul.f32 1.0, %v4469
    %v4471 = vrcp.pop %v4338
    %v4472 = vmul.f32 1.0, %v4471
    %v4473 = vrcp.pop %v4339
    %v4474 = vmul.f32 1.0, %v4473
    %v4475 = vrcp.pop %v4340
    %v4476 = vmul.f32 1.0, %v4475
    %v4477 = vrcp.pop %v4341
    %v4478 = vmul.f32 1.0, %v4477
    %v4479 = vrcp.pop %v4342
    %v4480 = vmul.f32 1.0, %v4479
    %v4481 = vrcp.pop %v4343
    %v4482 = vmul.f32 1.0, %v4481
    %v4483 = vrcp.pop %v4344
    %v4484 = vmul.f32 1.0, %v4483
    %v4485 = vrcp.pop %v4345
    %v4486 = vmul.f32 1.0, %v4485
    %v4487 = vrcp.pop %v4346
    %v4488 = vmul.f32 1.0, %v4487
    %v4489 = vrcp.pop %v4347
    %v4490 = vmul.f32 1.0, %v4489
    %v4491 = vrcp.pop %v4348
    %v4492 = vmul.f32 1.0, %v4491
    %v4493 = vrcp.pop %v4349
    %v4494 = vmul.f32 1.0, %v4493
    %v4495 = vrcp.pop %v4350
    %v4496 = vmul.f32 1.0, %v4495
    %v4497 = vrcp.pop %v4351
    %v4498 = vmul.f32 1.0, %v4497
    %v4499 = vrcp.pop %v4352
    %v4500 = vmul.f32 1.0, %v4499
    %v4501 = vrcp.pop %v4353
    %v4502 = vmul.f32 1.0, %v4501
    %v4503 = vrcp.pop %v4354
    %v4504 = vmul.f32 1.0, %v4503
    %v4505 = vrcp.pop %v4355
    %v4506 = vmul.f32 1.0, %v4505
    %v4507 = vrcp.pop %v4356
    %v4508 = vmul.f32 1.0, %v4507
    %v4509 = vrcp.pop %v4357
    %v4510 = vmul.f32 1.0, %v4509
    %v4511 = vrcp.pop %v4358
    %v4512 = vmul.f32 1.0, %v4511
    %v4513 = vrcp.pop %v4359
    %v4514 = vmul.f32 1.0, %v4513
    %v4515 = vrcp.pop %v4360
    %v4516 = vmul.f32 1.0, %v4515
    %v4517 = vrcp.pop %v4361
    %v4518 = vmul.f32 1.0, %v4517
    %v4519 = vrcp.pop %v4362
    %v4520 = vmul.f32 1.0, %v4519
    %v4521 = vrcp.pop %v4363
    %v4522 = vmul.f32 1.0, %v4521
    %v4523 = vrcp.pop %v4364
    %v4524 = vmul.f32 1.0, %v4523
    %v4525 = vrcp.pop %v4365
    %v4526 = vmul.f32 1.0, %v4525
    %v4527 = vrcp.pop %v4366
    %v4528 = vmul.f32 1.0, %v4527
    %v4529 = vrcp.pop %v4367
    %v4530 = vmul.f32 1.0, %v4529
    %v4531 = vrcp.pop %v4368
    %v4532 = vmul.f32 1.0, %v4531
    %v4533 = vrcp.pop %v4369
    %v4534 = vmul.f32 1.0, %v4533
    %v4535 = vrcp.pop %v4370
    %v4536 = vmul.f32 1.0, %v4535
    %v4537 = vrcp.pop %v4371
    %v4538 = vmul.f32 1.0, %v4537
    %v4539 = vrcp.pop %v4372
    %v4540 = vmul.f32 1.0, %v4539
    %v4541 = vrcp.pop %v4373
    %v4542 = vmul.f32 1.0, %v4541
    %v4543 = vrcp.pop %v4374
    %v4544 = vmul.f32 1.0, %v4543
    %v4545 = vrcp.pop %v4375
    %v4546 = vmul.f32 1.0, %v4545
    %v4547 = vrcp.pop %v4376
    %v4548 = vmul.f32 1.0, %v4547
    %v4549 = vrcp.pop %v4377
    %v4550 = vmul.f32 1.0, %v4549
    %v4551 = vrcp.pop %v4378
    %v4552 = vmul.f32 1.0, %v4551
    %v4553 = vrcp.pop %v4379
    %v4554 = vmul.f32 1.0, %v4553
    %v4555 = vrcp.pop %v4380
    %v4556 = vmul.f32 1.0, %v4555
    %v4557 = vrcp.pop %v4381
    %v4558 = vmul.f32 1.0, %v4557
    %v4559 = vrcp.pop %v4382
    %v4560 = vmul.f32 1.0, %v4559
    %v4561 = vrcp.pop %v4383
    %v4562 = vmul.f32 1.0, %v4561
    %v4563 = vrcp.pop %v4384
    %v4564 = vmul.f32 1.0, %v4563
    %v4565 = vrcp.pop %v4385
    %v4566 = vmul.f32 1.0, %v4565
    %v4567 = vrcp.pop %v4386
    %v4568 = vmul.f32 1.0, %v4567
    %v4569 = vrcp.pop %v4387
    %v4570 = vmul.f32 1.0, %v4569
    %v4571 = vrcp.pop %v4388
    %v4572 = vmul.f32 1.0, %v4571
    %v4573 = vrcp.pop %v4389
    %v4574 = vmul.f32 1.0, %v4573
    %v4575 = vrcp.pop %v4390
    %v4576 = vmul.f32 1.0, %v4575
    %v4577 = vrcp.pop %v4391
    %v4578 = vmul.f32 1.0, %v4577
    %v4579 = vrcp.pop %v4392
    %v4580 = vmul.f32 1.0, %v4579
    %v4581 = vrcp.pop %v4393
    %v4582 = vmul.f32 1.0, %v4581
    %v4583 = vrcp.pop %v4394
    %v4584 = vmul.f32 1.0, %v4583
    %v4585 = vrcp.pop %v4395
    %v4586 = vmul.f32 1.0, %v4585
    %v4587 = vrcp.pop %v4396
    %v4588 = vmul.f32 1.0, %v4587
    %v4589 = vrcp.pop %v4397
    %v4590 = vmul.f32 1.0, %v4589
    %v4591 = vrcp.pop %v4398
    %v4592 = vmul.f32 1.0, %v4591
    %v4593 = vrcp.pop %v4399
    %v4594 = vmul.f32 1.0, %v4593
    %v4595 = vrcp.pop %v4400
    %v4596 = vmul.f32 1.0, %v4595
    %v4597 = vrcp.pop %v4401
    %v4598 = vmul.f32 1.0, %v4597
    %v4599 = vrcp.pop %v4402
    %v4600 = vmul.f32 1.0, %v4599
    %v4601 = vrcp.pop %v4403
    %v4602 = vmul.f32 1.0, %v4601
    %v4603 = vrcp.pop %v4404
    %v4604 = vmul.f32 1.0, %v4603
    %v4605 = vrcp.pop %v4405
    %v4606 = vmul.f32 1.0, %v4605
    %v4607 = vrcp.pop %v4406
    %v4608 = vmul.f32 1.0, %v4607
    %v4609 = vrcp.pop %v4407
    %v4610 = vmul.f32 1.0, %v4609
    %v4611 = vrcp.pop %v4408
    %v4612 = vmul.f32 1.0, %v4611
    %v4613 = vrcp.pop %v4409
    %v4614 = vmul.f32 1.0, %v4613
    %v4615 = vrcp.pop %v4410
    %v4616 = vmul.f32 1.0, %v4615
    %v4617 = vrcp.pop %v4411
    %v4618 = vmul.f32 1.0, %v4617
    %v4619 = vrcp.pop %v4412
    %v4620 = vmul.f32 1.0, %v4619
    %v4621 = vrcp.pop %v4413
    %v4622 = vmul.f32 1.0, %v4621
    %v4623 = vrcp.pop %v4414
    %v4624 = vmul.f32 1.0, %v4623
    %v4625 = vrcp.pop %v4415
    %v4626 = vmul.f32 1.0, %v4625
    %v4627 = vrcp.pop %v4416
    %v4628 = vmul.f32 1.0, %v4627
    %v4629 = vrcp.pop %v4417
    %v4630 = vmul.f32 1.0, %v4629
    %v4631 = vrcp.pop %v4418
    %v4632 = vmul.f32 1.0, %v4631
    %v4633 = vrcp.pop %v4419
    %v4634 = vmul.f32 1.0, %v4633
    %v4635 = vrcp.pop %v4420
    %v4636 = vmul.f32 1.0, %v4635
    %v4637 = vrcp.pop %v4421
    %v4638 = vmul.f32 1.0, %v4637
    %v4639 = vrcp.pop %v4422
    %v4640 = vmul.f32 1.0, %v4639
    %v4641 = vrcp.pop %v4423
    %v4642 = vmul.f32 1.0, %v4641
    %v4643 = vrcp.pop %v4424
    %v4644 = vmul.f32 1.0, %v4643
    %v4645 = vrcp.pop %v4425
    %v4646 = vmul.f32 1.0, %v4645
    %v4647 = vrcp.pop %v4426
    %v4648 = vmul.f32 1.0, %v4647
    %v4649 = vrcp.pop %v4427
    %v4650 = vmul.f32 1.0, %v4649
    %v4651 = vrcp.pop %v4428
    %v4652 = vmul.f32 1.0, %v4651
    %v4653 = vrcp.pop %v4429
    %v4654 = vmul.f32 1.0, %v4653
    %v4655 = vrcp.pop %v4430
    %v4656 = vmul.f32 1.0, %v4655
    %v4657 = vrcp.pop %v4431
    %v4658 = vmul.f32 1.0, %v4657
    %v4659 = vrcp.pop %v4432
    %v4660 = vmul.f32 1.0, %v4659
    %v4661 = vrcp.pop %v4433
    %v4662 = vmul.f32 1.0, %v4661
    %v4663 = vrcp.pop %v4434
    %v4664 = vmul.f32 1.0, %v4663
    %v4665 = vrcp.pop %v4435
    %v4666 = vmul.f32 1.0, %v4665
    %v4667 = vrcp.pop %v4436
    %v4668 = vmul.f32 1.0, %v4667
    %v4669 = vrcp.pop %v4437
    %v4670 = vmul.f32 1.0, %v4669
    %v4671 = vrcp.pop %v4438
    %v4672 = vmul.f32 1.0, %v4671
    %v4673 = vrcp.pop %v4439
    %v4674 = vmul.f32 1.0, %v4673
    %v4675 = vrcp.pop %v4440
    %v4676 = vmul.f32 1.0, %v4675
    %v4677 = vrcp.pop %v4441
    %v4678 = vmul.f32 1.0, %v4677
    %v4679 = vrcp.pop %v4442
    %v4680 = vmul.f32 1.0, %v4679
    %v4681 = vrcp.pop %v4443
    %v4682 = vmul.f32 1.0, %v4681
    %v4683 = vrcp.pop %v4444
    %v4684 = vmul.f32 1.0, %v4683
    %v4685 = vrcp.pop %v4445
    %v4686 = vmul.f32 1.0, %v4685
    %v4687 = vrcp.pop %v4446
    %v4688 = vmul.f32 1.0, %v4687
    %v4689 = vrcp.pop %v4447
    %v4690 = vmul.f32 1.0, %v4689
    %v4691 = vrcp.pop %v4448
    %v4692 = vmul.f32 1.0, %v4691
    %v4693 = vrcp.pop %v4449
    %v4694 = vmul.f32 1.0, %v4693
    %v4695 = vrcp.pop %v4450
    %v4696 = vmul.f32 1.0, %v4695
    %v4697 = vrcp.pop %v4451
    %v4698 = vmul.f32 1.0, %v4697
    %v4699 = vrcp.pop %v4452
    %v4700 = vmul.f32 1.0, %v4699
    %v4701 = vrcp.pop %v4453
    %v4702 = vmul.f32 1.0, %v4701
    %v4703 = vrcp.pop %v4454
    %v4704 = vmul.f32 1.0, %v4703
    %v4705 = vrcp.pop %v4455
    %v4706 = vmul.f32 1.0, %v4705
    %v4707 = vrcp.pop %v4456
    %v4708 = vmul.f32 1.0, %v4707
    %v4709 = vrcp.pop %v4457
    %v4710 = vmul.f32 1.0, %v4709
    %v4711 = vrcp.pop %v4458
    %v4712 = vmul.f32 1.0, %v4711
    %v4713 = vrcp.pop %v4459
    %v4714 = vmul.f32 1.0, %v4713
    %v4715 = vrcp.pop %v4460
    %v4716 = vmul.f32 1.0, %v4715
    %v4717 = vmul.f32 %v3950, %v4461
    %v4718 = vmul.f32 %v3952, %v4463
    %v4719 = vmul.f32 %v3954, %v4465
    %v4720 = vmul.f32 %v3956, %v4467
    %v4721 = vmul.f32 %v3958, %v4469
    %v4722 = vmul.f32 %v3960, %v4471
    %v4723 = vmul.f32 %v3962, %v4473
    %v4724 = vmul.f32 %v3964, %v4475
    %v4725 = vmul.f32 %v3966, %v4477
    %v4726 = vmul.f32 %v3968, %v4479
    %v4727 = vmul.f32 %v3970, %v4481
    %v4728 = vmul.f32 %v3972, %v4483
    %v4729 = vmul.f32 %v3974, %v4485
    %v4730 = vmul.f32 %v3976, %v4487
    %v4731 = vmul.f32 %v3978, %v4489
    %v4732 = vmul.f32 %v3980, %v4491
    %v4733 = vmul.f32 %v3982, %v4493
    %v4734 = vmul.f32 %v3984, %v4495
    %v4735 = vmul.f32 %v3986, %v4497
    %v4736 = vmul.f32 %v3988, %v4499
    %v4737 = vmul.f32 %v3990, %v4501
    %v4738 = vmul.f32 %v3992, %v4503
    %v4739 = vmul.f32 %v3994, %v4505
    %v4740 = vmul.f32 %v3996, %v4507
    %v4741 = vmul.f32 %v3998, %v4509
    %v4742 = vmul.f32 %v4000, %v4511
    %v4743 = vmul.f32 %v4002, %v4513
    %v4744 = vmul.f32 %v4004, %v4515
    %v4745 = vmul.f32 %v4006, %v4517
    %v4746 = vmul.f32 %v4008, %v4519
    %v4747 = vmul.f32 %v4010, %v4521
    %v4748 = vmul.f32 %v4012, %v4523
    %v4749 = vmul.f32 %v4014, %v4525
    %v4750 = vmul.f32 %v4016, %v4527
    %v4751 = vmul.f32 %v4018, %v4529
    %v4752 = vmul.f32 %v4020, %v4531
    %v4753 = vmul.f32 %v4022, %v4533
    %v4754 = vmul.f32 %v4024, %v4535
    %v4755 = vmul.f32 %v4026, %v4537
    %v4756 = vmul.f32 %v4028, %v4539
    %v4757 = vmul.f32 %v4030, %v4541
    %v4758 = vmul.f32 %v4032, %v4543
    %v4759 = vmul.f32 %v4034, %v4545
    %v4760 = vmul.f32 %v4036, %v4547
    %v4761 = vmul.f32 %v4038, %v4549
    %v4762 = vmul.f32 %v4040, %v4551
    %v4763 = vmul.f32 %v4042, %v4553
    %v4764 = vmul.f32 %v4044, %v4555
    %v4765 = vmul.f32 %v4046, %v4557
    %v4766 = vmul.f32 %v4048, %v4559
    %v4767 = vmul.f32 %v4050, %v4561
    %v4768 = vmul.f32 %v4052, %v4563
    %v4769 = vmul.f32 %v4054, %v4565
    %v4770 = vmul.f32 %v4056, %v4567
    %v4771 = vmul.f32 %v4058, %v4569
    %v4772 = vmul.f32 %v4060, %v4571
    %v4773 = vmul.f32 %v4062, %v4573
    %v4774 = vmul.f32 %v4064, %v4575
    %v4775 = vmul.f32 %v4066, %v4577
    %v4776 = vmul.f32 %v4068, %v4579
    %v4777 = vmul.f32 %v4070, %v4581
    %v4778 = vmul.f32 %v4072, %v4583
    %v4779 = vmul.f32 %v4074, %v4585
    %v4780 = vmul.f32 %v4076, %v4587
    %v4781 = vmul.f32 %v4078, %v4589
    %v4782 = vmul.f32 %v4080, %v4591
    %v4783 = vmul.f32 %v4082, %v4593
    %v4784 = vmul.f32 %v4084, %v4595
    %v4785 = vmul.f32 %v4086, %v4597
    %v4786 = vmul.f32 %v4088, %v4599
    %v4787 = vmul.f32 %v4090, %v4601
    %v4788 = vmul.f32 %v4092, %v4603
    %v4789 = vmul.f32 %v4094, %v4605
    %v4790 = vmul.f32 %v4096, %v4607
    %v4791 = vmul.f32 %v4098, %v4609
    %v4792 = vmul.f32 %v4100, %v4611
    %v4793 = vmul.f32 %v4102, %v4613
    %v4794 = vmul.f32 %v4104, %v4615
    %v4795 = vmul.f32 %v4106, %v4617
    %v4796 = vmul.f32 %v4108, %v4619
    %v4797 = vmul.f32 %v4110, %v4621
    %v4798 = vmul.f32 %v4112, %v4623
    %v4799 = vmul.f32 %v4114, %v4625
    %v4800 = vmul.f32 %v4116, %v4627
    %v4801 = vmul.f32 %v4118, %v4629
    %v4802 = vmul.f32 %v4120, %v4631
    %v4803 = vmul.f32 %v4122, %v4633
    %v4804 = vmul.f32 %v4124, %v4635
    %v4805 = vmul.f32 %v4126, %v4637
    %v4806 = vmul.f32 %v4128, %v4639
    %v4807 = vmul.f32 %v4130, %v4641
    %v4808 = vmul.f32 %v4132, %v4643
    %v4809 = vmul.f32 %v4134, %v4645
    %v4810 = vmul.f32 %v4136, %v4647
    %v4811 = vmul.f32 %v4138, %v4649
    %v4812 = vmul.f32 %v4140, %v4651
    %v4813 = vmul.f32 %v4142, %v4653
    %v4814 = vmul.f32 %v4144, %v4655
    %v4815 = vmul.f32 %v4146, %v4657
    %v4816 = vmul.f32 %v4148, %v4659
    %v4817 = vmul.f32 %v4150, %v4661
    %v4818 = vmul.f32 %v4152, %v4663
    %v4819 = vmul.f32 %v4154, %v4665
    %v4820 = vmul.f32 %v4156, %v4667
    %v4821 = vmul.f32 %v4158, %v4669
    %v4822 = vmul.f32 %v4160, %v4671
    %v4823 = vmul.f32 %v4162, %v4673
    %v4824 = vmul.f32 %v4164, %v4675
    %v4825 = vmul.f32 %v4166, %v4677
    %v4826 = vmul.f32 %v4168, %v4679
    %v4827 = vmul.f32 %v4170, %v4681
    %v4828 = vmul.f32 %v4172, %v4683
    %v4829 = vmul.f32 %v4174, %v4685
    %v4830 = vmul.f32 %v4176, %v4687
    %v4831 = vmul.f32 %v4178, %v4689
    %v4832 = vmul.f32 %v4180, %v4691
    %v4833 = vmul.f32 %v4182, %v4693
    %v4834 = vmul.f32 %v4184, %v4695
    %v4835 = vmul.f32 %v4186, %v4697
    %v4836 = vmul.f32 %v4188, %v4699
    %v4837 = vmul.f32 %v4190, %v4701
    %v4838 = vmul.f32 %v4192, %v4703
    %v4839 = vmul.f32 %v4194, %v4705
    %v4840 = vmul.f32 %v4196, %v4707
    %v4841 = vmul.f32 %v4198, %v4709
    %v4842 = vmul.f32 %v4200, %v4711
    %v4843 = vmul.f32 %v4202, %v4713
    %v4844 = vmul.f32 %v4204, %v4715
    %v4845 = vsel %vm4205, %v4462, %v4717
    %v4846 = vsel %vm4206, %v4464, %v4718
    %v4847 = vsel %vm4207, %v4466, %v4719
    %v4848 = vsel %vm4208, %v4468, %v4720
    %v4849 = vsel %vm4209, %v4470, %v4721
    %v4850 = vsel %vm4210, %v4472, %v4722
    %v4851 = vsel %vm4211, %v4474, %v4723
    %v4852 = vsel %vm4212, %v4476, %v4724
    %v4853 = vsel %vm4213, %v4478, %v4725
    %v4854 = vsel %vm4214, %v4480, %v4726
    %v4855 = vsel %vm4215, %v4482, %v4727
    %v4856 = vsel %vm4216, %v4484, %v4728
    %v4857 = vsel %vm4217, %v4486, %v4729
    %v4858 = vsel %vm4218, %v4488, %v4730
    %v4859 = vsel %vm4219, %v4490, %v4731
    %v4860 = vsel %vm4220, %v4492, %v4732
    %v4861 = vsel %vm4221, %v4494, %v4733
    %v4862 = vsel %vm4222, %v4496, %v4734
    %v4863 = vsel %vm4223, %v4498, %v4735
    %v4864 = vsel %vm4224, %v4500, %v4736
    %v4865 = vsel %vm4225, %v4502, %v4737
    %v4866 = vsel %vm4226, %v4504, %v4738
    %v4867 = vsel %vm4227, %v4506, %v4739
    %v4868 = vsel %vm4228, %v4508, %v4740
    %v4869 = vsel %vm4229, %v4510, %v4741
    %v4870 = vsel %vm4230, %v4512, %v4742
    %v4871 = vsel %vm4231, %v4514, %v4743
    %v4872 = vsel %vm4232, %v4516, %v4744
    %v4873 = vsel %vm4233, %v4518, %v4745
    %v4874 = vsel %vm4234, %v4520, %v4746
    %v4875 = vsel %vm4235, %v4522, %v4747
    %v4876 = vsel %vm4236, %v4524, %v4748
    %v4877 = vsel %vm4237, %v4526, %v4749
    %v4878 = vsel %vm4238, %v4528, %v4750
    %v4879 = vsel %vm4239, %v4530, %v4751
    %v4880 = vsel %vm4240, %v4532, %v4752
    %v4881 = vsel %vm4241, %v4534, %v4753
    %v4882 = vsel %vm4242, %v4536, %v4754
    %v4883 = vsel %vm4243, %v4538, %v4755
    %v4884 = vsel %vm4244, %v4540, %v4756
    %v4885 = vsel %vm4245, %v4542, %v4757
    %v4886 = vsel %vm4246, %v4544, %v4758
    %v4887 = vsel %vm4247, %v4546, %v4759
    %v4888 = vsel %vm4248, %v4548, %v4760
    %v4889 = vsel %vm4249, %v4550, %v4761
    %v4890 = vsel %vm4250, %v4552, %v4762
    %v4891 = vsel %vm4251, %v4554, %v4763
    %v4892 = vsel %vm4252, %v4556, %v4764
    %v4893 = vsel %vm4253, %v4558, %v4765
    %v4894 = vsel %vm4254, %v4560, %v4766
    %v4895 = vsel %vm4255, %v4562, %v4767
    %v4896 = vsel %vm4256, %v4564, %v4768
    %v4897 = vsel %vm4257, %v4566, %v4769
    %v4898 = vsel %vm4258, %v4568, %v4770
    %v4899 = vsel %vm4259, %v4570, %v4771
    %v4900 = vsel %vm4260, %v4572, %v4772
    %v4901 = vsel %vm4261, %v4574, %v4773
    %v4902 = vsel %vm4262, %v4576, %v4774
    %v4903 = vsel %vm4263, %v4578, %v4775
    %v4904 = vsel %vm4264, %v4580, %v4776
    %v4905 = vsel %vm4265, %v4582, %v4777
    %v4906 = vsel %vm4266, %v4584, %v4778
    %v4907 = vsel %vm4267, %v4586, %v4779
    %v4908 = vsel %vm4268, %v4588, %v4780
    %v4909 = vsel %vm4269, %v4590, %v4781
    %v4910 = vsel %vm4270, %v4592, %v4782
    %v4911 = vsel %vm4271, %v4594, %v4783
    %v4912 = vsel %vm4272, %v4596, %v4784
    %v4913 = vsel %vm4273, %v4598, %v4785
    %v4914 = vsel %vm4274, %v4600, %v4786
    %v4915 = vsel %vm4275, %v4602, %v4787
    %v4916 = vsel %vm4276, %v4604, %v4788
    %v4917 = vsel %vm4277, %v4606, %v4789
    %v4918 = vsel %vm4278, %v4608, %v4790
    %v4919 = vsel %vm4279, %v4610, %v4791
    %v4920 = vsel %vm4280, %v4612, %v4792
    %v4921 = vsel %vm4281, %v4614, %v4793
    %v4922 = vsel %vm4282, %v4616, %v4794
    %v4923 = vsel %vm4283, %v4618, %v4795
    %v4924 = vsel %vm4284, %v4620, %v4796
    %v4925 = vsel %vm4285, %v4622, %v4797
    %v4926 = vsel %vm4286, %v4624, %v4798
    %v4927 = vsel %vm4287, %v4626, %v4799
    %v4928 = vsel %vm4288, %v4628, %v4800
    %v4929 = vsel %vm4289, %v4630, %v4801
    %v4930 = vsel %vm4290, %v4632, %v4802
    %v4931 = vsel %vm4291, %v4634, %v4803
    %v4932 = vsel %vm4292, %v4636, %v4804
    %v4933 = vsel %vm4293, %v4638, %v4805
    %v4934 = vsel %vm4294, %v4640, %v4806
    %v4935 = vsel %vm4295, %v4642, %v4807
    %v4936 = vsel %vm4296, %v4644, %v4808
    %v4937 = vsel %vm4297, %v4646, %v4809
    %v4938 = vsel %vm4298, %v4648, %v4810
    %v4939 = vsel %vm4299, %v4650, %v4811
    %v4940 = vsel %vm4300, %v4652, %v4812
    %v4941 = vsel %vm4301, %v4654, %v4813
    %v4942 = vsel %vm4302, %v4656, %v4814
    %v4943 = vsel %vm4303, %v4658, %v4815
    %v4944 = vsel %vm4304, %v4660, %v4816
    %v4945 = vsel %vm4305, %v4662, %v4817
    %v4946 = vsel %vm4306, %v4664, %v4818
    %v4947 = vsel %vm4307, %v4666, %v4819
    %v4948 = vsel %vm4308, %v4668, %v4820
    %v4949 = vsel %vm4309, %v4670, %v4821
    %v4950 = vsel %vm4310, %v4672, %v4822
    %v4951 = vsel %vm4311, %v4674, %v4823
    %v4952 = vsel %vm4312, %v4676, %v4824
    %v4953 = vsel %vm4313, %v4678, %v4825
    %v4954 = vsel %vm4314, %v4680, %v4826
    %v4955 = vsel %vm4315, %v4682, %v4827
    %v4956 = vsel %vm4316, %v4684, %v4828
    %v4957 = vsel %vm4317, %v4686, %v4829
    %v4958 = vsel %vm4318, %v4688, %v4830
    %v4959 = vsel %vm4319, %v4690, %v4831
    %v4960 = vsel %vm4320, %v4692, %v4832
    %v4961 = vsel %vm4321, %v4694, %v4833
    %v4962 = vsel %vm4322, %v4696, %v4834
    %v4963 = vsel %vm4323, %v4698, %v4835
    %v4964 = vsel %vm4324, %v4700, %v4836
    %v4965 = vsel %vm4325, %v4702, %v4837
    %v4966 = vsel %vm4326, %v4704, %v4838
    %v4967 = vsel %vm4327, %v4706, %v4839
    %v4968 = vsel %vm4328, %v4708, %v4840
    %v4969 = vsel %vm4329, %v4710, %v4841
    %v4970 = vsel %vm4330, %v4712, %v4842
    %v4971 = vsel %vm4331, %v4714, %v4843
    %v4972 = vsel %vm4332, %v4716, %v4844
    %4973 = vst.msk [vmem:[%s5] sm:$0xff] %vm3298, %v4845
    %4974 = vst.msk [vmem:[%s5 + $0x8] sm:$0xff] %vm3298, %v4846
    %4975 = vst.msk [vmem:[%s5 + $0x10] sm:$0xff] %vm3298, %v4847
    %4976 = vst.msk [vmem:[%s5 + $0x18] sm:$0xff] %vm3298, %v4848
    %4977 = vst.msk [vmem:[%s5 + $0x20] sm:$0xff] %vm3298, %v4849
    %4978 = vst.msk [vmem:[%s5 + $0x28] sm:$0xff] %vm3298, %v4850
    %4979 = vst.msk [vmem:[%s5 + $0x30] sm:$0xff] %vm3298, %v4851
    %4980 = vst.msk [vmem:[%s5 + $0x38] sm:$0xff] %vm3298, %v4852
    %4981 = vst.msk [vmem:[%s5 + $0x40] sm:$0xff] %vm3298, %v4853
    %4982 = vst.msk [vmem:[%s5 + $0x48] sm:$0xff] %vm3298, %v4854
    %4983 = vst.msk [vmem:[%s5 + $0x50] sm:$0xff] %vm3298, %v4855
    %4984 = vst.msk [vmem:[%s5 + $0x58] sm:$0xff] %vm3298, %v4856
    %4985 = vst.msk [vmem:[%s5 + $0x60] sm:$0xff] %vm3298, %v4857
    %4986 = vst.msk [vmem:[%s5 + $0x68] sm:$0xff] %vm3298, %v4858
    %4987 = vst.msk [vmem:[%s5 + $0x70] sm:$0xff] %vm3298, %v4859
    %4988 = vst.msk [vmem:[%s5 + $0x78] sm:$0xff] %vm3298, %v4860
    %4989 = vst.msk [vmem:[%s5 + $0x80] sm:$0xff] %vm3298, %v4861
    %4990 = vst.msk [vmem:[%s5 + $0x88] sm:$0xff] %vm3298, %v4862
    %4991 = vst.msk [vmem:[%s5 + $0x90] sm:$0xff] %vm3298, %v4863
    %4992 = vst.msk [vmem:[%s5 + $0x98] sm:$0xff] %vm3298, %v4864
    %4993 = vst.msk [vmem:[%s5 + $0xa0] sm:$0xff] %vm3298, %v4865
    %4994 = vst.msk [vmem:[%s5 + $0xa8] sm:$0xff] %vm3298, %v4866
    %4995 = vst.msk [vmem:[%s5 + $0xb0] sm:$0xff] %vm3298, %v4867
    %4996 = vst.msk [vmem:[%s5 + $0xb8] sm:$0xff] %vm3298, %v4868
    %4997 = vst.msk [vmem:[%s5 + $0xc0] sm:$0xff] %vm3298, %v4869
    %4998 = vst.msk [vmem:[%s5 + $0xc8] sm:$0xff] %vm3298, %v4870
    %4999 = vst.msk [vmem:[%s5 + $0xd0] sm:$0xff] %vm3298, %v4871
    %5000 = vst.msk [vmem:[%s5 + $0xd8] sm:$0xff] %vm3298, %v4872
    %5001 = vst.msk [vmem:[%s5 + $0xe0] sm:$0xff] %vm3298, %v4873
    %5002 = vst.msk [vmem:[%s5 + $0xe8] sm:$0xff] %vm3298, %v4874
    %5003 = vst.msk [vmem:[%s5 + $0xf0] sm:$0xff] %vm3298, %v4875
    %5004 = vst.msk [vmem:[%s5 + $0xf8] sm:$0xff] %vm3298, %v4876
    %5005 = vst.msk [vmem:[%s5 + $0x100] sm:$0xff] %vm3298, %v4877
    %5006 = vst.msk [vmem:[%s5 + $0x108] sm:$0xff] %vm3298, %v4878
    %5007 = vst.msk [vmem:[%s5 + $0x110] sm:$0xff] %vm3298, %v4879
    %5008 = vst.msk [vmem:[%s5 + $0x118] sm:$0xff] %vm3298, %v4880
    %5009 = vst.msk [vmem:[%s5 + $0x120] sm:$0xff] %vm3298, %v4881
    %5010 = vst.msk [vmem:[%s5 + $0x128] sm:$0xff] %vm3298, %v4882
    %5011 = vst.msk [vmem:[%s5 + $0x130] sm:$0xff] %vm3298, %v4883
    %5012 = vst.msk [vmem:[%s5 + $0x138] sm:$0xff] %vm3298, %v4884
    %5013 = vst.msk [vmem:[%s5 + $0x140] sm:$0xff] %vm3298, %v4885
    %5014 = vst.msk [vmem:[%s5 + $0x148] sm:$0xff] %vm3298, %v4886
    %5015 = vst.msk [vmem:[%s5 + $0x150] sm:$0xff] %vm3298, %v4887
    %5016 = vst.msk [vmem:[%s5 + $0x158] sm:$0xff] %vm3298, %v4888
    %5017 = vst.msk [vmem:[%s5 + $0x160] sm:$0xff] %vm3298, %v4889
    %5018 = vst.msk [vmem:[%s5 + $0x168] sm:$0xff] %vm3298, %v4890
    %5019 = vst.msk [vmem:[%s5 + $0x170] sm:$0xff] %vm3298, %v4891
    %5020 = vst.msk [vmem:[%s5 + $0x178] sm:$0xff] %vm3298, %v4892
    %5021 = vst.msk [vmem:[%s5 + $0x180] sm:$0xff] %vm3298, %v4893
    %5022 = vst.msk [vmem:[%s5 + $0x188] sm:$0xff] %vm3298, %v4894
    %5023 = vst.msk [vmem:[%s5 + $0x190] sm:$0xff] %vm3298, %v4895
    %5024 = vst.msk [vmem:[%s5 + $0x198] sm:$0xff] %vm3298, %v4896
    %5025 = vst.msk [vmem:[%s5 + $0x1a0] sm:$0xff] %vm3298, %v4897
    %5026 = vst.msk [vmem:[%s5 + $0x1a8] sm:$0xff] %vm3298, %v4898
    %5027 = vst.msk [vmem:[%s5 + $0x1b0] sm:$0xff] %vm3298, %v4899
    %5028 = vst.msk [vmem:[%s5 + $0x1b8] sm:$0xff] %vm3298, %v4900
    %5029 = vst.msk [vmem:[%s5 + $0x1c0] sm:$0xff] %vm3298, %v4901
    %5030 = vst.msk [vmem:[%s5 + $0x1c8] sm:$0xff] %vm3298, %v4902
    %5031 = vst.msk [vmem:[%s5 + $0x1d0] sm:$0xff] %vm3298, %v4903
    %5032 = vst.msk [vmem:[%s5 + $0x1d8] sm:$0xff] %vm3298, %v4904
    %5033 = vst.msk [vmem:[%s5 + $0x1e0] sm:$0xff] %vm3298, %v4905
    %5034 = vst.msk [vmem:[%s5 + $0x1e8] sm:$0xff] %vm3298, %v4906
    %5035 = vst.msk [vmem:[%s5 + $0x1f0] sm:$0xff] %vm3298, %v4907
    %5036 = vst.msk [vmem:[%s5 + $0x1f8] sm:$0xff] %vm3298, %v4908
    %5037 = vst.msk [vmem:[%s5 + $0x200] sm:$0xff] %vm3298, %v4909
    %5038 = vst.msk [vmem:[%s5 + $0x208] sm:$0xff] %vm3298, %v4910
    %5039 = vst.msk [vmem:[%s5 + $0x210] sm:$0xff] %vm3298, %v4911
    %5040 = vst.msk [vmem:[%s5 + $0x218] sm:$0xff] %vm3298, %v4912
    %5041 = vst.msk [vmem:[%s5 + $0x220] sm:$0xff] %vm3298, %v4913
    %5042 = vst.msk [vmem:[%s5 + $0x228] sm:$0xff] %vm3298, %v4914
    %5043 = vst.msk [vmem:[%s5 + $0x230] sm:$0xff] %vm3298, %v4915
    %5044 = vst.msk [vmem:[%s5 + $0x238] sm:$0xff] %vm3298, %v4916
    %5045 = vst.msk [vmem:[%s5 + $0x240] sm:$0xff] %vm3298, %v4917
    %5046 = vst.msk [vmem:[%s5 + $0x248] sm:$0xff] %vm3298, %v4918
    %5047 = vst.msk [vmem:[%s5 + $0x250] sm:$0xff] %vm3298, %v4919
    %5048 = vst.msk [vmem:[%s5 + $0x258] sm:$0xff] %vm3298, %v4920
    %5049 = vst.msk [vmem:[%s5 + $0x260] sm:$0xff] %vm3298, %v4921
    %5050 = vst.msk [vmem:[%s5 + $0x268] sm:$0xff] %vm3298, %v4922
    %5051 = vst.msk [vmem:[%s5 + $0x270] sm:$0xff] %vm3298, %v4923
    %5052 = vst.msk [vmem:[%s5 + $0x278] sm:$0xff] %vm3298, %v4924
    %5053 = vst.msk [vmem:[%s5 + $0x280] sm:$0xff] %vm3298, %v4925
    %5054 = vst.msk [vmem:[%s5 + $0x288] sm:$0xff] %vm3298, %v4926
    %5055 = vst.msk [vmem:[%s5 + $0x290] sm:$0xff] %vm3298, %v4927
    %5056 = vst.msk [vmem:[%s5 + $0x298] sm:$0xff] %vm3298, %v4928
    %5057 = vst.msk [vmem:[%s5 + $0x2a0] sm:$0xff] %vm3298, %v4929
    %5058 = vst.msk [vmem:[%s5 + $0x2a8] sm:$0xff] %vm3298, %v4930
    %5059 = vst.msk [vmem:[%s5 + $0x2b0] sm:$0xff] %vm3298, %v4931
    %5060 = vst.msk [vmem:[%s5 + $0x2b8] sm:$0xff] %vm3298, %v4932
    %5061 = vst.msk [vmem:[%s5 + $0x2c0] sm:$0xff] %vm3298, %v4933
    %5062 = vst.msk [vmem:[%s5 + $0x2c8] sm:$0xff] %vm3298, %v4934
    %5063 = vst.msk [vmem:[%s5 + $0x2d0] sm:$0xff] %vm3298, %v4935
    %5064 = vst.msk [vmem:[%s5 + $0x2d8] sm:$0xff] %vm3298, %v4936
    %5065 = vst.msk [vmem:[%s5 + $0x2e0] sm:$0xff] %vm3298, %v4937
    %5066 = vst.msk [vmem:[%s5 + $0x2e8] sm:$0xff] %vm3298, %v4938
    %5067 = vst.msk [vmem:[%s5 + $0x2f0] sm:$0xff] %vm3298, %v4939
    %5068 = vst.msk [vmem:[%s5 + $0x2f8] sm:$0xff] %vm3298, %v4940
    %5069 = vst.msk [vmem:[%s5 + $0x300] sm:$0xff] %vm3298, %v4941
    %5070 = vst.msk [vmem:[%s5 + $0x308] sm:$0xff] %vm3298, %v4942
    %5071 = vst.msk [vmem:[%s5 + $0x310] sm:$0xff] %vm3298, %v4943
    %5072 = vst.msk [vmem:[%s5 + $0x318] sm:$0xff] %vm3298, %v4944
    %5073 = vst.msk [vmem:[%s5 + $0x320] sm:$0xff] %vm3298, %v4945
    %5074 = vst.msk [vmem:[%s5 + $0x328] sm:$0xff] %vm3298, %v4946
    %5075 = vst.msk [vmem:[%s5 + $0x330] sm:$0xff] %vm3298, %v4947
    %5076 = vst.msk [vmem:[%s5 + $0x338] sm:$0xff] %vm3298, %v4948
    %5077 = vst.msk [vmem:[%s5 + $0x340] sm:$0xff] %vm3298, %v4949
    %5078 = vst.msk [vmem:[%s5 + $0x348] sm:$0xff] %vm3298, %v4950
    %5079 = vst.msk [vmem:[%s5 + $0x350] sm:$0xff] %vm3298, %v4951
    %5080 = vst.msk [vmem:[%s5 + $0x358] sm:$0xff] %vm3298, %v4952
    %5081 = vst.msk [vmem:[%s5 + $0x360] sm:$0xff] %vm3298, %v4953
    %5082 = vst.msk [vmem:[%s5 + $0x368] sm:$0xff] %vm3298, %v4954
    %5083 = vst.msk [vmem:[%s5 + $0x370] sm:$0xff] %vm3298, %v4955
    %5084 = vst.msk [vmem:[%s5 + $0x378] sm:$0xff] %vm3298, %v4956
    %5085 = vst.msk [vmem:[%s5 + $0x380] sm:$0xff] %vm3298, %v4957
    %5086 = vst.msk [vmem:[%s5 + $0x388] sm:$0xff] %vm3298, %v4958
    %5087 = vst.msk [vmem:[%s5 + $0x390] sm:$0xff] %vm3298, %v4959
    %5088 = vst.msk [vmem:[%s5 + $0x398] sm:$0xff] %vm3298, %v4960
    %5089 = vst.msk [vmem:[%s5 + $0x3a0] sm:$0xff] %vm3298, %v4961
    %5090 = vst.msk [vmem:[%s5 + $0x3a8] sm:$0xff] %vm3298, %v4962
    %5091 = vst.msk [vmem:[%s5 + $0x3b0] sm:$0xff] %vm3298, %v4963
    %5092 = vst.msk [vmem:[%s5 + $0x3b8] sm:$0xff] %vm3298, %v4964
    %5093 = vst.msk [vmem:[%s5 + $0x3c0] sm:$0xff] %vm3298, %v4965
    %5094 = vst.msk [vmem:[%s5 + $0x3c8] sm:$0xff] %vm3298, %v4966
    %5095 = vst.msk [vmem:[%s5 + $0x3d0] sm:$0xff] %vm3298, %v4967
    %5096 = vst.msk [vmem:[%s5 + $0x3d8] sm:$0xff] %vm3298, %v4968
    %5097 = vst.msk [vmem:[%s5 + $0x3e0] sm:$0xff] %vm3298, %v4969
    %5098 = vst.msk [vmem:[%s5 + $0x3e8] sm:$0xff] %vm3298, %v4970
    %5099 = vst.msk [vmem:[%s5 + $0x3f0] sm:$0xff] %vm3298, %v4971
    %5100 = vst.msk [vmem:[%s5 + $0x3f8] sm:$0xff] %vm3298, %v4972
  $region29: #{vae_forward.13} parent=0 // pred_fallthru
    _
  // Predicated region
  $region30: #{vae_forward.13} parent=0 // pred_check
    _
  $region31: #{vae_forward.13} parent=0 // pred_check_branch
    %5102 = sbr.rel (0) target = $region33
  $region32: #{vae_forward.13} parent=0 // pred_region
    _
  $region33: #{vae_forward.13} parent=0 // pred_fallthru
    _
  // Predicated region
  $region34: #{vae_forward.13} parent=0 // pred_check
    _
  $region35: #{vae_forward.13} parent=0 // pred_check_branch
    %5104 = sbr.rel (0) target = $region37
  $region36: #{vae_forward.13} parent=0 // pred_region
    _
  $region37: #{vae_forward.13} parent=0 // pred_fallthru
    _

</llo_original>
